<compile_context>
chip_gen: v7x
topology: tpu7x:2x2x1
jax: 0.10.0
libtpu: 0.0.40
codegen_flags: <defaults>
</compile_context>

<pallas_src>
import math

import jax
import jax.numpy as jnp
import numpy as np
from jax.experimental import pallas as pl
from jax.experimental.pallas import tpu as pltpu

# ---------------- network config ----------------
D_IN = 3
D_OUT = 33          # 1 sdf value + 32 feature channels
D_HIDDEN = 32
N_LAYERS = 8
SKIP_IN = (4,)
BIAS_INIT = 0.5
SCALE = 1.0
INSIDE_OUTSIDE = False

DIMS = [D_IN] + [D_HIDDEN] * N_LAYERS + [D_OUT]   # len = N_LAYERS + 2
NUM_LAYERS = len(DIMS)                            # == 10; linear layers l = 0..8

D_IN_PAD = 8          # input rows padded 3 -> 8 (sublane multiple)
D_OUT_PAD = 40        # output rows padded 33 -> 40 (sublane multiple)
MAX_TILE_N = 8192     # points per grid step (lane axis); multiple of 128
VMEM_LIMIT_BYTES = 32 * 1024 * 1024


def _round_up(x, m):
    return ((x + m - 1) // m) * m


def _cdiv(a, b):
    return (a + b - 1) // b


def _dot(a, b):
    # f32 x f32 MXU matmul; HIGHEST forbids any bf16 downcast so the kernel matches the
    # torch (full f32) semantics.
    return jnp.dot(a, b, preferred_element_type=jnp.float32,
                   precision=jax.lax.Precision.HIGHEST)


def _softplus_beta100(x):
    # PyTorch nn.Softplus(beta=100, threshold=20), max-form (see header).
    bx = 100.0 * x
    return jnp.maximum(jnp.log(1.0 + jnp.exp(jnp.minimum(bx, 20.0))) * 0.01, x)


# ---------------- kernel ----------------
def sdf_mlp_kernel(x_ref, win_ref, wh_ref, bh_ref, wl_ref, bl_ref, o_ref):
    """Whole SDF MLP for one tile of points, features-on-sublanes / batch-on-lanes.

    x_ref  : (8, T)        padded input points (rows 0..2 = xyz, rest zero)
    win_ref: (2, 32, 8)    [W0 | W4_input-part * 1/sqrt(2)]   (out, in) orientation
    wh_ref : (7, 32, 32)   [W1, W2, W3, W4_hidden-part*1/sqrt2, W5, W6, W7]
    bh_ref : (8, 32, 1)    [b0 .. b7]
    wl_ref : (40, 32)      W8 padded (rows 33..39 zero)
    bl_ref : (40, 1)       b8 padded
    o_ref  : (40, T)
    """
    xin = x_ref[...]                                           # (8, T)
    if SCALE != 1.0:                                           # trace-time guard
        xin = xin * SCALE

    # layer 0
    h = _dot(win_ref[0], xin) + bh_ref[0]
    h = _softplus_beta100(h)

    # layers 1..3 (layer 3's 29 real output rows are zero-padded to 32; the padded rows
    # hold softplus(0) but are killed by zero columns 29..31 in the layer-4 hidden weight)
    for l in range(1, 4):
        h = _dot(wh_ref[l - 1], h) + bh_ref[l]
        h = _softplus_beta100(h)

    # layer 4 (skip): cat([h, inputs])/sqrt(2) @ W4  ==  W4_h@h + W4_in@inputs
    # with 1/sqrt(2) folded into both weight halves on the host.
    h = _dot(wh_ref[3], h) + _dot(win_ref[1], xin) + bh_ref[4]
    h = _softplus_beta100(h)

    # layers 5..7
    for l in range(5, 8):
        h = _dot(wh_ref[l - 1], h) + bh_ref[l]
        h = _softplus_beta100(h)

    # layer 8: final linear, no activation
    out = _dot(wl_ref[...], h) + bl_ref[...]

    # torch: cat([x[..., :1] / scale, x[..., 1:]], -1) -> identity when SCALE == 1
    if SCALE != 1.0:
        row = jax.lax.broadcasted_iota(jnp.int32, (D_OUT_PAD, 1), 0)
        out = out * jnp.where(row == 0, 1.0 / SCALE, 1.0)

    o_ref[...] = out


# ---------------- parameter init & packing ----------------
def init_params(key):
    """Geometric init (multires=0 path). Weights stored as (out_dim, in_dim), torch-style."""
    params = []
    for l in range(NUM_LAYERS - 1):
        if l + 1 in SKIP_IN:
            out_dim = DIMS[l + 1] - DIMS[0]
        else:
            out_dim = DIMS[l + 1]
        in_dim = DIMS[l]
        key, sub = jax.random.split(key)
        if l == NUM_LAYERS - 2:
            mean = math.sqrt(math.pi) / math.sqrt(DIMS[l])
            if INSIDE_OUTSIDE:
                mean, b_val = -mean, BIAS_INIT
            else:
                b_val = -BIAS_INIT
            w = mean + 1e-4 * jax.random.normal(sub, (out_dim, in_dim), jnp.float32)
            b = jnp.full((out_dim,), b_val, jnp.float32)
        else:
            std = math.sqrt(2.0) / math.sqrt(out_dim)
            w = std * jax.random.normal(sub, (out_dim, in_dim), jnp.float32)
            b = jnp.zeros((out_dim,), jnp.float32)
        params.append((w, b))
    return params


def pack_params(params):
    """Pack/pad the 9 (W, b) pairs into the 5 slabs the kernel consumes."""
    inv_sqrt2 = 1.0 / math.sqrt(2.0)
    w_in = np.zeros((2, D_HIDDEN, D_IN_PAD), np.float32)
    w_h = np.zeros((7, D_HIDDEN, D_HIDDEN), np.float32)
    b_h = np.zeros((8, D_HIDDEN, 1), np.float32)
    w_l = np.zeros((D_OUT_PAD, D_HIDDEN), np.float32)
    b_l = np.zeros((D_OUT_PAD, 1), np.float32)

    # layer 0: (32, 3) applied to the 8-row zero-padded input
    W0, b0 = params[0]
    w_in[0, :, :D_IN] = np.asarray(W0)
    b_h[0, :, 0] = np.asarray(b0)

    # layers 1..3 (layer 3 has 29 output rows; padding rows stay zero)
    for l in range(1, 4):
        W, b = params[l]
        W = np.asarray(W)
        w_h[l - 1, :W.shape[0], :W.shape[1]] = W
        b_h[l, :W.shape[0], 0] = np.asarray(b)

    # layer 4 (skip): split into hidden / input parts, fold 1/sqrt(2).
    # Columns 29..31 of the hidden part MUST stay zero (they face the softplus(0) pad rows).
    W4, b4 = params[4]
    W4 = np.asarray(W4)                       # (32, 32): cols 0..28 -> h, cols 29..31 -> inputs
    n_h = DIMS[4] - DIMS[0]                   # 29
    w_h[3, :, :n_h] = W4[:, :n_h] * inv_sqrt2
    w_in[1, :, :D_IN] = W4[:, n_h:] * inv_sqrt2
    b_h[4, :, 0] = np.asarray(b4)

    # layers 5..7
    for l in range(5, 8):
        W, b = params[l]
        w_h[l - 1] = np.asarray(W)
        b_h[l, :, 0] = np.asarray(b)

    # layer 8 (final)
    W8, b8 = params[8]
    w_l[:D_OUT, :] = np.asarray(W8)
    b_l[:D_OUT, 0] = np.asarray(b8)

    return (jnp.asarray(w_in), jnp.asarray(w_h), jnp.asarray(b_h),
            jnp.asarray(w_l), jnp.asarray(b_l))


# ---------------- tiling ----------------
def _choose_tiling(n, max_tile_n):
    """Pick (tile_n, n_pad): tile_n a multiple of 128, and >= 2 grid steps whenever there
    are >= 2 full 128-lane tiles (v7x megacore occupancy; harmless on v5e/v6e)."""
    n_lane = _round_up(max(n, 1), 128)
    num_tiles = _cdiv(n_lane, max_tile_n)
    if n_lane >= 256:
        num_tiles = max(num_tiles, 2)
    tile_n = _round_up(_cdiv(n_lane, num_tiles), 128)
    tile_n = min(tile_n, max(_round_up(max_tile_n, 128), 128))
    n_pad = _round_up(n_lane, tile_n)
    assert tile_n % 128 == 0 and n_pad % tile_n == 0
    return tile_n, n_pad


# ---------------- pallas wrappers ----------------
def _sdf_forward_padded(xt, packed, tile_n):
    """xt: (8, n_pad) feature-major padded points -> (40, n_pad) padded outputs."""
    w_in, w_h, b_h, w_l, b_l = packed
    n_pad = xt.shape[1]

    # advisory cost estimate (per-point matmul MACs and transcendentals)
    macs_per_point = (32 * 3 + 3 * 32 * 32 + 29 * 32        # L0, L1-2, L3
                      + 32 * 29 + 32 * 3                    # L4 skip (two dots)
                      + 3 * 32 * 32 + 33 * 32)              # L5-7, L8
    cost = pl.CostEstimate(
        flops=int(2 * macs_per_point * n_pad),
        transcendentals=int(2 * 8 * 32 * n_pad),            # exp + log per softplus elem
        bytes_accessed=int(4 * (D_IN_PAD + D_OUT_PAD) * n_pad
                           + 4 * (w_in.size + w_h.size + b_h.size + w_l.size + b_l.size)),
    )

    return pl.pallas_call(
        sdf_mlp_kernel,
        out_shape=jax.ShapeDtypeStruct((D_OUT_PAD, n_pad), jnp.float32),
        grid_spec=pltpu.PrefetchScalarGridSpec(
            num_scalar_prefetch=0,
            grid=(n_pad // tile_n,),
            in_specs=[
                pl.BlockSpec((D_IN_PAD, tile_n), lambda i: (0, i)),    # x tile
                pl.BlockSpec(w_in.shape, lambda i: (0, 0, 0)),         # resident weight slabs
                pl.BlockSpec(w_h.shape, lambda i: (0, 0, 0)),
                pl.BlockSpec(b_h.shape, lambda i: (0, 0, 0)),
                pl.BlockSpec(w_l.shape, lambda i: (0, 0)),
                pl.BlockSpec(b_l.shape, lambda i: (0, 0)),
            ],
            out_specs=pl.BlockSpec((D_OUT_PAD, tile_n), lambda i: (0, i)),
        ),
        compiler_params=pltpu.CompilerParams(
            dimension_semantics=("parallel",),
            vmem_limit_bytes=VMEM_LIMIT_BYTES,
        ),
        cost_estimate=cost,
    )(xt, w_in, w_h, b_h, w_l, b_l)


def sdf_forward_pallas_fm(x_fm, packed, max_tile_n=MAX_TILE_N):
    """Feature-major entry: x_fm (3, N) -> (33, N) [sdf; features].
    Use this end-to-end to avoid the (N,3)<->(3,N)/(N,33) HBM layout passes."""
    d, n = x_fm.shape
    tile_n, n_pad = _choose_tiling(n, max_tile_n)
    xt = jnp.zeros((D_IN_PAD, n_pad), jnp.float32)
    xt = xt.at[:d, :n].set(x_fm.astype(jnp.float32))
    out = _sdf_forward_padded(xt, packed, tile_n)
    return out[:D_OUT, :n]


def sdf_forward_pallas(x, packed, max_tile_n=MAX_TILE_N):
    """x: (N, 3) float32 points -> (N, 33) [sdf, features], matching the torch forward."""
    return sdf_forward_pallas_fm(x.T, packed, max_tile_n).T


# ---------------- float64 numpy reference (exact) ----------------
def sdf_forward_ref_np(x, params):
    x = np.asarray(x, np.float64)
    inputs = x * SCALE
    h = inputs
    for l in range(NUM_LAYERS - 1):
        W, b = params[l]                       # (out, in), (out,)
        W = np.asarray(W, np.float64)
        b = np.asarray(b, np.float64)
        if l in SKIP_IN:
            h = np.concatenate([h, inputs], axis=-1) / np.sqrt(2.0)
        h = h @ W.T + b
        if l < NUM_LAYERS - 2:
            # torch Softplus(beta=100, threshold=20)
            bx = 100.0 * h
            h = np.where(bx > 20.0, h, np.log1p(np.exp(np.minimum(bx, 20.0))) / 100.0)
    return np.concatenate([h[:, :1] / SCALE, h[:, 1:]], axis=-1)


if __name__ == "__main__":
    key = jax.random.PRNGKey(0)
    k_param, k_x = jax.random.split(key)

    params = init_params(k_param)
    packed = pack_params(params)

    N = 200  # number of query points (non-multiple of 128 -> exercises padding + 2 grid steps)
    x = jax.random.uniform(k_x, (N, D_IN), jnp.float32, minval=-1.0, maxval=1.0)

    out = jax.block_until_ready(sdf_forward_pallas(x, packed))
    ref = sdf_forward_ref_np(np.asarray(x), params)

    np.testing.assert_allclose(np.asarray(out), ref, rtol=2e-4, atol=2e-4)
    assert out.shape == (N, D_OUT)
    print("KERNEL_OK")
</pallas_src>

<mosaic_0001>
module attributes {stable_mosaic.version = 11 : i64} {
  func.func @sdf_mlp_kernel(%arg0: i32, %arg1: memref<8x128xf32, #tpu.memory_space<vmem>>, %arg2: memref<2x32x8xf32, #tpu.memory_space<vmem>>, %arg3: memref<7x32x32xf32, #tpu.memory_space<vmem>>, %arg4: memref<8x32x1xf32, #tpu.memory_space<vmem>>, %arg5: memref<40x32xf32, #tpu.memory_space<vmem>>, %arg6: memref<40x1xf32, #tpu.memory_space<vmem>>, %arg7: memref<40x128xf32, #tpu.memory_space<vmem>>) attributes {dimension_semantics = [#tpu.dimension_semantics<parallel>], iteration_bounds = array<i64: 2>, scalar_prefetch = 0 : i64, scratch_operands = 0 : i64, tpu.core_type = #tpu.core_type<tc>, window_params = [{transform_indices = @transform_0, window_bounds = array<i64: 8, 128>}, {pipeline_mode = #tpu.pipeline_mode<synchronous>, transform_indices = @transform_1, window_bounds = array<i64: 2, 32, 8>}, {pipeline_mode = #tpu.pipeline_mode<synchronous>, transform_indices = @transform_2, window_bounds = array<i64: 7, 32, 32>}, {pipeline_mode = #tpu.pipeline_mode<synchronous>, transform_indices = @transform_3, window_bounds = array<i64: 8, 32, 1>}, {pipeline_mode = #tpu.pipeline_mode<synchronous>, transform_indices = @transform_4, window_bounds = array<i64: 40, 32>}, {pipeline_mode = #tpu.pipeline_mode<synchronous>, transform_indices = @transform_5, window_bounds = array<i64: 40, 1>}, {transform_indices = @transform_6, window_bounds = array<i64: 40, 128>}]} {
    %c0 = arith.constant 0 : index
    %c0_0 = arith.constant 0 : index
    %0 = vector.load %arg1[%c0, %c0_0] : memref<8x128xf32, #tpu.memory_space<vmem>>, vector<8x128xf32>
    %c0_1 = arith.constant 0 : index
    %c0_2 = arith.constant 0 : index
    %c0_3 = arith.constant 0 : index
    %1 = vector.load %arg2[%c0_1, %c0_2, %c0_3] : memref<2x32x8xf32, #tpu.memory_space<vmem>>, vector<1x32x8xf32>
    %2 = vector.shape_cast %1 : vector<1x32x8xf32> to vector<32x8xf32>
    %cst = arith.constant dense<0.000000e+00> : vector<32x128xf32>
    %3 = tpu.matmul %2, %0, %cst {dimension_numbers = #tpu.dot_dimension_numbers<[1], [0], [0], [1], [0, 0, 1, 1], [], []>, precision = #tpu.contract_precision<fp32>} : vector<32x8xf32>, vector<8x128xf32>, vector<32x128xf32> -> vector<32x128xf32>
    %c0_4 = arith.constant 0 : index
    %c0_5 = arith.constant 0 : index
    %c0_6 = arith.constant 0 : index
    %4 = vector.load %arg4[%c0_4, %c0_5, %c0_6] : memref<8x32x1xf32, #tpu.memory_space<vmem>>, vector<1x32x1xf32>
    %5 = vector.shape_cast %4 : vector<1x32x1xf32> to vector<32x1xf32>
    %6 = vector.broadcast %5 : vector<32x1xf32> to vector<32x128xf32>
    %7 = arith.addf %3, %6 : vector<32x128xf32>
    %cst_7 = arith.constant 1.000000e+02 : f32
    %8 = vector.broadcast %cst_7 : f32 to vector<32x128xf32>
    %9 = arith.mulf %8, %7 : vector<32x128xf32>
    %cst_8 = arith.constant 2.000000e+01 : f32
    %10 = vector.broadcast %cst_8 : f32 to vector<32x128xf32>
    %11 = arith.minimumf %9, %10 : vector<32x128xf32>
    %12 = math.exp %11 : vector<32x128xf32>
    %cst_9 = arith.constant 1.000000e+00 : f32
    %13 = vector.broadcast %cst_9 : f32 to vector<32x128xf32>
    %14 = arith.addf %13, %12 : vector<32x128xf32>
    %15 = math.log %14 : vector<32x128xf32>
    %cst_10 = arith.constant 0.00999999977 : f32
    %16 = vector.broadcast %cst_10 : f32 to vector<32x128xf32>
    %17 = arith.mulf %15, %16 : vector<32x128xf32>
    %18 = arith.maximumf %17, %7 : vector<32x128xf32>
    %c0_11 = arith.constant 0 : index
    %c0_12 = arith.constant 0 : index
    %c0_13 = arith.constant 0 : index
    %19 = vector.load %arg3[%c0_11, %c0_12, %c0_13] : memref<7x32x32xf32, #tpu.memory_space<vmem>>, vector<1x32x32xf32>
    %20 = vector.shape_cast %19 : vector<1x32x32xf32> to vector<32x32xf32>
    %cst_14 = arith.constant dense<0.000000e+00> : vector<32x128xf32>
    %21 = tpu.matmul %20, %18, %cst_14 {dimension_numbers = #tpu.dot_dimension_numbers<[1], [0], [0], [1], [0, 0, 1, 1], [], []>, precision = #tpu.contract_precision<fp32>} : vector<32x32xf32>, vector<32x128xf32>, vector<32x128xf32> -> vector<32x128xf32>
    %c1 = arith.constant 1 : index
    %c0_15 = arith.constant 0 : index
    %c0_16 = arith.constant 0 : index
    %22 = vector.load %arg4[%c1, %c0_15, %c0_16] : memref<8x32x1xf32, #tpu.memory_space<vmem>>, vector<1x32x1xf32>
    %23 = vector.shape_cast %22 : vector<1x32x1xf32> to vector<32x1xf32>
    %24 = vector.broadcast %23 : vector<32x1xf32> to vector<32x128xf32>
    %25 = arith.addf %21, %24 : vector<32x128xf32>
    %cst_17 = arith.constant 1.000000e+02 : f32
    %26 = vector.broadcast %cst_17 : f32 to vector<32x128xf32>
    %27 = arith.mulf %26, %25 : vector<32x128xf32>
    %cst_18 = arith.constant 2.000000e+01 : f32
    %28 = vector.broadcast %cst_18 : f32 to vector<32x128xf32>
    %29 = arith.minimumf %27, %28 : vector<32x128xf32>
    %30 = math.exp %29 : vector<32x128xf32>
    %cst_19 = arith.constant 1.000000e+00 : f32
    %31 = vector.broadcast %cst_19 : f32 to vector<32x128xf32>
    %32 = arith.addf %31, %30 : vector<32x128xf32>
    %33 = math.log %32 : vector<32x128xf32>
    %cst_20 = arith.constant 0.00999999977 : f32
    %34 = vector.broadcast %cst_20 : f32 to vector<32x128xf32>
    %35 = arith.mulf %33, %34 : vector<32x128xf32>
    %36 = arith.maximumf %35, %25 : vector<32x128xf32>
    %c1_21 = arith.constant 1 : index
    %c0_22 = arith.constant 0 : index
    %c0_23 = arith.constant 0 : index
    %37 = vector.load %arg3[%c1_21, %c0_22, %c0_23] : memref<7x32x32xf32, #tpu.memory_space<vmem>>, vector<1x32x32xf32>
    %38 = vector.shape_cast %37 : vector<1x32x32xf32> to vector<32x32xf32>
    %cst_24 = arith.constant dense<0.000000e+00> : vector<32x128xf32>
    %39 = tpu.matmul %38, %36, %cst_24 {dimension_numbers = #tpu.dot_dimension_numbers<[1], [0], [0], [1], [0, 0, 1, 1], [], []>, precision = #tpu.contract_precision<fp32>} : vector<32x32xf32>, vector<32x128xf32>, vector<32x128xf32> -> vector<32x128xf32>
    %c2 = arith.constant 2 : index
    %c0_25 = arith.constant 0 : index
    %c0_26 = arith.constant 0 : index
    %40 = vector.load %arg4[%c2, %c0_25, %c0_26] : memref<8x32x1xf32, #tpu.memory_space<vmem>>, vector<1x32x1xf32>
    %41 = vector.shape_cast %40 : vector<1x32x1xf32> to vector<32x1xf32>
    %42 = vector.broadcast %41 : vector<32x1xf32> to vector<32x128xf32>
    %43 = arith.addf %39, %42 : vector<32x128xf32>
    %cst_27 = arith.constant 1.000000e+02 : f32
    %44 = vector.broadcast %cst_27 : f32 to vector<32x128xf32>
    %45 = arith.mulf %44, %43 : vector<32x128xf32>
    %cst_28 = arith.constant 2.000000e+01 : f32
    %46 = vector.broadcast %cst_28 : f32 to vector<32x128xf32>
    %47 = arith.minimumf %45, %46 : vector<32x128xf32>
    %48 = math.exp %47 : vector<32x128xf32>
    %cst_29 = arith.constant 1.000000e+00 : f32
    %49 = vector.broadcast %cst_29 : f32 to vector<32x128xf32>
    %50 = arith.addf %49, %48 : vector<32x128xf32>
    %51 = math.log %50 : vector<32x128xf32>
    %cst_30 = arith.constant 0.00999999977 : f32
    %52 = vector.broadcast %cst_30 : f32 to vector<32x128xf32>
    %53 = arith.mulf %51, %52 : vector<32x128xf32>
    %54 = arith.maximumf %53, %43 : vector<32x128xf32>
    %c2_31 = arith.constant 2 : index
    %c0_32 = arith.constant 0 : index
    %c0_33 = arith.constant 0 : index
    %55 = vector.load %arg3[%c2_31, %c0_32, %c0_33] : memref<7x32x32xf32, #tpu.memory_space<vmem>>, vector<1x32x32xf32>
    %56 = vector.shape_cast %55 : vector<1x32x32xf32> to vector<32x32xf32>
    %cst_34 = arith.constant dense<0.000000e+00> : vector<32x128xf32>
    %57 = tpu.matmul %56, %54, %cst_34 {dimension_numbers = #tpu.dot_dimension_numbers<[1], [0], [0], [1], [0, 0, 1, 1], [], []>, precision = #tpu.contract_precision<fp32>} : vector<32x32xf32>, vector<32x128xf32>, vector<32x128xf32> -> vector<32x128xf32>
    %c3 = arith.constant 3 : index
    %c0_35 = arith.constant 0 : index
    %c0_36 = arith.constant 0 : index
    %58 = vector.load %arg4[%c3, %c0_35, %c0_36] : memref<8x32x1xf32, #tpu.memory_space<vmem>>, vector<1x32x1xf32>
    %59 = vector.shape_cast %58 : vector<1x32x1xf32> to vector<32x1xf32>
    %60 = vector.broadcast %59 : vector<32x1xf32> to vector<32x128xf32>
    %61 = arith.addf %57, %60 : vector<32x128xf32>
    %cst_37 = arith.constant 1.000000e+02 : f32
    %62 = vector.broadcast %cst_37 : f32 to vector<32x128xf32>
    %63 = arith.mulf %62, %61 : vector<32x128xf32>
    %cst_38 = arith.constant 2.000000e+01 : f32
    %64 = vector.broadcast %cst_38 : f32 to vector<32x128xf32>
    %65 = arith.minimumf %63, %64 : vector<32x128xf32>
    %66 = math.exp %65 : vector<32x128xf32>
    %cst_39 = arith.constant 1.000000e+00 : f32
    %67 = vector.broadcast %cst_39 : f32 to vector<32x128xf32>
    %68 = arith.addf %67, %66 : vector<32x128xf32>
    %69 = math.log %68 : vector<32x128xf32>
    %cst_40 = arith.constant 0.00999999977 : f32
    %70 = vector.broadcast %cst_40 : f32 to vector<32x128xf32>
    %71 = arith.mulf %69, %70 : vector<32x128xf32>
    %72 = arith.maximumf %71, %61 : vector<32x128xf32>
    %c3_41 = arith.constant 3 : index
    %c0_42 = arith.constant 0 : index
    %c0_43 = arith.constant 0 : index
    %73 = vector.load %arg3[%c3_41, %c0_42, %c0_43] : memref<7x32x32xf32, #tpu.memory_space<vmem>>, vector<1x32x32xf32>
    %74 = vector.shape_cast %73 : vector<1x32x32xf32> to vector<32x32xf32>
    %cst_44 = arith.constant dense<0.000000e+00> : vector<32x128xf32>
    %75 = tpu.matmul %74, %72, %cst_44 {dimension_numbers = #tpu.dot_dimension_numbers<[1], [0], [0], [1], [0, 0, 1, 1], [], []>, precision = #tpu.contract_precision<fp32>} : vector<32x32xf32>, vector<32x128xf32>, vector<32x128xf32> -> vector<32x128xf32>
    %c1_45 = arith.constant 1 : index
    %c0_46 = arith.constant 0 : index
    %c0_47 = arith.constant 0 : index
    %76 = vector.load %arg2[%c1_45, %c0_46, %c0_47] : memref<2x32x8xf32, #tpu.memory_space<vmem>>, vector<1x32x8xf32>
    %77 = vector.shape_cast %76 : vector<1x32x8xf32> to vector<32x8xf32>
    %cst_48 = arith.constant dense<0.000000e+00> : vector<32x128xf32>
    %78 = tpu.matmul %77, %0, %cst_48 {dimension_numbers = #tpu.dot_dimension_numbers<[1], [0], [0], [1], [0, 0, 1, 1], [], []>, precision = #tpu.contract_precision<fp32>} : vector<32x8xf32>, vector<8x128xf32>, vector<32x128xf32> -> vector<32x128xf32>
    %79 = arith.addf %75, %78 : vector<32x128xf32>
    %c4 = arith.constant 4 : index
    %c0_49 = arith.constant 0 : index
    %c0_50 = arith.constant 0 : index
    %80 = vector.load %arg4[%c4, %c0_49, %c0_50] : memref<8x32x1xf32, #tpu.memory_space<vmem>>, vector<1x32x1xf32>
    %81 = vector.shape_cast %80 : vector<1x32x1xf32> to vector<32x1xf32>
    %82 = vector.broadcast %81 : vector<32x1xf32> to vector<32x128xf32>
    %83 = arith.addf %79, %82 : vector<32x128xf32>
    %cst_51 = arith.constant 1.000000e+02 : f32
    %84 = vector.broadcast %cst_51 : f32 to vector<32x128xf32>
    %85 = arith.mulf %84, %83 : vector<32x128xf32>
    %cst_52 = arith.constant 2.000000e+01 : f32
    %86 = vector.broadcast %cst_52 : f32 to vector<32x128xf32>
    %87 = arith.minimumf %85, %86 : vector<32x128xf32>
    %88 = math.exp %87 : vector<32x128xf32>
    %cst_53 = arith.constant 1.000000e+00 : f32
    %89 = vector.broadcast %cst_53 : f32 to vector<32x128xf32>
    %90 = arith.addf %89, %88 : vector<32x128xf32>
    %91 = math.log %90 : vector<32x128xf32>
    %cst_54 = arith.constant 0.00999999977 : f32
    %92 = vector.broadcast %cst_54 : f32 to vector<32x128xf32>
    %93 = arith.mulf %91, %92 : vector<32x128xf32>
    %94 = arith.maximumf %93, %83 : vector<32x128xf32>
    %c4_55 = arith.constant 4 : index
    %c0_56 = arith.constant 0 : index
    %c0_57 = arith.constant 0 : index
    %95 = vector.load %arg3[%c4_55, %c0_56, %c0_57] : memref<7x32x32xf32, #tpu.memory_space<vmem>>, vector<1x32x32xf32>
    %96 = vector.shape_cast %95 : vector<1x32x32xf32> to vector<32x32xf32>
    %cst_58 = arith.constant dense<0.000000e+00> : vector<32x128xf32>
    %97 = tpu.matmul %96, %94, %cst_58 {dimension_numbers = #tpu.dot_dimension_numbers<[1], [0], [0], [1], [0, 0, 1, 1], [], []>, precision = #tpu.contract_precision<fp32>} : vector<32x32xf32>, vector<32x128xf32>, vector<32x128xf32> -> vector<32x128xf32>
    %c5 = arith.constant 5 : index
    %c0_59 = arith.constant 0 : index
    %c0_60 = arith.constant 0 : index
    %98 = vector.load %arg4[%c5, %c0_59, %c0_60] : memref<8x32x1xf32, #tpu.memory_space<vmem>>, vector<1x32x1xf32>
    %99 = vector.shape_cast %98 : vector<1x32x1xf32> to vector<32x1xf32>
    %100 = vector.broadcast %99 : vector<32x1xf32> to vector<32x128xf32>
    %101 = arith.addf %97, %100 : vector<32x128xf32>
    %cst_61 = arith.constant 1.000000e+02 : f32
    %102 = vector.broadcast %cst_61 : f32 to vector<32x128xf32>
    %103 = arith.mulf %102, %101 : vector<32x128xf32>
    %cst_62 = arith.constant 2.000000e+01 : f32
    %104 = vector.broadcast %cst_62 : f32 to vector<32x128xf32>
    %105 = arith.minimumf %103, %104 : vector<32x128xf32>
    %106 = math.exp %105 : vector<32x128xf32>
    %cst_63 = arith.constant 1.000000e+00 : f32
    %107 = vector.broadcast %cst_63 : f32 to vector<32x128xf32>
    %108 = arith.addf %107, %106 : vector<32x128xf32>
    %109 = math.log %108 : vector<32x128xf32>
    %cst_64 = arith.constant 0.00999999977 : f32
    %110 = vector.broadcast %cst_64 : f32 to vector<32x128xf32>
    %111 = arith.mulf %109, %110 : vector<32x128xf32>
    %112 = arith.maximumf %111, %101 : vector<32x128xf32>
    %c5_65 = arith.constant 5 : index
    %c0_66 = arith.constant 0 : index
    %c0_67 = arith.constant 0 : index
    %113 = vector.load %arg3[%c5_65, %c0_66, %c0_67] : memref<7x32x32xf32, #tpu.memory_space<vmem>>, vector<1x32x32xf32>
    %114 = vector.shape_cast %113 : vector<1x32x32xf32> to vector<32x32xf32>
    %cst_68 = arith.constant dense<0.000000e+00> : vector<32x128xf32>
    %115 = tpu.matmul %114, %112, %cst_68 {dimension_numbers = #tpu.dot_dimension_numbers<[1], [0], [0], [1], [0, 0, 1, 1], [], []>, precision = #tpu.contract_precision<fp32>} : vector<32x32xf32>, vector<32x128xf32>, vector<32x128xf32> -> vector<32x128xf32>
    %c6 = arith.constant 6 : index
    %c0_69 = arith.constant 0 : index
    %c0_70 = arith.constant 0 : index
    %116 = vector.load %arg4[%c6, %c0_69, %c0_70] : memref<8x32x1xf32, #tpu.memory_space<vmem>>, vector<1x32x1xf32>
    %117 = vector.shape_cast %116 : vector<1x32x1xf32> to vector<32x1xf32>
    %118 = vector.broadcast %117 : vector<32x1xf32> to vector<32x128xf32>
    %119 = arith.addf %115, %118 : vector<32x128xf32>
    %cst_71 = arith.constant 1.000000e+02 : f32
    %120 = vector.broadcast %cst_71 : f32 to vector<32x128xf32>
    %121 = arith.mulf %120, %119 : vector<32x128xf32>
    %cst_72 = arith.constant 2.000000e+01 : f32
    %122 = vector.broadcast %cst_72 : f32 to vector<32x128xf32>
    %123 = arith.minimumf %121, %122 : vector<32x128xf32>
    %124 = math.exp %123 : vector<32x128xf32>
    %cst_73 = arith.constant 1.000000e+00 : f32
    %125 = vector.broadcast %cst_73 : f32 to vector<32x128xf32>
    %126 = arith.addf %125, %124 : vector<32x128xf32>
    %127 = math.log %126 : vector<32x128xf32>
    %cst_74 = arith.constant 0.00999999977 : f32
    %128 = vector.broadcast %cst_74 : f32 to vector<32x128xf32>
    %129 = arith.mulf %127, %128 : vector<32x128xf32>
    %130 = arith.maximumf %129, %119 : vector<32x128xf32>
    %c6_75 = arith.constant 6 : index
    %c0_76 = arith.constant 0 : index
    %c0_77 = arith.constant 0 : index
    %131 = vector.load %arg3[%c6_75, %c0_76, %c0_77] : memref<7x32x32xf32, #tpu.memory_space<vmem>>, vector<1x32x32xf32>
    %132 = vector.shape_cast %131 : vector<1x32x32xf32> to vector<32x32xf32>
    %cst_78 = arith.constant dense<0.000000e+00> : vector<32x128xf32>
    %133 = tpu.matmul %132, %130, %cst_78 {dimension_numbers = #tpu.dot_dimension_numbers<[1], [0], [0], [1], [0, 0, 1, 1], [], []>, precision = #tpu.contract_precision<fp32>} : vector<32x32xf32>, vector<32x128xf32>, vector<32x128xf32> -> vector<32x128xf32>
    %c7 = arith.constant 7 : index
    %c0_79 = arith.constant 0 : index
    %c0_80 = arith.constant 0 : index
    %134 = vector.load %arg4[%c7, %c0_79, %c0_80] : memref<8x32x1xf32, #tpu.memory_space<vmem>>, vector<1x32x1xf32>
    %135 = vector.shape_cast %134 : vector<1x32x1xf32> to vector<32x1xf32>
    %136 = vector.broadcast %135 : vector<32x1xf32> to vector<32x128xf32>
    %137 = arith.addf %133, %136 : vector<32x128xf32>
    %cst_81 = arith.constant 1.000000e+02 : f32
    %138 = vector.broadcast %cst_81 : f32 to vector<32x128xf32>
    %139 = arith.mulf %138, %137 : vector<32x128xf32>
    %cst_82 = arith.constant 2.000000e+01 : f32
    %140 = vector.broadcast %cst_82 : f32 to vector<32x128xf32>
    %141 = arith.minimumf %139, %140 : vector<32x128xf32>
    %142 = math.exp %141 : vector<32x128xf32>
    %cst_83 = arith.constant 1.000000e+00 : f32
    %143 = vector.broadcast %cst_83 : f32 to vector<32x128xf32>
    %144 = arith.addf %143, %142 : vector<32x128xf32>
    %145 = math.log %144 : vector<32x128xf32>
    %cst_84 = arith.constant 0.00999999977 : f32
    %146 = vector.broadcast %cst_84 : f32 to vector<32x128xf32>
    %147 = arith.mulf %145, %146 : vector<32x128xf32>
    %148 = arith.maximumf %147, %137 : vector<32x128xf32>
    %c0_85 = arith.constant 0 : index
    %c0_86 = arith.constant 0 : index
    %149 = vector.load %arg5[%c0_85, %c0_86] : memref<40x32xf32, #tpu.memory_space<vmem>>, vector<40x32xf32>
    %cst_87 = arith.constant dense<0.000000e+00> : vector<40x128xf32>
    %150 = tpu.matmul %149, %148, %cst_87 {dimension_numbers = #tpu.dot_dimension_numbers<[1], [0], [0], [1], [0, 0, 1, 1], [], []>, precision = #tpu.contract_precision<fp32>} : vector<40x32xf32>, vector<32x128xf32>, vector<40x128xf32> -> vector<40x128xf32>
    %c0_88 = arith.constant 0 : index
    %c0_89 = arith.constant 0 : index
    %151 = vector.load %arg6[%c0_88, %c0_89] : memref<40x1xf32, #tpu.memory_space<vmem>>, vector<40x1xf32>
    %152 = vector.broadcast %151 : vector<40x1xf32> to vector<40x128xf32>
    %153 = arith.addf %150, %152 : vector<40x128xf32>
    %c0_90 = arith.constant 0 : index
    %c0_91 = arith.constant 0 : index
    %154 = vector.load %arg7[%c0_90, %c0_91] : memref<40x128xf32, #tpu.memory_space<vmem>>, vector<40x128xf32>
    tpu.vector_store %arg7[%c0_90, %c0_91], %153 {strides = array<i32>} : memref<40x128xf32, #tpu.memory_space<vmem>>, vector<40x128xf32>,
    return
  }
  func.func @transform_0(%arg0: i32) -> (i32, i32) {
    %c0_i32 = arith.constant 0 : i32
    %c0_i32_0 = arith.constant 0 : i32
    return %c0_i32, %arg0 : i32, i32
  }
  func.func @transform_1(%arg0: i32) -> (i32, i32, i32) {
    %c0_i32 = arith.constant 0 : i32
    %c0_i32_0 = arith.constant 0 : i32
    %c0_i32_1 = arith.constant 0 : i32
    %c0_i32_2 = arith.constant 0 : i32
    return %c0_i32, %c0_i32_0, %c0_i32_1 : i32, i32, i32
  }
  func.func @transform_2(%arg0: i32) -> (i32, i32, i32) {
    %c0_i32 = arith.constant 0 : i32
    %c0_i32_0 = arith.constant 0 : i32
    %c0_i32_1 = arith.constant 0 : i32
    %c0_i32_2 = arith.constant 0 : i32
    return %c0_i32, %c0_i32_0, %c0_i32_1 : i32, i32, i32
  }
  func.func @transform_3(%arg0: i32) -> (i32, i32, i32) {
    %c0_i32 = arith.constant 0 : i32
    %c0_i32_0 = arith.constant 0 : i32
    %c0_i32_1 = arith.constant 0 : i32
    %c0_i32_2 = arith.constant 0 : i32
    return %c0_i32, %c0_i32_0, %c0_i32_1 : i32, i32, i32
  }
  func.func @transform_4(%arg0: i32) -> (i32, i32) {
    %c0_i32 = arith.constant 0 : i32
    %c0_i32_0 = arith.constant 0 : i32
    %c0_i32_1 = arith.constant 0 : i32
    return %c0_i32, %c0_i32_0 : i32, i32
  }
  func.func @transform_5(%arg0: i32) -> (i32, i32) {
    %c0_i32 = arith.constant 0 : i32
    %c0_i32_0 = arith.constant 0 : i32
    %c0_i32_1 = arith.constant 0 : i32
    return %c0_i32, %c0_i32_0 : i32, i32
  }
  func.func @transform_6(%arg0: i32) -> (i32, i32) {
    %c0_i32 = arith.constant 0 : i32
    %c0_i32_0 = arith.constant 0 : i32
    return %c0_i32, %arg0 : i32, i32
  }
}

</mosaic_0001>

<llo_original>
// kernel: tpu_custom_call.1
$region0: #{tpu_custom_call.1}
  #allocation0 [shape = 'u32[]', space=smem, size = 0x4, offset = 0x4, fixed_abs, tag = 'smem constant byte address 0x4 - core index']
  #allocation1 [shape = 'u32[144,128]{1,0:T(1,128)}', space=vmem, size = 0x12000, scoped, tag = 'internal scratch']
  %s0 = inlined_call_operand.vmem [shape: f32[8,256], index: 0, kind: input, shape index: {}]
  %s1 = inlined_call_operand.vmem [shape: f32[2,32,8], index: 1, kind: input, shape index: {}]
  %s2 = inlined_call_operand.vmem [shape: f32[7,32,32], index: 2, kind: input, shape index: {}]
  %s3 = inlined_call_operand.vmem [shape: f32[8,32,1], index: 3, kind: input, shape index: {}]
  %s4 = inlined_call_operand.vmem [shape: f32[40,32], index: 4, kind: input, shape index: {}]
  %s5 = inlined_call_operand.vmem [shape: f32[40,1], index: 5, kind: input, shape index: {}]
  %s6 = inlined_call_operand.hbm [shape: f32[40,256], index: 6, kind: output, shape index: {}]
  %s7 = sld [smem:[#allocation0]]
  $region57: #{tpu_custom_call.1} parent=0
    _
  %s9 = ssub.s32 1, %s7
  %s10 = scalar_select 0, %s9, %s7
  $region1: #{tpu_custom_call.1} parent=0
    #allocation2 [shape = 'u8[40960]{0}', space=vmem, size = 0xa000, scoped, tag = 'output window, operand 0']
    #allocation3 [shape = 's32[2]{0}', space=sflag, size = 0x8, scoped, tag = 'scoped memory for tpu_custom_call.1']
    %11 = vsyncpa [#allocation3], 0
    %s12 = scalar_lea.sflag [#allocation3], 1
    %13 = vsyncpa %s12, 0
    loop: start=0, step=1, limit=4
    $region2: #{tpu_custom_call.1} parent=1 // loop_pre_header
      _
    $region3: #{tpu_custom_call.1} parent=1 // loop_header
      %s15 = sphi 0, %s19
      %p16 = scmp.ge.s32.totalorder %s15, 4
      %s25 = sphi 0, %s27
      %s28 = sphi 0, %s25
      %s29 = sphi 0, %s28
      %s45 = sphi 0, %s29
      %s49 = sphi 0, %s49
      %s51 = sphi 0, %s49
      %s52 = sphi 0, %s51
      %s66 = sphi 0, %s52
      %s70 = sphi 0, %s70
      %s72 = sphi 0, %s70
      %s73 = sphi 0, %s72
      %s87 = sphi 0, %s73
      %s91 = sphi 0, %s91
      %s93 = sphi 0, %s91
      %s94 = sphi 0, %s93
      %s108 = sphi 0, %s94
      %s112 = sphi 0, %s112
      %s114 = sphi 0, %s112
      %s115 = sphi 0, %s114
      %s129 = sphi 0, %s115
      %s133 = sphi 0, %s133
      %s135 = sphi 0, %s133
      %s136 = sphi 0, %s135
      %s150 = sphi 0, %s136
      %s156 = sphi 0, %s158
      %s159 = sphi 0, %s156
      %s160 = sphi 0, %s159
      %s176 = sphi 0, %s160
    $region4: #{tpu_custom_call.1} parent=1 // loop_header_branch
      %18 = sbr.rel (%p16) target = $region8
    $region5: #{tpu_custom_call.1} parent=1 // loop_body
      %s20 = ssub.s32 %s15, 1
      %s21 = ssub.s32 %s15, 2
      %s22 = sadd.s32 %s15, 1
      %s23 = ssub.s32 %s15, %s22
      %p24 = scmp.eq.s32.totalorder %s23, 0
      %s26 = sadd.s32 %s25, 1
      %s27 = scalar_select %p24, %s25, %s26
      %p30 = pneg %p24
      %p31 = scmp.eq.s32.totalorder %s15, 1
      %p32 = por %p30, %p31
      %p33 = scmp.ne.s32.totalorder %s25, %s28
      %p34 = scmp.eq.s32.totalorder %s15, 0
      %p35 = por %p33, %p34
      %p36 = scmp.ne.s32.totalorder %s25, %s28
      %p37 = scmp.eq.s32.totalorder %s20, 1
      %p38 = por %p36, %p37
      %p39 = scmp.ne.s32.totalorder %s28, %s29
      %p40 = scmp.eq.s32.totalorder %s20, 0
      %p41 = por %p39, %p40
      %p42 = scmp.ne.s32.totalorder %s28, %s29
      %p43 = scmp.eq.s32.totalorder %s21, 1
      %p44 = por %p42, %p43
      %p46 = scmp.ne.s32.totalorder %s29, %s45
      %p47 = scmp.eq.s32.totalorder %s21, 0
      %p48 = por %p46, %p47
      %s50 = sadd.s32 %s49, 1
      %p53 = scmp.eq.s32.totalorder %s15, 1
      %p54 = scmp.ne.s32.totalorder %s49, %s51
      %p55 = scmp.eq.s32.totalorder %s15, 0
      %p56 = por %p54, %p55
      %p57 = scmp.ne.s32.totalorder %s49, %s51
      %p58 = scmp.eq.s32.totalorder %s20, 1
      %p59 = por %p57, %p58
      %p60 = scmp.ne.s32.totalorder %s51, %s52
      %p61 = scmp.eq.s32.totalorder %s20, 0
      %p62 = por %p60, %p61
      %p63 = scmp.ne.s32.totalorder %s51, %s52
      %p64 = scmp.eq.s32.totalorder %s21, 1
      %p65 = por %p63, %p64
      %p67 = scmp.ne.s32.totalorder %s52, %s66
      %p68 = scmp.eq.s32.totalorder %s21, 0
      %p69 = por %p67, %p68
      %s71 = sadd.s32 %s70, 1
      %p74 = scmp.eq.s32.totalorder %s15, 1
      %p75 = scmp.ne.s32.totalorder %s70, %s72
      %p76 = scmp.eq.s32.totalorder %s15, 0
      %p77 = por %p75, %p76
      %p78 = scmp.ne.s32.totalorder %s70, %s72
      %p79 = scmp.eq.s32.totalorder %s20, 1
      %p80 = por %p78, %p79
      %p81 = scmp.ne.s32.totalorder %s72, %s73
      %p82 = scmp.eq.s32.totalorder %s20, 0
      %p83 = por %p81, %p82
      %p84 = scmp.ne.s32.totalorder %s72, %s73
      %p85 = scmp.eq.s32.totalorder %s21, 1
      %p86 = por %p84, %p85
      %p88 = scmp.ne.s32.totalorder %s73, %s87
      %p89 = scmp.eq.s32.totalorder %s21, 0
      %p90 = por %p88, %p89
      %s92 = sadd.s32 %s91, 1
      %p95 = scmp.eq.s32.totalorder %s15, 1
      %p96 = scmp.ne.s32.totalorder %s91, %s93
      %p97 = scmp.eq.s32.totalorder %s15, 0
      %p98 = por %p96, %p97
      %p99 = scmp.ne.s32.totalorder %s91, %s93
      %p100 = scmp.eq.s32.totalorder %s20, 1
      %p101 = por %p99, %p100
      %p102 = scmp.ne.s32.totalorder %s93, %s94
      %p103 = scmp.eq.s32.totalorder %s20, 0
      %p104 = por %p102, %p103
      %p105 = scmp.ne.s32.totalorder %s93, %s94
      %p106 = scmp.eq.s32.totalorder %s21, 1
      %p107 = por %p105, %p106
      %p109 = scmp.ne.s32.totalorder %s94, %s108
      %p110 = scmp.eq.s32.totalorder %s21, 0
      %p111 = por %p109, %p110
      %s113 = sadd.s32 %s112, 1
      %p116 = scmp.eq.s32.totalorder %s15, 1
      %p117 = scmp.ne.s32.totalorder %s112, %s114
      %p118 = scmp.eq.s32.totalorder %s15, 0
      %p119 = por %p117, %p118
      %p120 = scmp.ne.s32.totalorder %s112, %s114
      %p121 = scmp.eq.s32.totalorder %s20, 1
      %p122 = por %p120, %p121
      %p123 = scmp.ne.s32.totalorder %s114, %s115
      %p124 = scmp.eq.s32.totalorder %s20, 0
      %p125 = por %p123, %p124
      %p126 = scmp.ne.s32.totalorder %s114, %s115
      %p127 = scmp.eq.s32.totalorder %s21, 1
      %p128 = por %p126, %p127
      %p130 = scmp.ne.s32.totalorder %s115, %s129
      %p131 = scmp.eq.s32.totalorder %s21, 0
      %p132 = por %p130, %p131
      %s134 = sadd.s32 %s133, 1
      %p137 = scmp.eq.s32.totalorder %s15, 1
      %p138 = scmp.ne.s32.totalorder %s133, %s135
      %p139 = scmp.eq.s32.totalorder %s15, 0
      %p140 = por %p138, %p139
      %p141 = scmp.ne.s32.totalorder %s133, %s135
      %p142 = scmp.eq.s32.totalorder %s20, 1
      %p143 = por %p141, %p142
      %p144 = scmp.ne.s32.totalorder %s135, %s136
      %p145 = scmp.eq.s32.totalorder %s20, 0
      %p146 = por %p144, %p145
      %p147 = scmp.ne.s32.totalorder %s135, %s136
      %p148 = scmp.eq.s32.totalorder %s21, 1
      %p149 = por %p147, %p148
      %p151 = scmp.ne.s32.totalorder %s136, %s150
      %p152 = scmp.eq.s32.totalorder %s21, 0
      %p153 = por %p151, %p152
      %s154 = ssub.s32 %s15, %s22
      %p155 = scmp.eq.s32.totalorder %s154, 0
      %s157 = sadd.s32 %s156, 1
      %s158 = scalar_select %p155, %s156, %s157
      %p161 = pneg %p155
      %p162 = scmp.eq.s32.totalorder %s15, 1
      %p163 = por %p161, %p162
      %p164 = scmp.ne.s32.totalorder %s156, %s159
      %p165 = scmp.eq.s32.totalorder %s15, 0
      %p166 = por %p164, %p165
      %p167 = scmp.ne.s32.totalorder %s156, %s159
      %p168 = scmp.eq.s32.totalorder %s20, 1
      %p169 = por %p167, %p168
      %p170 = scmp.ne.s32.totalorder %s159, %s160
      %p171 = scmp.eq.s32.totalorder %s20, 0
      %p172 = por %p170, %p171
      %p173 = scmp.ne.s32.totalorder %s159, %s160
      %p174 = scmp.eq.s32.totalorder %s21, 1
      %p175 = por %p173, %p174
      %p177 = scmp.ne.s32.totalorder %s160, %s176
      %p178 = scmp.eq.s32.totalorder %s21, 0
      %p179 = por %p177, %p178
      %p180 = scmp.le.s32.totalorder 1, %s15
      %p181 = scmp.lt.s32.totalorder %s15, 3
      %p182 = pnand %p180, %p181
      %p183 = pneg %p182
      // Predicated region
      $region9: #{tpu_custom_call.1} parent=5 // pred_check
        _
      $region10: #{tpu_custom_call.1} parent=5 // pred_check_branch
        %185 = sbr.rel (%p182) target = $region12
      $region11: #{tpu_custom_call.1} parent=5 // pred_region
        %s186 = ssub.s32 %s15, 1
        // Predicated region
        $region13: #{tpu_custom_call.1} parent=11 // pred_check
          %p187 = pneg %p62
        $region14: #{tpu_custom_call.1} parent=11 // pred_check_branch
          %189 = sbr.rel (%p187) target = $region16
        $region15: #{tpu_custom_call.1} parent=11 // pred_region
          _
        $region16: #{tpu_custom_call.1} parent=11 // pred_fallthru
          _
        // Predicated region
        $region17: #{tpu_custom_call.1} parent=11 // pred_check
          %p190 = pneg %p83
        $region18: #{tpu_custom_call.1} parent=11 // pred_check_branch
          %192 = sbr.rel (%p190) target = $region20
        $region19: #{tpu_custom_call.1} parent=11 // pred_region
          _
        $region20: #{tpu_custom_call.1} parent=11 // pred_fallthru
          _
        // Predicated region
        $region21: #{tpu_custom_call.1} parent=11 // pred_check
          %p193 = pneg %p104
        $region22: #{tpu_custom_call.1} parent=11 // pred_check_branch
          %195 = sbr.rel (%p193) target = $region24
        $region23: #{tpu_custom_call.1} parent=11 // pred_region
          _
        $region24: #{tpu_custom_call.1} parent=11 // pred_fallthru
          _
        // Predicated region
        $region25: #{tpu_custom_call.1} parent=11 // pred_check
          %p196 = pneg %p125
        $region26: #{tpu_custom_call.1} parent=11 // pred_check_branch
          %198 = sbr.rel (%p196) target = $region28
        $region27: #{tpu_custom_call.1} parent=11 // pred_region
          _
        $region28: #{tpu_custom_call.1} parent=11 // pred_fallthru
          _
        // Predicated region
        $region29: #{tpu_custom_call.1} parent=11 // pred_check
          %p199 = pneg %p146
        $region30: #{tpu_custom_call.1} parent=11 // pred_check_branch
          %201 = sbr.rel (%p199) target = $region32
        $region31: #{tpu_custom_call.1} parent=11 // pred_region
          _
        $region32: #{tpu_custom_call.1} parent=11 // pred_fallthru
          _
      $region12: #{tpu_custom_call.1} parent=5 // pred_fallthru
        _
      %p202 = scmp.lt.s32.totalorder %s15, 2
      // Predicated region
      $region33: #{tpu_custom_call.1} parent=5 // pred_check
        %p203 = pneg %p202
      $region34: #{tpu_custom_call.1} parent=5 // pred_check_branch
        %205 = sbr.rel (%p203) target = $region36
      $region35: #{tpu_custom_call.1} parent=5 // pred_region
        // Predicated region
        $region37: #{tpu_custom_call.1} parent=35 // pred_check
          %p206 = pneg %p35
        $region38: #{tpu_custom_call.1} parent=35 // pred_check_branch
          %208 = sbr.rel (%p206) target = $region40
        $region39: #{tpu_custom_call.1} parent=35 // pred_region
          %p209 = scmp.lt.s32.totalorder %s15, 1
          %s210 = scalar_select %p209, %s15, 1
          %s211 = smul.addr %s210, 8
          %s212 = scalar_lea.vmem %s0, %s211
        $region40: #{tpu_custom_call.1} parent=35 // pred_fallthru
          _
      $region36: #{tpu_custom_call.1} parent=5 // pred_fallthru
        _
      %p213 = scmp.le.s32.totalorder 1, %s15
      %p214 = scmp.lt.s32.totalorder %s15, 3
      %p215 = pnand %p213, %p214
      %p216 = pneg %p215
      // Predicated region
      $region41: #{tpu_custom_call.1} parent=5 // pred_check
        _
      $region42: #{tpu_custom_call.1} parent=5 // pred_check_branch
        %218 = sbr.rel (%p215) target = $region44
      $region43: #{tpu_custom_call.1} parent=5 // pred_region
        %s219 = ssub.s32 %s15, 1
        %p220 = scmp.lt.s32.totalorder %s20, 1
        %s221 = scalar_select %p220, %s20, 1
        %s222 = smul.addr %s221, 8
        %s223 = scalar_lea.vmem %s0, %s222
        %p224 = pneg %p41
        %p225 = pneg %p38
        %p226 = pneg %p62
        %p227 = pneg %p59
        %p228 = pneg %p83
        %p229 = pneg %p80
        %p230 = pneg %p104
        %p231 = pneg %p101
        %p232 = pneg %p125
        %p233 = pneg %p122
        %p234 = pneg %p146
        %p235 = pneg %p143
        %p236 = pneg %p172
        %p237 = pneg %p169
        %s238 = sand.u32 %s159, 1
        %s239 = scalar_lea.sflag [#allocation3], %s238
        %s240 = sand.u32 %s159, 1
        %s241 = smul.addr %s240, 40
        %s242 = scalar_lea.vmem [#allocation2], %s241
        %p243 = scmp.lt.s32.totalorder %s20, 1
        %s244 = scalar_select %p243, %s20, 1
        %s245 = smul.addr %s244, 8
        %s246 = scalar_lea.vmem %s0, %s245
        %v247 = vld [vmem:[%s246] sm:$0xff]
        %v248 = vld [vmem:[%s1] sm:$0xff]
        %v249 = vld [vmem:[%s1 + $0x8] sm:$0xff]
        %v250 = vld [vmem:[%s1 + $0x10] sm:$0xff]
        %v251 = vld [vmem:[%s1 + $0x18] sm:$0xff]
        %v252 = vld [vmem:[%s3] sm:$0xff]
        %v253 = vld [vmem:[%s3 + $0x8] sm:$0xff]
        %v254 = vld [vmem:[%s3 + $0x10] sm:$0xff]
        %v255 = vld [vmem:[%s3 + $0x18] sm:$0xff]
        %257 = vset.pattern.permute.xlu0 0
        %258 = vperm.xlu0 %257, %v252
        %v259 = vpop.permute.xlu0 %258
        %262 = vset.pattern.permute.xlu0 0
        %263 = vperm.xlu0 %262, %v253
        %v264 = vpop.permute.xlu0 %263
        %267 = vset.pattern.permute.xlu0 0
        %268 = vperm.xlu0 %267, %v254
        %v269 = vpop.permute.xlu0 %268
        %272 = vset.pattern.permute.xlu0 0
        %273 = vperm.xlu0 %272, %v255
        %v274 = vpop.permute.xlu0 %273
        %vm276 = vcmask 64512
        %v278 = vsel %vm276, %v248, 0
        %v281 = vsel %vm276, %v249, 0
        %v284 = vsel %vm276, %v250, 0
        %v287 = vsel %vm276, %v251, 0
        %289 = vmatprep.subr.mxu0 0.0
        %v290 = vand.u32 %v247, 4294901760
        %291 = vmatpush1.msra.mxu0 %v290
        %292 = vmatprep.subr.mxu0 0.0
        %293 = vmatpush1.msra.mxu0 0.0
        %294 = vmatprep.subr.mxu0 0.0
        %295 = vmatpush1.msra.mxu0 0.0
        %296 = vmatprep.subr.mxu0 0.0
        %297 = vmatpush1.msra.mxu0 0.0
        %298 = vmatprep.subr.mxu0 0.0
        %299 = vmatpush1.msra.mxu0 0.0
        %300 = vmatprep.subr.mxu0 0.0
        %301 = vmatpush1.msra.mxu0 0.0
        %302 = vmatprep.subr.mxu0 0.0
        %303 = vmatpush1.msra.mxu0 0.0
        %304 = vmatprep.subr.mxu0 0.0
        %305 = vmatpush1.msra.mxu0 0.0
        %306 = vmatprep.subr.mxu0 0.0
        %307 = vmatpush1.msra.mxu0 0.0
        %308 = vmatprep.subr.mxu0 0.0
        %309 = vmatpush1.msra.mxu0 0.0
        %310 = vmatprep.subr.mxu0 0.0
        %311 = vmatpush1.msra.mxu0 0.0
        %312 = vmatprep.subr.mxu0 0.0
        %313 = vmatpush1.msra.mxu0 0.0
        %314 = vmatprep.subr.mxu0 0.0
        %315 = vmatpush1.msra.mxu0 0.0
        %316 = vmatprep.subr.mxu0 0.0
        %317 = vmatpush1.msra.mxu0 0.0
        %318 = vmatprep.subr.mxu0 0.0
        %319 = vmatpush1.msra.mxu0 0.0
        %320 = vmatprep.subr.mxu0 0.0
        %321 = vmatpush1.msra.mxu0 0.0
        %322 = vmatprep.subr.mxu0 0.0
        %323 = vmatpush1.msra.mxu0 0.0
        %324 = vmatprep.subr.mxu0 0.0
        %325 = vmatpush1.msra.mxu0 0.0
        %326 = vmatprep.subr.mxu0 0.0
        %327 = vmatpush1.msra.mxu0 0.0
        %328 = vmatprep.subr.mxu0 0.0
        %329 = vmatpush1.msra.mxu0 0.0
        %330 = vmatprep.subr.mxu0 0.0
        %331 = vmatpush1.msra.mxu0 0.0
        %332 = vmatprep.subr.mxu0 0.0
        %333 = vmatpush1.msra.mxu0 0.0
        %334 = vmatprep.subr.mxu0 0.0
        %335 = vmatpush1.msra.mxu0 0.0
        %336 = vmatprep.subr.mxu0 0.0
        %337 = vmatpush1.msra.mxu0 0.0
        %338 = vmatprep.subr.mxu0 0.0
        %339 = vmatpush1.msra.mxu0 0.0
        %340 = vmatprep.subr.mxu0 0.0
        %341 = vmatpush1.msra.mxu0 0.0
        %342 = vmatprep.subr.mxu0 0.0
        %343 = vmatpush1.msra.mxu0 0.0
        %344 = vmatprep.subr.mxu0 0.0
        %345 = vmatpush1.msra.mxu0 0.0
        %346 = vmatprep.subr.mxu0 0.0
        %347 = vmatpush1.msra.mxu0 0.0
        %348 = vmatprep.subr.mxu0 0.0
        %349 = vmatpush1.msra.mxu0 0.0
        %350 = vmatprep.subr.mxu0 0.0
        %351 = vmatpush1.msra.mxu0 0.0
        %352 = vmatprep.subr.mxu0 0.0
        %353 = vmatpush1.msra.mxu0 0.0
        %354 = vmatprep.mubr.f32.mxu0 0.0
        %v355 = vand.u32 %v278, 4294901760
        %v356 = vsub.f32 %v278, %v355
        %v357 = vand.u32 %v356, 4294901760
        %v358 = vsub.f32 %v356, %v357
        %v359 = vand.u32 %v358, 4294901760
        %360 = vmatmul.mubr.f32.gmra.mrb[0].mxu0 %v359
        %v361 = vpop.f32.mrb[0].mxu0
        %v362 = vadd.f32 %v259, %v361
        %v363 = vpop.f32.mrb[0].mxu0
        %364 = vmatprep.mubr.f32.mxu0 0.0
        %v365 = vand.u32 %v281, 4294901760
        %v366 = vsub.f32 %v281, %v365
        %v367 = vand.u32 %v366, 4294901760
        %v368 = vsub.f32 %v366, %v367
        %v369 = vand.u32 %v368, 4294901760
        %370 = vmatmul.mubr.f32.gmra.mrb[0].mxu0 %v369
        %v371 = vpop.f32.mrb[0].mxu0
        %v372 = vadd.f32 %v264, %v371
        %v373 = vpop.f32.mrb[0].mxu0
        %374 = vmatprep.mubr.f32.mxu0 0.0
        %v375 = vand.u32 %v284, 4294901760
        %v376 = vsub.f32 %v284, %v375
        %v377 = vand.u32 %v376, 4294901760
        %v378 = vsub.f32 %v376, %v377
        %v379 = vand.u32 %v378, 4294901760
        %380 = vmatmul.mubr.f32.gmra.mrb[0].mxu0 %v379
        %v381 = vpop.f32.mrb[0].mxu0
        %v382 = vadd.f32 %v269, %v381
        %v383 = vpop.f32.mrb[0].mxu0
        %384 = vmatprep.mubr.f32.mxu0 0.0
        %v385 = vand.u32 %v287, 4294901760
        %v386 = vsub.f32 %v287, %v385
        %v387 = vand.u32 %v386, 4294901760
        %v388 = vsub.f32 %v386, %v387
        %v389 = vand.u32 %v388, 4294901760
        %390 = vmatmul.mubr.f32.gmra.mrb[0].mxu0 %v389
        %v391 = vpop.f32.mrb[0].mxu0
        %v392 = vadd.f32 %v274, %v391
        %v393 = vpop.f32.mrb[0].mxu0
        %394 = vdwg.mxu0
        %395 = vmatprep.subr.mxu0 0.0
        %v396 = vand.u32 %v247, 4294901760
        %v397 = vsub.f32 %v247, %v396
        %v398 = vand.u32 %v397, 4294901760
        %v399 = vsub.f32 %v397, %v398
        %v400 = vand.u32 %v399, 4294901760
        %401 = vmatpush1.msra.mxu0 %v400
        %402 = vmatprep.subr.mxu0 0.0
        %403 = vmatpush1.msra.mxu0 0.0
        %404 = vmatprep.subr.mxu0 0.0
        %405 = vmatpush1.msra.mxu0 0.0
        %406 = vmatprep.subr.mxu0 0.0
        %407 = vmatpush1.msra.mxu0 0.0
        %408 = vmatprep.subr.mxu0 0.0
        %409 = vmatpush1.msra.mxu0 0.0
        %410 = vmatprep.subr.mxu0 0.0
        %411 = vmatpush1.msra.mxu0 0.0
        %412 = vmatprep.subr.mxu0 0.0
        %413 = vmatpush1.msra.mxu0 0.0
        %414 = vmatprep.subr.mxu0 0.0
        %415 = vmatpush1.msra.mxu0 0.0
        %416 = vmatprep.subr.mxu0 0.0
        %417 = vmatpush1.msra.mxu0 0.0
        %418 = vmatprep.subr.mxu0 0.0
        %419 = vmatpush1.msra.mxu0 0.0
        %420 = vmatprep.subr.mxu0 0.0
        %421 = vmatpush1.msra.mxu0 0.0
        %422 = vmatprep.subr.mxu0 0.0
        %423 = vmatpush1.msra.mxu0 0.0
        %424 = vmatprep.subr.mxu0 0.0
        %425 = vmatpush1.msra.mxu0 0.0
        %426 = vmatprep.subr.mxu0 0.0
        %427 = vmatpush1.msra.mxu0 0.0
        %428 = vmatprep.subr.mxu0 0.0
        %429 = vmatpush1.msra.mxu0 0.0
        %430 = vmatprep.subr.mxu0 0.0
        %431 = vmatpush1.msra.mxu0 0.0
        %432 = vmatprep.subr.mxu0 0.0
        %433 = vmatpush1.msra.mxu0 0.0
        %434 = vmatprep.subr.mxu0 0.0
        %435 = vmatpush1.msra.mxu0 0.0
        %436 = vmatprep.subr.mxu0 0.0
        %437 = vmatpush1.msra.mxu0 0.0
        %438 = vmatprep.subr.mxu0 0.0
        %439 = vmatpush1.msra.mxu0 0.0
        %440 = vmatprep.subr.mxu0 0.0
        %441 = vmatpush1.msra.mxu0 0.0
        %442 = vmatprep.subr.mxu0 0.0
        %443 = vmatpush1.msra.mxu0 0.0
        %444 = vmatprep.subr.mxu0 0.0
        %445 = vmatpush1.msra.mxu0 0.0
        %446 = vmatprep.subr.mxu0 0.0
        %447 = vmatpush1.msra.mxu0 0.0
        %448 = vmatprep.subr.mxu0 0.0
        %449 = vmatpush1.msra.mxu0 0.0
        %450 = vmatprep.subr.mxu0 0.0
        %451 = vmatpush1.msra.mxu0 0.0
        %452 = vmatprep.subr.mxu0 0.0
        %453 = vmatpush1.msra.mxu0 0.0
        %454 = vmatprep.subr.mxu0 0.0
        %455 = vmatpush1.msra.mxu0 0.0
        %456 = vmatprep.subr.mxu0 0.0
        %457 = vmatpush1.msra.mxu0 0.0
        %458 = vmatprep.subr.mxu0 0.0
        %459 = vmatpush1.msra.mxu0 0.0
        %460 = vmatprep.subr.mxu0 0.0
        %461 = vmatpush1.msra.mxu0 0.0
        %462 = vmatprep.subr.mxu0 0.0
        %463 = vmatpush1.msra.mxu0 0.0
        %464 = vmatprep.mubr.f32.mxu0 0.0
        %v465 = vand.u32 %v278, 4294901760
        %466 = vmatmul.mubr.f32.gmra.mrb[0].mxu0 %v465
        %v467 = vpop.f32.mrb[0].mxu0
        %v468 = vadd.f32 %v362, %v467
        %v469 = vpop.f32.mrb[0].mxu0
        %470 = vmatprep.mubr.f32.mxu0 0.0
        %v471 = vand.u32 %v281, 4294901760
        %472 = vmatmul.mubr.f32.gmra.mrb[0].mxu0 %v471
        %v473 = vpop.f32.mrb[0].mxu0
        %v474 = vadd.f32 %v372, %v473
        %v475 = vpop.f32.mrb[0].mxu0
        %476 = vmatprep.mubr.f32.mxu0 0.0
        %v477 = vand.u32 %v284, 4294901760
        %478 = vmatmul.mubr.f32.gmra.mrb[0].mxu0 %v477
        %v479 = vpop.f32.mrb[0].mxu0
        %v480 = vadd.f32 %v382, %v479
        %v481 = vpop.f32.mrb[0].mxu0
        %482 = vmatprep.mubr.f32.mxu0 0.0
        %v483 = vand.u32 %v287, 4294901760
        %484 = vmatmul.mubr.f32.gmra.mrb[0].mxu0 %v483
        %v485 = vpop.f32.mrb[0].mxu0
        %v486 = vadd.f32 %v392, %v485
        %v487 = vpop.f32.mrb[0].mxu0
        %488 = vdwg.mxu0
        %489 = vmatprep.subr.mxu0 0.0
        %v490 = vand.u32 %v247, 4294901760
        %v491 = vsub.f32 %v247, %v490
        %492 = vmatpush1.msra.mxu0 %v491
        %493 = vmatprep.subr.mxu0 0.0
        %494 = vmatpush1.msra.mxu0 0.0
        %495 = vmatprep.subr.mxu0 0.0
        %496 = vmatpush1.msra.mxu0 0.0
        %497 = vmatprep.subr.mxu0 0.0
        %498 = vmatpush1.msra.mxu0 0.0
        %499 = vmatprep.subr.mxu0 0.0
        %500 = vmatpush1.msra.mxu0 0.0
        %501 = vmatprep.subr.mxu0 0.0
        %502 = vmatpush1.msra.mxu0 0.0
        %503 = vmatprep.subr.mxu0 0.0
        %504 = vmatpush1.msra.mxu0 0.0
        %505 = vmatprep.subr.mxu0 0.0
        %506 = vmatpush1.msra.mxu0 0.0
        %507 = vmatprep.subr.mxu0 0.0
        %508 = vmatpush1.msra.mxu0 0.0
        %509 = vmatprep.subr.mxu0 0.0
        %510 = vmatpush1.msra.mxu0 0.0
        %511 = vmatprep.subr.mxu0 0.0
        %512 = vmatpush1.msra.mxu0 0.0
        %513 = vmatprep.subr.mxu0 0.0
        %514 = vmatpush1.msra.mxu0 0.0
        %515 = vmatprep.subr.mxu0 0.0
        %516 = vmatpush1.msra.mxu0 0.0
        %517 = vmatprep.subr.mxu0 0.0
        %518 = vmatpush1.msra.mxu0 0.0
        %519 = vmatprep.subr.mxu0 0.0
        %520 = vmatpush1.msra.mxu0 0.0
        %521 = vmatprep.subr.mxu0 0.0
        %522 = vmatpush1.msra.mxu0 0.0
        %523 = vmatprep.subr.mxu0 0.0
        %524 = vmatpush1.msra.mxu0 0.0
        %525 = vmatprep.subr.mxu0 0.0
        %526 = vmatpush1.msra.mxu0 0.0
        %527 = vmatprep.subr.mxu0 0.0
        %528 = vmatpush1.msra.mxu0 0.0
        %529 = vmatprep.subr.mxu0 0.0
        %530 = vmatpush1.msra.mxu0 0.0
        %531 = vmatprep.subr.mxu0 0.0
        %532 = vmatpush1.msra.mxu0 0.0
        %533 = vmatprep.subr.mxu0 0.0
        %534 = vmatpush1.msra.mxu0 0.0
        %535 = vmatprep.subr.mxu0 0.0
        %536 = vmatpush1.msra.mxu0 0.0
        %537 = vmatprep.subr.mxu0 0.0
        %538 = vmatpush1.msra.mxu0 0.0
        %539 = vmatprep.subr.mxu0 0.0
        %540 = vmatpush1.msra.mxu0 0.0
        %541 = vmatprep.subr.mxu0 0.0
        %542 = vmatpush1.msra.mxu0 0.0
        %543 = vmatprep.subr.mxu0 0.0
        %544 = vmatpush1.msra.mxu0 0.0
        %545 = vmatprep.subr.mxu0 0.0
        %546 = vmatpush1.msra.mxu0 0.0
        %547 = vmatprep.subr.mxu0 0.0
        %548 = vmatpush1.msra.mxu0 0.0
        %549 = vmatprep.subr.mxu0 0.0
        %550 = vmatpush1.msra.mxu0 0.0
        %551 = vmatprep.subr.mxu0 0.0
        %552 = vmatpush1.msra.mxu0 0.0
        %553 = vmatprep.subr.mxu0 0.0
        %554 = vmatpush1.msra.mxu0 0.0
        %555 = vmatprep.mubr.f32.mxu0 0.0
        %v556 = vand.u32 %v278, 4294901760
        %v557 = vsub.f32 %v278, %v556
        %558 = vmatmul.mubr.f32.gmra.mrb[0].mxu0 %v557
        %v559 = vpop.f32.mrb[0].mxu0
        %v560 = vadd.f32 %v468, %v559
        %v561 = vpop.f32.mrb[0].mxu0
        %562 = vmatprep.mubr.f32.mxu0 0.0
        %v563 = vand.u32 %v281, 4294901760
        %v564 = vsub.f32 %v281, %v563
        %565 = vmatmul.mubr.f32.gmra.mrb[0].mxu0 %v564
        %v566 = vpop.f32.mrb[0].mxu0
        %v567 = vadd.f32 %v474, %v566
        %v568 = vpop.f32.mrb[0].mxu0
        %569 = vmatprep.mubr.f32.mxu0 0.0
        %v570 = vand.u32 %v284, 4294901760
        %v571 = vsub.f32 %v284, %v570
        %572 = vmatmul.mubr.f32.gmra.mrb[0].mxu0 %v571
        %v573 = vpop.f32.mrb[0].mxu0
        %v574 = vadd.f32 %v480, %v573
        %v575 = vpop.f32.mrb[0].mxu0
        %576 = vmatprep.mubr.f32.mxu0 0.0
        %v577 = vand.u32 %v287, 4294901760
        %v578 = vsub.f32 %v287, %v577
        %579 = vmatmul.mubr.f32.gmra.mrb[0].mxu0 %v578
        %v580 = vpop.f32.mrb[0].mxu0
        %v581 = vadd.f32 %v486, %v580
        %v582 = vpop.f32.mrb[0].mxu0
        %583 = vdwg.mxu0
        %584 = vmatprep.subr.mxu0 0.0
        %v585 = vand.u32 %v247, 4294901760
        %586 = vmatpush1.msra.mxu0 %v585
        %587 = vmatprep.subr.mxu0 0.0
        %588 = vmatpush1.msra.mxu0 0.0
        %589 = vmatprep.subr.mxu0 0.0
        %590 = vmatpush1.msra.mxu0 0.0
        %591 = vmatprep.subr.mxu0 0.0
        %592 = vmatpush1.msra.mxu0 0.0
        %593 = vmatprep.subr.mxu0 0.0
        %594 = vmatpush1.msra.mxu0 0.0
        %595 = vmatprep.subr.mxu0 0.0
        %596 = vmatpush1.msra.mxu0 0.0
        %597 = vmatprep.subr.mxu0 0.0
        %598 = vmatpush1.msra.mxu0 0.0
        %599 = vmatprep.subr.mxu0 0.0
        %600 = vmatpush1.msra.mxu0 0.0
        %601 = vmatprep.subr.mxu0 0.0
        %602 = vmatpush1.msra.mxu0 0.0
        %603 = vmatprep.subr.mxu0 0.0
        %604 = vmatpush1.msra.mxu0 0.0
        %605 = vmatprep.subr.mxu0 0.0
        %606 = vmatpush1.msra.mxu0 0.0
        %607 = vmatprep.subr.mxu0 0.0
        %608 = vmatpush1.msra.mxu0 0.0
        %609 = vmatprep.subr.mxu0 0.0
        %610 = vmatpush1.msra.mxu0 0.0
        %611 = vmatprep.subr.mxu0 0.0
        %612 = vmatpush1.msra.mxu0 0.0
        %613 = vmatprep.subr.mxu0 0.0
        %614 = vmatpush1.msra.mxu0 0.0
        %615 = vmatprep.subr.mxu0 0.0
        %616 = vmatpush1.msra.mxu0 0.0
        %617 = vmatprep.subr.mxu0 0.0
        %618 = vmatpush1.msra.mxu0 0.0
        %619 = vmatprep.subr.mxu0 0.0
        %620 = vmatpush1.msra.mxu0 0.0
        %621 = vmatprep.subr.mxu0 0.0
        %622 = vmatpush1.msra.mxu0 0.0
        %623 = vmatprep.subr.mxu0 0.0
        %624 = vmatpush1.msra.mxu0 0.0
        %625 = vmatprep.subr.mxu0 0.0
        %626 = vmatpush1.msra.mxu0 0.0
        %627 = vmatprep.subr.mxu0 0.0
        %628 = vmatpush1.msra.mxu0 0.0
        %629 = vmatprep.subr.mxu0 0.0
        %630 = vmatpush1.msra.mxu0 0.0
        %631 = vmatprep.subr.mxu0 0.0
        %632 = vmatpush1.msra.mxu0 0.0
        %633 = vmatprep.subr.mxu0 0.0
        %634 = vmatpush1.msra.mxu0 0.0
        %635 = vmatprep.subr.mxu0 0.0
        %636 = vmatpush1.msra.mxu0 0.0
        %637 = vmatprep.subr.mxu0 0.0
        %638 = vmatpush1.msra.mxu0 0.0
        %639 = vmatprep.subr.mxu0 0.0
        %640 = vmatpush1.msra.mxu0 0.0
        %641 = vmatprep.subr.mxu0 0.0
        %642 = vmatpush1.msra.mxu0 0.0
        %643 = vmatprep.subr.mxu0 0.0
        %644 = vmatpush1.msra.mxu0 0.0
        %645 = vmatprep.subr.mxu0 0.0
        %646 = vmatpush1.msra.mxu0 0.0
        %647 = vmatprep.subr.mxu0 0.0
        %648 = vmatpush1.msra.mxu0 0.0
        %649 = vmatprep.mubr.f32.mxu0 0.0
        %v650 = vand.u32 %v278, 4294901760
        %v651 = vsub.f32 %v278, %v650
        %v652 = vand.u32 %v651, 4294901760
        %653 = vmatmul.mubr.f32.gmra.mrb[0].mxu0 %v652
        %v654 = vpop.f32.mrb[0].mxu0
        %v655 = vadd.f32 %v560, %v654
        %v656 = vpop.f32.mrb[0].mxu0
        %657 = vmatprep.mubr.f32.mxu0 0.0
        %v658 = vand.u32 %v281, 4294901760
        %v659 = vsub.f32 %v281, %v658
        %v660 = vand.u32 %v659, 4294901760
        %661 = vmatmul.mubr.f32.gmra.mrb[0].mxu0 %v660
        %v662 = vpop.f32.mrb[0].mxu0
        %v663 = vadd.f32 %v567, %v662
        %v664 = vpop.f32.mrb[0].mxu0
        %665 = vmatprep.mubr.f32.mxu0 0.0
        %v666 = vand.u32 %v284, 4294901760
        %v667 = vsub.f32 %v284, %v666
        %v668 = vand.u32 %v667, 4294901760
        %669 = vmatmul.mubr.f32.gmra.mrb[0].mxu0 %v668
        %v670 = vpop.f32.mrb[0].mxu0
        %v671 = vadd.f32 %v574, %v670
        %v672 = vpop.f32.mrb[0].mxu0
        %673 = vmatprep.mubr.f32.mxu0 0.0
        %v674 = vand.u32 %v287, 4294901760
        %v675 = vsub.f32 %v287, %v674
        %v676 = vand.u32 %v675, 4294901760
        %677 = vmatmul.mubr.f32.gmra.mrb[0].mxu0 %v676
        %v678 = vpop.f32.mrb[0].mxu0
        %v679 = vadd.f32 %v581, %v678
        %v680 = vpop.f32.mrb[0].mxu0
        %681 = vdwg.mxu0
        %682 = vmatprep.subr.mxu0 0.0
        %v683 = vand.u32 %v247, 4294901760
        %v684 = vsub.f32 %v247, %v683
        %v685 = vand.u32 %v684, 4294901760
        %686 = vmatpush1.msra.mxu0 %v685
        %687 = vmatprep.subr.mxu0 0.0
        %688 = vmatpush1.msra.mxu0 0.0
        %689 = vmatprep.subr.mxu0 0.0
        %690 = vmatpush1.msra.mxu0 0.0
        %691 = vmatprep.subr.mxu0 0.0
        %692 = vmatpush1.msra.mxu0 0.0
        %693 = vmatprep.subr.mxu0 0.0
        %694 = vmatpush1.msra.mxu0 0.0
        %695 = vmatprep.subr.mxu0 0.0
        %696 = vmatpush1.msra.mxu0 0.0
        %697 = vmatprep.subr.mxu0 0.0
        %698 = vmatpush1.msra.mxu0 0.0
        %699 = vmatprep.subr.mxu0 0.0
        %700 = vmatpush1.msra.mxu0 0.0
        %701 = vmatprep.subr.mxu0 0.0
        %702 = vmatpush1.msra.mxu0 0.0
        %703 = vmatprep.subr.mxu0 0.0
        %704 = vmatpush1.msra.mxu0 0.0
        %705 = vmatprep.subr.mxu0 0.0
        %706 = vmatpush1.msra.mxu0 0.0
        %707 = vmatprep.subr.mxu0 0.0
        %708 = vmatpush1.msra.mxu0 0.0
        %709 = vmatprep.subr.mxu0 0.0
        %710 = vmatpush1.msra.mxu0 0.0
        %711 = vmatprep.subr.mxu0 0.0
        %712 = vmatpush1.msra.mxu0 0.0
        %713 = vmatprep.subr.mxu0 0.0
        %714 = vmatpush1.msra.mxu0 0.0
        %715 = vmatprep.subr.mxu0 0.0
        %716 = vmatpush1.msra.mxu0 0.0
        %717 = vmatprep.subr.mxu0 0.0
        %718 = vmatpush1.msra.mxu0 0.0
        %719 = vmatprep.subr.mxu0 0.0
        %720 = vmatpush1.msra.mxu0 0.0
        %721 = vmatprep.subr.mxu0 0.0
        %722 = vmatpush1.msra.mxu0 0.0
        %723 = vmatprep.subr.mxu0 0.0
        %724 = vmatpush1.msra.mxu0 0.0
        %725 = vmatprep.subr.mxu0 0.0
        %726 = vmatpush1.msra.mxu0 0.0
        %727 = vmatprep.subr.mxu0 0.0
        %728 = vmatpush1.msra.mxu0 0.0
        %729 = vmatprep.subr.mxu0 0.0
        %730 = vmatpush1.msra.mxu0 0.0
        %731 = vmatprep.subr.mxu0 0.0
        %732 = vmatpush1.msra.mxu0 0.0
        %733 = vmatprep.subr.mxu0 0.0
        %734 = vmatpush1.msra.mxu0 0.0
        %735 = vmatprep.subr.mxu0 0.0
        %736 = vmatpush1.msra.mxu0 0.0
        %737 = vmatprep.subr.mxu0 0.0
        %738 = vmatpush1.msra.mxu0 0.0
        %739 = vmatprep.subr.mxu0 0.0
        %740 = vmatpush1.msra.mxu0 0.0
        %741 = vmatprep.subr.mxu0 0.0
        %742 = vmatpush1.msra.mxu0 0.0
        %743 = vmatprep.subr.mxu0 0.0
        %744 = vmatpush1.msra.mxu0 0.0
        %745 = vmatprep.subr.mxu0 0.0
        %746 = vmatpush1.msra.mxu0 0.0
        %747 = vmatprep.subr.mxu0 0.0
        %748 = vmatpush1.msra.mxu0 0.0
        %749 = vmatprep.mubr.f32.mxu0 0.0
        %v750 = vand.u32 %v278, 4294901760
        %751 = vmatmul.mubr.f32.gmra.mrb[0].mxu0 %v750
        %v752 = vpop.f32.mrb[0].mxu0
        %v753 = vadd.f32 %v655, %v752
        %v754 = vpop.f32.mrb[0].mxu0
        %755 = vmatprep.mubr.f32.mxu0 0.0
        %v756 = vand.u32 %v281, 4294901760
        %757 = vmatmul.mubr.f32.gmra.mrb[0].mxu0 %v756
        %v758 = vpop.f32.mrb[0].mxu0
        %v759 = vadd.f32 %v663, %v758
        %v760 = vpop.f32.mrb[0].mxu0
        %761 = vmatprep.mubr.f32.mxu0 0.0
        %v762 = vand.u32 %v284, 4294901760
        %763 = vmatmul.mubr.f32.gmra.mrb[0].mxu0 %v762
        %v764 = vpop.f32.mrb[0].mxu0
        %v765 = vadd.f32 %v671, %v764
        %v766 = vpop.f32.mrb[0].mxu0
        %767 = vmatprep.mubr.f32.mxu0 0.0
        %v768 = vand.u32 %v287, 4294901760
        %769 = vmatmul.mubr.f32.gmra.mrb[0].mxu0 %v768
        %v770 = vpop.f32.mrb[0].mxu0
        %v771 = vadd.f32 %v679, %v770
        %v772 = vpop.f32.mrb[0].mxu0
        %773 = vdwg.mxu0
        %774 = vmatprep.subr.mxu0 0.0
        %v775 = vand.u32 %v247, 4294901760
        %776 = vmatpush1.msra.mxu0 %v775
        %777 = vmatprep.subr.mxu0 0.0
        %778 = vmatpush1.msra.mxu0 0.0
        %779 = vmatprep.subr.mxu0 0.0
        %780 = vmatpush1.msra.mxu0 0.0
        %781 = vmatprep.subr.mxu0 0.0
        %782 = vmatpush1.msra.mxu0 0.0
        %783 = vmatprep.subr.mxu0 0.0
        %784 = vmatpush1.msra.mxu0 0.0
        %785 = vmatprep.subr.mxu0 0.0
        %786 = vmatpush1.msra.mxu0 0.0
        %787 = vmatprep.subr.mxu0 0.0
        %788 = vmatpush1.msra.mxu0 0.0
        %789 = vmatprep.subr.mxu0 0.0
        %790 = vmatpush1.msra.mxu0 0.0
        %791 = vmatprep.subr.mxu0 0.0
        %792 = vmatpush1.msra.mxu0 0.0
        %793 = vmatprep.subr.mxu0 0.0
        %794 = vmatpush1.msra.mxu0 0.0
        %795 = vmatprep.subr.mxu0 0.0
        %796 = vmatpush1.msra.mxu0 0.0
        %797 = vmatprep.subr.mxu0 0.0
        %798 = vmatpush1.msra.mxu0 0.0
        %799 = vmatprep.subr.mxu0 0.0
        %800 = vmatpush1.msra.mxu0 0.0
        %801 = vmatprep.subr.mxu0 0.0
        %802 = vmatpush1.msra.mxu0 0.0
        %803 = vmatprep.subr.mxu0 0.0
        %804 = vmatpush1.msra.mxu0 0.0
        %805 = vmatprep.subr.mxu0 0.0
        %806 = vmatpush1.msra.mxu0 0.0
        %807 = vmatprep.subr.mxu0 0.0
        %808 = vmatpush1.msra.mxu0 0.0
        %809 = vmatprep.subr.mxu0 0.0
        %810 = vmatpush1.msra.mxu0 0.0
        %811 = vmatprep.subr.mxu0 0.0
        %812 = vmatpush1.msra.mxu0 0.0
        %813 = vmatprep.subr.mxu0 0.0
        %814 = vmatpush1.msra.mxu0 0.0
        %815 = vmatprep.subr.mxu0 0.0
        %816 = vmatpush1.msra.mxu0 0.0
        %817 = vmatprep.subr.mxu0 0.0
        %818 = vmatpush1.msra.mxu0 0.0
        %819 = vmatprep.subr.mxu0 0.0
        %820 = vmatpush1.msra.mxu0 0.0
        %821 = vmatprep.subr.mxu0 0.0
        %822 = vmatpush1.msra.mxu0 0.0
        %823 = vmatprep.subr.mxu0 0.0
        %824 = vmatpush1.msra.mxu0 0.0
        %825 = vmatprep.subr.mxu0 0.0
        %826 = vmatpush1.msra.mxu0 0.0
        %827 = vmatprep.subr.mxu0 0.0
        %828 = vmatpush1.msra.mxu0 0.0
        %829 = vmatprep.subr.mxu0 0.0
        %830 = vmatpush1.msra.mxu0 0.0
        %831 = vmatprep.subr.mxu0 0.0
        %832 = vmatpush1.msra.mxu0 0.0
        %833 = vmatprep.subr.mxu0 0.0
        %834 = vmatpush1.msra.mxu0 0.0
        %835 = vmatprep.subr.mxu0 0.0
        %836 = vmatpush1.msra.mxu0 0.0
        %837 = vmatprep.subr.mxu0 0.0
        %838 = vmatpush1.msra.mxu0 0.0
        %839 = vmatprep.mubr.f32.mxu0 0.0
        %v840 = vand.u32 %v278, 4294901760
        %841 = vmatmul.mubr.f32.gmra.mrb[0].mxu0 %v840
        %v842 = vpop.f32.mrb[0].mxu0
        %v843 = vadd.f32 %v753, %v842
        %v844 = vpop.f32.mrb[0].mxu0
        %845 = vmatprep.mubr.f32.mxu0 0.0
        %v846 = vand.u32 %v281, 4294901760
        %847 = vmatmul.mubr.f32.gmra.mrb[0].mxu0 %v846
        %v848 = vpop.f32.mrb[0].mxu0
        %v849 = vadd.f32 %v759, %v848
        %v850 = vpop.f32.mrb[0].mxu0
        %851 = vmatprep.mubr.f32.mxu0 0.0
        %v852 = vand.u32 %v284, 4294901760
        %853 = vmatmul.mubr.f32.gmra.mrb[0].mxu0 %v852
        %v854 = vpop.f32.mrb[0].mxu0
        %v855 = vadd.f32 %v765, %v854
        %v856 = vpop.f32.mrb[0].mxu0
        %857 = vmatprep.mubr.f32.mxu0 0.0
        %v858 = vand.u32 %v287, 4294901760
        %859 = vmatmul.mubr.f32.gmra.mrb[0].mxu0 %v858
        %v860 = vpop.f32.mrb[0].mxu0
        %v861 = vadd.f32 %v771, %v860
        %v862 = vpop.f32.mrb[0].mxu0
        %863 = vdwg.mxu0
        %v864 = vmul.f32 %v843, 100.0
        %v865 = vmul.f32 %v849, 100.0
        %v866 = vmul.f32 %v855, 100.0
        %v867 = vmul.f32 %v861, 100.0
        %v868 = vmin.f32 %v864, 20.0
        %v869 = vmin.f32 %v865, 20.0
        %v870 = vmin.f32 %v866, 20.0
        %v871 = vmin.f32 %v867, 20.0
        %v872 = vmul.f32 %v868, 1.442695
        %v873 = vpow.pop %v872
        %v874 = vmul.f32 %v869, 1.442695
        %v875 = vpow.pop %v874
        %v876 = vmul.f32 %v870, 1.442695
        %v877 = vpow.pop %v876
        %v878 = vmul.f32 %v871, 1.442695
        %v879 = vpow.pop %v878
        %v880 = vadd.f32 %v873, 1.0
        %v881 = vadd.f32 %v875, 1.0
        %v882 = vadd.f32 %v877, 1.0
        %v883 = vadd.f32 %v879, 1.0
        %v884 = vlog2.pop %v880
        %v885 = vmul.f32 %v884, 0.6931472
        %v886 = vlog2.pop %v881
        %v887 = vmul.f32 %v886, 0.6931472
        %v888 = vlog2.pop %v882
        %v889 = vmul.f32 %v888, 0.6931472
        %v890 = vlog2.pop %v883
        %v891 = vmul.f32 %v890, 0.6931472
        %v892 = vmul.f32 %v885, 0.01
        %v893 = vmul.f32 %v887, 0.01
        %v894 = vmul.f32 %v889, 0.01
        %v895 = vmul.f32 %v891, 0.01
        %v896 = vmax.f32 %v892, %v843
        %v897 = vmax.f32 %v893, %v849
        %v898 = vmax.f32 %v894, %v855
        %v899 = vmax.f32 %v895, %v861
        %v900 = vld [vmem:[%s2] sm:$0xff]
        %v901 = vld [vmem:[%s2 + $0x8] sm:$0xff]
        %v902 = vld [vmem:[%s2 + $0x10] sm:$0xff]
        %v903 = vld [vmem:[%s2 + $0x18] sm:$0xff]
        %s904 = scalar_lea.vmem %s3, 32
        %v905 = vld [vmem:[%s904] sm:$0xff]
        %v906 = vld [vmem:[%s904 + $0x8] sm:$0xff]
        %v907 = vld [vmem:[%s904 + $0x10] sm:$0xff]
        %v908 = vld [vmem:[%s904 + $0x18] sm:$0xff]
        %910 = vset.pattern.permute.xlu0 0
        %911 = vperm.xlu0 %910, %v905
        %v912 = vpop.permute.xlu0 %911
        %915 = vset.pattern.permute.xlu0 0
        %916 = vperm.xlu0 %915, %v906
        %v917 = vpop.permute.xlu0 %916
        %920 = vset.pattern.permute.xlu0 0
        %921 = vperm.xlu0 %920, %v907
        %v922 = vpop.permute.xlu0 %921
        %925 = vset.pattern.permute.xlu0 0
        %926 = vperm.xlu0 %925, %v908
        %v927 = vpop.permute.xlu0 %926
        %vm929 = vcmask 261120
        %v931 = vsel %vm929, %v900, 0
        %v934 = vsel %vm929, %v901, 0
        %v937 = vsel %vm929, %v902, 0
        %v940 = vsel %vm929, %v903, 0
        %942 = vmatprep.subr.mxu0 0.0
        %v943 = vand.u32 %v896, 4294901760
        %944 = vmatpush1.msra.mxu0 %v943
        %945 = vmatprep.subr.mxu0 0.0
        %v946 = vand.u32 %v897, 4294901760
        %947 = vmatpush1.msra.mxu0 %v946
        %948 = vmatprep.subr.mxu0 0.0
        %v949 = vand.u32 %v898, 4294901760
        %950 = vmatpush1.msra.mxu0 %v949
        %951 = vmatprep.subr.mxu0 0.0
        %v952 = vand.u32 %v899, 4294901760
        %953 = vmatpush1.msra.mxu0 %v952
        %954 = vmatprep.subr.mxu0 0.0
        %955 = vmatpush1.msra.mxu0 0.0
        %956 = vmatprep.subr.mxu0 0.0
        %957 = vmatpush1.msra.mxu0 0.0
        %958 = vmatprep.subr.mxu0 0.0
        %959 = vmatpush1.msra.mxu0 0.0
        %960 = vmatprep.subr.mxu0 0.0
        %961 = vmatpush1.msra.mxu0 0.0
        %962 = vmatprep.subr.mxu0 0.0
        %963 = vmatpush1.msra.mxu0 0.0
        %964 = vmatprep.subr.mxu0 0.0
        %965 = vmatpush1.msra.mxu0 0.0
        %966 = vmatprep.subr.mxu0 0.0
        %967 = vmatpush1.msra.mxu0 0.0
        %968 = vmatprep.subr.mxu0 0.0
        %969 = vmatpush1.msra.mxu0 0.0
        %970 = vmatprep.subr.mxu0 0.0
        %971 = vmatpush1.msra.mxu0 0.0
        %972 = vmatprep.subr.mxu0 0.0
        %973 = vmatpush1.msra.mxu0 0.0
        %974 = vmatprep.subr.mxu0 0.0
        %975 = vmatpush1.msra.mxu0 0.0
        %976 = vmatprep.subr.mxu0 0.0
        %977 = vmatpush1.msra.mxu0 0.0
        %978 = vmatprep.subr.mxu0 0.0
        %979 = vmatpush1.msra.mxu0 0.0
        %980 = vmatprep.subr.mxu0 0.0
        %981 = vmatpush1.msra.mxu0 0.0
        %982 = vmatprep.subr.mxu0 0.0
        %983 = vmatpush1.msra.mxu0 0.0
        %984 = vmatprep.subr.mxu0 0.0
        %985 = vmatpush1.msra.mxu0 0.0
        %986 = vmatprep.subr.mxu0 0.0
        %987 = vmatpush1.msra.mxu0 0.0
        %988 = vmatprep.subr.mxu0 0.0
        %989 = vmatpush1.msra.mxu0 0.0
        %990 = vmatprep.subr.mxu0 0.0
        %991 = vmatpush1.msra.mxu0 0.0
        %992 = vmatprep.subr.mxu0 0.0
        %993 = vmatpush1.msra.mxu0 0.0
        %994 = vmatprep.subr.mxu0 0.0
        %995 = vmatpush1.msra.mxu0 0.0
        %996 = vmatprep.subr.mxu0 0.0
        %997 = vmatpush1.msra.mxu0 0.0
        %998 = vmatprep.subr.mxu0 0.0
        %999 = vmatpush1.msra.mxu0 0.0
        %1000 = vmatprep.subr.mxu0 0.0
        %1001 = vmatpush1.msra.mxu0 0.0
        %1002 = vmatprep.subr.mxu0 0.0
        %1003 = vmatpush1.msra.mxu0 0.0
        %1004 = vmatprep.subr.mxu0 0.0
        %1005 = vmatpush1.msra.mxu0 0.0
        %1006 = vmatprep.subr.mxu0 0.0
        %1007 = vmatpush1.msra.mxu0 0.0
        %1008 = vmatprep.subr.mxu0 0.0
        %1009 = vmatpush1.msra.mxu0 0.0
        %1010 = vmatprep.mubr.f32.mxu0 0.0
        %v1011 = vand.u32 %v931, 4294901760
        %v1012 = vsub.f32 %v931, %v1011
        %v1013 = vand.u32 %v1012, 4294901760
        %v1014 = vsub.f32 %v1012, %v1013
        %v1015 = vand.u32 %v1014, 4294901760
        %1016 = vmatmul.mubr.f32.gmra.mrb[0].mxu0 %v1015
        %v1017 = vpop.f32.mrb[0].mxu0
        %v1018 = vadd.f32 %v912, %v1017
        %v1019 = vpop.f32.mrb[0].mxu0
        %1020 = vmatprep.mubr.f32.mxu0 0.0
        %v1021 = vand.u32 %v934, 4294901760
        %v1022 = vsub.f32 %v934, %v1021
        %v1023 = vand.u32 %v1022, 4294901760
        %v1024 = vsub.f32 %v1022, %v1023
        %v1025 = vand.u32 %v1024, 4294901760
        %1026 = vmatmul.mubr.f32.gmra.mrb[0].mxu0 %v1025
        %v1027 = vpop.f32.mrb[0].mxu0
        %v1028 = vadd.f32 %v917, %v1027
        %v1029 = vpop.f32.mrb[0].mxu0
        %1030 = vmatprep.mubr.f32.mxu0 0.0
        %v1031 = vand.u32 %v937, 4294901760
        %v1032 = vsub.f32 %v937, %v1031
        %v1033 = vand.u32 %v1032, 4294901760
        %v1034 = vsub.f32 %v1032, %v1033
        %v1035 = vand.u32 %v1034, 4294901760
        %1036 = vmatmul.mubr.f32.gmra.mrb[0].mxu0 %v1035
        %v1037 = vpop.f32.mrb[0].mxu0
        %v1038 = vadd.f32 %v922, %v1037
        %v1039 = vpop.f32.mrb[0].mxu0
        %1040 = vmatprep.mubr.f32.mxu0 0.0
        %v1041 = vand.u32 %v940, 4294901760
        %v1042 = vsub.f32 %v940, %v1041
        %v1043 = vand.u32 %v1042, 4294901760
        %v1044 = vsub.f32 %v1042, %v1043
        %v1045 = vand.u32 %v1044, 4294901760
        %1046 = vmatmul.mubr.f32.gmra.mrb[0].mxu0 %v1045
        %v1047 = vpop.f32.mrb[0].mxu0
        %v1048 = vadd.f32 %v927, %v1047
        %v1049 = vpop.f32.mrb[0].mxu0
        %1050 = vdwg.mxu0
        %1051 = vmatprep.subr.mxu0 0.0
        %v1052 = vand.u32 %v896, 4294901760
        %v1053 = vsub.f32 %v896, %v1052
        %v1054 = vand.u32 %v1053, 4294901760
        %v1055 = vsub.f32 %v1053, %v1054
        %v1056 = vand.u32 %v1055, 4294901760
        %1057 = vmatpush1.msra.mxu0 %v1056
        %1058 = vmatprep.subr.mxu0 0.0
        %v1059 = vand.u32 %v897, 4294901760
        %v1060 = vsub.f32 %v897, %v1059
        %v1061 = vand.u32 %v1060, 4294901760
        %v1062 = vsub.f32 %v1060, %v1061
        %v1063 = vand.u32 %v1062, 4294901760
        %1064 = vmatpush1.msra.mxu0 %v1063
        %1065 = vmatprep.subr.mxu0 0.0
        %v1066 = vand.u32 %v898, 4294901760
        %v1067 = vsub.f32 %v898, %v1066
        %v1068 = vand.u32 %v1067, 4294901760
        %v1069 = vsub.f32 %v1067, %v1068
        %v1070 = vand.u32 %v1069, 4294901760
        %1071 = vmatpush1.msra.mxu0 %v1070
        %1072 = vmatprep.subr.mxu0 0.0
        %v1073 = vand.u32 %v899, 4294901760
        %v1074 = vsub.f32 %v899, %v1073
        %v1075 = vand.u32 %v1074, 4294901760
        %v1076 = vsub.f32 %v1074, %v1075
        %v1077 = vand.u32 %v1076, 4294901760
        %1078 = vmatpush1.msra.mxu0 %v1077
        %1079 = vmatprep.subr.mxu0 0.0
        %1080 = vmatpush1.msra.mxu0 0.0
        %1081 = vmatprep.subr.mxu0 0.0
        %1082 = vmatpush1.msra.mxu0 0.0
        %1083 = vmatprep.subr.mxu0 0.0
        %1084 = vmatpush1.msra.mxu0 0.0
        %1085 = vmatprep.subr.mxu0 0.0
        %1086 = vmatpush1.msra.mxu0 0.0
        %1087 = vmatprep.subr.mxu0 0.0
        %1088 = vmatpush1.msra.mxu0 0.0
        %1089 = vmatprep.subr.mxu0 0.0
        %1090 = vmatpush1.msra.mxu0 0.0
        %1091 = vmatprep.subr.mxu0 0.0
        %1092 = vmatpush1.msra.mxu0 0.0
        %1093 = vmatprep.subr.mxu0 0.0
        %1094 = vmatpush1.msra.mxu0 0.0
        %1095 = vmatprep.subr.mxu0 0.0
        %1096 = vmatpush1.msra.mxu0 0.0
        %1097 = vmatprep.subr.mxu0 0.0
        %1098 = vmatpush1.msra.mxu0 0.0
        %1099 = vmatprep.subr.mxu0 0.0
        %1100 = vmatpush1.msra.mxu0 0.0
        %1101 = vmatprep.subr.mxu0 0.0
        %1102 = vmatpush1.msra.mxu0 0.0
        %1103 = vmatprep.subr.mxu0 0.0
        %1104 = vmatpush1.msra.mxu0 0.0
        %1105 = vmatprep.subr.mxu0 0.0
        %1106 = vmatpush1.msra.mxu0 0.0
        %1107 = vmatprep.subr.mxu0 0.0
        %1108 = vmatpush1.msra.mxu0 0.0
        %1109 = vmatprep.subr.mxu0 0.0
        %1110 = vmatpush1.msra.mxu0 0.0
        %1111 = vmatprep.subr.mxu0 0.0
        %1112 = vmatpush1.msra.mxu0 0.0
        %1113 = vmatprep.subr.mxu0 0.0
        %1114 = vmatpush1.msra.mxu0 0.0
        %1115 = vmatprep.subr.mxu0 0.0
        %1116 = vmatpush1.msra.mxu0 0.0
        %1117 = vmatprep.subr.mxu0 0.0
        %1118 = vmatpush1.msra.mxu0 0.0
        %1119 = vmatprep.subr.mxu0 0.0
        %1120 = vmatpush1.msra.mxu0 0.0
        %1121 = vmatprep.subr.mxu0 0.0
        %1122 = vmatpush1.msra.mxu0 0.0
        %1123 = vmatprep.subr.mxu0 0.0
        %1124 = vmatpush1.msra.mxu0 0.0
        %1125 = vmatprep.subr.mxu0 0.0
        %1126 = vmatpush1.msra.mxu0 0.0
        %1127 = vmatprep.subr.mxu0 0.0
        %1128 = vmatpush1.msra.mxu0 0.0
        %1129 = vmatprep.subr.mxu0 0.0
        %1130 = vmatpush1.msra.mxu0 0.0
        %1131 = vmatprep.subr.mxu0 0.0
        %1132 = vmatpush1.msra.mxu0 0.0
        %1133 = vmatprep.subr.mxu0 0.0
        %1134 = vmatpush1.msra.mxu0 0.0
        %1135 = vmatprep.mubr.f32.mxu0 0.0
        %v1136 = vand.u32 %v931, 4294901760
        %1137 = vmatmul.mubr.f32.gmra.mrb[0].mxu0 %v1136
        %v1138 = vpop.f32.mrb[0].mxu0
        %v1139 = vadd.f32 %v1018, %v1138
        %v1140 = vpop.f32.mrb[0].mxu0
        %1141 = vmatprep.mubr.f32.mxu0 0.0
        %v1142 = vand.u32 %v934, 4294901760
        %1143 = vmatmul.mubr.f32.gmra.mrb[0].mxu0 %v1142
        %v1144 = vpop.f32.mrb[0].mxu0
        %v1145 = vadd.f32 %v1028, %v1144
        %v1146 = vpop.f32.mrb[0].mxu0
        %1147 = vmatprep.mubr.f32.mxu0 0.0
        %v1148 = vand.u32 %v937, 4294901760
        %1149 = vmatmul.mubr.f32.gmra.mrb[0].mxu0 %v1148
        %v1150 = vpop.f32.mrb[0].mxu0
        %v1151 = vadd.f32 %v1038, %v1150
        %v1152 = vpop.f32.mrb[0].mxu0
        %1153 = vmatprep.mubr.f32.mxu0 0.0
        %v1154 = vand.u32 %v940, 4294901760
        %1155 = vmatmul.mubr.f32.gmra.mrb[0].mxu0 %v1154
        %v1156 = vpop.f32.mrb[0].mxu0
        %v1157 = vadd.f32 %v1048, %v1156
        %v1158 = vpop.f32.mrb[0].mxu0
        %1159 = vdwg.mxu0
        %1160 = vmatprep.subr.mxu0 0.0
        %v1161 = vand.u32 %v896, 4294901760
        %v1162 = vsub.f32 %v896, %v1161
        %1163 = vmatpush1.msra.mxu0 %v1162
        %1164 = vmatprep.subr.mxu0 0.0
        %v1165 = vand.u32 %v897, 4294901760
        %v1166 = vsub.f32 %v897, %v1165
        %1167 = vmatpush1.msra.mxu0 %v1166
        %1168 = vmatprep.subr.mxu0 0.0
        %v1169 = vand.u32 %v898, 4294901760
        %v1170 = vsub.f32 %v898, %v1169
        %1171 = vmatpush1.msra.mxu0 %v1170
        %1172 = vmatprep.subr.mxu0 0.0
        %v1173 = vand.u32 %v899, 4294901760
        %v1174 = vsub.f32 %v899, %v1173
        %1175 = vmatpush1.msra.mxu0 %v1174
        %1176 = vmatprep.subr.mxu0 0.0
        %1177 = vmatpush1.msra.mxu0 0.0
        %1178 = vmatprep.subr.mxu0 0.0
        %1179 = vmatpush1.msra.mxu0 0.0
        %1180 = vmatprep.subr.mxu0 0.0
        %1181 = vmatpush1.msra.mxu0 0.0
        %1182 = vmatprep.subr.mxu0 0.0
        %1183 = vmatpush1.msra.mxu0 0.0
        %1184 = vmatprep.subr.mxu0 0.0
        %1185 = vmatpush1.msra.mxu0 0.0
        %1186 = vmatprep.subr.mxu0 0.0
        %1187 = vmatpush1.msra.mxu0 0.0
        %1188 = vmatprep.subr.mxu0 0.0
        %1189 = vmatpush1.msra.mxu0 0.0
        %1190 = vmatprep.subr.mxu0 0.0
        %1191 = vmatpush1.msra.mxu0 0.0
        %1192 = vmatprep.subr.mxu0 0.0
        %1193 = vmatpush1.msra.mxu0 0.0
        %1194 = vmatprep.subr.mxu0 0.0
        %1195 = vmatpush1.msra.mxu0 0.0
        %1196 = vmatprep.subr.mxu0 0.0
        %1197 = vmatpush1.msra.mxu0 0.0
        %1198 = vmatprep.subr.mxu0 0.0
        %1199 = vmatpush1.msra.mxu0 0.0
        %1200 = vmatprep.subr.mxu0 0.0
        %1201 = vmatpush1.msra.mxu0 0.0
        %1202 = vmatprep.subr.mxu0 0.0
        %1203 = vmatpush1.msra.mxu0 0.0
        %1204 = vmatprep.subr.mxu0 0.0
        %1205 = vmatpush1.msra.mxu0 0.0
        %1206 = vmatprep.subr.mxu0 0.0
        %1207 = vmatpush1.msra.mxu0 0.0
        %1208 = vmatprep.subr.mxu0 0.0
        %1209 = vmatpush1.msra.mxu0 0.0
        %1210 = vmatprep.subr.mxu0 0.0
        %1211 = vmatpush1.msra.mxu0 0.0
        %1212 = vmatprep.subr.mxu0 0.0
        %1213 = vmatpush1.msra.mxu0 0.0
        %1214 = vmatprep.subr.mxu0 0.0
        %1215 = vmatpush1.msra.mxu0 0.0
        %1216 = vmatprep.subr.mxu0 0.0
        %1217 = vmatpush1.msra.mxu0 0.0
        %1218 = vmatprep.subr.mxu0 0.0
        %1219 = vmatpush1.msra.mxu0 0.0
        %1220 = vmatprep.subr.mxu0 0.0
        %1221 = vmatpush1.msra.mxu0 0.0
        %1222 = vmatprep.subr.mxu0 0.0
        %1223 = vmatpush1.msra.mxu0 0.0
        %1224 = vmatprep.subr.mxu0 0.0
        %1225 = vmatpush1.msra.mxu0 0.0
        %1226 = vmatprep.subr.mxu0 0.0
        %1227 = vmatpush1.msra.mxu0 0.0
        %1228 = vmatprep.subr.mxu0 0.0
        %1229 = vmatpush1.msra.mxu0 0.0
        %1230 = vmatprep.subr.mxu0 0.0
        %1231 = vmatpush1.msra.mxu0 0.0
        %1232 = vmatprep.mubr.f32.mxu0 0.0
        %v1233 = vand.u32 %v931, 4294901760
        %v1234 = vsub.f32 %v931, %v1233
        %1235 = vmatmul.mubr.f32.gmra.mrb[0].mxu0 %v1234
        %v1236 = vpop.f32.mrb[0].mxu0
        %v1237 = vadd.f32 %v1139, %v1236
        %v1238 = vpop.f32.mrb[0].mxu0
        %1239 = vmatprep.mubr.f32.mxu0 0.0
        %v1240 = vand.u32 %v934, 4294901760
        %v1241 = vsub.f32 %v934, %v1240
        %1242 = vmatmul.mubr.f32.gmra.mrb[0].mxu0 %v1241
        %v1243 = vpop.f32.mrb[0].mxu0
        %v1244 = vadd.f32 %v1145, %v1243
        %v1245 = vpop.f32.mrb[0].mxu0
        %1246 = vmatprep.mubr.f32.mxu0 0.0
        %v1247 = vand.u32 %v937, 4294901760
        %v1248 = vsub.f32 %v937, %v1247
        %1249 = vmatmul.mubr.f32.gmra.mrb[0].mxu0 %v1248
        %v1250 = vpop.f32.mrb[0].mxu0
        %v1251 = vadd.f32 %v1151, %v1250
        %v1252 = vpop.f32.mrb[0].mxu0
        %1253 = vmatprep.mubr.f32.mxu0 0.0
        %v1254 = vand.u32 %v940, 4294901760
        %v1255 = vsub.f32 %v940, %v1254
        %1256 = vmatmul.mubr.f32.gmra.mrb[0].mxu0 %v1255
        %v1257 = vpop.f32.mrb[0].mxu0
        %v1258 = vadd.f32 %v1157, %v1257
        %v1259 = vpop.f32.mrb[0].mxu0
        %1260 = vdwg.mxu0
        %1261 = vmatprep.subr.mxu0 0.0
        %v1262 = vand.u32 %v896, 4294901760
        %1263 = vmatpush1.msra.mxu0 %v1262
        %1264 = vmatprep.subr.mxu0 0.0
        %v1265 = vand.u32 %v897, 4294901760
        %1266 = vmatpush1.msra.mxu0 %v1265
        %1267 = vmatprep.subr.mxu0 0.0
        %v1268 = vand.u32 %v898, 4294901760
        %1269 = vmatpush1.msra.mxu0 %v1268
        %1270 = vmatprep.subr.mxu0 0.0
        %v1271 = vand.u32 %v899, 4294901760
        %1272 = vmatpush1.msra.mxu0 %v1271
        %1273 = vmatprep.subr.mxu0 0.0
        %1274 = vmatpush1.msra.mxu0 0.0
        %1275 = vmatprep.subr.mxu0 0.0
        %1276 = vmatpush1.msra.mxu0 0.0
        %1277 = vmatprep.subr.mxu0 0.0
        %1278 = vmatpush1.msra.mxu0 0.0
        %1279 = vmatprep.subr.mxu0 0.0
        %1280 = vmatpush1.msra.mxu0 0.0
        %1281 = vmatprep.subr.mxu0 0.0
        %1282 = vmatpush1.msra.mxu0 0.0
        %1283 = vmatprep.subr.mxu0 0.0
        %1284 = vmatpush1.msra.mxu0 0.0
        %1285 = vmatprep.subr.mxu0 0.0
        %1286 = vmatpush1.msra.mxu0 0.0
        %1287 = vmatprep.subr.mxu0 0.0
        %1288 = vmatpush1.msra.mxu0 0.0
        %1289 = vmatprep.subr.mxu0 0.0
        %1290 = vmatpush1.msra.mxu0 0.0
        %1291 = vmatprep.subr.mxu0 0.0
        %1292 = vmatpush1.msra.mxu0 0.0
        %1293 = vmatprep.subr.mxu0 0.0
        %1294 = vmatpush1.msra.mxu0 0.0
        %1295 = vmatprep.subr.mxu0 0.0
        %1296 = vmatpush1.msra.mxu0 0.0
        %1297 = vmatprep.subr.mxu0 0.0
        %1298 = vmatpush1.msra.mxu0 0.0
        %1299 = vmatprep.subr.mxu0 0.0
        %1300 = vmatpush1.msra.mxu0 0.0
        %1301 = vmatprep.subr.mxu0 0.0
        %1302 = vmatpush1.msra.mxu0 0.0
        %1303 = vmatprep.subr.mxu0 0.0
        %1304 = vmatpush1.msra.mxu0 0.0
        %1305 = vmatprep.subr.mxu0 0.0
        %1306 = vmatpush1.msra.mxu0 0.0
        %1307 = vmatprep.subr.mxu0 0.0
        %1308 = vmatpush1.msra.mxu0 0.0
        %1309 = vmatprep.subr.mxu0 0.0
        %1310 = vmatpush1.msra.mxu0 0.0
        %1311 = vmatprep.subr.mxu0 0.0
        %1312 = vmatpush1.msra.mxu0 0.0
        %1313 = vmatprep.subr.mxu0 0.0
        %1314 = vmatpush1.msra.mxu0 0.0
        %1315 = vmatprep.subr.mxu0 0.0
        %1316 = vmatpush1.msra.mxu0 0.0
        %1317 = vmatprep.subr.mxu0 0.0
        %1318 = vmatpush1.msra.mxu0 0.0
        %1319 = vmatprep.subr.mxu0 0.0
        %1320 = vmatpush1.msra.mxu0 0.0
        %1321 = vmatprep.subr.mxu0 0.0
        %1322 = vmatpush1.msra.mxu0 0.0
        %1323 = vmatprep.subr.mxu0 0.0
        %1324 = vmatpush1.msra.mxu0 0.0
        %1325 = vmatprep.subr.mxu0 0.0
        %1326 = vmatpush1.msra.mxu0 0.0
        %1327 = vmatprep.subr.mxu0 0.0
        %1328 = vmatpush1.msra.mxu0 0.0
        %1329 = vmatprep.mubr.f32.mxu0 0.0
        %v1330 = vand.u32 %v931, 4294901760
        %v1331 = vsub.f32 %v931, %v1330
        %v1332 = vand.u32 %v1331, 4294901760
        %1333 = vmatmul.mubr.f32.gmra.mrb[0].mxu0 %v1332
        %v1334 = vpop.f32.mrb[0].mxu0
        %v1335 = vadd.f32 %v1237, %v1334
        %v1336 = vpop.f32.mrb[0].mxu0
        %1337 = vmatprep.mubr.f32.mxu0 0.0
        %v1338 = vand.u32 %v934, 4294901760
        %v1339 = vsub.f32 %v934, %v1338
        %v1340 = vand.u32 %v1339, 4294901760
        %1341 = vmatmul.mubr.f32.gmra.mrb[0].mxu0 %v1340
        %v1342 = vpop.f32.mrb[0].mxu0
        %v1343 = vadd.f32 %v1244, %v1342
        %v1344 = vpop.f32.mrb[0].mxu0
        %1345 = vmatprep.mubr.f32.mxu0 0.0
        %v1346 = vand.u32 %v937, 4294901760
        %v1347 = vsub.f32 %v937, %v1346
        %v1348 = vand.u32 %v1347, 4294901760
        %1349 = vmatmul.mubr.f32.gmra.mrb[0].mxu0 %v1348
        %v1350 = vpop.f32.mrb[0].mxu0
        %v1351 = vadd.f32 %v1251, %v1350
        %v1352 = vpop.f32.mrb[0].mxu0
        %1353 = vmatprep.mubr.f32.mxu0 0.0
        %v1354 = vand.u32 %v940, 4294901760
        %v1355 = vsub.f32 %v940, %v1354
        %v1356 = vand.u32 %v1355, 4294901760
        %1357 = vmatmul.mubr.f32.gmra.mrb[0].mxu0 %v1356
        %v1358 = vpop.f32.mrb[0].mxu0
        %v1359 = vadd.f32 %v1258, %v1358
        %v1360 = vpop.f32.mrb[0].mxu0
        %1361 = vdwg.mxu0
        %1362 = vmatprep.subr.mxu0 0.0
        %v1363 = vand.u32 %v896, 4294901760
        %v1364 = vsub.f32 %v896, %v1363
        %v1365 = vand.u32 %v1364, 4294901760
        %1366 = vmatpush1.msra.mxu0 %v1365
        %1367 = vmatprep.subr.mxu0 0.0
        %v1368 = vand.u32 %v897, 4294901760
        %v1369 = vsub.f32 %v897, %v1368
        %v1370 = vand.u32 %v1369, 4294901760
        %1371 = vmatpush1.msra.mxu0 %v1370
        %1372 = vmatprep.subr.mxu0 0.0
        %v1373 = vand.u32 %v898, 4294901760
        %v1374 = vsub.f32 %v898, %v1373
        %v1375 = vand.u32 %v1374, 4294901760
        %1376 = vmatpush1.msra.mxu0 %v1375
        %1377 = vmatprep.subr.mxu0 0.0
        %v1378 = vand.u32 %v899, 4294901760
        %v1379 = vsub.f32 %v899, %v1378
        %v1380 = vand.u32 %v1379, 4294901760
        %1381 = vmatpush1.msra.mxu0 %v1380
        %1382 = vmatprep.subr.mxu0 0.0
        %1383 = vmatpush1.msra.mxu0 0.0
        %1384 = vmatprep.subr.mxu0 0.0
        %1385 = vmatpush1.msra.mxu0 0.0
        %1386 = vmatprep.subr.mxu0 0.0
        %1387 = vmatpush1.msra.mxu0 0.0
        %1388 = vmatprep.subr.mxu0 0.0
        %1389 = vmatpush1.msra.mxu0 0.0
        %1390 = vmatprep.subr.mxu0 0.0
        %1391 = vmatpush1.msra.mxu0 0.0
        %1392 = vmatprep.subr.mxu0 0.0
        %1393 = vmatpush1.msra.mxu0 0.0
        %1394 = vmatprep.subr.mxu0 0.0
        %1395 = vmatpush1.msra.mxu0 0.0
        %1396 = vmatprep.subr.mxu0 0.0
        %1397 = vmatpush1.msra.mxu0 0.0
        %1398 = vmatprep.subr.mxu0 0.0
        %1399 = vmatpush1.msra.mxu0 0.0
        %1400 = vmatprep.subr.mxu0 0.0
        %1401 = vmatpush1.msra.mxu0 0.0
        %1402 = vmatprep.subr.mxu0 0.0
        %1403 = vmatpush1.msra.mxu0 0.0
        %1404 = vmatprep.subr.mxu0 0.0
        %1405 = vmatpush1.msra.mxu0 0.0
        %1406 = vmatprep.subr.mxu0 0.0
        %1407 = vmatpush1.msra.mxu0 0.0
        %1408 = vmatprep.subr.mxu0 0.0
        %1409 = vmatpush1.msra.mxu0 0.0
        %1410 = vmatprep.subr.mxu0 0.0
        %1411 = vmatpush1.msra.mxu0 0.0
        %1412 = vmatprep.subr.mxu0 0.0
        %1413 = vmatpush1.msra.mxu0 0.0
        %1414 = vmatprep.subr.mxu0 0.0
        %1415 = vmatpush1.msra.mxu0 0.0
        %1416 = vmatprep.subr.mxu0 0.0
        %1417 = vmatpush1.msra.mxu0 0.0
        %1418 = vmatprep.subr.mxu0 0.0
        %1419 = vmatpush1.msra.mxu0 0.0
        %1420 = vmatprep.subr.mxu0 0.0
        %1421 = vmatpush1.msra.mxu0 0.0
        %1422 = vmatprep.subr.mxu0 0.0
        %1423 = vmatpush1.msra.mxu0 0.0
        %1424 = vmatprep.subr.mxu0 0.0
        %1425 = vmatpush1.msra.mxu0 0.0
        %1426 = vmatprep.subr.mxu0 0.0
        %1427 = vmatpush1.msra.mxu0 0.0
        %1428 = vmatprep.subr.mxu0 0.0
        %1429 = vmatpush1.msra.mxu0 0.0
        %1430 = vmatprep.subr.mxu0 0.0
        %1431 = vmatpush1.msra.mxu0 0.0
        %1432 = vmatprep.subr.mxu0 0.0
        %1433 = vmatpush1.msra.mxu0 0.0
        %1434 = vmatprep.subr.mxu0 0.0
        %1435 = vmatpush1.msra.mxu0 0.0
        %1436 = vmatprep.subr.mxu0 0.0
        %1437 = vmatpush1.msra.mxu0 0.0
        %1438 = vmatprep.mubr.f32.mxu0 0.0
        %v1439 = vand.u32 %v931, 4294901760
        %1440 = vmatmul.mubr.f32.gmra.mrb[0].mxu0 %v1439
        %v1441 = vpop.f32.mrb[0].mxu0
        %v1442 = vadd.f32 %v1335, %v1441
        %v1443 = vpop.f32.mrb[0].mxu0
        %1444 = vmatprep.mubr.f32.mxu0 0.0
        %v1445 = vand.u32 %v934, 4294901760
        %1446 = vmatmul.mubr.f32.gmra.mrb[0].mxu0 %v1445
        %v1447 = vpop.f32.mrb[0].mxu0
        %v1448 = vadd.f32 %v1343, %v1447
        %v1449 = vpop.f32.mrb[0].mxu0
        %1450 = vmatprep.mubr.f32.mxu0 0.0
        %v1451 = vand.u32 %v937, 4294901760
        %1452 = vmatmul.mubr.f32.gmra.mrb[0].mxu0 %v1451
        %v1453 = vpop.f32.mrb[0].mxu0
        %v1454 = vadd.f32 %v1351, %v1453
        %v1455 = vpop.f32.mrb[0].mxu0
        %1456 = vmatprep.mubr.f32.mxu0 0.0
        %v1457 = vand.u32 %v940, 4294901760
        %1458 = vmatmul.mubr.f32.gmra.mrb[0].mxu0 %v1457
        %v1459 = vpop.f32.mrb[0].mxu0
        %v1460 = vadd.f32 %v1359, %v1459
        %v1461 = vpop.f32.mrb[0].mxu0
        %1462 = vdwg.mxu0
        %1463 = vmatprep.subr.mxu0 0.0
        %v1464 = vand.u32 %v896, 4294901760
        %1465 = vmatpush1.msra.mxu0 %v1464
        %1466 = vmatprep.subr.mxu0 0.0
        %v1467 = vand.u32 %v897, 4294901760
        %1468 = vmatpush1.msra.mxu0 %v1467
        %1469 = vmatprep.subr.mxu0 0.0
        %v1470 = vand.u32 %v898, 4294901760
        %1471 = vmatpush1.msra.mxu0 %v1470
        %1472 = vmatprep.subr.mxu0 0.0
        %v1473 = vand.u32 %v899, 4294901760
        %1474 = vmatpush1.msra.mxu0 %v1473
        %1475 = vmatprep.subr.mxu0 0.0
        %1476 = vmatpush1.msra.mxu0 0.0
        %1477 = vmatprep.subr.mxu0 0.0
        %1478 = vmatpush1.msra.mxu0 0.0
        %1479 = vmatprep.subr.mxu0 0.0
        %1480 = vmatpush1.msra.mxu0 0.0
        %1481 = vmatprep.subr.mxu0 0.0
        %1482 = vmatpush1.msra.mxu0 0.0
        %1483 = vmatprep.subr.mxu0 0.0
        %1484 = vmatpush1.msra.mxu0 0.0
        %1485 = vmatprep.subr.mxu0 0.0
        %1486 = vmatpush1.msra.mxu0 0.0
        %1487 = vmatprep.subr.mxu0 0.0
        %1488 = vmatpush1.msra.mxu0 0.0
        %1489 = vmatprep.subr.mxu0 0.0
        %1490 = vmatpush1.msra.mxu0 0.0
        %1491 = vmatprep.subr.mxu0 0.0
        %1492 = vmatpush1.msra.mxu0 0.0
        %1493 = vmatprep.subr.mxu0 0.0
        %1494 = vmatpush1.msra.mxu0 0.0
        %1495 = vmatprep.subr.mxu0 0.0
        %1496 = vmatpush1.msra.mxu0 0.0
        %1497 = vmatprep.subr.mxu0 0.0
        %1498 = vmatpush1.msra.mxu0 0.0
        %1499 = vmatprep.subr.mxu0 0.0
        %1500 = vmatpush1.msra.mxu0 0.0
        %1501 = vmatprep.subr.mxu0 0.0
        %1502 = vmatpush1.msra.mxu0 0.0
        %1503 = vmatprep.subr.mxu0 0.0
        %1504 = vmatpush1.msra.mxu0 0.0
        %1505 = vmatprep.subr.mxu0 0.0
        %1506 = vmatpush1.msra.mxu0 0.0
        %1507 = vmatprep.subr.mxu0 0.0
        %1508 = vmatpush1.msra.mxu0 0.0
        %1509 = vmatprep.subr.mxu0 0.0
        %1510 = vmatpush1.msra.mxu0 0.0
        %1511 = vmatprep.subr.mxu0 0.0
        %1512 = vmatpush1.msra.mxu0 0.0
        %1513 = vmatprep.subr.mxu0 0.0
        %1514 = vmatpush1.msra.mxu0 0.0
        %1515 = vmatprep.subr.mxu0 0.0
        %1516 = vmatpush1.msra.mxu0 0.0
        %1517 = vmatprep.subr.mxu0 0.0
        %1518 = vmatpush1.msra.mxu0 0.0
        %1519 = vmatprep.subr.mxu0 0.0
        %1520 = vmatpush1.msra.mxu0 0.0
        %1521 = vmatprep.subr.mxu0 0.0
        %1522 = vmatpush1.msra.mxu0 0.0
        %1523 = vmatprep.subr.mxu0 0.0
        %1524 = vmatpush1.msra.mxu0 0.0
        %1525 = vmatprep.subr.mxu0 0.0
        %1526 = vmatpush1.msra.mxu0 0.0
        %1527 = vmatprep.subr.mxu0 0.0
        %1528 = vmatpush1.msra.mxu0 0.0
        %1529 = vmatprep.subr.mxu0 0.0
        %1530 = vmatpush1.msra.mxu0 0.0
        %1531 = vmatprep.mubr.f32.mxu0 0.0
        %v1532 = vand.u32 %v931, 4294901760
        %1533 = vmatmul.mubr.f32.gmra.mrb[0].mxu0 %v1532
        %v1534 = vpop.f32.mrb[0].mxu0
        %v1535 = vadd.f32 %v1442, %v1534
        %v1536 = vpop.f32.mrb[0].mxu0
        %1537 = vmatprep.mubr.f32.mxu0 0.0
        %v1538 = vand.u32 %v934, 4294901760
        %1539 = vmatmul.mubr.f32.gmra.mrb[0].mxu0 %v1538
        %v1540 = vpop.f32.mrb[0].mxu0
        %v1541 = vadd.f32 %v1448, %v1540
        %v1542 = vpop.f32.mrb[0].mxu0
        %1543 = vmatprep.mubr.f32.mxu0 0.0
        %v1544 = vand.u32 %v937, 4294901760
        %1545 = vmatmul.mubr.f32.gmra.mrb[0].mxu0 %v1544
        %v1546 = vpop.f32.mrb[0].mxu0
        %v1547 = vadd.f32 %v1454, %v1546
        %v1548 = vpop.f32.mrb[0].mxu0
        %1549 = vmatprep.mubr.f32.mxu0 0.0
        %v1550 = vand.u32 %v940, 4294901760
        %1551 = vmatmul.mubr.f32.gmra.mrb[0].mxu0 %v1550
        %v1552 = vpop.f32.mrb[0].mxu0
        %v1553 = vadd.f32 %v1460, %v1552
        %v1554 = vpop.f32.mrb[0].mxu0
        %1555 = vdwg.mxu0
        %v1556 = vmul.f32 %v1535, 100.0
        %v1557 = vmul.f32 %v1541, 100.0
        %v1558 = vmul.f32 %v1547, 100.0
        %v1559 = vmul.f32 %v1553, 100.0
        %v1560 = vmin.f32 %v1556, 20.0
        %v1561 = vmin.f32 %v1557, 20.0
        %v1562 = vmin.f32 %v1558, 20.0
        %v1563 = vmin.f32 %v1559, 20.0
        %v1564 = vmul.f32 %v1560, 1.442695
        %v1565 = vpow.pop %v1564
        %v1566 = vmul.f32 %v1561, 1.442695
        %v1567 = vpow.pop %v1566
        %v1568 = vmul.f32 %v1562, 1.442695
        %v1569 = vpow.pop %v1568
        %v1570 = vmul.f32 %v1563, 1.442695
        %v1571 = vpow.pop %v1570
        %v1572 = vadd.f32 %v1565, 1.0
        %v1573 = vadd.f32 %v1567, 1.0
        %v1574 = vadd.f32 %v1569, 1.0
        %v1575 = vadd.f32 %v1571, 1.0
        %v1576 = vlog2.pop %v1572
        %v1577 = vmul.f32 %v1576, 0.6931472
        %v1578 = vlog2.pop %v1573
        %v1579 = vmul.f32 %v1578, 0.6931472
        %v1580 = vlog2.pop %v1574
        %v1581 = vmul.f32 %v1580, 0.6931472
        %v1582 = vlog2.pop %v1575
        %v1583 = vmul.f32 %v1582, 0.6931472
        %v1584 = vmul.f32 %v1577, 0.01
        %v1585 = vmul.f32 %v1579, 0.01
        %v1586 = vmul.f32 %v1581, 0.01
        %v1587 = vmul.f32 %v1583, 0.01
        %v1588 = vmax.f32 %v1584, %v1535
        %v1589 = vmax.f32 %v1585, %v1541
        %v1590 = vmax.f32 %v1586, %v1547
        %v1591 = vmax.f32 %v1587, %v1553
        %s1592 = scalar_lea.vmem %s2, 32
        %v1593 = vld [vmem:[%s1592] sm:$0xff]
        %v1594 = vld [vmem:[%s1592 + $0x8] sm:$0xff]
        %v1595 = vld [vmem:[%s1592 + $0x10] sm:$0xff]
        %v1596 = vld [vmem:[%s1592 + $0x18] sm:$0xff]
        %s1597 = scalar_lea.vmem %s3, 64
        %v1598 = vld [vmem:[%s1597] sm:$0xff]
        %v1599 = vld [vmem:[%s1597 + $0x8] sm:$0xff]
        %v1600 = vld [vmem:[%s1597 + $0x10] sm:$0xff]
        %v1601 = vld [vmem:[%s1597 + $0x18] sm:$0xff]
        %1603 = vset.pattern.permute.xlu0 0
        %1604 = vperm.xlu0 %1603, %v1598
        %v1605 = vpop.permute.xlu0 %1604
        %1608 = vset.pattern.permute.xlu0 0
        %1609 = vperm.xlu0 %1608, %v1599
        %v1610 = vpop.permute.xlu0 %1609
        %1613 = vset.pattern.permute.xlu0 0
        %1614 = vperm.xlu0 %1613, %v1600
        %v1615 = vpop.permute.xlu0 %1614
        %1618 = vset.pattern.permute.xlu0 0
        %1619 = vperm.xlu0 %1618, %v1601
        %v1620 = vpop.permute.xlu0 %1619
        %v1623 = vsel %vm929, %v1593, 0
        %v1626 = vsel %vm929, %v1594, 0
        %v1629 = vsel %vm929, %v1595, 0
        %v1632 = vsel %vm929, %v1596, 0
        %1634 = vmatprep.subr.mxu0 0.0
        %v1635 = vand.u32 %v1588, 4294901760
        %1636 = vmatpush1.msra.mxu0 %v1635
        %1637 = vmatprep.subr.mxu0 0.0
        %v1638 = vand.u32 %v1589, 4294901760
        %1639 = vmatpush1.msra.mxu0 %v1638
        %1640 = vmatprep.subr.mxu0 0.0
        %v1641 = vand.u32 %v1590, 4294901760
        %1642 = vmatpush1.msra.mxu0 %v1641
        %1643 = vmatprep.subr.mxu0 0.0
        %v1644 = vand.u32 %v1591, 4294901760
        %1645 = vmatpush1.msra.mxu0 %v1644
        %1646 = vmatprep.subr.mxu0 0.0
        %1647 = vmatpush1.msra.mxu0 0.0
        %1648 = vmatprep.subr.mxu0 0.0
        %1649 = vmatpush1.msra.mxu0 0.0
        %1650 = vmatprep.subr.mxu0 0.0
        %1651 = vmatpush1.msra.mxu0 0.0
        %1652 = vmatprep.subr.mxu0 0.0
        %1653 = vmatpush1.msra.mxu0 0.0
        %1654 = vmatprep.subr.mxu0 0.0
        %1655 = vmatpush1.msra.mxu0 0.0
        %1656 = vmatprep.subr.mxu0 0.0
        %1657 = vmatpush1.msra.mxu0 0.0
        %1658 = vmatprep.subr.mxu0 0.0
        %1659 = vmatpush1.msra.mxu0 0.0
        %1660 = vmatprep.subr.mxu0 0.0
        %1661 = vmatpush1.msra.mxu0 0.0
        %1662 = vmatprep.subr.mxu0 0.0
        %1663 = vmatpush1.msra.mxu0 0.0
        %1664 = vmatprep.subr.mxu0 0.0
        %1665 = vmatpush1.msra.mxu0 0.0
        %1666 = vmatprep.subr.mxu0 0.0
        %1667 = vmatpush1.msra.mxu0 0.0
        %1668 = vmatprep.subr.mxu0 0.0
        %1669 = vmatpush1.msra.mxu0 0.0
        %1670 = vmatprep.subr.mxu0 0.0
        %1671 = vmatpush1.msra.mxu0 0.0
        %1672 = vmatprep.subr.mxu0 0.0
        %1673 = vmatpush1.msra.mxu0 0.0
        %1674 = vmatprep.subr.mxu0 0.0
        %1675 = vmatpush1.msra.mxu0 0.0
        %1676 = vmatprep.subr.mxu0 0.0
        %1677 = vmatpush1.msra.mxu0 0.0
        %1678 = vmatprep.subr.mxu0 0.0
        %1679 = vmatpush1.msra.mxu0 0.0
        %1680 = vmatprep.subr.mxu0 0.0
        %1681 = vmatpush1.msra.mxu0 0.0
        %1682 = vmatprep.subr.mxu0 0.0
        %1683 = vmatpush1.msra.mxu0 0.0
        %1684 = vmatprep.subr.mxu0 0.0
        %1685 = vmatpush1.msra.mxu0 0.0
        %1686 = vmatprep.subr.mxu0 0.0
        %1687 = vmatpush1.msra.mxu0 0.0
        %1688 = vmatprep.subr.mxu0 0.0
        %1689 = vmatpush1.msra.mxu0 0.0
        %1690 = vmatprep.subr.mxu0 0.0
        %1691 = vmatpush1.msra.mxu0 0.0
        %1692 = vmatprep.subr.mxu0 0.0
        %1693 = vmatpush1.msra.mxu0 0.0
        %1694 = vmatprep.subr.mxu0 0.0
        %1695 = vmatpush1.msra.mxu0 0.0
        %1696 = vmatprep.subr.mxu0 0.0
        %1697 = vmatpush1.msra.mxu0 0.0
        %1698 = vmatprep.subr.mxu0 0.0
        %1699 = vmatpush1.msra.mxu0 0.0
        %1700 = vmatprep.subr.mxu0 0.0
        %1701 = vmatpush1.msra.mxu0 0.0
        %1702 = vmatprep.mubr.f32.mxu0 0.0
        %v1703 = vand.u32 %v1623, 4294901760
        %v1704 = vsub.f32 %v1623, %v1703
        %v1705 = vand.u32 %v1704, 4294901760
        %v1706 = vsub.f32 %v1704, %v1705
        %v1707 = vand.u32 %v1706, 4294901760
        %1708 = vmatmul.mubr.f32.gmra.mrb[0].mxu0 %v1707
        %v1709 = vpop.f32.mrb[0].mxu0
        %v1710 = vadd.f32 %v1605, %v1709
        %v1711 = vpop.f32.mrb[0].mxu0
        %1712 = vmatprep.mubr.f32.mxu0 0.0
        %v1713 = vand.u32 %v1626, 4294901760
        %v1714 = vsub.f32 %v1626, %v1713
        %v1715 = vand.u32 %v1714, 4294901760
        %v1716 = vsub.f32 %v1714, %v1715
        %v1717 = vand.u32 %v1716, 4294901760
        %1718 = vmatmul.mubr.f32.gmra.mrb[0].mxu0 %v1717
        %v1719 = vpop.f32.mrb[0].mxu0
        %v1720 = vadd.f32 %v1610, %v1719
        %v1721 = vpop.f32.mrb[0].mxu0
        %1722 = vmatprep.mubr.f32.mxu0 0.0
        %v1723 = vand.u32 %v1629, 4294901760
        %v1724 = vsub.f32 %v1629, %v1723
        %v1725 = vand.u32 %v1724, 4294901760
        %v1726 = vsub.f32 %v1724, %v1725
        %v1727 = vand.u32 %v1726, 4294901760
        %1728 = vmatmul.mubr.f32.gmra.mrb[0].mxu0 %v1727
        %v1729 = vpop.f32.mrb[0].mxu0
        %v1730 = vadd.f32 %v1615, %v1729
        %v1731 = vpop.f32.mrb[0].mxu0
        %1732 = vmatprep.mubr.f32.mxu0 0.0
        %v1733 = vand.u32 %v1632, 4294901760
        %v1734 = vsub.f32 %v1632, %v1733
        %v1735 = vand.u32 %v1734, 4294901760
        %v1736 = vsub.f32 %v1734, %v1735
        %v1737 = vand.u32 %v1736, 4294901760
        %1738 = vmatmul.mubr.f32.gmra.mrb[0].mxu0 %v1737
        %v1739 = vpop.f32.mrb[0].mxu0
        %v1740 = vadd.f32 %v1620, %v1739
        %v1741 = vpop.f32.mrb[0].mxu0
        %1742 = vdwg.mxu0
        %1743 = vmatprep.subr.mxu0 0.0
        %v1744 = vand.u32 %v1588, 4294901760
        %v1745 = vsub.f32 %v1588, %v1744
        %v1746 = vand.u32 %v1745, 4294901760
        %v1747 = vsub.f32 %v1745, %v1746
        %v1748 = vand.u32 %v1747, 4294901760
        %1749 = vmatpush1.msra.mxu0 %v1748
        %1750 = vmatprep.subr.mxu0 0.0
        %v1751 = vand.u32 %v1589, 4294901760
        %v1752 = vsub.f32 %v1589, %v1751
        %v1753 = vand.u32 %v1752, 4294901760
        %v1754 = vsub.f32 %v1752, %v1753
        %v1755 = vand.u32 %v1754, 4294901760
        %1756 = vmatpush1.msra.mxu0 %v1755
        %1757 = vmatprep.subr.mxu0 0.0
        %v1758 = vand.u32 %v1590, 4294901760
        %v1759 = vsub.f32 %v1590, %v1758
        %v1760 = vand.u32 %v1759, 4294901760
        %v1761 = vsub.f32 %v1759, %v1760
        %v1762 = vand.u32 %v1761, 4294901760
        %1763 = vmatpush1.msra.mxu0 %v1762
        %1764 = vmatprep.subr.mxu0 0.0
        %v1765 = vand.u32 %v1591, 4294901760
        %v1766 = vsub.f32 %v1591, %v1765
        %v1767 = vand.u32 %v1766, 4294901760
        %v1768 = vsub.f32 %v1766, %v1767
        %v1769 = vand.u32 %v1768, 4294901760
        %1770 = vmatpush1.msra.mxu0 %v1769
        %1771 = vmatprep.subr.mxu0 0.0
        %1772 = vmatpush1.msra.mxu0 0.0
        %1773 = vmatprep.subr.mxu0 0.0
        %1774 = vmatpush1.msra.mxu0 0.0
        %1775 = vmatprep.subr.mxu0 0.0
        %1776 = vmatpush1.msra.mxu0 0.0
        %1777 = vmatprep.subr.mxu0 0.0
        %1778 = vmatpush1.msra.mxu0 0.0
        %1779 = vmatprep.subr.mxu0 0.0
        %1780 = vmatpush1.msra.mxu0 0.0
        %1781 = vmatprep.subr.mxu0 0.0
        %1782 = vmatpush1.msra.mxu0 0.0
        %1783 = vmatprep.subr.mxu0 0.0
        %1784 = vmatpush1.msra.mxu0 0.0
        %1785 = vmatprep.subr.mxu0 0.0
        %1786 = vmatpush1.msra.mxu0 0.0
        %1787 = vmatprep.subr.mxu0 0.0
        %1788 = vmatpush1.msra.mxu0 0.0
        %1789 = vmatprep.subr.mxu0 0.0
        %1790 = vmatpush1.msra.mxu0 0.0
        %1791 = vmatprep.subr.mxu0 0.0
        %1792 = vmatpush1.msra.mxu0 0.0
        %1793 = vmatprep.subr.mxu0 0.0
        %1794 = vmatpush1.msra.mxu0 0.0
        %1795 = vmatprep.subr.mxu0 0.0
        %1796 = vmatpush1.msra.mxu0 0.0
        %1797 = vmatprep.subr.mxu0 0.0
        %1798 = vmatpush1.msra.mxu0 0.0
        %1799 = vmatprep.subr.mxu0 0.0
        %1800 = vmatpush1.msra.mxu0 0.0
        %1801 = vmatprep.subr.mxu0 0.0
        %1802 = vmatpush1.msra.mxu0 0.0
        %1803 = vmatprep.subr.mxu0 0.0
        %1804 = vmatpush1.msra.mxu0 0.0
        %1805 = vmatprep.subr.mxu0 0.0
        %1806 = vmatpush1.msra.mxu0 0.0
        %1807 = vmatprep.subr.mxu0 0.0
        %1808 = vmatpush1.msra.mxu0 0.0
        %1809 = vmatprep.subr.mxu0 0.0
        %1810 = vmatpush1.msra.mxu0 0.0
        %1811 = vmatprep.subr.mxu0 0.0
        %1812 = vmatpush1.msra.mxu0 0.0
        %1813 = vmatprep.subr.mxu0 0.0
        %1814 = vmatpush1.msra.mxu0 0.0
        %1815 = vmatprep.subr.mxu0 0.0
        %1816 = vmatpush1.msra.mxu0 0.0
        %1817 = vmatprep.subr.mxu0 0.0
        %1818 = vmatpush1.msra.mxu0 0.0
        %1819 = vmatprep.subr.mxu0 0.0
        %1820 = vmatpush1.msra.mxu0 0.0
        %1821 = vmatprep.subr.mxu0 0.0
        %1822 = vmatpush1.msra.mxu0 0.0
        %1823 = vmatprep.subr.mxu0 0.0
        %1824 = vmatpush1.msra.mxu0 0.0
        %1825 = vmatprep.subr.mxu0 0.0
        %1826 = vmatpush1.msra.mxu0 0.0
        %1827 = vmatprep.mubr.f32.mxu0 0.0
        %v1828 = vand.u32 %v1623, 4294901760
        %1829 = vmatmul.mubr.f32.gmra.mrb[0].mxu0 %v1828
        %v1830 = vpop.f32.mrb[0].mxu0
        %v1831 = vadd.f32 %v1710, %v1830
        %v1832 = vpop.f32.mrb[0].mxu0
        %1833 = vmatprep.mubr.f32.mxu0 0.0
        %v1834 = vand.u32 %v1626, 4294901760
        %1835 = vmatmul.mubr.f32.gmra.mrb[0].mxu0 %v1834
        %v1836 = vpop.f32.mrb[0].mxu0
        %v1837 = vadd.f32 %v1720, %v1836
        %v1838 = vpop.f32.mrb[0].mxu0
        %1839 = vmatprep.mubr.f32.mxu0 0.0
        %v1840 = vand.u32 %v1629, 4294901760
        %1841 = vmatmul.mubr.f32.gmra.mrb[0].mxu0 %v1840
        %v1842 = vpop.f32.mrb[0].mxu0
        %v1843 = vadd.f32 %v1730, %v1842
        %v1844 = vpop.f32.mrb[0].mxu0
        %1845 = vmatprep.mubr.f32.mxu0 0.0
        %v1846 = vand.u32 %v1632, 4294901760
        %1847 = vmatmul.mubr.f32.gmra.mrb[0].mxu0 %v1846
        %v1848 = vpop.f32.mrb[0].mxu0
        %v1849 = vadd.f32 %v1740, %v1848
        %v1850 = vpop.f32.mrb[0].mxu0
        %1851 = vdwg.mxu0
        %1852 = vmatprep.subr.mxu0 0.0
        %v1853 = vand.u32 %v1588, 4294901760
        %v1854 = vsub.f32 %v1588, %v1853
        %1855 = vmatpush1.msra.mxu0 %v1854
        %1856 = vmatprep.subr.mxu0 0.0
        %v1857 = vand.u32 %v1589, 4294901760
        %v1858 = vsub.f32 %v1589, %v1857
        %1859 = vmatpush1.msra.mxu0 %v1858
        %1860 = vmatprep.subr.mxu0 0.0
        %v1861 = vand.u32 %v1590, 4294901760
        %v1862 = vsub.f32 %v1590, %v1861
        %1863 = vmatpush1.msra.mxu0 %v1862
        %1864 = vmatprep.subr.mxu0 0.0
        %v1865 = vand.u32 %v1591, 4294901760
        %v1866 = vsub.f32 %v1591, %v1865
        %1867 = vmatpush1.msra.mxu0 %v1866
        %1868 = vmatprep.subr.mxu0 0.0
        %1869 = vmatpush1.msra.mxu0 0.0
        %1870 = vmatprep.subr.mxu0 0.0
        %1871 = vmatpush1.msra.mxu0 0.0
        %1872 = vmatprep.subr.mxu0 0.0
        %1873 = vmatpush1.msra.mxu0 0.0
        %1874 = vmatprep.subr.mxu0 0.0
        %1875 = vmatpush1.msra.mxu0 0.0
        %1876 = vmatprep.subr.mxu0 0.0
        %1877 = vmatpush1.msra.mxu0 0.0
        %1878 = vmatprep.subr.mxu0 0.0
        %1879 = vmatpush1.msra.mxu0 0.0
        %1880 = vmatprep.subr.mxu0 0.0
        %1881 = vmatpush1.msra.mxu0 0.0
        %1882 = vmatprep.subr.mxu0 0.0
        %1883 = vmatpush1.msra.mxu0 0.0
        %1884 = vmatprep.subr.mxu0 0.0
        %1885 = vmatpush1.msra.mxu0 0.0
        %1886 = vmatprep.subr.mxu0 0.0
        %1887 = vmatpush1.msra.mxu0 0.0
        %1888 = vmatprep.subr.mxu0 0.0
        %1889 = vmatpush1.msra.mxu0 0.0
        %1890 = vmatprep.subr.mxu0 0.0
        %1891 = vmatpush1.msra.mxu0 0.0
        %1892 = vmatprep.subr.mxu0 0.0
        %1893 = vmatpush1.msra.mxu0 0.0
        %1894 = vmatprep.subr.mxu0 0.0
        %1895 = vmatpush1.msra.mxu0 0.0
        %1896 = vmatprep.subr.mxu0 0.0
        %1897 = vmatpush1.msra.mxu0 0.0
        %1898 = vmatprep.subr.mxu0 0.0
        %1899 = vmatpush1.msra.mxu0 0.0
        %1900 = vmatprep.subr.mxu0 0.0
        %1901 = vmatpush1.msra.mxu0 0.0
        %1902 = vmatprep.subr.mxu0 0.0
        %1903 = vmatpush1.msra.mxu0 0.0
        %1904 = vmatprep.subr.mxu0 0.0
        %1905 = vmatpush1.msra.mxu0 0.0
        %1906 = vmatprep.subr.mxu0 0.0
        %1907 = vmatpush1.msra.mxu0 0.0
        %1908 = vmatprep.subr.mxu0 0.0
        %1909 = vmatpush1.msra.mxu0 0.0
        %1910 = vmatprep.subr.mxu0 0.0
        %1911 = vmatpush1.msra.mxu0 0.0
        %1912 = vmatprep.subr.mxu0 0.0
        %1913 = vmatpush1.msra.mxu0 0.0
        %1914 = vmatprep.subr.mxu0 0.0
        %1915 = vmatpush1.msra.mxu0 0.0
        %1916 = vmatprep.subr.mxu0 0.0
        %1917 = vmatpush1.msra.mxu0 0.0
        %1918 = vmatprep.subr.mxu0 0.0
        %1919 = vmatpush1.msra.mxu0 0.0
        %1920 = vmatprep.subr.mxu0 0.0
        %1921 = vmatpush1.msra.mxu0 0.0
        %1922 = vmatprep.subr.mxu0 0.0
        %1923 = vmatpush1.msra.mxu0 0.0
        %1924 = vmatprep.mubr.f32.mxu0 0.0
        %v1925 = vand.u32 %v1623, 4294901760
        %v1926 = vsub.f32 %v1623, %v1925
        %1927 = vmatmul.mubr.f32.gmra.mrb[0].mxu0 %v1926
        %v1928 = vpop.f32.mrb[0].mxu0
        %v1929 = vadd.f32 %v1831, %v1928
        %v1930 = vpop.f32.mrb[0].mxu0
        %1931 = vmatprep.mubr.f32.mxu0 0.0
        %v1932 = vand.u32 %v1626, 4294901760
        %v1933 = vsub.f32 %v1626, %v1932
        %1934 = vmatmul.mubr.f32.gmra.mrb[0].mxu0 %v1933
        %v1935 = vpop.f32.mrb[0].mxu0
        %v1936 = vadd.f32 %v1837, %v1935
        %v1937 = vpop.f32.mrb[0].mxu0
        %1938 = vmatprep.mubr.f32.mxu0 0.0
        %v1939 = vand.u32 %v1629, 4294901760
        %v1940 = vsub.f32 %v1629, %v1939
        %1941 = vmatmul.mubr.f32.gmra.mrb[0].mxu0 %v1940
        %v1942 = vpop.f32.mrb[0].mxu0
        %v1943 = vadd.f32 %v1843, %v1942
        %v1944 = vpop.f32.mrb[0].mxu0
        %1945 = vmatprep.mubr.f32.mxu0 0.0
        %v1946 = vand.u32 %v1632, 4294901760
        %v1947 = vsub.f32 %v1632, %v1946
        %1948 = vmatmul.mubr.f32.gmra.mrb[0].mxu0 %v1947
        %v1949 = vpop.f32.mrb[0].mxu0
        %v1950 = vadd.f32 %v1849, %v1949
        %v1951 = vpop.f32.mrb[0].mxu0
        %1952 = vdwg.mxu0
        %1953 = vmatprep.subr.mxu0 0.0
        %v1954 = vand.u32 %v1588, 4294901760
        %1955 = vmatpush1.msra.mxu0 %v1954
        %1956 = vmatprep.subr.mxu0 0.0
        %v1957 = vand.u32 %v1589, 4294901760
        %1958 = vmatpush1.msra.mxu0 %v1957
        %1959 = vmatprep.subr.mxu0 0.0
        %v1960 = vand.u32 %v1590, 4294901760
        %1961 = vmatpush1.msra.mxu0 %v1960
        %1962 = vmatprep.subr.mxu0 0.0
        %v1963 = vand.u32 %v1591, 4294901760
        %1964 = vmatpush1.msra.mxu0 %v1963
        %1965 = vmatprep.subr.mxu0 0.0
        %1966 = vmatpush1.msra.mxu0 0.0
        %1967 = vmatprep.subr.mxu0 0.0
        %1968 = vmatpush1.msra.mxu0 0.0
        %1969 = vmatprep.subr.mxu0 0.0
        %1970 = vmatpush1.msra.mxu0 0.0
        %1971 = vmatprep.subr.mxu0 0.0
        %1972 = vmatpush1.msra.mxu0 0.0
        %1973 = vmatprep.subr.mxu0 0.0
        %1974 = vmatpush1.msra.mxu0 0.0
        %1975 = vmatprep.subr.mxu0 0.0
        %1976 = vmatpush1.msra.mxu0 0.0
        %1977 = vmatprep.subr.mxu0 0.0
        %1978 = vmatpush1.msra.mxu0 0.0
        %1979 = vmatprep.subr.mxu0 0.0
        %1980 = vmatpush1.msra.mxu0 0.0
        %1981 = vmatprep.subr.mxu0 0.0
        %1982 = vmatpush1.msra.mxu0 0.0
        %1983 = vmatprep.subr.mxu0 0.0
        %1984 = vmatpush1.msra.mxu0 0.0
        %1985 = vmatprep.subr.mxu0 0.0
        %1986 = vmatpush1.msra.mxu0 0.0
        %1987 = vmatprep.subr.mxu0 0.0
        %1988 = vmatpush1.msra.mxu0 0.0
        %1989 = vmatprep.subr.mxu0 0.0
        %1990 = vmatpush1.msra.mxu0 0.0
        %1991 = vmatprep.subr.mxu0 0.0
        %1992 = vmatpush1.msra.mxu0 0.0
        %1993 = vmatprep.subr.mxu0 0.0
        %1994 = vmatpush1.msra.mxu0 0.0
        %1995 = vmatprep.subr.mxu0 0.0
        %1996 = vmatpush1.msra.mxu0 0.0
        %1997 = vmatprep.subr.mxu0 0.0
        %1998 = vmatpush1.msra.mxu0 0.0
        %1999 = vmatprep.subr.mxu0 0.0
        %2000 = vmatpush1.msra.mxu0 0.0
        %2001 = vmatprep.subr.mxu0 0.0
        %2002 = vmatpush1.msra.mxu0 0.0
        %2003 = vmatprep.subr.mxu0 0.0
        %2004 = vmatpush1.msra.mxu0 0.0
        %2005 = vmatprep.subr.mxu0 0.0
        %2006 = vmatpush1.msra.mxu0 0.0
        %2007 = vmatprep.subr.mxu0 0.0
        %2008 = vmatpush1.msra.mxu0 0.0
        %2009 = vmatprep.subr.mxu0 0.0
        %2010 = vmatpush1.msra.mxu0 0.0
        %2011 = vmatprep.subr.mxu0 0.0
        %2012 = vmatpush1.msra.mxu0 0.0
        %2013 = vmatprep.subr.mxu0 0.0
        %2014 = vmatpush1.msra.mxu0 0.0
        %2015 = vmatprep.subr.mxu0 0.0
        %2016 = vmatpush1.msra.mxu0 0.0
        %2017 = vmatprep.subr.mxu0 0.0
        %2018 = vmatpush1.msra.mxu0 0.0
        %2019 = vmatprep.subr.mxu0 0.0
        %2020 = vmatpush1.msra.mxu0 0.0
        %2021 = vmatprep.mubr.f32.mxu0 0.0
        %v2022 = vand.u32 %v1623, 4294901760
        %v2023 = vsub.f32 %v1623, %v2022
        %v2024 = vand.u32 %v2023, 4294901760
        %2025 = vmatmul.mubr.f32.gmra.mrb[0].mxu0 %v2024
        %v2026 = vpop.f32.mrb[0].mxu0
        %v2027 = vadd.f32 %v1929, %v2026
        %v2028 = vpop.f32.mrb[0].mxu0
        %2029 = vmatprep.mubr.f32.mxu0 0.0
        %v2030 = vand.u32 %v1626, 4294901760
        %v2031 = vsub.f32 %v1626, %v2030
        %v2032 = vand.u32 %v2031, 4294901760
        %2033 = vmatmul.mubr.f32.gmra.mrb[0].mxu0 %v2032
        %v2034 = vpop.f32.mrb[0].mxu0
        %v2035 = vadd.f32 %v1936, %v2034
        %v2036 = vpop.f32.mrb[0].mxu0
        %2037 = vmatprep.mubr.f32.mxu0 0.0
        %v2038 = vand.u32 %v1629, 4294901760
        %v2039 = vsub.f32 %v1629, %v2038
        %v2040 = vand.u32 %v2039, 4294901760
        %2041 = vmatmul.mubr.f32.gmra.mrb[0].mxu0 %v2040
        %v2042 = vpop.f32.mrb[0].mxu0
        %v2043 = vadd.f32 %v1943, %v2042
        %v2044 = vpop.f32.mrb[0].mxu0
        %2045 = vmatprep.mubr.f32.mxu0 0.0
        %v2046 = vand.u32 %v1632, 4294901760
        %v2047 = vsub.f32 %v1632, %v2046
        %v2048 = vand.u32 %v2047, 4294901760
        %2049 = vmatmul.mubr.f32.gmra.mrb[0].mxu0 %v2048
        %v2050 = vpop.f32.mrb[0].mxu0
        %v2051 = vadd.f32 %v1950, %v2050
        %v2052 = vpop.f32.mrb[0].mxu0
        %2053 = vdwg.mxu0
        %2054 = vmatprep.subr.mxu0 0.0
        %v2055 = vand.u32 %v1588, 4294901760
        %v2056 = vsub.f32 %v1588, %v2055
        %v2057 = vand.u32 %v2056, 4294901760
        %2058 = vmatpush1.msra.mxu0 %v2057
        %2059 = vmatprep.subr.mxu0 0.0
        %v2060 = vand.u32 %v1589, 4294901760
        %v2061 = vsub.f32 %v1589, %v2060
        %v2062 = vand.u32 %v2061, 4294901760
        %2063 = vmatpush1.msra.mxu0 %v2062
        %2064 = vmatprep.subr.mxu0 0.0
        %v2065 = vand.u32 %v1590, 4294901760
        %v2066 = vsub.f32 %v1590, %v2065
        %v2067 = vand.u32 %v2066, 4294901760
        %2068 = vmatpush1.msra.mxu0 %v2067
        %2069 = vmatprep.subr.mxu0 0.0
        %v2070 = vand.u32 %v1591, 4294901760
        %v2071 = vsub.f32 %v1591, %v2070
        %v2072 = vand.u32 %v2071, 4294901760
        %2073 = vmatpush1.msra.mxu0 %v2072
        %2074 = vmatprep.subr.mxu0 0.0
        %2075 = vmatpush1.msra.mxu0 0.0
        %2076 = vmatprep.subr.mxu0 0.0
        %2077 = vmatpush1.msra.mxu0 0.0
        %2078 = vmatprep.subr.mxu0 0.0
        %2079 = vmatpush1.msra.mxu0 0.0
        %2080 = vmatprep.subr.mxu0 0.0
        %2081 = vmatpush1.msra.mxu0 0.0
        %2082 = vmatprep.subr.mxu0 0.0
        %2083 = vmatpush1.msra.mxu0 0.0
        %2084 = vmatprep.subr.mxu0 0.0
        %2085 = vmatpush1.msra.mxu0 0.0
        %2086 = vmatprep.subr.mxu0 0.0
        %2087 = vmatpush1.msra.mxu0 0.0
        %2088 = vmatprep.subr.mxu0 0.0
        %2089 = vmatpush1.msra.mxu0 0.0
        %2090 = vmatprep.subr.mxu0 0.0
        %2091 = vmatpush1.msra.mxu0 0.0
        %2092 = vmatprep.subr.mxu0 0.0
        %2093 = vmatpush1.msra.mxu0 0.0
        %2094 = vmatprep.subr.mxu0 0.0
        %2095 = vmatpush1.msra.mxu0 0.0
        %2096 = vmatprep.subr.mxu0 0.0
        %2097 = vmatpush1.msra.mxu0 0.0
        %2098 = vmatprep.subr.mxu0 0.0
        %2099 = vmatpush1.msra.mxu0 0.0
        %2100 = vmatprep.subr.mxu0 0.0
        %2101 = vmatpush1.msra.mxu0 0.0
        %2102 = vmatprep.subr.mxu0 0.0
        %2103 = vmatpush1.msra.mxu0 0.0
        %2104 = vmatprep.subr.mxu0 0.0
        %2105 = vmatpush1.msra.mxu0 0.0
        %2106 = vmatprep.subr.mxu0 0.0
        %2107 = vmatpush1.msra.mxu0 0.0
        %2108 = vmatprep.subr.mxu0 0.0
        %2109 = vmatpush1.msra.mxu0 0.0
        %2110 = vmatprep.subr.mxu0 0.0
        %2111 = vmatpush1.msra.mxu0 0.0
        %2112 = vmatprep.subr.mxu0 0.0
        %2113 = vmatpush1.msra.mxu0 0.0
        %2114 = vmatprep.subr.mxu0 0.0
        %2115 = vmatpush1.msra.mxu0 0.0
        %2116 = vmatprep.subr.mxu0 0.0
        %2117 = vmatpush1.msra.mxu0 0.0
        %2118 = vmatprep.subr.mxu0 0.0
        %2119 = vmatpush1.msra.mxu0 0.0
        %2120 = vmatprep.subr.mxu0 0.0
        %2121 = vmatpush1.msra.mxu0 0.0
        %2122 = vmatprep.subr.mxu0 0.0
        %2123 = vmatpush1.msra.mxu0 0.0
        %2124 = vmatprep.subr.mxu0 0.0
        %2125 = vmatpush1.msra.mxu0 0.0
        %2126 = vmatprep.subr.mxu0 0.0
        %2127 = vmatpush1.msra.mxu0 0.0
        %2128 = vmatprep.subr.mxu0 0.0
        %2129 = vmatpush1.msra.mxu0 0.0
        %2130 = vmatprep.mubr.f32.mxu0 0.0
        %v2131 = vand.u32 %v1623, 4294901760
        %2132 = vmatmul.mubr.f32.gmra.mrb[0].mxu0 %v2131
        %v2133 = vpop.f32.mrb[0].mxu0
        %v2134 = vadd.f32 %v2027, %v2133
        %v2135 = vpop.f32.mrb[0].mxu0
        %2136 = vmatprep.mubr.f32.mxu0 0.0
        %v2137 = vand.u32 %v1626, 4294901760
        %2138 = vmatmul.mubr.f32.gmra.mrb[0].mxu0 %v2137
        %v2139 = vpop.f32.mrb[0].mxu0
        %v2140 = vadd.f32 %v2035, %v2139
        %v2141 = vpop.f32.mrb[0].mxu0
        %2142 = vmatprep.mubr.f32.mxu0 0.0
        %v2143 = vand.u32 %v1629, 4294901760
        %2144 = vmatmul.mubr.f32.gmra.mrb[0].mxu0 %v2143
        %v2145 = vpop.f32.mrb[0].mxu0
        %v2146 = vadd.f32 %v2043, %v2145
        %v2147 = vpop.f32.mrb[0].mxu0
        %2148 = vmatprep.mubr.f32.mxu0 0.0
        %v2149 = vand.u32 %v1632, 4294901760
        %2150 = vmatmul.mubr.f32.gmra.mrb[0].mxu0 %v2149
        %v2151 = vpop.f32.mrb[0].mxu0
        %v2152 = vadd.f32 %v2051, %v2151
        %v2153 = vpop.f32.mrb[0].mxu0
        %2154 = vdwg.mxu0
        %2155 = vmatprep.subr.mxu0 0.0
        %v2156 = vand.u32 %v1588, 4294901760
        %2157 = vmatpush1.msra.mxu0 %v2156
        %2158 = vmatprep.subr.mxu0 0.0
        %v2159 = vand.u32 %v1589, 4294901760
        %2160 = vmatpush1.msra.mxu0 %v2159
        %2161 = vmatprep.subr.mxu0 0.0
        %v2162 = vand.u32 %v1590, 4294901760
        %2163 = vmatpush1.msra.mxu0 %v2162
        %2164 = vmatprep.subr.mxu0 0.0
        %v2165 = vand.u32 %v1591, 4294901760
        %2166 = vmatpush1.msra.mxu0 %v2165
        %2167 = vmatprep.subr.mxu0 0.0
        %2168 = vmatpush1.msra.mxu0 0.0
        %2169 = vmatprep.subr.mxu0 0.0
        %2170 = vmatpush1.msra.mxu0 0.0
        %2171 = vmatprep.subr.mxu0 0.0
        %2172 = vmatpush1.msra.mxu0 0.0
        %2173 = vmatprep.subr.mxu0 0.0
        %2174 = vmatpush1.msra.mxu0 0.0
        %2175 = vmatprep.subr.mxu0 0.0
        %2176 = vmatpush1.msra.mxu0 0.0
        %2177 = vmatprep.subr.mxu0 0.0
        %2178 = vmatpush1.msra.mxu0 0.0
        %2179 = vmatprep.subr.mxu0 0.0
        %2180 = vmatpush1.msra.mxu0 0.0
        %2181 = vmatprep.subr.mxu0 0.0
        %2182 = vmatpush1.msra.mxu0 0.0
        %2183 = vmatprep.subr.mxu0 0.0
        %2184 = vmatpush1.msra.mxu0 0.0
        %2185 = vmatprep.subr.mxu0 0.0
        %2186 = vmatpush1.msra.mxu0 0.0
        %2187 = vmatprep.subr.mxu0 0.0
        %2188 = vmatpush1.msra.mxu0 0.0
        %2189 = vmatprep.subr.mxu0 0.0
        %2190 = vmatpush1.msra.mxu0 0.0
        %2191 = vmatprep.subr.mxu0 0.0
        %2192 = vmatpush1.msra.mxu0 0.0
        %2193 = vmatprep.subr.mxu0 0.0
        %2194 = vmatpush1.msra.mxu0 0.0
        %2195 = vmatprep.subr.mxu0 0.0
        %2196 = vmatpush1.msra.mxu0 0.0
        %2197 = vmatprep.subr.mxu0 0.0
        %2198 = vmatpush1.msra.mxu0 0.0
        %2199 = vmatprep.subr.mxu0 0.0
        %2200 = vmatpush1.msra.mxu0 0.0
        %2201 = vmatprep.subr.mxu0 0.0
        %2202 = vmatpush1.msra.mxu0 0.0
        %2203 = vmatprep.subr.mxu0 0.0
        %2204 = vmatpush1.msra.mxu0 0.0
        %2205 = vmatprep.subr.mxu0 0.0
        %2206 = vmatpush1.msra.mxu0 0.0
        %2207 = vmatprep.subr.mxu0 0.0
        %2208 = vmatpush1.msra.mxu0 0.0
        %2209 = vmatprep.subr.mxu0 0.0
        %2210 = vmatpush1.msra.mxu0 0.0
        %2211 = vmatprep.subr.mxu0 0.0
        %2212 = vmatpush1.msra.mxu0 0.0
        %2213 = vmatprep.subr.mxu0 0.0
        %2214 = vmatpush1.msra.mxu0 0.0
        %2215 = vmatprep.subr.mxu0 0.0
        %2216 = vmatpush1.msra.mxu0 0.0
        %2217 = vmatprep.subr.mxu0 0.0
        %2218 = vmatpush1.msra.mxu0 0.0
        %2219 = vmatprep.subr.mxu0 0.0
        %2220 = vmatpush1.msra.mxu0 0.0
        %2221 = vmatprep.subr.mxu0 0.0
        %2222 = vmatpush1.msra.mxu0 0.0
        %2223 = vmatprep.mubr.f32.mxu0 0.0
        %v2224 = vand.u32 %v1623, 4294901760
        %2225 = vmatmul.mubr.f32.gmra.mrb[0].mxu0 %v2224
        %v2226 = vpop.f32.mrb[0].mxu0
        %v2227 = vadd.f32 %v2134, %v2226
        %v2228 = vpop.f32.mrb[0].mxu0
        %2229 = vmatprep.mubr.f32.mxu0 0.0
        %v2230 = vand.u32 %v1626, 4294901760
        %2231 = vmatmul.mubr.f32.gmra.mrb[0].mxu0 %v2230
        %v2232 = vpop.f32.mrb[0].mxu0
        %v2233 = vadd.f32 %v2140, %v2232
        %v2234 = vpop.f32.mrb[0].mxu0
        %2235 = vmatprep.mubr.f32.mxu0 0.0
        %v2236 = vand.u32 %v1629, 4294901760
        %2237 = vmatmul.mubr.f32.gmra.mrb[0].mxu0 %v2236
        %v2238 = vpop.f32.mrb[0].mxu0
        %v2239 = vadd.f32 %v2146, %v2238
        %v2240 = vpop.f32.mrb[0].mxu0
        %2241 = vmatprep.mubr.f32.mxu0 0.0
        %v2242 = vand.u32 %v1632, 4294901760
        %2243 = vmatmul.mubr.f32.gmra.mrb[0].mxu0 %v2242
        %v2244 = vpop.f32.mrb[0].mxu0
        %v2245 = vadd.f32 %v2152, %v2244
        %v2246 = vpop.f32.mrb[0].mxu0
        %2247 = vdwg.mxu0
        %v2248 = vmul.f32 %v2227, 100.0
        %v2249 = vmul.f32 %v2233, 100.0
        %v2250 = vmul.f32 %v2239, 100.0
        %v2251 = vmul.f32 %v2245, 100.0
        %v2252 = vmin.f32 %v2248, 20.0
        %v2253 = vmin.f32 %v2249, 20.0
        %v2254 = vmin.f32 %v2250, 20.0
        %v2255 = vmin.f32 %v2251, 20.0
        %v2256 = vmul.f32 %v2252, 1.442695
        %v2257 = vpow.pop %v2256
        %v2258 = vmul.f32 %v2253, 1.442695
        %v2259 = vpow.pop %v2258
        %v2260 = vmul.f32 %v2254, 1.442695
        %v2261 = vpow.pop %v2260
        %v2262 = vmul.f32 %v2255, 1.442695
        %v2263 = vpow.pop %v2262
        %v2264 = vadd.f32 %v2257, 1.0
        %v2265 = vadd.f32 %v2259, 1.0
        %v2266 = vadd.f32 %v2261, 1.0
        %v2267 = vadd.f32 %v2263, 1.0
        %v2268 = vlog2.pop %v2264
        %v2269 = vmul.f32 %v2268, 0.6931472
        %v2270 = vlog2.pop %v2265
        %v2271 = vmul.f32 %v2270, 0.6931472
        %v2272 = vlog2.pop %v2266
        %v2273 = vmul.f32 %v2272, 0.6931472
        %v2274 = vlog2.pop %v2267
        %v2275 = vmul.f32 %v2274, 0.6931472
        %v2276 = vmul.f32 %v2269, 0.01
        %v2277 = vmul.f32 %v2271, 0.01
        %v2278 = vmul.f32 %v2273, 0.01
        %v2279 = vmul.f32 %v2275, 0.01
        %v2280 = vmax.f32 %v2276, %v2227
        %v2281 = vmax.f32 %v2277, %v2233
        %v2282 = vmax.f32 %v2278, %v2239
        %v2283 = vmax.f32 %v2279, %v2245
        %s2284 = scalar_lea.vmem %s2, 64
        %v2285 = vld [vmem:[%s2284] sm:$0xff]
        %v2286 = vld [vmem:[%s2284 + $0x8] sm:$0xff]
        %v2287 = vld [vmem:[%s2284 + $0x10] sm:$0xff]
        %v2288 = vld [vmem:[%s2284 + $0x18] sm:$0xff]
        %s2289 = scalar_lea.vmem %s3, 96
        %v2290 = vld [vmem:[%s2289] sm:$0xff]
        %v2291 = vld [vmem:[%s2289 + $0x8] sm:$0xff]
        %v2292 = vld [vmem:[%s2289 + $0x10] sm:$0xff]
        %v2293 = vld [vmem:[%s2289 + $0x18] sm:$0xff]
        %2295 = vset.pattern.permute.xlu0 0
        %2296 = vperm.xlu0 %2295, %v2290
        %v2297 = vpop.permute.xlu0 %2296
        %2300 = vset.pattern.permute.xlu0 0
        %2301 = vperm.xlu0 %2300, %v2291
        %v2302 = vpop.permute.xlu0 %2301
        %2305 = vset.pattern.permute.xlu0 0
        %2306 = vperm.xlu0 %2305, %v2292
        %v2307 = vpop.permute.xlu0 %2306
        %2310 = vset.pattern.permute.xlu0 0
        %2311 = vperm.xlu0 %2310, %v2293
        %v2312 = vpop.permute.xlu0 %2311
        %v2315 = vsel %vm929, %v2285, 0
        %v2318 = vsel %vm929, %v2286, 0
        %v2321 = vsel %vm929, %v2287, 0
        %v2324 = vsel %vm929, %v2288, 0
        %2326 = vmatprep.subr.mxu0 0.0
        %v2327 = vand.u32 %v2280, 4294901760
        %2328 = vmatpush1.msra.mxu0 %v2327
        %2329 = vmatprep.subr.mxu0 0.0
        %v2330 = vand.u32 %v2281, 4294901760
        %2331 = vmatpush1.msra.mxu0 %v2330
        %2332 = vmatprep.subr.mxu0 0.0
        %v2333 = vand.u32 %v2282, 4294901760
        %2334 = vmatpush1.msra.mxu0 %v2333
        %2335 = vmatprep.subr.mxu0 0.0
        %v2336 = vand.u32 %v2283, 4294901760
        %2337 = vmatpush1.msra.mxu0 %v2336
        %2338 = vmatprep.subr.mxu0 0.0
        %2339 = vmatpush1.msra.mxu0 0.0
        %2340 = vmatprep.subr.mxu0 0.0
        %2341 = vmatpush1.msra.mxu0 0.0
        %2342 = vmatprep.subr.mxu0 0.0
        %2343 = vmatpush1.msra.mxu0 0.0
        %2344 = vmatprep.subr.mxu0 0.0
        %2345 = vmatpush1.msra.mxu0 0.0
        %2346 = vmatprep.subr.mxu0 0.0
        %2347 = vmatpush1.msra.mxu0 0.0
        %2348 = vmatprep.subr.mxu0 0.0
        %2349 = vmatpush1.msra.mxu0 0.0
        %2350 = vmatprep.subr.mxu0 0.0
        %2351 = vmatpush1.msra.mxu0 0.0
        %2352 = vmatprep.subr.mxu0 0.0
        %2353 = vmatpush1.msra.mxu0 0.0
        %2354 = vmatprep.subr.mxu0 0.0
        %2355 = vmatpush1.msra.mxu0 0.0
        %2356 = vmatprep.subr.mxu0 0.0
        %2357 = vmatpush1.msra.mxu0 0.0
        %2358 = vmatprep.subr.mxu0 0.0
        %2359 = vmatpush1.msra.mxu0 0.0
        %2360 = vmatprep.subr.mxu0 0.0
        %2361 = vmatpush1.msra.mxu0 0.0
        %2362 = vmatprep.subr.mxu0 0.0
        %2363 = vmatpush1.msra.mxu0 0.0
        %2364 = vmatprep.subr.mxu0 0.0
        %2365 = vmatpush1.msra.mxu0 0.0
        %2366 = vmatprep.subr.mxu0 0.0
        %2367 = vmatpush1.msra.mxu0 0.0
        %2368 = vmatprep.subr.mxu0 0.0
        %2369 = vmatpush1.msra.mxu0 0.0
        %2370 = vmatprep.subr.mxu0 0.0
        %2371 = vmatpush1.msra.mxu0 0.0
        %2372 = vmatprep.subr.mxu0 0.0
        %2373 = vmatpush1.msra.mxu0 0.0
        %2374 = vmatprep.subr.mxu0 0.0
        %2375 = vmatpush1.msra.mxu0 0.0
        %2376 = vmatprep.subr.mxu0 0.0
        %2377 = vmatpush1.msra.mxu0 0.0
        %2378 = vmatprep.subr.mxu0 0.0
        %2379 = vmatpush1.msra.mxu0 0.0
        %2380 = vmatprep.subr.mxu0 0.0
        %2381 = vmatpush1.msra.mxu0 0.0
        %2382 = vmatprep.subr.mxu0 0.0
        %2383 = vmatpush1.msra.mxu0 0.0
        %2384 = vmatprep.subr.mxu0 0.0
        %2385 = vmatpush1.msra.mxu0 0.0
        %2386 = vmatprep.subr.mxu0 0.0
        %2387 = vmatpush1.msra.mxu0 0.0
        %2388 = vmatprep.subr.mxu0 0.0
        %2389 = vmatpush1.msra.mxu0 0.0
        %2390 = vmatprep.subr.mxu0 0.0
        %2391 = vmatpush1.msra.mxu0 0.0
        %2392 = vmatprep.subr.mxu0 0.0
        %2393 = vmatpush1.msra.mxu0 0.0
        %2394 = vmatprep.mubr.f32.mxu0 0.0
        %v2395 = vand.u32 %v2315, 4294901760
        %v2396 = vsub.f32 %v2315, %v2395
        %v2397 = vand.u32 %v2396, 4294901760
        %v2398 = vsub.f32 %v2396, %v2397
        %v2399 = vand.u32 %v2398, 4294901760
        %2400 = vmatmul.mubr.f32.gmra.mrb[0].mxu0 %v2399
        %v2401 = vpop.f32.mrb[0].mxu0
        %v2402 = vadd.f32 %v2297, %v2401
        %v2403 = vpop.f32.mrb[0].mxu0
        %2404 = vmatprep.mubr.f32.mxu0 0.0
        %v2405 = vand.u32 %v2318, 4294901760
        %v2406 = vsub.f32 %v2318, %v2405
        %v2407 = vand.u32 %v2406, 4294901760
        %v2408 = vsub.f32 %v2406, %v2407
        %v2409 = vand.u32 %v2408, 4294901760
        %2410 = vmatmul.mubr.f32.gmra.mrb[0].mxu0 %v2409
        %v2411 = vpop.f32.mrb[0].mxu0
        %v2412 = vadd.f32 %v2302, %v2411
        %v2413 = vpop.f32.mrb[0].mxu0
        %2414 = vmatprep.mubr.f32.mxu0 0.0
        %v2415 = vand.u32 %v2321, 4294901760
        %v2416 = vsub.f32 %v2321, %v2415
        %v2417 = vand.u32 %v2416, 4294901760
        %v2418 = vsub.f32 %v2416, %v2417
        %v2419 = vand.u32 %v2418, 4294901760
        %2420 = vmatmul.mubr.f32.gmra.mrb[0].mxu0 %v2419
        %v2421 = vpop.f32.mrb[0].mxu0
        %v2422 = vadd.f32 %v2307, %v2421
        %v2423 = vpop.f32.mrb[0].mxu0
        %2424 = vmatprep.mubr.f32.mxu0 0.0
        %v2425 = vand.u32 %v2324, 4294901760
        %v2426 = vsub.f32 %v2324, %v2425
        %v2427 = vand.u32 %v2426, 4294901760
        %v2428 = vsub.f32 %v2426, %v2427
        %v2429 = vand.u32 %v2428, 4294901760
        %2430 = vmatmul.mubr.f32.gmra.mrb[0].mxu0 %v2429
        %v2431 = vpop.f32.mrb[0].mxu0
        %v2432 = vadd.f32 %v2312, %v2431
        %v2433 = vpop.f32.mrb[0].mxu0
        %2434 = vdwg.mxu0
        %2435 = vmatprep.subr.mxu0 0.0
        %v2436 = vand.u32 %v2280, 4294901760
        %v2437 = vsub.f32 %v2280, %v2436
        %v2438 = vand.u32 %v2437, 4294901760
        %v2439 = vsub.f32 %v2437, %v2438
        %v2440 = vand.u32 %v2439, 4294901760
        %2441 = vmatpush1.msra.mxu0 %v2440
        %2442 = vmatprep.subr.mxu0 0.0
        %v2443 = vand.u32 %v2281, 4294901760
        %v2444 = vsub.f32 %v2281, %v2443
        %v2445 = vand.u32 %v2444, 4294901760
        %v2446 = vsub.f32 %v2444, %v2445
        %v2447 = vand.u32 %v2446, 4294901760
        %2448 = vmatpush1.msra.mxu0 %v2447
        %2449 = vmatprep.subr.mxu0 0.0
        %v2450 = vand.u32 %v2282, 4294901760
        %v2451 = vsub.f32 %v2282, %v2450
        %v2452 = vand.u32 %v2451, 4294901760
        %v2453 = vsub.f32 %v2451, %v2452
        %v2454 = vand.u32 %v2453, 4294901760
        %2455 = vmatpush1.msra.mxu0 %v2454
        %2456 = vmatprep.subr.mxu0 0.0
        %v2457 = vand.u32 %v2283, 4294901760
        %v2458 = vsub.f32 %v2283, %v2457
        %v2459 = vand.u32 %v2458, 4294901760
        %v2460 = vsub.f32 %v2458, %v2459
        %v2461 = vand.u32 %v2460, 4294901760
        %2462 = vmatpush1.msra.mxu0 %v2461
        %2463 = vmatprep.subr.mxu0 0.0
        %2464 = vmatpush1.msra.mxu0 0.0
        %2465 = vmatprep.subr.mxu0 0.0
        %2466 = vmatpush1.msra.mxu0 0.0
        %2467 = vmatprep.subr.mxu0 0.0
        %2468 = vmatpush1.msra.mxu0 0.0
        %2469 = vmatprep.subr.mxu0 0.0
        %2470 = vmatpush1.msra.mxu0 0.0
        %2471 = vmatprep.subr.mxu0 0.0
        %2472 = vmatpush1.msra.mxu0 0.0
        %2473 = vmatprep.subr.mxu0 0.0
        %2474 = vmatpush1.msra.mxu0 0.0
        %2475 = vmatprep.subr.mxu0 0.0
        %2476 = vmatpush1.msra.mxu0 0.0
        %2477 = vmatprep.subr.mxu0 0.0
        %2478 = vmatpush1.msra.mxu0 0.0
        %2479 = vmatprep.subr.mxu0 0.0
        %2480 = vmatpush1.msra.mxu0 0.0
        %2481 = vmatprep.subr.mxu0 0.0
        %2482 = vmatpush1.msra.mxu0 0.0
        %2483 = vmatprep.subr.mxu0 0.0
        %2484 = vmatpush1.msra.mxu0 0.0
        %2485 = vmatprep.subr.mxu0 0.0
        %2486 = vmatpush1.msra.mxu0 0.0
        %2487 = vmatprep.subr.mxu0 0.0
        %2488 = vmatpush1.msra.mxu0 0.0
        %2489 = vmatprep.subr.mxu0 0.0
        %2490 = vmatpush1.msra.mxu0 0.0
        %2491 = vmatprep.subr.mxu0 0.0
        %2492 = vmatpush1.msra.mxu0 0.0
        %2493 = vmatprep.subr.mxu0 0.0
        %2494 = vmatpush1.msra.mxu0 0.0
        %2495 = vmatprep.subr.mxu0 0.0
        %2496 = vmatpush1.msra.mxu0 0.0
        %2497 = vmatprep.subr.mxu0 0.0
        %2498 = vmatpush1.msra.mxu0 0.0
        %2499 = vmatprep.subr.mxu0 0.0
        %2500 = vmatpush1.msra.mxu0 0.0
        %2501 = vmatprep.subr.mxu0 0.0
        %2502 = vmatpush1.msra.mxu0 0.0
        %2503 = vmatprep.subr.mxu0 0.0
        %2504 = vmatpush1.msra.mxu0 0.0
        %2505 = vmatprep.subr.mxu0 0.0
        %2506 = vmatpush1.msra.mxu0 0.0
        %2507 = vmatprep.subr.mxu0 0.0
        %2508 = vmatpush1.msra.mxu0 0.0
        %2509 = vmatprep.subr.mxu0 0.0
        %2510 = vmatpush1.msra.mxu0 0.0
        %2511 = vmatprep.subr.mxu0 0.0
        %2512 = vmatpush1.msra.mxu0 0.0
        %2513 = vmatprep.subr.mxu0 0.0
        %2514 = vmatpush1.msra.mxu0 0.0
        %2515 = vmatprep.subr.mxu0 0.0
        %2516 = vmatpush1.msra.mxu0 0.0
        %2517 = vmatprep.subr.mxu0 0.0
        %2518 = vmatpush1.msra.mxu0 0.0
        %2519 = vmatprep.mubr.f32.mxu0 0.0
        %v2520 = vand.u32 %v2315, 4294901760
        %2521 = vmatmul.mubr.f32.gmra.mrb[0].mxu0 %v2520
        %v2522 = vpop.f32.mrb[0].mxu0
        %v2523 = vadd.f32 %v2402, %v2522
        %v2524 = vpop.f32.mrb[0].mxu0
        %2525 = vmatprep.mubr.f32.mxu0 0.0
        %v2526 = vand.u32 %v2318, 4294901760
        %2527 = vmatmul.mubr.f32.gmra.mrb[0].mxu0 %v2526
        %v2528 = vpop.f32.mrb[0].mxu0
        %v2529 = vadd.f32 %v2412, %v2528
        %v2530 = vpop.f32.mrb[0].mxu0
        %2531 = vmatprep.mubr.f32.mxu0 0.0
        %v2532 = vand.u32 %v2321, 4294901760
        %2533 = vmatmul.mubr.f32.gmra.mrb[0].mxu0 %v2532
        %v2534 = vpop.f32.mrb[0].mxu0
        %v2535 = vadd.f32 %v2422, %v2534
        %v2536 = vpop.f32.mrb[0].mxu0
        %2537 = vmatprep.mubr.f32.mxu0 0.0
        %v2538 = vand.u32 %v2324, 4294901760
        %2539 = vmatmul.mubr.f32.gmra.mrb[0].mxu0 %v2538
        %v2540 = vpop.f32.mrb[0].mxu0
        %v2541 = vadd.f32 %v2432, %v2540
        %v2542 = vpop.f32.mrb[0].mxu0
        %2543 = vdwg.mxu0
        %2544 = vmatprep.subr.mxu0 0.0
        %v2545 = vand.u32 %v2280, 4294901760
        %v2546 = vsub.f32 %v2280, %v2545
        %2547 = vmatpush1.msra.mxu0 %v2546
        %2548 = vmatprep.subr.mxu0 0.0
        %v2549 = vand.u32 %v2281, 4294901760
        %v2550 = vsub.f32 %v2281, %v2549
        %2551 = vmatpush1.msra.mxu0 %v2550
        %2552 = vmatprep.subr.mxu0 0.0
        %v2553 = vand.u32 %v2282, 4294901760
        %v2554 = vsub.f32 %v2282, %v2553
        %2555 = vmatpush1.msra.mxu0 %v2554
        %2556 = vmatprep.subr.mxu0 0.0
        %v2557 = vand.u32 %v2283, 4294901760
        %v2558 = vsub.f32 %v2283, %v2557
        %2559 = vmatpush1.msra.mxu0 %v2558
        %2560 = vmatprep.subr.mxu0 0.0
        %2561 = vmatpush1.msra.mxu0 0.0
        %2562 = vmatprep.subr.mxu0 0.0
        %2563 = vmatpush1.msra.mxu0 0.0
        %2564 = vmatprep.subr.mxu0 0.0
        %2565 = vmatpush1.msra.mxu0 0.0
        %2566 = vmatprep.subr.mxu0 0.0
        %2567 = vmatpush1.msra.mxu0 0.0
        %2568 = vmatprep.subr.mxu0 0.0
        %2569 = vmatpush1.msra.mxu0 0.0
        %2570 = vmatprep.subr.mxu0 0.0
        %2571 = vmatpush1.msra.mxu0 0.0
        %2572 = vmatprep.subr.mxu0 0.0
        %2573 = vmatpush1.msra.mxu0 0.0
        %2574 = vmatprep.subr.mxu0 0.0
        %2575 = vmatpush1.msra.mxu0 0.0
        %2576 = vmatprep.subr.mxu0 0.0
        %2577 = vmatpush1.msra.mxu0 0.0
        %2578 = vmatprep.subr.mxu0 0.0
        %2579 = vmatpush1.msra.mxu0 0.0
        %2580 = vmatprep.subr.mxu0 0.0
        %2581 = vmatpush1.msra.mxu0 0.0
        %2582 = vmatprep.subr.mxu0 0.0
        %2583 = vmatpush1.msra.mxu0 0.0
        %2584 = vmatprep.subr.mxu0 0.0
        %2585 = vmatpush1.msra.mxu0 0.0
        %2586 = vmatprep.subr.mxu0 0.0
        %2587 = vmatpush1.msra.mxu0 0.0
        %2588 = vmatprep.subr.mxu0 0.0
        %2589 = vmatpush1.msra.mxu0 0.0
        %2590 = vmatprep.subr.mxu0 0.0
        %2591 = vmatpush1.msra.mxu0 0.0
        %2592 = vmatprep.subr.mxu0 0.0
        %2593 = vmatpush1.msra.mxu0 0.0
        %2594 = vmatprep.subr.mxu0 0.0
        %2595 = vmatpush1.msra.mxu0 0.0
        %2596 = vmatprep.subr.mxu0 0.0
        %2597 = vmatpush1.msra.mxu0 0.0
        %2598 = vmatprep.subr.mxu0 0.0
        %2599 = vmatpush1.msra.mxu0 0.0
        %2600 = vmatprep.subr.mxu0 0.0
        %2601 = vmatpush1.msra.mxu0 0.0
        %2602 = vmatprep.subr.mxu0 0.0
        %2603 = vmatpush1.msra.mxu0 0.0
        %2604 = vmatprep.subr.mxu0 0.0
        %2605 = vmatpush1.msra.mxu0 0.0
        %2606 = vmatprep.subr.mxu0 0.0
        %2607 = vmatpush1.msra.mxu0 0.0
        %2608 = vmatprep.subr.mxu0 0.0
        %2609 = vmatpush1.msra.mxu0 0.0
        %2610 = vmatprep.subr.mxu0 0.0
        %2611 = vmatpush1.msra.mxu0 0.0
        %2612 = vmatprep.subr.mxu0 0.0
        %2613 = vmatpush1.msra.mxu0 0.0
        %2614 = vmatprep.subr.mxu0 0.0
        %2615 = vmatpush1.msra.mxu0 0.0
        %2616 = vmatprep.mubr.f32.mxu0 0.0
        %v2617 = vand.u32 %v2315, 4294901760
        %v2618 = vsub.f32 %v2315, %v2617
        %2619 = vmatmul.mubr.f32.gmra.mrb[0].mxu0 %v2618
        %v2620 = vpop.f32.mrb[0].mxu0
        %v2621 = vadd.f32 %v2523, %v2620
        %v2622 = vpop.f32.mrb[0].mxu0
        %2623 = vmatprep.mubr.f32.mxu0 0.0
        %v2624 = vand.u32 %v2318, 4294901760
        %v2625 = vsub.f32 %v2318, %v2624
        %2626 = vmatmul.mubr.f32.gmra.mrb[0].mxu0 %v2625
        %v2627 = vpop.f32.mrb[0].mxu0
        %v2628 = vadd.f32 %v2529, %v2627
        %v2629 = vpop.f32.mrb[0].mxu0
        %2630 = vmatprep.mubr.f32.mxu0 0.0
        %v2631 = vand.u32 %v2321, 4294901760
        %v2632 = vsub.f32 %v2321, %v2631
        %2633 = vmatmul.mubr.f32.gmra.mrb[0].mxu0 %v2632
        %v2634 = vpop.f32.mrb[0].mxu0
        %v2635 = vadd.f32 %v2535, %v2634
        %v2636 = vpop.f32.mrb[0].mxu0
        %2637 = vmatprep.mubr.f32.mxu0 0.0
        %v2638 = vand.u32 %v2324, 4294901760
        %v2639 = vsub.f32 %v2324, %v2638
        %2640 = vmatmul.mubr.f32.gmra.mrb[0].mxu0 %v2639
        %v2641 = vpop.f32.mrb[0].mxu0
        %v2642 = vadd.f32 %v2541, %v2641
        %v2643 = vpop.f32.mrb[0].mxu0
        %2644 = vdwg.mxu0
        %2645 = vmatprep.subr.mxu0 0.0
        %v2646 = vand.u32 %v2280, 4294901760
        %2647 = vmatpush1.msra.mxu0 %v2646
        %2648 = vmatprep.subr.mxu0 0.0
        %v2649 = vand.u32 %v2281, 4294901760
        %2650 = vmatpush1.msra.mxu0 %v2649
        %2651 = vmatprep.subr.mxu0 0.0
        %v2652 = vand.u32 %v2282, 4294901760
        %2653 = vmatpush1.msra.mxu0 %v2652
        %2654 = vmatprep.subr.mxu0 0.0
        %v2655 = vand.u32 %v2283, 4294901760
        %2656 = vmatpush1.msra.mxu0 %v2655
        %2657 = vmatprep.subr.mxu0 0.0
        %2658 = vmatpush1.msra.mxu0 0.0
        %2659 = vmatprep.subr.mxu0 0.0
        %2660 = vmatpush1.msra.mxu0 0.0
        %2661 = vmatprep.subr.mxu0 0.0
        %2662 = vmatpush1.msra.mxu0 0.0
        %2663 = vmatprep.subr.mxu0 0.0
        %2664 = vmatpush1.msra.mxu0 0.0
        %2665 = vmatprep.subr.mxu0 0.0
        %2666 = vmatpush1.msra.mxu0 0.0
        %2667 = vmatprep.subr.mxu0 0.0
        %2668 = vmatpush1.msra.mxu0 0.0
        %2669 = vmatprep.subr.mxu0 0.0
        %2670 = vmatpush1.msra.mxu0 0.0
        %2671 = vmatprep.subr.mxu0 0.0
        %2672 = vmatpush1.msra.mxu0 0.0
        %2673 = vmatprep.subr.mxu0 0.0
        %2674 = vmatpush1.msra.mxu0 0.0
        %2675 = vmatprep.subr.mxu0 0.0
        %2676 = vmatpush1.msra.mxu0 0.0
        %2677 = vmatprep.subr.mxu0 0.0
        %2678 = vmatpush1.msra.mxu0 0.0
        %2679 = vmatprep.subr.mxu0 0.0
        %2680 = vmatpush1.msra.mxu0 0.0
        %2681 = vmatprep.subr.mxu0 0.0
        %2682 = vmatpush1.msra.mxu0 0.0
        %2683 = vmatprep.subr.mxu0 0.0
        %2684 = vmatpush1.msra.mxu0 0.0
        %2685 = vmatprep.subr.mxu0 0.0
        %2686 = vmatpush1.msra.mxu0 0.0
        %2687 = vmatprep.subr.mxu0 0.0
        %2688 = vmatpush1.msra.mxu0 0.0
        %2689 = vmatprep.subr.mxu0 0.0
        %2690 = vmatpush1.msra.mxu0 0.0
        %2691 = vmatprep.subr.mxu0 0.0
        %2692 = vmatpush1.msra.mxu0 0.0
        %2693 = vmatprep.subr.mxu0 0.0
        %2694 = vmatpush1.msra.mxu0 0.0
        %2695 = vmatprep.subr.mxu0 0.0
        %2696 = vmatpush1.msra.mxu0 0.0
        %2697 = vmatprep.subr.mxu0 0.0
        %2698 = vmatpush1.msra.mxu0 0.0
        %2699 = vmatprep.subr.mxu0 0.0
        %2700 = vmatpush1.msra.mxu0 0.0
        %2701 = vmatprep.subr.mxu0 0.0
        %2702 = vmatpush1.msra.mxu0 0.0
        %2703 = vmatprep.subr.mxu0 0.0
        %2704 = vmatpush1.msra.mxu0 0.0
        %2705 = vmatprep.subr.mxu0 0.0
        %2706 = vmatpush1.msra.mxu0 0.0
        %2707 = vmatprep.subr.mxu0 0.0
        %2708 = vmatpush1.msra.mxu0 0.0
        %2709 = vmatprep.subr.mxu0 0.0
        %2710 = vmatpush1.msra.mxu0 0.0
        %2711 = vmatprep.subr.mxu0 0.0
        %2712 = vmatpush1.msra.mxu0 0.0
        %2713 = vmatprep.mubr.f32.mxu0 0.0
        %v2714 = vand.u32 %v2315, 4294901760
        %v2715 = vsub.f32 %v2315, %v2714
        %v2716 = vand.u32 %v2715, 4294901760
        %2717 = vmatmul.mubr.f32.gmra.mrb[0].mxu0 %v2716
        %v2718 = vpop.f32.mrb[0].mxu0
        %v2719 = vadd.f32 %v2621, %v2718
        %v2720 = vpop.f32.mrb[0].mxu0
        %2721 = vmatprep.mubr.f32.mxu0 0.0
        %v2722 = vand.u32 %v2318, 4294901760
        %v2723 = vsub.f32 %v2318, %v2722
        %v2724 = vand.u32 %v2723, 4294901760
        %2725 = vmatmul.mubr.f32.gmra.mrb[0].mxu0 %v2724
        %v2726 = vpop.f32.mrb[0].mxu0
        %v2727 = vadd.f32 %v2628, %v2726
        %v2728 = vpop.f32.mrb[0].mxu0
        %2729 = vmatprep.mubr.f32.mxu0 0.0
        %v2730 = vand.u32 %v2321, 4294901760
        %v2731 = vsub.f32 %v2321, %v2730
        %v2732 = vand.u32 %v2731, 4294901760
        %2733 = vmatmul.mubr.f32.gmra.mrb[0].mxu0 %v2732
        %v2734 = vpop.f32.mrb[0].mxu0
        %v2735 = vadd.f32 %v2635, %v2734
        %v2736 = vpop.f32.mrb[0].mxu0
        %2737 = vmatprep.mubr.f32.mxu0 0.0
        %v2738 = vand.u32 %v2324, 4294901760
        %v2739 = vsub.f32 %v2324, %v2738
        %v2740 = vand.u32 %v2739, 4294901760
        %2741 = vmatmul.mubr.f32.gmra.mrb[0].mxu0 %v2740
        %v2742 = vpop.f32.mrb[0].mxu0
        %v2743 = vadd.f32 %v2642, %v2742
        %v2744 = vpop.f32.mrb[0].mxu0
        %2745 = vdwg.mxu0
        %2746 = vmatprep.subr.mxu0 0.0
        %v2747 = vand.u32 %v2280, 4294901760
        %v2748 = vsub.f32 %v2280, %v2747
        %v2749 = vand.u32 %v2748, 4294901760
        %2750 = vmatpush1.msra.mxu0 %v2749
        %2751 = vmatprep.subr.mxu0 0.0
        %v2752 = vand.u32 %v2281, 4294901760
        %v2753 = vsub.f32 %v2281, %v2752
        %v2754 = vand.u32 %v2753, 4294901760
        %2755 = vmatpush1.msra.mxu0 %v2754
        %2756 = vmatprep.subr.mxu0 0.0
        %v2757 = vand.u32 %v2282, 4294901760
        %v2758 = vsub.f32 %v2282, %v2757
        %v2759 = vand.u32 %v2758, 4294901760
        %2760 = vmatpush1.msra.mxu0 %v2759
        %2761 = vmatprep.subr.mxu0 0.0
        %v2762 = vand.u32 %v2283, 4294901760
        %v2763 = vsub.f32 %v2283, %v2762
        %v2764 = vand.u32 %v2763, 4294901760
        %2765 = vmatpush1.msra.mxu0 %v2764
        %2766 = vmatprep.subr.mxu0 0.0
        %2767 = vmatpush1.msra.mxu0 0.0
        %2768 = vmatprep.subr.mxu0 0.0
        %2769 = vmatpush1.msra.mxu0 0.0
        %2770 = vmatprep.subr.mxu0 0.0
        %2771 = vmatpush1.msra.mxu0 0.0
        %2772 = vmatprep.subr.mxu0 0.0
        %2773 = vmatpush1.msra.mxu0 0.0
        %2774 = vmatprep.subr.mxu0 0.0
        %2775 = vmatpush1.msra.mxu0 0.0
        %2776 = vmatprep.subr.mxu0 0.0
        %2777 = vmatpush1.msra.mxu0 0.0
        %2778 = vmatprep.subr.mxu0 0.0
        %2779 = vmatpush1.msra.mxu0 0.0
        %2780 = vmatprep.subr.mxu0 0.0
        %2781 = vmatpush1.msra.mxu0 0.0
        %2782 = vmatprep.subr.mxu0 0.0
        %2783 = vmatpush1.msra.mxu0 0.0
        %2784 = vmatprep.subr.mxu0 0.0
        %2785 = vmatpush1.msra.mxu0 0.0
        %2786 = vmatprep.subr.mxu0 0.0
        %2787 = vmatpush1.msra.mxu0 0.0
        %2788 = vmatprep.subr.mxu0 0.0
        %2789 = vmatpush1.msra.mxu0 0.0
        %2790 = vmatprep.subr.mxu0 0.0
        %2791 = vmatpush1.msra.mxu0 0.0
        %2792 = vmatprep.subr.mxu0 0.0
        %2793 = vmatpush1.msra.mxu0 0.0
        %2794 = vmatprep.subr.mxu0 0.0
        %2795 = vmatpush1.msra.mxu0 0.0
        %2796 = vmatprep.subr.mxu0 0.0
        %2797 = vmatpush1.msra.mxu0 0.0
        %2798 = vmatprep.subr.mxu0 0.0
        %2799 = vmatpush1.msra.mxu0 0.0
        %2800 = vmatprep.subr.mxu0 0.0
        %2801 = vmatpush1.msra.mxu0 0.0
        %2802 = vmatprep.subr.mxu0 0.0
        %2803 = vmatpush1.msra.mxu0 0.0
        %2804 = vmatprep.subr.mxu0 0.0
        %2805 = vmatpush1.msra.mxu0 0.0
        %2806 = vmatprep.subr.mxu0 0.0
        %2807 = vmatpush1.msra.mxu0 0.0
        %2808 = vmatprep.subr.mxu0 0.0
        %2809 = vmatpush1.msra.mxu0 0.0
        %2810 = vmatprep.subr.mxu0 0.0
        %2811 = vmatpush1.msra.mxu0 0.0
        %2812 = vmatprep.subr.mxu0 0.0
        %2813 = vmatpush1.msra.mxu0 0.0
        %2814 = vmatprep.subr.mxu0 0.0
        %2815 = vmatpush1.msra.mxu0 0.0
        %2816 = vmatprep.subr.mxu0 0.0
        %2817 = vmatpush1.msra.mxu0 0.0
        %2818 = vmatprep.subr.mxu0 0.0
        %2819 = vmatpush1.msra.mxu0 0.0
        %2820 = vmatprep.subr.mxu0 0.0
        %2821 = vmatpush1.msra.mxu0 0.0
        %2822 = vmatprep.mubr.f32.mxu0 0.0
        %v2823 = vand.u32 %v2315, 4294901760
        %2824 = vmatmul.mubr.f32.gmra.mrb[0].mxu0 %v2823
        %v2825 = vpop.f32.mrb[0].mxu0
        %v2826 = vadd.f32 %v2719, %v2825
        %v2827 = vpop.f32.mrb[0].mxu0
        %2828 = vmatprep.mubr.f32.mxu0 0.0
        %v2829 = vand.u32 %v2318, 4294901760
        %2830 = vmatmul.mubr.f32.gmra.mrb[0].mxu0 %v2829
        %v2831 = vpop.f32.mrb[0].mxu0
        %v2832 = vadd.f32 %v2727, %v2831
        %v2833 = vpop.f32.mrb[0].mxu0
        %2834 = vmatprep.mubr.f32.mxu0 0.0
        %v2835 = vand.u32 %v2321, 4294901760
        %2836 = vmatmul.mubr.f32.gmra.mrb[0].mxu0 %v2835
        %v2837 = vpop.f32.mrb[0].mxu0
        %v2838 = vadd.f32 %v2735, %v2837
        %v2839 = vpop.f32.mrb[0].mxu0
        %2840 = vmatprep.mubr.f32.mxu0 0.0
        %v2841 = vand.u32 %v2324, 4294901760
        %2842 = vmatmul.mubr.f32.gmra.mrb[0].mxu0 %v2841
        %v2843 = vpop.f32.mrb[0].mxu0
        %v2844 = vadd.f32 %v2743, %v2843
        %v2845 = vpop.f32.mrb[0].mxu0
        %2846 = vdwg.mxu0
        %2847 = vmatprep.subr.mxu0 0.0
        %v2848 = vand.u32 %v2280, 4294901760
        %2849 = vmatpush1.msra.mxu0 %v2848
        %2850 = vmatprep.subr.mxu0 0.0
        %v2851 = vand.u32 %v2281, 4294901760
        %2852 = vmatpush1.msra.mxu0 %v2851
        %2853 = vmatprep.subr.mxu0 0.0
        %v2854 = vand.u32 %v2282, 4294901760
        %2855 = vmatpush1.msra.mxu0 %v2854
        %2856 = vmatprep.subr.mxu0 0.0
        %v2857 = vand.u32 %v2283, 4294901760
        %2858 = vmatpush1.msra.mxu0 %v2857
        %2859 = vmatprep.subr.mxu0 0.0
        %2860 = vmatpush1.msra.mxu0 0.0
        %2861 = vmatprep.subr.mxu0 0.0
        %2862 = vmatpush1.msra.mxu0 0.0
        %2863 = vmatprep.subr.mxu0 0.0
        %2864 = vmatpush1.msra.mxu0 0.0
        %2865 = vmatprep.subr.mxu0 0.0
        %2866 = vmatpush1.msra.mxu0 0.0
        %2867 = vmatprep.subr.mxu0 0.0
        %2868 = vmatpush1.msra.mxu0 0.0
        %2869 = vmatprep.subr.mxu0 0.0
        %2870 = vmatpush1.msra.mxu0 0.0
        %2871 = vmatprep.subr.mxu0 0.0
        %2872 = vmatpush1.msra.mxu0 0.0
        %2873 = vmatprep.subr.mxu0 0.0
        %2874 = vmatpush1.msra.mxu0 0.0
        %2875 = vmatprep.subr.mxu0 0.0
        %2876 = vmatpush1.msra.mxu0 0.0
        %2877 = vmatprep.subr.mxu0 0.0
        %2878 = vmatpush1.msra.mxu0 0.0
        %2879 = vmatprep.subr.mxu0 0.0
        %2880 = vmatpush1.msra.mxu0 0.0
        %2881 = vmatprep.subr.mxu0 0.0
        %2882 = vmatpush1.msra.mxu0 0.0
        %2883 = vmatprep.subr.mxu0 0.0
        %2884 = vmatpush1.msra.mxu0 0.0
        %2885 = vmatprep.subr.mxu0 0.0
        %2886 = vmatpush1.msra.mxu0 0.0
        %2887 = vmatprep.subr.mxu0 0.0
        %2888 = vmatpush1.msra.mxu0 0.0
        %2889 = vmatprep.subr.mxu0 0.0
        %2890 = vmatpush1.msra.mxu0 0.0
        %2891 = vmatprep.subr.mxu0 0.0
        %2892 = vmatpush1.msra.mxu0 0.0
        %2893 = vmatprep.subr.mxu0 0.0
        %2894 = vmatpush1.msra.mxu0 0.0
        %2895 = vmatprep.subr.mxu0 0.0
        %2896 = vmatpush1.msra.mxu0 0.0
        %2897 = vmatprep.subr.mxu0 0.0
        %2898 = vmatpush1.msra.mxu0 0.0
        %2899 = vmatprep.subr.mxu0 0.0
        %2900 = vmatpush1.msra.mxu0 0.0
        %2901 = vmatprep.subr.mxu0 0.0
        %2902 = vmatpush1.msra.mxu0 0.0
        %2903 = vmatprep.subr.mxu0 0.0
        %2904 = vmatpush1.msra.mxu0 0.0
        %2905 = vmatprep.subr.mxu0 0.0
        %2906 = vmatpush1.msra.mxu0 0.0
        %2907 = vmatprep.subr.mxu0 0.0
        %2908 = vmatpush1.msra.mxu0 0.0
        %2909 = vmatprep.subr.mxu0 0.0
        %2910 = vmatpush1.msra.mxu0 0.0
        %2911 = vmatprep.subr.mxu0 0.0
        %2912 = vmatpush1.msra.mxu0 0.0
        %2913 = vmatprep.subr.mxu0 0.0
        %2914 = vmatpush1.msra.mxu0 0.0
        %2915 = vmatprep.mubr.f32.mxu0 0.0
        %v2916 = vand.u32 %v2315, 4294901760
        %2917 = vmatmul.mubr.f32.gmra.mrb[0].mxu0 %v2916
        %v2918 = vpop.f32.mrb[0].mxu0
        %v2919 = vadd.f32 %v2826, %v2918
        %v2920 = vpop.f32.mrb[0].mxu0
        %2921 = vmatprep.mubr.f32.mxu0 0.0
        %v2922 = vand.u32 %v2318, 4294901760
        %2923 = vmatmul.mubr.f32.gmra.mrb[0].mxu0 %v2922
        %v2924 = vpop.f32.mrb[0].mxu0
        %v2925 = vadd.f32 %v2832, %v2924
        %v2926 = vpop.f32.mrb[0].mxu0
        %2927 = vmatprep.mubr.f32.mxu0 0.0
        %v2928 = vand.u32 %v2321, 4294901760
        %2929 = vmatmul.mubr.f32.gmra.mrb[0].mxu0 %v2928
        %v2930 = vpop.f32.mrb[0].mxu0
        %v2931 = vadd.f32 %v2838, %v2930
        %v2932 = vpop.f32.mrb[0].mxu0
        %2933 = vmatprep.mubr.f32.mxu0 0.0
        %v2934 = vand.u32 %v2324, 4294901760
        %2935 = vmatmul.mubr.f32.gmra.mrb[0].mxu0 %v2934
        %v2936 = vpop.f32.mrb[0].mxu0
        %v2937 = vadd.f32 %v2844, %v2936
        %v2938 = vpop.f32.mrb[0].mxu0
        %2939 = vdwg.mxu0
        %v2940 = vmul.f32 %v2919, 100.0
        %v2941 = vmul.f32 %v2925, 100.0
        %v2942 = vmul.f32 %v2931, 100.0
        %v2943 = vmul.f32 %v2937, 100.0
        %v2944 = vmin.f32 %v2940, 20.0
        %v2945 = vmin.f32 %v2941, 20.0
        %v2946 = vmin.f32 %v2942, 20.0
        %v2947 = vmin.f32 %v2943, 20.0
        %v2948 = vmul.f32 %v2944, 1.442695
        %v2949 = vpow.pop %v2948
        %v2950 = vmul.f32 %v2945, 1.442695
        %v2951 = vpow.pop %v2950
        %v2952 = vmul.f32 %v2946, 1.442695
        %v2953 = vpow.pop %v2952
        %v2954 = vmul.f32 %v2947, 1.442695
        %v2955 = vpow.pop %v2954
        %v2956 = vadd.f32 %v2949, 1.0
        %v2957 = vadd.f32 %v2951, 1.0
        %v2958 = vadd.f32 %v2953, 1.0
        %v2959 = vadd.f32 %v2955, 1.0
        %v2960 = vlog2.pop %v2956
        %v2961 = vmul.f32 %v2960, 0.6931472
        %v2962 = vlog2.pop %v2957
        %v2963 = vmul.f32 %v2962, 0.6931472
        %v2964 = vlog2.pop %v2958
        %v2965 = vmul.f32 %v2964, 0.6931472
        %v2966 = vlog2.pop %v2959
        %v2967 = vmul.f32 %v2966, 0.6931472
        %v2968 = vmul.f32 %v2961, 0.01
        %v2969 = vmul.f32 %v2963, 0.01
        %v2970 = vmul.f32 %v2965, 0.01
        %v2971 = vmul.f32 %v2967, 0.01
        %v2972 = vmax.f32 %v2968, %v2919
        %v2973 = vmax.f32 %v2969, %v2925
        %v2974 = vmax.f32 %v2970, %v2931
        %v2975 = vmax.f32 %v2971, %v2937
        %s2976 = scalar_lea.vmem %s2, 96
        %v2977 = vld [vmem:[%s2976] sm:$0xff]
        %v2978 = vld [vmem:[%s2976 + $0x8] sm:$0xff]
        %v2979 = vld [vmem:[%s2976 + $0x10] sm:$0xff]
        %v2980 = vld [vmem:[%s2976 + $0x18] sm:$0xff]
        %s2981 = scalar_lea.vmem %s1, 32
        %v2982 = vld [vmem:[%s2981] sm:$0xff]
        %v2983 = vld [vmem:[%s2981 + $0x8] sm:$0xff]
        %v2984 = vld [vmem:[%s2981 + $0x10] sm:$0xff]
        %v2985 = vld [vmem:[%s2981 + $0x18] sm:$0xff]
        %v2987 = vsel %vm276, %v2982, 0
        %v2990 = vsel %vm276, %v2983, 0
        %v2993 = vsel %vm276, %v2984, 0
        %v2996 = vsel %vm276, %v2985, 0
        %2998 = vmatprep.subr.mxu0 0.0
        %v2999 = vand.u32 %v247, 4294901760
        %3000 = vmatpush1.msra.mxu0 %v2999
        %3001 = vmatprep.subr.mxu0 0.0
        %3002 = vmatpush1.msra.mxu0 0.0
        %3003 = vmatprep.subr.mxu0 0.0
        %3004 = vmatpush1.msra.mxu0 0.0
        %3005 = vmatprep.subr.mxu0 0.0
        %3006 = vmatpush1.msra.mxu0 0.0
        %3007 = vmatprep.subr.mxu0 0.0
        %3008 = vmatpush1.msra.mxu0 0.0
        %3009 = vmatprep.subr.mxu0 0.0
        %3010 = vmatpush1.msra.mxu0 0.0
        %3011 = vmatprep.subr.mxu0 0.0
        %3012 = vmatpush1.msra.mxu0 0.0
        %3013 = vmatprep.subr.mxu0 0.0
        %3014 = vmatpush1.msra.mxu0 0.0
        %3015 = vmatprep.subr.mxu0 0.0
        %3016 = vmatpush1.msra.mxu0 0.0
        %3017 = vmatprep.subr.mxu0 0.0
        %3018 = vmatpush1.msra.mxu0 0.0
        %3019 = vmatprep.subr.mxu0 0.0
        %3020 = vmatpush1.msra.mxu0 0.0
        %3021 = vmatprep.subr.mxu0 0.0
        %3022 = vmatpush1.msra.mxu0 0.0
        %3023 = vmatprep.subr.mxu0 0.0
        %3024 = vmatpush1.msra.mxu0 0.0
        %3025 = vmatprep.subr.mxu0 0.0
        %3026 = vmatpush1.msra.mxu0 0.0
        %3027 = vmatprep.subr.mxu0 0.0
        %3028 = vmatpush1.msra.mxu0 0.0
        %3029 = vmatprep.subr.mxu0 0.0
        %3030 = vmatpush1.msra.mxu0 0.0
        %3031 = vmatprep.subr.mxu0 0.0
        %3032 = vmatpush1.msra.mxu0 0.0
        %3033 = vmatprep.subr.mxu0 0.0
        %3034 = vmatpush1.msra.mxu0 0.0
        %3035 = vmatprep.subr.mxu0 0.0
        %3036 = vmatpush1.msra.mxu0 0.0
        %3037 = vmatprep.subr.mxu0 0.0
        %3038 = vmatpush1.msra.mxu0 0.0
        %3039 = vmatprep.subr.mxu0 0.0
        %3040 = vmatpush1.msra.mxu0 0.0
        %3041 = vmatprep.subr.mxu0 0.0
        %3042 = vmatpush1.msra.mxu0 0.0
        %3043 = vmatprep.subr.mxu0 0.0
        %3044 = vmatpush1.msra.mxu0 0.0
        %3045 = vmatprep.subr.mxu0 0.0
        %3046 = vmatpush1.msra.mxu0 0.0
        %3047 = vmatprep.subr.mxu0 0.0
        %3048 = vmatpush1.msra.mxu0 0.0
        %3049 = vmatprep.subr.mxu0 0.0
        %3050 = vmatpush1.msra.mxu0 0.0
        %3051 = vmatprep.subr.mxu0 0.0
        %3052 = vmatpush1.msra.mxu0 0.0
        %3053 = vmatprep.subr.mxu0 0.0
        %3054 = vmatpush1.msra.mxu0 0.0
        %3055 = vmatprep.subr.mxu0 0.0
        %3056 = vmatpush1.msra.mxu0 0.0
        %3057 = vmatprep.subr.mxu0 0.0
        %3058 = vmatpush1.msra.mxu0 0.0
        %3059 = vmatprep.subr.mxu0 0.0
        %3060 = vmatpush1.msra.mxu0 0.0
        %3061 = vmatprep.subr.mxu0 0.0
        %3062 = vmatpush1.msra.mxu0 0.0
        %3063 = vmatprep.mubr.f32.mxu0 0.0
        %v3064 = vand.u32 %v2987, 4294901760
        %v3065 = vsub.f32 %v2987, %v3064
        %v3066 = vand.u32 %v3065, 4294901760
        %v3067 = vsub.f32 %v3065, %v3066
        %v3068 = vand.u32 %v3067, 4294901760
        %3069 = vmatmul.mubr.f32.gmra.mrb[0].mxu0 %v3068
        %v3070 = vpop.f32.mrb[0].mxu0
        %v3071 = vadd.f32 0.0, %v3070
        %v3072 = vpop.f32.mrb[0].mxu0
        %3073 = vmatprep.mubr.f32.mxu0 0.0
        %v3074 = vand.u32 %v2990, 4294901760
        %v3075 = vsub.f32 %v2990, %v3074
        %v3076 = vand.u32 %v3075, 4294901760
        %v3077 = vsub.f32 %v3075, %v3076
        %v3078 = vand.u32 %v3077, 4294901760
        %3079 = vmatmul.mubr.f32.gmra.mrb[0].mxu0 %v3078
        %v3080 = vpop.f32.mrb[0].mxu0
        %v3081 = vadd.f32 0.0, %v3080
        %v3082 = vpop.f32.mrb[0].mxu0
        %3083 = vmatprep.mubr.f32.mxu0 0.0
        %v3084 = vand.u32 %v2993, 4294901760
        %v3085 = vsub.f32 %v2993, %v3084
        %v3086 = vand.u32 %v3085, 4294901760
        %v3087 = vsub.f32 %v3085, %v3086
        %v3088 = vand.u32 %v3087, 4294901760
        %3089 = vmatmul.mubr.f32.gmra.mrb[0].mxu0 %v3088
        %v3090 = vpop.f32.mrb[0].mxu0
        %v3091 = vadd.f32 0.0, %v3090
        %v3092 = vpop.f32.mrb[0].mxu0
        %3093 = vmatprep.mubr.f32.mxu0 0.0
        %v3094 = vand.u32 %v2996, 4294901760
        %v3095 = vsub.f32 %v2996, %v3094
        %v3096 = vand.u32 %v3095, 4294901760
        %v3097 = vsub.f32 %v3095, %v3096
        %v3098 = vand.u32 %v3097, 4294901760
        %3099 = vmatmul.mubr.f32.gmra.mrb[0].mxu0 %v3098
        %v3100 = vpop.f32.mrb[0].mxu0
        %v3101 = vadd.f32 0.0, %v3100
        %v3102 = vpop.f32.mrb[0].mxu0
        %3103 = vdwg.mxu0
        %3104 = vmatprep.subr.mxu0 0.0
        %v3105 = vand.u32 %v247, 4294901760
        %v3106 = vsub.f32 %v247, %v3105
        %v3107 = vand.u32 %v3106, 4294901760
        %v3108 = vsub.f32 %v3106, %v3107
        %v3109 = vand.u32 %v3108, 4294901760
        %3110 = vmatpush1.msra.mxu0 %v3109
        %3111 = vmatprep.subr.mxu0 0.0
        %3112 = vmatpush1.msra.mxu0 0.0
        %3113 = vmatprep.subr.mxu0 0.0
        %3114 = vmatpush1.msra.mxu0 0.0
        %3115 = vmatprep.subr.mxu0 0.0
        %3116 = vmatpush1.msra.mxu0 0.0
        %3117 = vmatprep.subr.mxu0 0.0
        %3118 = vmatpush1.msra.mxu0 0.0
        %3119 = vmatprep.subr.mxu0 0.0
        %3120 = vmatpush1.msra.mxu0 0.0
        %3121 = vmatprep.subr.mxu0 0.0
        %3122 = vmatpush1.msra.mxu0 0.0
        %3123 = vmatprep.subr.mxu0 0.0
        %3124 = vmatpush1.msra.mxu0 0.0
        %3125 = vmatprep.subr.mxu0 0.0
        %3126 = vmatpush1.msra.mxu0 0.0
        %3127 = vmatprep.subr.mxu0 0.0
        %3128 = vmatpush1.msra.mxu0 0.0
        %3129 = vmatprep.subr.mxu0 0.0
        %3130 = vmatpush1.msra.mxu0 0.0
        %3131 = vmatprep.subr.mxu0 0.0
        %3132 = vmatpush1.msra.mxu0 0.0
        %3133 = vmatprep.subr.mxu0 0.0
        %3134 = vmatpush1.msra.mxu0 0.0
        %3135 = vmatprep.subr.mxu0 0.0
        %3136 = vmatpush1.msra.mxu0 0.0
        %3137 = vmatprep.subr.mxu0 0.0
        %3138 = vmatpush1.msra.mxu0 0.0
        %3139 = vmatprep.subr.mxu0 0.0
        %3140 = vmatpush1.msra.mxu0 0.0
        %3141 = vmatprep.subr.mxu0 0.0
        %3142 = vmatpush1.msra.mxu0 0.0
        %3143 = vmatprep.subr.mxu0 0.0
        %3144 = vmatpush1.msra.mxu0 0.0
        %3145 = vmatprep.subr.mxu0 0.0
        %3146 = vmatpush1.msra.mxu0 0.0
        %3147 = vmatprep.subr.mxu0 0.0
        %3148 = vmatpush1.msra.mxu0 0.0
        %3149 = vmatprep.subr.mxu0 0.0
        %3150 = vmatpush1.msra.mxu0 0.0
        %3151 = vmatprep.subr.mxu0 0.0
        %3152 = vmatpush1.msra.mxu0 0.0
        %3153 = vmatprep.subr.mxu0 0.0
        %3154 = vmatpush1.msra.mxu0 0.0
        %3155 = vmatprep.subr.mxu0 0.0
        %3156 = vmatpush1.msra.mxu0 0.0
        %3157 = vmatprep.subr.mxu0 0.0
        %3158 = vmatpush1.msra.mxu0 0.0
        %3159 = vmatprep.subr.mxu0 0.0
        %3160 = vmatpush1.msra.mxu0 0.0
        %3161 = vmatprep.subr.mxu0 0.0
        %3162 = vmatpush1.msra.mxu0 0.0
        %3163 = vmatprep.subr.mxu0 0.0
        %3164 = vmatpush1.msra.mxu0 0.0
        %3165 = vmatprep.subr.mxu0 0.0
        %3166 = vmatpush1.msra.mxu0 0.0
        %3167 = vmatprep.subr.mxu0 0.0
        %3168 = vmatpush1.msra.mxu0 0.0
        %3169 = vmatprep.subr.mxu0 0.0
        %3170 = vmatpush1.msra.mxu0 0.0
        %3171 = vmatprep.subr.mxu0 0.0
        %3172 = vmatpush1.msra.mxu0 0.0
        %3173 = vmatprep.mubr.f32.mxu0 0.0
        %v3174 = vand.u32 %v2987, 4294901760
        %3175 = vmatmul.mubr.f32.gmra.mrb[0].mxu0 %v3174
        %v3176 = vpop.f32.mrb[0].mxu0
        %v3177 = vadd.f32 %v3071, %v3176
        %v3178 = vpop.f32.mrb[0].mxu0
        %3179 = vmatprep.mubr.f32.mxu0 0.0
        %v3180 = vand.u32 %v2990, 4294901760
        %3181 = vmatmul.mubr.f32.gmra.mrb[0].mxu0 %v3180
        %v3182 = vpop.f32.mrb[0].mxu0
        %v3183 = vadd.f32 %v3081, %v3182
        %v3184 = vpop.f32.mrb[0].mxu0
        %3185 = vmatprep.mubr.f32.mxu0 0.0
        %v3186 = vand.u32 %v2993, 4294901760
        %3187 = vmatmul.mubr.f32.gmra.mrb[0].mxu0 %v3186
        %v3188 = vpop.f32.mrb[0].mxu0
        %v3189 = vadd.f32 %v3091, %v3188
        %v3190 = vpop.f32.mrb[0].mxu0
        %3191 = vmatprep.mubr.f32.mxu0 0.0
        %v3192 = vand.u32 %v2996, 4294901760
        %3193 = vmatmul.mubr.f32.gmra.mrb[0].mxu0 %v3192
        %v3194 = vpop.f32.mrb[0].mxu0
        %v3195 = vadd.f32 %v3101, %v3194
        %v3196 = vpop.f32.mrb[0].mxu0
        %3197 = vdwg.mxu0
        %3198 = vmatprep.subr.mxu0 0.0
        %v3199 = vand.u32 %v247, 4294901760
        %v3200 = vsub.f32 %v247, %v3199
        %3201 = vmatpush1.msra.mxu0 %v3200
        %3202 = vmatprep.subr.mxu0 0.0
        %3203 = vmatpush1.msra.mxu0 0.0
        %3204 = vmatprep.subr.mxu0 0.0
        %3205 = vmatpush1.msra.mxu0 0.0
        %3206 = vmatprep.subr.mxu0 0.0
        %3207 = vmatpush1.msra.mxu0 0.0
        %3208 = vmatprep.subr.mxu0 0.0
        %3209 = vmatpush1.msra.mxu0 0.0
        %3210 = vmatprep.subr.mxu0 0.0
        %3211 = vmatpush1.msra.mxu0 0.0
        %3212 = vmatprep.subr.mxu0 0.0
        %3213 = vmatpush1.msra.mxu0 0.0
        %3214 = vmatprep.subr.mxu0 0.0
        %3215 = vmatpush1.msra.mxu0 0.0
        %3216 = vmatprep.subr.mxu0 0.0
        %3217 = vmatpush1.msra.mxu0 0.0
        %3218 = vmatprep.subr.mxu0 0.0
        %3219 = vmatpush1.msra.mxu0 0.0
        %3220 = vmatprep.subr.mxu0 0.0
        %3221 = vmatpush1.msra.mxu0 0.0
        %3222 = vmatprep.subr.mxu0 0.0
        %3223 = vmatpush1.msra.mxu0 0.0
        %3224 = vmatprep.subr.mxu0 0.0
        %3225 = vmatpush1.msra.mxu0 0.0
        %3226 = vmatprep.subr.mxu0 0.0
        %3227 = vmatpush1.msra.mxu0 0.0
        %3228 = vmatprep.subr.mxu0 0.0
        %3229 = vmatpush1.msra.mxu0 0.0
        %3230 = vmatprep.subr.mxu0 0.0
        %3231 = vmatpush1.msra.mxu0 0.0
        %3232 = vmatprep.subr.mxu0 0.0
        %3233 = vmatpush1.msra.mxu0 0.0
        %3234 = vmatprep.subr.mxu0 0.0
        %3235 = vmatpush1.msra.mxu0 0.0
        %3236 = vmatprep.subr.mxu0 0.0
        %3237 = vmatpush1.msra.mxu0 0.0
        %3238 = vmatprep.subr.mxu0 0.0
        %3239 = vmatpush1.msra.mxu0 0.0
        %3240 = vmatprep.subr.mxu0 0.0
        %3241 = vmatpush1.msra.mxu0 0.0
        %3242 = vmatprep.subr.mxu0 0.0
        %3243 = vmatpush1.msra.mxu0 0.0
        %3244 = vmatprep.subr.mxu0 0.0
        %3245 = vmatpush1.msra.mxu0 0.0
        %3246 = vmatprep.subr.mxu0 0.0
        %3247 = vmatpush1.msra.mxu0 0.0
        %3248 = vmatprep.subr.mxu0 0.0
        %3249 = vmatpush1.msra.mxu0 0.0
        %3250 = vmatprep.subr.mxu0 0.0
        %3251 = vmatpush1.msra.mxu0 0.0
        %3252 = vmatprep.subr.mxu0 0.0
        %3253 = vmatpush1.msra.mxu0 0.0
        %3254 = vmatprep.subr.mxu0 0.0
        %3255 = vmatpush1.msra.mxu0 0.0
        %3256 = vmatprep.subr.mxu0 0.0
        %3257 = vmatpush1.msra.mxu0 0.0
        %3258 = vmatprep.subr.mxu0 0.0
        %3259 = vmatpush1.msra.mxu0 0.0
        %3260 = vmatprep.subr.mxu0 0.0
        %3261 = vmatpush1.msra.mxu0 0.0
        %3262 = vmatprep.subr.mxu0 0.0
        %3263 = vmatpush1.msra.mxu0 0.0
        %3264 = vmatprep.mubr.f32.mxu0 0.0
        %v3265 = vand.u32 %v2987, 4294901760
        %v3266 = vsub.f32 %v2987, %v3265
        %3267 = vmatmul.mubr.f32.gmra.mrb[0].mxu0 %v3266
        %v3268 = vpop.f32.mrb[0].mxu0
        %v3269 = vadd.f32 %v3177, %v3268
        %v3270 = vpop.f32.mrb[0].mxu0
        %3271 = vmatprep.mubr.f32.mxu0 0.0
        %v3272 = vand.u32 %v2990, 4294901760
        %v3273 = vsub.f32 %v2990, %v3272
        %3274 = vmatmul.mubr.f32.gmra.mrb[0].mxu0 %v3273
        %v3275 = vpop.f32.mrb[0].mxu0
        %v3276 = vadd.f32 %v3183, %v3275
        %v3277 = vpop.f32.mrb[0].mxu0
        %3278 = vmatprep.mubr.f32.mxu0 0.0
        %v3279 = vand.u32 %v2993, 4294901760
        %v3280 = vsub.f32 %v2993, %v3279
        %3281 = vmatmul.mubr.f32.gmra.mrb[0].mxu0 %v3280
        %v3282 = vpop.f32.mrb[0].mxu0
        %v3283 = vadd.f32 %v3189, %v3282
        %v3284 = vpop.f32.mrb[0].mxu0
        %3285 = vmatprep.mubr.f32.mxu0 0.0
        %v3286 = vand.u32 %v2996, 4294901760
        %v3287 = vsub.f32 %v2996, %v3286
        %3288 = vmatmul.mubr.f32.gmra.mrb[0].mxu0 %v3287
        %v3289 = vpop.f32.mrb[0].mxu0
        %v3290 = vadd.f32 %v3195, %v3289
        %v3291 = vpop.f32.mrb[0].mxu0
        %3292 = vdwg.mxu0
        %3293 = vmatprep.subr.mxu0 0.0
        %v3294 = vand.u32 %v247, 4294901760
        %3295 = vmatpush1.msra.mxu0 %v3294
        %3296 = vmatprep.subr.mxu0 0.0
        %3297 = vmatpush1.msra.mxu0 0.0
        %3298 = vmatprep.subr.mxu0 0.0
        %3299 = vmatpush1.msra.mxu0 0.0
        %3300 = vmatprep.subr.mxu0 0.0
        %3301 = vmatpush1.msra.mxu0 0.0
        %3302 = vmatprep.subr.mxu0 0.0
        %3303 = vmatpush1.msra.mxu0 0.0
        %3304 = vmatprep.subr.mxu0 0.0
        %3305 = vmatpush1.msra.mxu0 0.0
        %3306 = vmatprep.subr.mxu0 0.0
        %3307 = vmatpush1.msra.mxu0 0.0
        %3308 = vmatprep.subr.mxu0 0.0
        %3309 = vmatpush1.msra.mxu0 0.0
        %3310 = vmatprep.subr.mxu0 0.0
        %3311 = vmatpush1.msra.mxu0 0.0
        %3312 = vmatprep.subr.mxu0 0.0
        %3313 = vmatpush1.msra.mxu0 0.0
        %3314 = vmatprep.subr.mxu0 0.0
        %3315 = vmatpush1.msra.mxu0 0.0
        %3316 = vmatprep.subr.mxu0 0.0
        %3317 = vmatpush1.msra.mxu0 0.0
        %3318 = vmatprep.subr.mxu0 0.0
        %3319 = vmatpush1.msra.mxu0 0.0
        %3320 = vmatprep.subr.mxu0 0.0
        %3321 = vmatpush1.msra.mxu0 0.0
        %3322 = vmatprep.subr.mxu0 0.0
        %3323 = vmatpush1.msra.mxu0 0.0
        %3324 = vmatprep.subr.mxu0 0.0
        %3325 = vmatpush1.msra.mxu0 0.0
        %3326 = vmatprep.subr.mxu0 0.0
        %3327 = vmatpush1.msra.mxu0 0.0
        %3328 = vmatprep.subr.mxu0 0.0
        %3329 = vmatpush1.msra.mxu0 0.0
        %3330 = vmatprep.subr.mxu0 0.0
        %3331 = vmatpush1.msra.mxu0 0.0
        %3332 = vmatprep.subr.mxu0 0.0
        %3333 = vmatpush1.msra.mxu0 0.0
        %3334 = vmatprep.subr.mxu0 0.0
        %3335 = vmatpush1.msra.mxu0 0.0
        %3336 = vmatprep.subr.mxu0 0.0
        %3337 = vmatpush1.msra.mxu0 0.0
        %3338 = vmatprep.subr.mxu0 0.0
        %3339 = vmatpush1.msra.mxu0 0.0
        %3340 = vmatprep.subr.mxu0 0.0
        %3341 = vmatpush1.msra.mxu0 0.0
        %3342 = vmatprep.subr.mxu0 0.0
        %3343 = vmatpush1.msra.mxu0 0.0
        %3344 = vmatprep.subr.mxu0 0.0
        %3345 = vmatpush1.msra.mxu0 0.0
        %3346 = vmatprep.subr.mxu0 0.0
        %3347 = vmatpush1.msra.mxu0 0.0
        %3348 = vmatprep.subr.mxu0 0.0
        %3349 = vmatpush1.msra.mxu0 0.0
        %3350 = vmatprep.subr.mxu0 0.0
        %3351 = vmatpush1.msra.mxu0 0.0
        %3352 = vmatprep.subr.mxu0 0.0
        %3353 = vmatpush1.msra.mxu0 0.0
        %3354 = vmatprep.subr.mxu0 0.0
        %3355 = vmatpush1.msra.mxu0 0.0
        %3356 = vmatprep.subr.mxu0 0.0
        %3357 = vmatpush1.msra.mxu0 0.0
        %3358 = vmatprep.mubr.f32.mxu0 0.0
        %v3359 = vand.u32 %v2987, 4294901760
        %v3360 = vsub.f32 %v2987, %v3359
        %v3361 = vand.u32 %v3360, 4294901760
        %3362 = vmatmul.mubr.f32.gmra.mrb[0].mxu0 %v3361
        %v3363 = vpop.f32.mrb[0].mxu0
        %v3364 = vadd.f32 %v3269, %v3363
        %v3365 = vpop.f32.mrb[0].mxu0
        %3366 = vmatprep.mubr.f32.mxu0 0.0
        %v3367 = vand.u32 %v2990, 4294901760
        %v3368 = vsub.f32 %v2990, %v3367
        %v3369 = vand.u32 %v3368, 4294901760
        %3370 = vmatmul.mubr.f32.gmra.mrb[0].mxu0 %v3369
        %v3371 = vpop.f32.mrb[0].mxu0
        %v3372 = vadd.f32 %v3276, %v3371
        %v3373 = vpop.f32.mrb[0].mxu0
        %3374 = vmatprep.mubr.f32.mxu0 0.0
        %v3375 = vand.u32 %v2993, 4294901760
        %v3376 = vsub.f32 %v2993, %v3375
        %v3377 = vand.u32 %v3376, 4294901760
        %3378 = vmatmul.mubr.f32.gmra.mrb[0].mxu0 %v3377
        %v3379 = vpop.f32.mrb[0].mxu0
        %v3380 = vadd.f32 %v3283, %v3379
        %v3381 = vpop.f32.mrb[0].mxu0
        %3382 = vmatprep.mubr.f32.mxu0 0.0
        %v3383 = vand.u32 %v2996, 4294901760
        %v3384 = vsub.f32 %v2996, %v3383
        %v3385 = vand.u32 %v3384, 4294901760
        %3386 = vmatmul.mubr.f32.gmra.mrb[0].mxu0 %v3385
        %v3387 = vpop.f32.mrb[0].mxu0
        %v3388 = vadd.f32 %v3290, %v3387
        %v3389 = vpop.f32.mrb[0].mxu0
        %3390 = vdwg.mxu0
        %3391 = vmatprep.subr.mxu0 0.0
        %v3392 = vand.u32 %v247, 4294901760
        %v3393 = vsub.f32 %v247, %v3392
        %v3394 = vand.u32 %v3393, 4294901760
        %3395 = vmatpush1.msra.mxu0 %v3394
        %3396 = vmatprep.subr.mxu0 0.0
        %3397 = vmatpush1.msra.mxu0 0.0
        %3398 = vmatprep.subr.mxu0 0.0
        %3399 = vmatpush1.msra.mxu0 0.0
        %3400 = vmatprep.subr.mxu0 0.0
        %3401 = vmatpush1.msra.mxu0 0.0
        %3402 = vmatprep.subr.mxu0 0.0
        %3403 = vmatpush1.msra.mxu0 0.0
        %3404 = vmatprep.subr.mxu0 0.0
        %3405 = vmatpush1.msra.mxu0 0.0
        %3406 = vmatprep.subr.mxu0 0.0
        %3407 = vmatpush1.msra.mxu0 0.0
        %3408 = vmatprep.subr.mxu0 0.0
        %3409 = vmatpush1.msra.mxu0 0.0
        %3410 = vmatprep.subr.mxu0 0.0
        %3411 = vmatpush1.msra.mxu0 0.0
        %3412 = vmatprep.subr.mxu0 0.0
        %3413 = vmatpush1.msra.mxu0 0.0
        %3414 = vmatprep.subr.mxu0 0.0
        %3415 = vmatpush1.msra.mxu0 0.0
        %3416 = vmatprep.subr.mxu0 0.0
        %3417 = vmatpush1.msra.mxu0 0.0
        %3418 = vmatprep.subr.mxu0 0.0
        %3419 = vmatpush1.msra.mxu0 0.0
        %3420 = vmatprep.subr.mxu0 0.0
        %3421 = vmatpush1.msra.mxu0 0.0
        %3422 = vmatprep.subr.mxu0 0.0
        %3423 = vmatpush1.msra.mxu0 0.0
        %3424 = vmatprep.subr.mxu0 0.0
        %3425 = vmatpush1.msra.mxu0 0.0
        %3426 = vmatprep.subr.mxu0 0.0
        %3427 = vmatpush1.msra.mxu0 0.0
        %3428 = vmatprep.subr.mxu0 0.0
        %3429 = vmatpush1.msra.mxu0 0.0
        %3430 = vmatprep.subr.mxu0 0.0
        %3431 = vmatpush1.msra.mxu0 0.0
        %3432 = vmatprep.subr.mxu0 0.0
        %3433 = vmatpush1.msra.mxu0 0.0
        %3434 = vmatprep.subr.mxu0 0.0
        %3435 = vmatpush1.msra.mxu0 0.0
        %3436 = vmatprep.subr.mxu0 0.0
        %3437 = vmatpush1.msra.mxu0 0.0
        %3438 = vmatprep.subr.mxu0 0.0
        %3439 = vmatpush1.msra.mxu0 0.0
        %3440 = vmatprep.subr.mxu0 0.0
        %3441 = vmatpush1.msra.mxu0 0.0
        %3442 = vmatprep.subr.mxu0 0.0
        %3443 = vmatpush1.msra.mxu0 0.0
        %3444 = vmatprep.subr.mxu0 0.0
        %3445 = vmatpush1.msra.mxu0 0.0
        %3446 = vmatprep.subr.mxu0 0.0
        %3447 = vmatpush1.msra.mxu0 0.0
        %3448 = vmatprep.subr.mxu0 0.0
        %3449 = vmatpush1.msra.mxu0 0.0
        %3450 = vmatprep.subr.mxu0 0.0
        %3451 = vmatpush1.msra.mxu0 0.0
        %3452 = vmatprep.subr.mxu0 0.0
        %3453 = vmatpush1.msra.mxu0 0.0
        %3454 = vmatprep.subr.mxu0 0.0
        %3455 = vmatpush1.msra.mxu0 0.0
        %3456 = vmatprep.subr.mxu0 0.0
        %3457 = vmatpush1.msra.mxu0 0.0
        %3458 = vmatprep.mubr.f32.mxu0 0.0
        %v3459 = vand.u32 %v2987, 4294901760
        %3460 = vmatmul.mubr.f32.gmra.mrb[0].mxu0 %v3459
        %v3461 = vpop.f32.mrb[0].mxu0
        %v3462 = vadd.f32 %v3364, %v3461
        %v3463 = vpop.f32.mrb[0].mxu0
        %3464 = vmatprep.mubr.f32.mxu0 0.0
        %v3465 = vand.u32 %v2990, 4294901760
        %3466 = vmatmul.mubr.f32.gmra.mrb[0].mxu0 %v3465
        %v3467 = vpop.f32.mrb[0].mxu0
        %v3468 = vadd.f32 %v3372, %v3467
        %v3469 = vpop.f32.mrb[0].mxu0
        %3470 = vmatprep.mubr.f32.mxu0 0.0
        %v3471 = vand.u32 %v2993, 4294901760
        %3472 = vmatmul.mubr.f32.gmra.mrb[0].mxu0 %v3471
        %v3473 = vpop.f32.mrb[0].mxu0
        %v3474 = vadd.f32 %v3380, %v3473
        %v3475 = vpop.f32.mrb[0].mxu0
        %3476 = vmatprep.mubr.f32.mxu0 0.0
        %v3477 = vand.u32 %v2996, 4294901760
        %3478 = vmatmul.mubr.f32.gmra.mrb[0].mxu0 %v3477
        %v3479 = vpop.f32.mrb[0].mxu0
        %v3480 = vadd.f32 %v3388, %v3479
        %v3481 = vpop.f32.mrb[0].mxu0
        %3482 = vdwg.mxu0
        %3483 = vmatprep.subr.mxu0 0.0
        %v3484 = vand.u32 %v247, 4294901760
        %3485 = vmatpush1.msra.mxu0 %v3484
        %3486 = vmatprep.subr.mxu0 0.0
        %3487 = vmatpush1.msra.mxu0 0.0
        %3488 = vmatprep.subr.mxu0 0.0
        %3489 = vmatpush1.msra.mxu0 0.0
        %3490 = vmatprep.subr.mxu0 0.0
        %3491 = vmatpush1.msra.mxu0 0.0
        %3492 = vmatprep.subr.mxu0 0.0
        %3493 = vmatpush1.msra.mxu0 0.0
        %3494 = vmatprep.subr.mxu0 0.0
        %3495 = vmatpush1.msra.mxu0 0.0
        %3496 = vmatprep.subr.mxu0 0.0
        %3497 = vmatpush1.msra.mxu0 0.0
        %3498 = vmatprep.subr.mxu0 0.0
        %3499 = vmatpush1.msra.mxu0 0.0
        %3500 = vmatprep.subr.mxu0 0.0
        %3501 = vmatpush1.msra.mxu0 0.0
        %3502 = vmatprep.subr.mxu0 0.0
        %3503 = vmatpush1.msra.mxu0 0.0
        %3504 = vmatprep.subr.mxu0 0.0
        %3505 = vmatpush1.msra.mxu0 0.0
        %3506 = vmatprep.subr.mxu0 0.0
        %3507 = vmatpush1.msra.mxu0 0.0
        %3508 = vmatprep.subr.mxu0 0.0
        %3509 = vmatpush1.msra.mxu0 0.0
        %3510 = vmatprep.subr.mxu0 0.0
        %3511 = vmatpush1.msra.mxu0 0.0
        %3512 = vmatprep.subr.mxu0 0.0
        %3513 = vmatpush1.msra.mxu0 0.0
        %3514 = vmatprep.subr.mxu0 0.0
        %3515 = vmatpush1.msra.mxu0 0.0
        %3516 = vmatprep.subr.mxu0 0.0
        %3517 = vmatpush1.msra.mxu0 0.0
        %3518 = vmatprep.subr.mxu0 0.0
        %3519 = vmatpush1.msra.mxu0 0.0
        %3520 = vmatprep.subr.mxu0 0.0
        %3521 = vmatpush1.msra.mxu0 0.0
        %3522 = vmatprep.subr.mxu0 0.0
        %3523 = vmatpush1.msra.mxu0 0.0
        %3524 = vmatprep.subr.mxu0 0.0
        %3525 = vmatpush1.msra.mxu0 0.0
        %3526 = vmatprep.subr.mxu0 0.0
        %3527 = vmatpush1.msra.mxu0 0.0
        %3528 = vmatprep.subr.mxu0 0.0
        %3529 = vmatpush1.msra.mxu0 0.0
        %3530 = vmatprep.subr.mxu0 0.0
        %3531 = vmatpush1.msra.mxu0 0.0
        %3532 = vmatprep.subr.mxu0 0.0
        %3533 = vmatpush1.msra.mxu0 0.0
        %3534 = vmatprep.subr.mxu0 0.0
        %3535 = vmatpush1.msra.mxu0 0.0
        %3536 = vmatprep.subr.mxu0 0.0
        %3537 = vmatpush1.msra.mxu0 0.0
        %3538 = vmatprep.subr.mxu0 0.0
        %3539 = vmatpush1.msra.mxu0 0.0
        %3540 = vmatprep.subr.mxu0 0.0
        %3541 = vmatpush1.msra.mxu0 0.0
        %3542 = vmatprep.subr.mxu0 0.0
        %3543 = vmatpush1.msra.mxu0 0.0
        %3544 = vmatprep.subr.mxu0 0.0
        %3545 = vmatpush1.msra.mxu0 0.0
        %3546 = vmatprep.subr.mxu0 0.0
        %3547 = vmatpush1.msra.mxu0 0.0
        %3548 = vmatprep.mubr.f32.mxu0 0.0
        %v3549 = vand.u32 %v2987, 4294901760
        %3550 = vmatmul.mubr.f32.gmra.mrb[0].mxu0 %v3549
        %v3551 = vpop.f32.mrb[0].mxu0
        %v3552 = vadd.f32 %v3462, %v3551
        %v3553 = vpop.f32.mrb[0].mxu0
        %3554 = vmatprep.mubr.f32.mxu0 0.0
        %v3555 = vand.u32 %v2990, 4294901760
        %3556 = vmatmul.mubr.f32.gmra.mrb[0].mxu0 %v3555
        %v3557 = vpop.f32.mrb[0].mxu0
        %v3558 = vadd.f32 %v3468, %v3557
        %v3559 = vpop.f32.mrb[0].mxu0
        %3560 = vmatprep.mubr.f32.mxu0 0.0
        %v3561 = vand.u32 %v2993, 4294901760
        %3562 = vmatmul.mubr.f32.gmra.mrb[0].mxu0 %v3561
        %v3563 = vpop.f32.mrb[0].mxu0
        %v3564 = vadd.f32 %v3474, %v3563
        %v3565 = vpop.f32.mrb[0].mxu0
        %3566 = vmatprep.mubr.f32.mxu0 0.0
        %v3567 = vand.u32 %v2996, 4294901760
        %3568 = vmatmul.mubr.f32.gmra.mrb[0].mxu0 %v3567
        %v3569 = vpop.f32.mrb[0].mxu0
        %v3570 = vadd.f32 %v3480, %v3569
        %v3571 = vpop.f32.mrb[0].mxu0
        %3572 = vdwg.mxu0
        %v3574 = vsel %vm929, %v2977, 0
        %v3577 = vsel %vm929, %v2978, 0
        %v3580 = vsel %vm929, %v2979, 0
        %v3583 = vsel %vm929, %v2980, 0
        %3585 = vmatprep.subr.mxu0 0.0
        %v3586 = vand.u32 %v2972, 4294901760
        %3587 = vmatpush1.msra.mxu0 %v3586
        %3588 = vmatprep.subr.mxu0 0.0
        %v3589 = vand.u32 %v2973, 4294901760
        %3590 = vmatpush1.msra.mxu0 %v3589
        %3591 = vmatprep.subr.mxu0 0.0
        %v3592 = vand.u32 %v2974, 4294901760
        %3593 = vmatpush1.msra.mxu0 %v3592
        %3594 = vmatprep.subr.mxu0 0.0
        %v3595 = vand.u32 %v2975, 4294901760
        %3596 = vmatpush1.msra.mxu0 %v3595
        %3597 = vmatprep.subr.mxu0 0.0
        %3598 = vmatpush1.msra.mxu0 0.0
        %3599 = vmatprep.subr.mxu0 0.0
        %3600 = vmatpush1.msra.mxu0 0.0
        %3601 = vmatprep.subr.mxu0 0.0
        %3602 = vmatpush1.msra.mxu0 0.0
        %3603 = vmatprep.subr.mxu0 0.0
        %3604 = vmatpush1.msra.mxu0 0.0
        %3605 = vmatprep.subr.mxu0 0.0
        %3606 = vmatpush1.msra.mxu0 0.0
        %3607 = vmatprep.subr.mxu0 0.0
        %3608 = vmatpush1.msra.mxu0 0.0
        %3609 = vmatprep.subr.mxu0 0.0
        %3610 = vmatpush1.msra.mxu0 0.0
        %3611 = vmatprep.subr.mxu0 0.0
        %3612 = vmatpush1.msra.mxu0 0.0
        %3613 = vmatprep.subr.mxu0 0.0
        %3614 = vmatpush1.msra.mxu0 0.0
        %3615 = vmatprep.subr.mxu0 0.0
        %3616 = vmatpush1.msra.mxu0 0.0
        %3617 = vmatprep.subr.mxu0 0.0
        %3618 = vmatpush1.msra.mxu0 0.0
        %3619 = vmatprep.subr.mxu0 0.0
        %3620 = vmatpush1.msra.mxu0 0.0
        %3621 = vmatprep.subr.mxu0 0.0
        %3622 = vmatpush1.msra.mxu0 0.0
        %3623 = vmatprep.subr.mxu0 0.0
        %3624 = vmatpush1.msra.mxu0 0.0
        %3625 = vmatprep.subr.mxu0 0.0
        %3626 = vmatpush1.msra.mxu0 0.0
        %3627 = vmatprep.subr.mxu0 0.0
        %3628 = vmatpush1.msra.mxu0 0.0
        %3629 = vmatprep.subr.mxu0 0.0
        %3630 = vmatpush1.msra.mxu0 0.0
        %3631 = vmatprep.subr.mxu0 0.0
        %3632 = vmatpush1.msra.mxu0 0.0
        %3633 = vmatprep.subr.mxu0 0.0
        %3634 = vmatpush1.msra.mxu0 0.0
        %3635 = vmatprep.subr.mxu0 0.0
        %3636 = vmatpush1.msra.mxu0 0.0
        %3637 = vmatprep.subr.mxu0 0.0
        %3638 = vmatpush1.msra.mxu0 0.0
        %3639 = vmatprep.subr.mxu0 0.0
        %3640 = vmatpush1.msra.mxu0 0.0
        %3641 = vmatprep.subr.mxu0 0.0
        %3642 = vmatpush1.msra.mxu0 0.0
        %3643 = vmatprep.subr.mxu0 0.0
        %3644 = vmatpush1.msra.mxu0 0.0
        %3645 = vmatprep.subr.mxu0 0.0
        %3646 = vmatpush1.msra.mxu0 0.0
        %3647 = vmatprep.subr.mxu0 0.0
        %3648 = vmatpush1.msra.mxu0 0.0
        %3649 = vmatprep.subr.mxu0 0.0
        %3650 = vmatpush1.msra.mxu0 0.0
        %3651 = vmatprep.subr.mxu0 0.0
        %3652 = vmatpush1.msra.mxu0 0.0
        %3653 = vmatprep.mubr.f32.mxu0 0.0
        %v3654 = vand.u32 %v3574, 4294901760
        %v3655 = vsub.f32 %v3574, %v3654
        %v3656 = vand.u32 %v3655, 4294901760
        %v3657 = vsub.f32 %v3655, %v3656
        %v3658 = vand.u32 %v3657, 4294901760
        %3659 = vmatmul.mubr.f32.gmra.mrb[0].mxu0 %v3658
        %v3660 = vpop.f32.mrb[0].mxu0
        %v3661 = vadd.f32 %v3552, %v3660
        %v3662 = vpop.f32.mrb[0].mxu0
        %3663 = vmatprep.mubr.f32.mxu0 0.0
        %v3664 = vand.u32 %v3577, 4294901760
        %v3665 = vsub.f32 %v3577, %v3664
        %v3666 = vand.u32 %v3665, 4294901760
        %v3667 = vsub.f32 %v3665, %v3666
        %v3668 = vand.u32 %v3667, 4294901760
        %3669 = vmatmul.mubr.f32.gmra.mrb[0].mxu0 %v3668
        %v3670 = vpop.f32.mrb[0].mxu0
        %v3671 = vadd.f32 %v3558, %v3670
        %v3672 = vpop.f32.mrb[0].mxu0
        %3673 = vmatprep.mubr.f32.mxu0 0.0
        %v3674 = vand.u32 %v3580, 4294901760
        %v3675 = vsub.f32 %v3580, %v3674
        %v3676 = vand.u32 %v3675, 4294901760
        %v3677 = vsub.f32 %v3675, %v3676
        %v3678 = vand.u32 %v3677, 4294901760
        %3679 = vmatmul.mubr.f32.gmra.mrb[0].mxu0 %v3678
        %v3680 = vpop.f32.mrb[0].mxu0
        %v3681 = vadd.f32 %v3564, %v3680
        %v3682 = vpop.f32.mrb[0].mxu0
        %3683 = vmatprep.mubr.f32.mxu0 0.0
        %v3684 = vand.u32 %v3583, 4294901760
        %v3685 = vsub.f32 %v3583, %v3684
        %v3686 = vand.u32 %v3685, 4294901760
        %v3687 = vsub.f32 %v3685, %v3686
        %v3688 = vand.u32 %v3687, 4294901760
        %3689 = vmatmul.mubr.f32.gmra.mrb[0].mxu0 %v3688
        %v3690 = vpop.f32.mrb[0].mxu0
        %v3691 = vadd.f32 %v3570, %v3690
        %v3692 = vpop.f32.mrb[0].mxu0
        %3693 = vdwg.mxu0
        %3694 = vmatprep.subr.mxu0 0.0
        %v3695 = vand.u32 %v2972, 4294901760
        %v3696 = vsub.f32 %v2972, %v3695
        %v3697 = vand.u32 %v3696, 4294901760
        %v3698 = vsub.f32 %v3696, %v3697
        %v3699 = vand.u32 %v3698, 4294901760
        %3700 = vmatpush1.msra.mxu0 %v3699
        %3701 = vmatprep.subr.mxu0 0.0
        %v3702 = vand.u32 %v2973, 4294901760
        %v3703 = vsub.f32 %v2973, %v3702
        %v3704 = vand.u32 %v3703, 4294901760
        %v3705 = vsub.f32 %v3703, %v3704
        %v3706 = vand.u32 %v3705, 4294901760
        %3707 = vmatpush1.msra.mxu0 %v3706
        %3708 = vmatprep.subr.mxu0 0.0
        %v3709 = vand.u32 %v2974, 4294901760
        %v3710 = vsub.f32 %v2974, %v3709
        %v3711 = vand.u32 %v3710, 4294901760
        %v3712 = vsub.f32 %v3710, %v3711
        %v3713 = vand.u32 %v3712, 4294901760
        %3714 = vmatpush1.msra.mxu0 %v3713
        %3715 = vmatprep.subr.mxu0 0.0
        %v3716 = vand.u32 %v2975, 4294901760
        %v3717 = vsub.f32 %v2975, %v3716
        %v3718 = vand.u32 %v3717, 4294901760
        %v3719 = vsub.f32 %v3717, %v3718
        %v3720 = vand.u32 %v3719, 4294901760
        %3721 = vmatpush1.msra.mxu0 %v3720
        %3722 = vmatprep.subr.mxu0 0.0
        %3723 = vmatpush1.msra.mxu0 0.0
        %3724 = vmatprep.subr.mxu0 0.0
        %3725 = vmatpush1.msra.mxu0 0.0
        %3726 = vmatprep.subr.mxu0 0.0
        %3727 = vmatpush1.msra.mxu0 0.0
        %3728 = vmatprep.subr.mxu0 0.0
        %3729 = vmatpush1.msra.mxu0 0.0
        %3730 = vmatprep.subr.mxu0 0.0
        %3731 = vmatpush1.msra.mxu0 0.0
        %3732 = vmatprep.subr.mxu0 0.0
        %3733 = vmatpush1.msra.mxu0 0.0
        %3734 = vmatprep.subr.mxu0 0.0
        %3735 = vmatpush1.msra.mxu0 0.0
        %3736 = vmatprep.subr.mxu0 0.0
        %3737 = vmatpush1.msra.mxu0 0.0
        %3738 = vmatprep.subr.mxu0 0.0
        %3739 = vmatpush1.msra.mxu0 0.0
        %3740 = vmatprep.subr.mxu0 0.0
        %3741 = vmatpush1.msra.mxu0 0.0
        %3742 = vmatprep.subr.mxu0 0.0
        %3743 = vmatpush1.msra.mxu0 0.0
        %3744 = vmatprep.subr.mxu0 0.0
        %3745 = vmatpush1.msra.mxu0 0.0
        %3746 = vmatprep.subr.mxu0 0.0
        %3747 = vmatpush1.msra.mxu0 0.0
        %3748 = vmatprep.subr.mxu0 0.0
        %3749 = vmatpush1.msra.mxu0 0.0
        %3750 = vmatprep.subr.mxu0 0.0
        %3751 = vmatpush1.msra.mxu0 0.0
        %3752 = vmatprep.subr.mxu0 0.0
        %3753 = vmatpush1.msra.mxu0 0.0
        %3754 = vmatprep.subr.mxu0 0.0
        %3755 = vmatpush1.msra.mxu0 0.0
        %3756 = vmatprep.subr.mxu0 0.0
        %3757 = vmatpush1.msra.mxu0 0.0
        %3758 = vmatprep.subr.mxu0 0.0
        %3759 = vmatpush1.msra.mxu0 0.0
        %3760 = vmatprep.subr.mxu0 0.0
        %3761 = vmatpush1.msra.mxu0 0.0
        %3762 = vmatprep.subr.mxu0 0.0
        %3763 = vmatpush1.msra.mxu0 0.0
        %3764 = vmatprep.subr.mxu0 0.0
        %3765 = vmatpush1.msra.mxu0 0.0
        %3766 = vmatprep.subr.mxu0 0.0
        %3767 = vmatpush1.msra.mxu0 0.0
        %3768 = vmatprep.subr.mxu0 0.0
        %3769 = vmatpush1.msra.mxu0 0.0
        %3770 = vmatprep.subr.mxu0 0.0
        %3771 = vmatpush1.msra.mxu0 0.0
        %3772 = vmatprep.subr.mxu0 0.0
        %3773 = vmatpush1.msra.mxu0 0.0
        %3774 = vmatprep.subr.mxu0 0.0
        %3775 = vmatpush1.msra.mxu0 0.0
        %3776 = vmatprep.subr.mxu0 0.0
        %3777 = vmatpush1.msra.mxu0 0.0
        %3778 = vmatprep.mubr.f32.mxu0 0.0
        %v3779 = vand.u32 %v3574, 4294901760
        %3780 = vmatmul.mubr.f32.gmra.mrb[0].mxu0 %v3779
        %v3781 = vpop.f32.mrb[0].mxu0
        %v3782 = vadd.f32 %v3661, %v3781
        %v3783 = vpop.f32.mrb[0].mxu0
        %3784 = vmatprep.mubr.f32.mxu0 0.0
        %v3785 = vand.u32 %v3577, 4294901760
        %3786 = vmatmul.mubr.f32.gmra.mrb[0].mxu0 %v3785
        %v3787 = vpop.f32.mrb[0].mxu0
        %v3788 = vadd.f32 %v3671, %v3787
        %v3789 = vpop.f32.mrb[0].mxu0
        %3790 = vmatprep.mubr.f32.mxu0 0.0
        %v3791 = vand.u32 %v3580, 4294901760
        %3792 = vmatmul.mubr.f32.gmra.mrb[0].mxu0 %v3791
        %v3793 = vpop.f32.mrb[0].mxu0
        %v3794 = vadd.f32 %v3681, %v3793
        %v3795 = vpop.f32.mrb[0].mxu0
        %3796 = vmatprep.mubr.f32.mxu0 0.0
        %v3797 = vand.u32 %v3583, 4294901760
        %3798 = vmatmul.mubr.f32.gmra.mrb[0].mxu0 %v3797
        %v3799 = vpop.f32.mrb[0].mxu0
        %v3800 = vadd.f32 %v3691, %v3799
        %v3801 = vpop.f32.mrb[0].mxu0
        %3802 = vdwg.mxu0
        %3803 = vmatprep.subr.mxu0 0.0
        %v3804 = vand.u32 %v2972, 4294901760
        %v3805 = vsub.f32 %v2972, %v3804
        %3806 = vmatpush1.msra.mxu0 %v3805
        %3807 = vmatprep.subr.mxu0 0.0
        %v3808 = vand.u32 %v2973, 4294901760
        %v3809 = vsub.f32 %v2973, %v3808
        %3810 = vmatpush1.msra.mxu0 %v3809
        %3811 = vmatprep.subr.mxu0 0.0
        %v3812 = vand.u32 %v2974, 4294901760
        %v3813 = vsub.f32 %v2974, %v3812
        %3814 = vmatpush1.msra.mxu0 %v3813
        %3815 = vmatprep.subr.mxu0 0.0
        %v3816 = vand.u32 %v2975, 4294901760
        %v3817 = vsub.f32 %v2975, %v3816
        %3818 = vmatpush1.msra.mxu0 %v3817
        %3819 = vmatprep.subr.mxu0 0.0
        %3820 = vmatpush1.msra.mxu0 0.0
        %3821 = vmatprep.subr.mxu0 0.0
        %3822 = vmatpush1.msra.mxu0 0.0
        %3823 = vmatprep.subr.mxu0 0.0
        %3824 = vmatpush1.msra.mxu0 0.0
        %3825 = vmatprep.subr.mxu0 0.0
        %3826 = vmatpush1.msra.mxu0 0.0
        %3827 = vmatprep.subr.mxu0 0.0
        %3828 = vmatpush1.msra.mxu0 0.0
        %3829 = vmatprep.subr.mxu0 0.0
        %3830 = vmatpush1.msra.mxu0 0.0
        %3831 = vmatprep.subr.mxu0 0.0
        %3832 = vmatpush1.msra.mxu0 0.0
        %3833 = vmatprep.subr.mxu0 0.0
        %3834 = vmatpush1.msra.mxu0 0.0
        %3835 = vmatprep.subr.mxu0 0.0
        %3836 = vmatpush1.msra.mxu0 0.0
        %3837 = vmatprep.subr.mxu0 0.0
        %3838 = vmatpush1.msra.mxu0 0.0
        %3839 = vmatprep.subr.mxu0 0.0
        %3840 = vmatpush1.msra.mxu0 0.0
        %3841 = vmatprep.subr.mxu0 0.0
        %3842 = vmatpush1.msra.mxu0 0.0
        %3843 = vmatprep.subr.mxu0 0.0
        %3844 = vmatpush1.msra.mxu0 0.0
        %3845 = vmatprep.subr.mxu0 0.0
        %3846 = vmatpush1.msra.mxu0 0.0
        %3847 = vmatprep.subr.mxu0 0.0
        %3848 = vmatpush1.msra.mxu0 0.0
        %3849 = vmatprep.subr.mxu0 0.0
        %3850 = vmatpush1.msra.mxu0 0.0
        %3851 = vmatprep.subr.mxu0 0.0
        %3852 = vmatpush1.msra.mxu0 0.0
        %3853 = vmatprep.subr.mxu0 0.0
        %3854 = vmatpush1.msra.mxu0 0.0
        %3855 = vmatprep.subr.mxu0 0.0
        %3856 = vmatpush1.msra.mxu0 0.0
        %3857 = vmatprep.subr.mxu0 0.0
        %3858 = vmatpush1.msra.mxu0 0.0
        %3859 = vmatprep.subr.mxu0 0.0
        %3860 = vmatpush1.msra.mxu0 0.0
        %3861 = vmatprep.subr.mxu0 0.0
        %3862 = vmatpush1.msra.mxu0 0.0
        %3863 = vmatprep.subr.mxu0 0.0
        %3864 = vmatpush1.msra.mxu0 0.0
        %3865 = vmatprep.subr.mxu0 0.0
        %3866 = vmatpush1.msra.mxu0 0.0
        %3867 = vmatprep.subr.mxu0 0.0
        %3868 = vmatpush1.msra.mxu0 0.0
        %3869 = vmatprep.subr.mxu0 0.0
        %3870 = vmatpush1.msra.mxu0 0.0
        %3871 = vmatprep.subr.mxu0 0.0
        %3872 = vmatpush1.msra.mxu0 0.0
        %3873 = vmatprep.subr.mxu0 0.0
        %3874 = vmatpush1.msra.mxu0 0.0
        %3875 = vmatprep.mubr.f32.mxu0 0.0
        %v3876 = vand.u32 %v3574, 4294901760
        %v3877 = vsub.f32 %v3574, %v3876
        %3878 = vmatmul.mubr.f32.gmra.mrb[0].mxu0 %v3877
        %v3879 = vpop.f32.mrb[0].mxu0
        %v3880 = vadd.f32 %v3782, %v3879
        %v3881 = vpop.f32.mrb[0].mxu0
        %3882 = vmatprep.mubr.f32.mxu0 0.0
        %v3883 = vand.u32 %v3577, 4294901760
        %v3884 = vsub.f32 %v3577, %v3883
        %3885 = vmatmul.mubr.f32.gmra.mrb[0].mxu0 %v3884
        %v3886 = vpop.f32.mrb[0].mxu0
        %v3887 = vadd.f32 %v3788, %v3886
        %v3888 = vpop.f32.mrb[0].mxu0
        %3889 = vmatprep.mubr.f32.mxu0 0.0
        %v3890 = vand.u32 %v3580, 4294901760
        %v3891 = vsub.f32 %v3580, %v3890
        %3892 = vmatmul.mubr.f32.gmra.mrb[0].mxu0 %v3891
        %v3893 = vpop.f32.mrb[0].mxu0
        %v3894 = vadd.f32 %v3794, %v3893
        %v3895 = vpop.f32.mrb[0].mxu0
        %3896 = vmatprep.mubr.f32.mxu0 0.0
        %v3897 = vand.u32 %v3583, 4294901760
        %v3898 = vsub.f32 %v3583, %v3897
        %3899 = vmatmul.mubr.f32.gmra.mrb[0].mxu0 %v3898
        %v3900 = vpop.f32.mrb[0].mxu0
        %v3901 = vadd.f32 %v3800, %v3900
        %v3902 = vpop.f32.mrb[0].mxu0
        %3903 = vdwg.mxu0
        %3904 = vmatprep.subr.mxu0 0.0
        %v3905 = vand.u32 %v2972, 4294901760
        %3906 = vmatpush1.msra.mxu0 %v3905
        %3907 = vmatprep.subr.mxu0 0.0
        %v3908 = vand.u32 %v2973, 4294901760
        %3909 = vmatpush1.msra.mxu0 %v3908
        %3910 = vmatprep.subr.mxu0 0.0
        %v3911 = vand.u32 %v2974, 4294901760
        %3912 = vmatpush1.msra.mxu0 %v3911
        %3913 = vmatprep.subr.mxu0 0.0
        %v3914 = vand.u32 %v2975, 4294901760
        %3915 = vmatpush1.msra.mxu0 %v3914
        %3916 = vmatprep.subr.mxu0 0.0
        %3917 = vmatpush1.msra.mxu0 0.0
        %3918 = vmatprep.subr.mxu0 0.0
        %3919 = vmatpush1.msra.mxu0 0.0
        %3920 = vmatprep.subr.mxu0 0.0
        %3921 = vmatpush1.msra.mxu0 0.0
        %3922 = vmatprep.subr.mxu0 0.0
        %3923 = vmatpush1.msra.mxu0 0.0
        %3924 = vmatprep.subr.mxu0 0.0
        %3925 = vmatpush1.msra.mxu0 0.0
        %3926 = vmatprep.subr.mxu0 0.0
        %3927 = vmatpush1.msra.mxu0 0.0
        %3928 = vmatprep.subr.mxu0 0.0
        %3929 = vmatpush1.msra.mxu0 0.0
        %3930 = vmatprep.subr.mxu0 0.0
        %3931 = vmatpush1.msra.mxu0 0.0
        %3932 = vmatprep.subr.mxu0 0.0
        %3933 = vmatpush1.msra.mxu0 0.0
        %3934 = vmatprep.subr.mxu0 0.0
        %3935 = vmatpush1.msra.mxu0 0.0
        %3936 = vmatprep.subr.mxu0 0.0
        %3937 = vmatpush1.msra.mxu0 0.0
        %3938 = vmatprep.subr.mxu0 0.0
        %3939 = vmatpush1.msra.mxu0 0.0
        %3940 = vmatprep.subr.mxu0 0.0
        %3941 = vmatpush1.msra.mxu0 0.0
        %3942 = vmatprep.subr.mxu0 0.0
        %3943 = vmatpush1.msra.mxu0 0.0
        %3944 = vmatprep.subr.mxu0 0.0
        %3945 = vmatpush1.msra.mxu0 0.0
        %3946 = vmatprep.subr.mxu0 0.0
        %3947 = vmatpush1.msra.mxu0 0.0
        %3948 = vmatprep.subr.mxu0 0.0
        %3949 = vmatpush1.msra.mxu0 0.0
        %3950 = vmatprep.subr.mxu0 0.0
        %3951 = vmatpush1.msra.mxu0 0.0
        %3952 = vmatprep.subr.mxu0 0.0
        %3953 = vmatpush1.msra.mxu0 0.0
        %3954 = vmatprep.subr.mxu0 0.0
        %3955 = vmatpush1.msra.mxu0 0.0
        %3956 = vmatprep.subr.mxu0 0.0
        %3957 = vmatpush1.msra.mxu0 0.0
        %3958 = vmatprep.subr.mxu0 0.0
        %3959 = vmatpush1.msra.mxu0 0.0
        %3960 = vmatprep.subr.mxu0 0.0
        %3961 = vmatpush1.msra.mxu0 0.0
        %3962 = vmatprep.subr.mxu0 0.0
        %3963 = vmatpush1.msra.mxu0 0.0
        %3964 = vmatprep.subr.mxu0 0.0
        %3965 = vmatpush1.msra.mxu0 0.0
        %3966 = vmatprep.subr.mxu0 0.0
        %3967 = vmatpush1.msra.mxu0 0.0
        %3968 = vmatprep.subr.mxu0 0.0
        %3969 = vmatpush1.msra.mxu0 0.0
        %3970 = vmatprep.subr.mxu0 0.0
        %3971 = vmatpush1.msra.mxu0 0.0
        %3972 = vmatprep.mubr.f32.mxu0 0.0
        %v3973 = vand.u32 %v3574, 4294901760
        %v3974 = vsub.f32 %v3574, %v3973
        %v3975 = vand.u32 %v3974, 4294901760
        %3976 = vmatmul.mubr.f32.gmra.mrb[0].mxu0 %v3975
        %v3977 = vpop.f32.mrb[0].mxu0
        %v3978 = vadd.f32 %v3880, %v3977
        %v3979 = vpop.f32.mrb[0].mxu0
        %3980 = vmatprep.mubr.f32.mxu0 0.0
        %v3981 = vand.u32 %v3577, 4294901760
        %v3982 = vsub.f32 %v3577, %v3981
        %v3983 = vand.u32 %v3982, 4294901760
        %3984 = vmatmul.mubr.f32.gmra.mrb[0].mxu0 %v3983
        %v3985 = vpop.f32.mrb[0].mxu0
        %v3986 = vadd.f32 %v3887, %v3985
        %v3987 = vpop.f32.mrb[0].mxu0
        %3988 = vmatprep.mubr.f32.mxu0 0.0
        %v3989 = vand.u32 %v3580, 4294901760
        %v3990 = vsub.f32 %v3580, %v3989
        %v3991 = vand.u32 %v3990, 4294901760
        %3992 = vmatmul.mubr.f32.gmra.mrb[0].mxu0 %v3991
        %v3993 = vpop.f32.mrb[0].mxu0
        %v3994 = vadd.f32 %v3894, %v3993
        %v3995 = vpop.f32.mrb[0].mxu0
        %3996 = vmatprep.mubr.f32.mxu0 0.0
        %v3997 = vand.u32 %v3583, 4294901760
        %v3998 = vsub.f32 %v3583, %v3997
        %v3999 = vand.u32 %v3998, 4294901760
        %4000 = vmatmul.mubr.f32.gmra.mrb[0].mxu0 %v3999
        %v4001 = vpop.f32.mrb[0].mxu0
        %v4002 = vadd.f32 %v3901, %v4001
        %v4003 = vpop.f32.mrb[0].mxu0
        %4004 = vdwg.mxu0
        %4005 = vmatprep.subr.mxu0 0.0
        %v4006 = vand.u32 %v2972, 4294901760
        %v4007 = vsub.f32 %v2972, %v4006
        %v4008 = vand.u32 %v4007, 4294901760
        %4009 = vmatpush1.msra.mxu0 %v4008
        %4010 = vmatprep.subr.mxu0 0.0
        %v4011 = vand.u32 %v2973, 4294901760
        %v4012 = vsub.f32 %v2973, %v4011
        %v4013 = vand.u32 %v4012, 4294901760
        %4014 = vmatpush1.msra.mxu0 %v4013
        %4015 = vmatprep.subr.mxu0 0.0
        %v4016 = vand.u32 %v2974, 4294901760
        %v4017 = vsub.f32 %v2974, %v4016
        %v4018 = vand.u32 %v4017, 4294901760
        %4019 = vmatpush1.msra.mxu0 %v4018
        %4020 = vmatprep.subr.mxu0 0.0
        %v4021 = vand.u32 %v2975, 4294901760
        %v4022 = vsub.f32 %v2975, %v4021
        %v4023 = vand.u32 %v4022, 4294901760
        %4024 = vmatpush1.msra.mxu0 %v4023
        %4025 = vmatprep.subr.mxu0 0.0
        %4026 = vmatpush1.msra.mxu0 0.0
        %4027 = vmatprep.subr.mxu0 0.0
        %4028 = vmatpush1.msra.mxu0 0.0
        %4029 = vmatprep.subr.mxu0 0.0
        %4030 = vmatpush1.msra.mxu0 0.0
        %4031 = vmatprep.subr.mxu0 0.0
        %4032 = vmatpush1.msra.mxu0 0.0
        %4033 = vmatprep.subr.mxu0 0.0
        %4034 = vmatpush1.msra.mxu0 0.0
        %4035 = vmatprep.subr.mxu0 0.0
        %4036 = vmatpush1.msra.mxu0 0.0
        %4037 = vmatprep.subr.mxu0 0.0
        %4038 = vmatpush1.msra.mxu0 0.0
        %4039 = vmatprep.subr.mxu0 0.0
        %4040 = vmatpush1.msra.mxu0 0.0
        %4041 = vmatprep.subr.mxu0 0.0
        %4042 = vmatpush1.msra.mxu0 0.0
        %4043 = vmatprep.subr.mxu0 0.0
        %4044 = vmatpush1.msra.mxu0 0.0
        %4045 = vmatprep.subr.mxu0 0.0
        %4046 = vmatpush1.msra.mxu0 0.0
        %4047 = vmatprep.subr.mxu0 0.0
        %4048 = vmatpush1.msra.mxu0 0.0
        %4049 = vmatprep.subr.mxu0 0.0
        %4050 = vmatpush1.msra.mxu0 0.0
        %4051 = vmatprep.subr.mxu0 0.0
        %4052 = vmatpush1.msra.mxu0 0.0
        %4053 = vmatprep.subr.mxu0 0.0
        %4054 = vmatpush1.msra.mxu0 0.0
        %4055 = vmatprep.subr.mxu0 0.0
        %4056 = vmatpush1.msra.mxu0 0.0
        %4057 = vmatprep.subr.mxu0 0.0
        %4058 = vmatpush1.msra.mxu0 0.0
        %4059 = vmatprep.subr.mxu0 0.0
        %4060 = vmatpush1.msra.mxu0 0.0
        %4061 = vmatprep.subr.mxu0 0.0
        %4062 = vmatpush1.msra.mxu0 0.0
        %4063 = vmatprep.subr.mxu0 0.0
        %4064 = vmatpush1.msra.mxu0 0.0
        %4065 = vmatprep.subr.mxu0 0.0
        %4066 = vmatpush1.msra.mxu0 0.0
        %4067 = vmatprep.subr.mxu0 0.0
        %4068 = vmatpush1.msra.mxu0 0.0
        %4069 = vmatprep.subr.mxu0 0.0
        %4070 = vmatpush1.msra.mxu0 0.0
        %4071 = vmatprep.subr.mxu0 0.0
        %4072 = vmatpush1.msra.mxu0 0.0
        %4073 = vmatprep.subr.mxu0 0.0
        %4074 = vmatpush1.msra.mxu0 0.0
        %4075 = vmatprep.subr.mxu0 0.0
        %4076 = vmatpush1.msra.mxu0 0.0
        %4077 = vmatprep.subr.mxu0 0.0
        %4078 = vmatpush1.msra.mxu0 0.0
        %4079 = vmatprep.subr.mxu0 0.0
        %4080 = vmatpush1.msra.mxu0 0.0
        %4081 = vmatprep.mubr.f32.mxu0 0.0
        %v4082 = vand.u32 %v3574, 4294901760
        %4083 = vmatmul.mubr.f32.gmra.mrb[0].mxu0 %v4082
        %v4084 = vpop.f32.mrb[0].mxu0
        %v4085 = vadd.f32 %v3978, %v4084
        %v4086 = vpop.f32.mrb[0].mxu0
        %4087 = vmatprep.mubr.f32.mxu0 0.0
        %v4088 = vand.u32 %v3577, 4294901760
        %4089 = vmatmul.mubr.f32.gmra.mrb[0].mxu0 %v4088
        %v4090 = vpop.f32.mrb[0].mxu0
        %v4091 = vadd.f32 %v3986, %v4090
        %v4092 = vpop.f32.mrb[0].mxu0
        %4093 = vmatprep.mubr.f32.mxu0 0.0
        %v4094 = vand.u32 %v3580, 4294901760
        %4095 = vmatmul.mubr.f32.gmra.mrb[0].mxu0 %v4094
        %v4096 = vpop.f32.mrb[0].mxu0
        %v4097 = vadd.f32 %v3994, %v4096
        %v4098 = vpop.f32.mrb[0].mxu0
        %4099 = vmatprep.mubr.f32.mxu0 0.0
        %v4100 = vand.u32 %v3583, 4294901760
        %4101 = vmatmul.mubr.f32.gmra.mrb[0].mxu0 %v4100
        %v4102 = vpop.f32.mrb[0].mxu0
        %v4103 = vadd.f32 %v4002, %v4102
        %v4104 = vpop.f32.mrb[0].mxu0
        %4105 = vdwg.mxu0
        %4106 = vmatprep.subr.mxu0 0.0
        %v4107 = vand.u32 %v2972, 4294901760
        %4108 = vmatpush1.msra.mxu0 %v4107
        %4109 = vmatprep.subr.mxu0 0.0
        %v4110 = vand.u32 %v2973, 4294901760
        %4111 = vmatpush1.msra.mxu0 %v4110
        %4112 = vmatprep.subr.mxu0 0.0
        %v4113 = vand.u32 %v2974, 4294901760
        %4114 = vmatpush1.msra.mxu0 %v4113
        %4115 = vmatprep.subr.mxu0 0.0
        %v4116 = vand.u32 %v2975, 4294901760
        %4117 = vmatpush1.msra.mxu0 %v4116
        %4118 = vmatprep.subr.mxu0 0.0
        %4119 = vmatpush1.msra.mxu0 0.0
        %4120 = vmatprep.subr.mxu0 0.0
        %4121 = vmatpush1.msra.mxu0 0.0
        %4122 = vmatprep.subr.mxu0 0.0
        %4123 = vmatpush1.msra.mxu0 0.0
        %4124 = vmatprep.subr.mxu0 0.0
        %4125 = vmatpush1.msra.mxu0 0.0
        %4126 = vmatprep.subr.mxu0 0.0
        %4127 = vmatpush1.msra.mxu0 0.0
        %4128 = vmatprep.subr.mxu0 0.0
        %4129 = vmatpush1.msra.mxu0 0.0
        %4130 = vmatprep.subr.mxu0 0.0
        %4131 = vmatpush1.msra.mxu0 0.0
        %4132 = vmatprep.subr.mxu0 0.0
        %4133 = vmatpush1.msra.mxu0 0.0
        %4134 = vmatprep.subr.mxu0 0.0
        %4135 = vmatpush1.msra.mxu0 0.0
        %4136 = vmatprep.subr.mxu0 0.0
        %4137 = vmatpush1.msra.mxu0 0.0
        %4138 = vmatprep.subr.mxu0 0.0
        %4139 = vmatpush1.msra.mxu0 0.0
        %4140 = vmatprep.subr.mxu0 0.0
        %4141 = vmatpush1.msra.mxu0 0.0
        %4142 = vmatprep.subr.mxu0 0.0
        %4143 = vmatpush1.msra.mxu0 0.0
        %4144 = vmatprep.subr.mxu0 0.0
        %4145 = vmatpush1.msra.mxu0 0.0
        %4146 = vmatprep.subr.mxu0 0.0
        %4147 = vmatpush1.msra.mxu0 0.0
        %4148 = vmatprep.subr.mxu0 0.0
        %4149 = vmatpush1.msra.mxu0 0.0
        %4150 = vmatprep.subr.mxu0 0.0
        %4151 = vmatpush1.msra.mxu0 0.0
        %4152 = vmatprep.subr.mxu0 0.0
        %4153 = vmatpush1.msra.mxu0 0.0
        %4154 = vmatprep.subr.mxu0 0.0
        %4155 = vmatpush1.msra.mxu0 0.0
        %4156 = vmatprep.subr.mxu0 0.0
        %4157 = vmatpush1.msra.mxu0 0.0
        %4158 = vmatprep.subr.mxu0 0.0
        %4159 = vmatpush1.msra.mxu0 0.0
        %4160 = vmatprep.subr.mxu0 0.0
        %4161 = vmatpush1.msra.mxu0 0.0
        %4162 = vmatprep.subr.mxu0 0.0
        %4163 = vmatpush1.msra.mxu0 0.0
        %4164 = vmatprep.subr.mxu0 0.0
        %4165 = vmatpush1.msra.mxu0 0.0
        %4166 = vmatprep.subr.mxu0 0.0
        %4167 = vmatpush1.msra.mxu0 0.0
        %4168 = vmatprep.subr.mxu0 0.0
        %4169 = vmatpush1.msra.mxu0 0.0
        %4170 = vmatprep.subr.mxu0 0.0
        %4171 = vmatpush1.msra.mxu0 0.0
        %4172 = vmatprep.subr.mxu0 0.0
        %4173 = vmatpush1.msra.mxu0 0.0
        %4174 = vmatprep.mubr.f32.mxu0 0.0
        %v4175 = vand.u32 %v3574, 4294901760
        %4176 = vmatmul.mubr.f32.gmra.mrb[0].mxu0 %v4175
        %v4177 = vpop.f32.mrb[0].mxu0
        %v4178 = vadd.f32 %v4085, %v4177
        %v4179 = vpop.f32.mrb[0].mxu0
        %4180 = vmatprep.mubr.f32.mxu0 0.0
        %v4181 = vand.u32 %v3577, 4294901760
        %4182 = vmatmul.mubr.f32.gmra.mrb[0].mxu0 %v4181
        %v4183 = vpop.f32.mrb[0].mxu0
        %v4184 = vadd.f32 %v4091, %v4183
        %v4185 = vpop.f32.mrb[0].mxu0
        %4186 = vmatprep.mubr.f32.mxu0 0.0
        %v4187 = vand.u32 %v3580, 4294901760
        %4188 = vmatmul.mubr.f32.gmra.mrb[0].mxu0 %v4187
        %v4189 = vpop.f32.mrb[0].mxu0
        %v4190 = vadd.f32 %v4097, %v4189
        %v4191 = vpop.f32.mrb[0].mxu0
        %4192 = vmatprep.mubr.f32.mxu0 0.0
        %v4193 = vand.u32 %v3583, 4294901760
        %4194 = vmatmul.mubr.f32.gmra.mrb[0].mxu0 %v4193
        %v4195 = vpop.f32.mrb[0].mxu0
        %v4196 = vadd.f32 %v4103, %v4195
        %v4197 = vpop.f32.mrb[0].mxu0
        %4198 = vdwg.mxu0
        %s4199 = scalar_lea.vmem %s3, 128
        %v4200 = vld [vmem:[%s4199] sm:$0xff]
        %v4201 = vld [vmem:[%s4199 + $0x8] sm:$0xff]
        %v4202 = vld [vmem:[%s4199 + $0x10] sm:$0xff]
        %v4203 = vld [vmem:[%s4199 + $0x18] sm:$0xff]
        %4205 = vset.pattern.permute.xlu0 0
        %4206 = vperm.xlu0 %4205, %v4200
        %v4207 = vpop.permute.xlu0 %4206
        %4210 = vset.pattern.permute.xlu0 0
        %4211 = vperm.xlu0 %4210, %v4201
        %v4212 = vpop.permute.xlu0 %4211
        %4215 = vset.pattern.permute.xlu0 0
        %4216 = vperm.xlu0 %4215, %v4202
        %v4217 = vpop.permute.xlu0 %4216
        %4220 = vset.pattern.permute.xlu0 0
        %4221 = vperm.xlu0 %4220, %v4203
        %v4222 = vpop.permute.xlu0 %4221
        %v4224 = vadd.f32 %v4178, %v4207
        %v4225 = vadd.f32 %v4184, %v4212
        %v4226 = vadd.f32 %v4190, %v4217
        %v4227 = vadd.f32 %v4196, %v4222
        %v4228 = vmul.f32 %v4224, 100.0
        %v4229 = vmul.f32 %v4225, 100.0
        %v4230 = vmul.f32 %v4226, 100.0
        %v4231 = vmul.f32 %v4227, 100.0
        %v4232 = vmin.f32 %v4228, 20.0
        %v4233 = vmin.f32 %v4229, 20.0
        %v4234 = vmin.f32 %v4230, 20.0
        %v4235 = vmin.f32 %v4231, 20.0
        %v4236 = vmul.f32 %v4232, 1.442695
        %v4237 = vpow.pop %v4236
        %v4238 = vmul.f32 %v4233, 1.442695
        %v4239 = vpow.pop %v4238
        %v4240 = vmul.f32 %v4234, 1.442695
        %v4241 = vpow.pop %v4240
        %v4242 = vmul.f32 %v4235, 1.442695
        %v4243 = vpow.pop %v4242
        %v4244 = vadd.f32 %v4237, 1.0
        %v4245 = vadd.f32 %v4239, 1.0
        %v4246 = vadd.f32 %v4241, 1.0
        %v4247 = vadd.f32 %v4243, 1.0
        %v4248 = vlog2.pop %v4244
        %v4249 = vmul.f32 %v4248, 0.6931472
        %v4250 = vlog2.pop %v4245
        %v4251 = vmul.f32 %v4250, 0.6931472
        %v4252 = vlog2.pop %v4246
        %v4253 = vmul.f32 %v4252, 0.6931472
        %v4254 = vlog2.pop %v4247
        %v4255 = vmul.f32 %v4254, 0.6931472
        %v4256 = vmul.f32 %v4249, 0.01
        %v4257 = vmul.f32 %v4251, 0.01
        %v4258 = vmul.f32 %v4253, 0.01
        %v4259 = vmul.f32 %v4255, 0.01
        %v4260 = vmax.f32 %v4256, %v4224
        %v4261 = vmax.f32 %v4257, %v4225
        %v4262 = vmax.f32 %v4258, %v4226
        %v4263 = vmax.f32 %v4259, %v4227
        %s4264 = scalar_lea.vmem %s2, 128
        %v4265 = vld [vmem:[%s4264] sm:$0xff]
        %v4266 = vld [vmem:[%s4264 + $0x8] sm:$0xff]
        %v4267 = vld [vmem:[%s4264 + $0x10] sm:$0xff]
        %v4268 = vld [vmem:[%s4264 + $0x18] sm:$0xff]
        %s4269 = scalar_lea.vmem %s3, 160
        %v4270 = vld [vmem:[%s4269] sm:$0xff]
        %v4271 = vld [vmem:[%s4269 + $0x8] sm:$0xff]
        %v4272 = vld [vmem:[%s4269 + $0x10] sm:$0xff]
        %v4273 = vld [vmem:[%s4269 + $0x18] sm:$0xff]
        %4275 = vset.pattern.permute.xlu0 0
        %4276 = vperm.xlu0 %4275, %v4270
        %v4277 = vpop.permute.xlu0 %4276
        %4280 = vset.pattern.permute.xlu0 0
        %4281 = vperm.xlu0 %4280, %v4271
        %v4282 = vpop.permute.xlu0 %4281
        %4285 = vset.pattern.permute.xlu0 0
        %4286 = vperm.xlu0 %4285, %v4272
        %v4287 = vpop.permute.xlu0 %4286
        %4290 = vset.pattern.permute.xlu0 0
        %4291 = vperm.xlu0 %4290, %v4273
        %v4292 = vpop.permute.xlu0 %4291
        %v4295 = vsel %vm929, %v4265, 0
        %v4298 = vsel %vm929, %v4266, 0
        %v4301 = vsel %vm929, %v4267, 0
        %v4304 = vsel %vm929, %v4268, 0
        %4306 = vmatprep.subr.mxu0 0.0
        %v4307 = vand.u32 %v4260, 4294901760
        %4308 = vmatpush1.msra.mxu0 %v4307
        %4309 = vmatprep.subr.mxu0 0.0
        %v4310 = vand.u32 %v4261, 4294901760
        %4311 = vmatpush1.msra.mxu0 %v4310
        %4312 = vmatprep.subr.mxu0 0.0
        %v4313 = vand.u32 %v4262, 4294901760
        %4314 = vmatpush1.msra.mxu0 %v4313
        %4315 = vmatprep.subr.mxu0 0.0
        %v4316 = vand.u32 %v4263, 4294901760
        %4317 = vmatpush1.msra.mxu0 %v4316
        %4318 = vmatprep.subr.mxu0 0.0
        %4319 = vmatpush1.msra.mxu0 0.0
        %4320 = vmatprep.subr.mxu0 0.0
        %4321 = vmatpush1.msra.mxu0 0.0
        %4322 = vmatprep.subr.mxu0 0.0
        %4323 = vmatpush1.msra.mxu0 0.0
        %4324 = vmatprep.subr.mxu0 0.0
        %4325 = vmatpush1.msra.mxu0 0.0
        %4326 = vmatprep.subr.mxu0 0.0
        %4327 = vmatpush1.msra.mxu0 0.0
        %4328 = vmatprep.subr.mxu0 0.0
        %4329 = vmatpush1.msra.mxu0 0.0
        %4330 = vmatprep.subr.mxu0 0.0
        %4331 = vmatpush1.msra.mxu0 0.0
        %4332 = vmatprep.subr.mxu0 0.0
        %4333 = vmatpush1.msra.mxu0 0.0
        %4334 = vmatprep.subr.mxu0 0.0
        %4335 = vmatpush1.msra.mxu0 0.0
        %4336 = vmatprep.subr.mxu0 0.0
        %4337 = vmatpush1.msra.mxu0 0.0
        %4338 = vmatprep.subr.mxu0 0.0
        %4339 = vmatpush1.msra.mxu0 0.0
        %4340 = vmatprep.subr.mxu0 0.0
        %4341 = vmatpush1.msra.mxu0 0.0
        %4342 = vmatprep.subr.mxu0 0.0
        %4343 = vmatpush1.msra.mxu0 0.0
        %4344 = vmatprep.subr.mxu0 0.0
        %4345 = vmatpush1.msra.mxu0 0.0
        %4346 = vmatprep.subr.mxu0 0.0
        %4347 = vmatpush1.msra.mxu0 0.0
        %4348 = vmatprep.subr.mxu0 0.0
        %4349 = vmatpush1.msra.mxu0 0.0
        %4350 = vmatprep.subr.mxu0 0.0
        %4351 = vmatpush1.msra.mxu0 0.0
        %4352 = vmatprep.subr.mxu0 0.0
        %4353 = vmatpush1.msra.mxu0 0.0
        %4354 = vmatprep.subr.mxu0 0.0
        %4355 = vmatpush1.msra.mxu0 0.0
        %4356 = vmatprep.subr.mxu0 0.0
        %4357 = vmatpush1.msra.mxu0 0.0
        %4358 = vmatprep.subr.mxu0 0.0
        %4359 = vmatpush1.msra.mxu0 0.0
        %4360 = vmatprep.subr.mxu0 0.0
        %4361 = vmatpush1.msra.mxu0 0.0
        %4362 = vmatprep.subr.mxu0 0.0
        %4363 = vmatpush1.msra.mxu0 0.0
        %4364 = vmatprep.subr.mxu0 0.0
        %4365 = vmatpush1.msra.mxu0 0.0
        %4366 = vmatprep.subr.mxu0 0.0
        %4367 = vmatpush1.msra.mxu0 0.0
        %4368 = vmatprep.subr.mxu0 0.0
        %4369 = vmatpush1.msra.mxu0 0.0
        %4370 = vmatprep.subr.mxu0 0.0
        %4371 = vmatpush1.msra.mxu0 0.0
        %4372 = vmatprep.subr.mxu0 0.0
        %4373 = vmatpush1.msra.mxu0 0.0
        %4374 = vmatprep.mubr.f32.mxu0 0.0
        %v4375 = vand.u32 %v4295, 4294901760
        %v4376 = vsub.f32 %v4295, %v4375
        %v4377 = vand.u32 %v4376, 4294901760
        %v4378 = vsub.f32 %v4376, %v4377
        %v4379 = vand.u32 %v4378, 4294901760
        %4380 = vmatmul.mubr.f32.gmra.mrb[0].mxu0 %v4379
        %v4381 = vpop.f32.mrb[0].mxu0
        %v4382 = vadd.f32 %v4277, %v4381
        %v4383 = vpop.f32.mrb[0].mxu0
        %4384 = vmatprep.mubr.f32.mxu0 0.0
        %v4385 = vand.u32 %v4298, 4294901760
        %v4386 = vsub.f32 %v4298, %v4385
        %v4387 = vand.u32 %v4386, 4294901760
        %v4388 = vsub.f32 %v4386, %v4387
        %v4389 = vand.u32 %v4388, 4294901760
        %4390 = vmatmul.mubr.f32.gmra.mrb[0].mxu0 %v4389
        %v4391 = vpop.f32.mrb[0].mxu0
        %v4392 = vadd.f32 %v4282, %v4391
        %v4393 = vpop.f32.mrb[0].mxu0
        %4394 = vmatprep.mubr.f32.mxu0 0.0
        %v4395 = vand.u32 %v4301, 4294901760
        %v4396 = vsub.f32 %v4301, %v4395
        %v4397 = vand.u32 %v4396, 4294901760
        %v4398 = vsub.f32 %v4396, %v4397
        %v4399 = vand.u32 %v4398, 4294901760
        %4400 = vmatmul.mubr.f32.gmra.mrb[0].mxu0 %v4399
        %v4401 = vpop.f32.mrb[0].mxu0
        %v4402 = vadd.f32 %v4287, %v4401
        %v4403 = vpop.f32.mrb[0].mxu0
        %4404 = vmatprep.mubr.f32.mxu0 0.0
        %v4405 = vand.u32 %v4304, 4294901760
        %v4406 = vsub.f32 %v4304, %v4405
        %v4407 = vand.u32 %v4406, 4294901760
        %v4408 = vsub.f32 %v4406, %v4407
        %v4409 = vand.u32 %v4408, 4294901760
        %4410 = vmatmul.mubr.f32.gmra.mrb[0].mxu0 %v4409
        %v4411 = vpop.f32.mrb[0].mxu0
        %v4412 = vadd.f32 %v4292, %v4411
        %v4413 = vpop.f32.mrb[0].mxu0
        %4414 = vdwg.mxu0
        %4415 = vmatprep.subr.mxu0 0.0
        %v4416 = vand.u32 %v4260, 4294901760
        %v4417 = vsub.f32 %v4260, %v4416
        %v4418 = vand.u32 %v4417, 4294901760
        %v4419 = vsub.f32 %v4417, %v4418
        %v4420 = vand.u32 %v4419, 4294901760
        %4421 = vmatpush1.msra.mxu0 %v4420
        %4422 = vmatprep.subr.mxu0 0.0
        %v4423 = vand.u32 %v4261, 4294901760
        %v4424 = vsub.f32 %v4261, %v4423
        %v4425 = vand.u32 %v4424, 4294901760
        %v4426 = vsub.f32 %v4424, %v4425
        %v4427 = vand.u32 %v4426, 4294901760
        %4428 = vmatpush1.msra.mxu0 %v4427
        %4429 = vmatprep.subr.mxu0 0.0
        %v4430 = vand.u32 %v4262, 4294901760
        %v4431 = vsub.f32 %v4262, %v4430
        %v4432 = vand.u32 %v4431, 4294901760
        %v4433 = vsub.f32 %v4431, %v4432
        %v4434 = vand.u32 %v4433, 4294901760
        %4435 = vmatpush1.msra.mxu0 %v4434
        %4436 = vmatprep.subr.mxu0 0.0
        %v4437 = vand.u32 %v4263, 4294901760
        %v4438 = vsub.f32 %v4263, %v4437
        %v4439 = vand.u32 %v4438, 4294901760
        %v4440 = vsub.f32 %v4438, %v4439
        %v4441 = vand.u32 %v4440, 4294901760
        %4442 = vmatpush1.msra.mxu0 %v4441
        %4443 = vmatprep.subr.mxu0 0.0
        %4444 = vmatpush1.msra.mxu0 0.0
        %4445 = vmatprep.subr.mxu0 0.0
        %4446 = vmatpush1.msra.mxu0 0.0
        %4447 = vmatprep.subr.mxu0 0.0
        %4448 = vmatpush1.msra.mxu0 0.0
        %4449 = vmatprep.subr.mxu0 0.0
        %4450 = vmatpush1.msra.mxu0 0.0
        %4451 = vmatprep.subr.mxu0 0.0
        %4452 = vmatpush1.msra.mxu0 0.0
        %4453 = vmatprep.subr.mxu0 0.0
        %4454 = vmatpush1.msra.mxu0 0.0
        %4455 = vmatprep.subr.mxu0 0.0
        %4456 = vmatpush1.msra.mxu0 0.0
        %4457 = vmatprep.subr.mxu0 0.0
        %4458 = vmatpush1.msra.mxu0 0.0
        %4459 = vmatprep.subr.mxu0 0.0
        %4460 = vmatpush1.msra.mxu0 0.0
        %4461 = vmatprep.subr.mxu0 0.0
        %4462 = vmatpush1.msra.mxu0 0.0
        %4463 = vmatprep.subr.mxu0 0.0
        %4464 = vmatpush1.msra.mxu0 0.0
        %4465 = vmatprep.subr.mxu0 0.0
        %4466 = vmatpush1.msra.mxu0 0.0
        %4467 = vmatprep.subr.mxu0 0.0
        %4468 = vmatpush1.msra.mxu0 0.0
        %4469 = vmatprep.subr.mxu0 0.0
        %4470 = vmatpush1.msra.mxu0 0.0
        %4471 = vmatprep.subr.mxu0 0.0
        %4472 = vmatpush1.msra.mxu0 0.0
        %4473 = vmatprep.subr.mxu0 0.0
        %4474 = vmatpush1.msra.mxu0 0.0
        %4475 = vmatprep.subr.mxu0 0.0
        %4476 = vmatpush1.msra.mxu0 0.0
        %4477 = vmatprep.subr.mxu0 0.0
        %4478 = vmatpush1.msra.mxu0 0.0
        %4479 = vmatprep.subr.mxu0 0.0
        %4480 = vmatpush1.msra.mxu0 0.0
        %4481 = vmatprep.subr.mxu0 0.0
        %4482 = vmatpush1.msra.mxu0 0.0
        %4483 = vmatprep.subr.mxu0 0.0
        %4484 = vmatpush1.msra.mxu0 0.0
        %4485 = vmatprep.subr.mxu0 0.0
        %4486 = vmatpush1.msra.mxu0 0.0
        %4487 = vmatprep.subr.mxu0 0.0
        %4488 = vmatpush1.msra.mxu0 0.0
        %4489 = vmatprep.subr.mxu0 0.0
        %4490 = vmatpush1.msra.mxu0 0.0
        %4491 = vmatprep.subr.mxu0 0.0
        %4492 = vmatpush1.msra.mxu0 0.0
        %4493 = vmatprep.subr.mxu0 0.0
        %4494 = vmatpush1.msra.mxu0 0.0
        %4495 = vmatprep.subr.mxu0 0.0
        %4496 = vmatpush1.msra.mxu0 0.0
        %4497 = vmatprep.subr.mxu0 0.0
        %4498 = vmatpush1.msra.mxu0 0.0
        %4499 = vmatprep.mubr.f32.mxu0 0.0
        %v4500 = vand.u32 %v4295, 4294901760
        %4501 = vmatmul.mubr.f32.gmra.mrb[0].mxu0 %v4500
        %v4502 = vpop.f32.mrb[0].mxu0
        %v4503 = vadd.f32 %v4382, %v4502
        %v4504 = vpop.f32.mrb[0].mxu0
        %4505 = vmatprep.mubr.f32.mxu0 0.0
        %v4506 = vand.u32 %v4298, 4294901760
        %4507 = vmatmul.mubr.f32.gmra.mrb[0].mxu0 %v4506
        %v4508 = vpop.f32.mrb[0].mxu0
        %v4509 = vadd.f32 %v4392, %v4508
        %v4510 = vpop.f32.mrb[0].mxu0
        %4511 = vmatprep.mubr.f32.mxu0 0.0
        %v4512 = vand.u32 %v4301, 4294901760
        %4513 = vmatmul.mubr.f32.gmra.mrb[0].mxu0 %v4512
        %v4514 = vpop.f32.mrb[0].mxu0
        %v4515 = vadd.f32 %v4402, %v4514
        %v4516 = vpop.f32.mrb[0].mxu0
        %4517 = vmatprep.mubr.f32.mxu0 0.0
        %v4518 = vand.u32 %v4304, 4294901760
        %4519 = vmatmul.mubr.f32.gmra.mrb[0].mxu0 %v4518
        %v4520 = vpop.f32.mrb[0].mxu0
        %v4521 = vadd.f32 %v4412, %v4520
        %v4522 = vpop.f32.mrb[0].mxu0
        %4523 = vdwg.mxu0
        %4524 = vmatprep.subr.mxu0 0.0
        %v4525 = vand.u32 %v4260, 4294901760
        %v4526 = vsub.f32 %v4260, %v4525
        %4527 = vmatpush1.msra.mxu0 %v4526
        %4528 = vmatprep.subr.mxu0 0.0
        %v4529 = vand.u32 %v4261, 4294901760
        %v4530 = vsub.f32 %v4261, %v4529
        %4531 = vmatpush1.msra.mxu0 %v4530
        %4532 = vmatprep.subr.mxu0 0.0
        %v4533 = vand.u32 %v4262, 4294901760
        %v4534 = vsub.f32 %v4262, %v4533
        %4535 = vmatpush1.msra.mxu0 %v4534
        %4536 = vmatprep.subr.mxu0 0.0
        %v4537 = vand.u32 %v4263, 4294901760
        %v4538 = vsub.f32 %v4263, %v4537
        %4539 = vmatpush1.msra.mxu0 %v4538
        %4540 = vmatprep.subr.mxu0 0.0
        %4541 = vmatpush1.msra.mxu0 0.0
        %4542 = vmatprep.subr.mxu0 0.0
        %4543 = vmatpush1.msra.mxu0 0.0
        %4544 = vmatprep.subr.mxu0 0.0
        %4545 = vmatpush1.msra.mxu0 0.0
        %4546 = vmatprep.subr.mxu0 0.0
        %4547 = vmatpush1.msra.mxu0 0.0
        %4548 = vmatprep.subr.mxu0 0.0
        %4549 = vmatpush1.msra.mxu0 0.0
        %4550 = vmatprep.subr.mxu0 0.0
        %4551 = vmatpush1.msra.mxu0 0.0
        %4552 = vmatprep.subr.mxu0 0.0
        %4553 = vmatpush1.msra.mxu0 0.0
        %4554 = vmatprep.subr.mxu0 0.0
        %4555 = vmatpush1.msra.mxu0 0.0
        %4556 = vmatprep.subr.mxu0 0.0
        %4557 = vmatpush1.msra.mxu0 0.0
        %4558 = vmatprep.subr.mxu0 0.0
        %4559 = vmatpush1.msra.mxu0 0.0
        %4560 = vmatprep.subr.mxu0 0.0
        %4561 = vmatpush1.msra.mxu0 0.0
        %4562 = vmatprep.subr.mxu0 0.0
        %4563 = vmatpush1.msra.mxu0 0.0
        %4564 = vmatprep.subr.mxu0 0.0
        %4565 = vmatpush1.msra.mxu0 0.0
        %4566 = vmatprep.subr.mxu0 0.0
        %4567 = vmatpush1.msra.mxu0 0.0
        %4568 = vmatprep.subr.mxu0 0.0
        %4569 = vmatpush1.msra.mxu0 0.0
        %4570 = vmatprep.subr.mxu0 0.0
        %4571 = vmatpush1.msra.mxu0 0.0
        %4572 = vmatprep.subr.mxu0 0.0
        %4573 = vmatpush1.msra.mxu0 0.0
        %4574 = vmatprep.subr.mxu0 0.0
        %4575 = vmatpush1.msra.mxu0 0.0
        %4576 = vmatprep.subr.mxu0 0.0
        %4577 = vmatpush1.msra.mxu0 0.0
        %4578 = vmatprep.subr.mxu0 0.0
        %4579 = vmatpush1.msra.mxu0 0.0
        %4580 = vmatprep.subr.mxu0 0.0
        %4581 = vmatpush1.msra.mxu0 0.0
        %4582 = vmatprep.subr.mxu0 0.0
        %4583 = vmatpush1.msra.mxu0 0.0
        %4584 = vmatprep.subr.mxu0 0.0
        %4585 = vmatpush1.msra.mxu0 0.0
        %4586 = vmatprep.subr.mxu0 0.0
        %4587 = vmatpush1.msra.mxu0 0.0
        %4588 = vmatprep.subr.mxu0 0.0
        %4589 = vmatpush1.msra.mxu0 0.0
        %4590 = vmatprep.subr.mxu0 0.0
        %4591 = vmatpush1.msra.mxu0 0.0
        %4592 = vmatprep.subr.mxu0 0.0
        %4593 = vmatpush1.msra.mxu0 0.0
        %4594 = vmatprep.subr.mxu0 0.0
        %4595 = vmatpush1.msra.mxu0 0.0
        %4596 = vmatprep.mubr.f32.mxu0 0.0
        %v4597 = vand.u32 %v4295, 4294901760
        %v4598 = vsub.f32 %v4295, %v4597
        %4599 = vmatmul.mubr.f32.gmra.mrb[0].mxu0 %v4598
        %v4600 = vpop.f32.mrb[0].mxu0
        %v4601 = vadd.f32 %v4503, %v4600
        %v4602 = vpop.f32.mrb[0].mxu0
        %4603 = vmatprep.mubr.f32.mxu0 0.0
        %v4604 = vand.u32 %v4298, 4294901760
        %v4605 = vsub.f32 %v4298, %v4604
        %4606 = vmatmul.mubr.f32.gmra.mrb[0].mxu0 %v4605
        %v4607 = vpop.f32.mrb[0].mxu0
        %v4608 = vadd.f32 %v4509, %v4607
        %v4609 = vpop.f32.mrb[0].mxu0
        %4610 = vmatprep.mubr.f32.mxu0 0.0
        %v4611 = vand.u32 %v4301, 4294901760
        %v4612 = vsub.f32 %v4301, %v4611
        %4613 = vmatmul.mubr.f32.gmra.mrb[0].mxu0 %v4612
        %v4614 = vpop.f32.mrb[0].mxu0
        %v4615 = vadd.f32 %v4515, %v4614
        %v4616 = vpop.f32.mrb[0].mxu0
        %4617 = vmatprep.mubr.f32.mxu0 0.0
        %v4618 = vand.u32 %v4304, 4294901760
        %v4619 = vsub.f32 %v4304, %v4618
        %4620 = vmatmul.mubr.f32.gmra.mrb[0].mxu0 %v4619
        %v4621 = vpop.f32.mrb[0].mxu0
        %v4622 = vadd.f32 %v4521, %v4621
        %v4623 = vpop.f32.mrb[0].mxu0
        %4624 = vdwg.mxu0
        %4625 = vmatprep.subr.mxu0 0.0
        %v4626 = vand.u32 %v4260, 4294901760
        %4627 = vmatpush1.msra.mxu0 %v4626
        %4628 = vmatprep.subr.mxu0 0.0
        %v4629 = vand.u32 %v4261, 4294901760
        %4630 = vmatpush1.msra.mxu0 %v4629
        %4631 = vmatprep.subr.mxu0 0.0
        %v4632 = vand.u32 %v4262, 4294901760
        %4633 = vmatpush1.msra.mxu0 %v4632
        %4634 = vmatprep.subr.mxu0 0.0
        %v4635 = vand.u32 %v4263, 4294901760
        %4636 = vmatpush1.msra.mxu0 %v4635
        %4637 = vmatprep.subr.mxu0 0.0
        %4638 = vmatpush1.msra.mxu0 0.0
        %4639 = vmatprep.subr.mxu0 0.0
        %4640 = vmatpush1.msra.mxu0 0.0
        %4641 = vmatprep.subr.mxu0 0.0
        %4642 = vmatpush1.msra.mxu0 0.0
        %4643 = vmatprep.subr.mxu0 0.0
        %4644 = vmatpush1.msra.mxu0 0.0
        %4645 = vmatprep.subr.mxu0 0.0
        %4646 = vmatpush1.msra.mxu0 0.0
        %4647 = vmatprep.subr.mxu0 0.0
        %4648 = vmatpush1.msra.mxu0 0.0
        %4649 = vmatprep.subr.mxu0 0.0
        %4650 = vmatpush1.msra.mxu0 0.0
        %4651 = vmatprep.subr.mxu0 0.0
        %4652 = vmatpush1.msra.mxu0 0.0
        %4653 = vmatprep.subr.mxu0 0.0
        %4654 = vmatpush1.msra.mxu0 0.0
        %4655 = vmatprep.subr.mxu0 0.0
        %4656 = vmatpush1.msra.mxu0 0.0
        %4657 = vmatprep.subr.mxu0 0.0
        %4658 = vmatpush1.msra.mxu0 0.0
        %4659 = vmatprep.subr.mxu0 0.0
        %4660 = vmatpush1.msra.mxu0 0.0
        %4661 = vmatprep.subr.mxu0 0.0
        %4662 = vmatpush1.msra.mxu0 0.0
        %4663 = vmatprep.subr.mxu0 0.0
        %4664 = vmatpush1.msra.mxu0 0.0
        %4665 = vmatprep.subr.mxu0 0.0
        %4666 = vmatpush1.msra.mxu0 0.0
        %4667 = vmatprep.subr.mxu0 0.0
        %4668 = vmatpush1.msra.mxu0 0.0
        %4669 = vmatprep.subr.mxu0 0.0
        %4670 = vmatpush1.msra.mxu0 0.0
        %4671 = vmatprep.subr.mxu0 0.0
        %4672 = vmatpush1.msra.mxu0 0.0
        %4673 = vmatprep.subr.mxu0 0.0
        %4674 = vmatpush1.msra.mxu0 0.0
        %4675 = vmatprep.subr.mxu0 0.0
        %4676 = vmatpush1.msra.mxu0 0.0
        %4677 = vmatprep.subr.mxu0 0.0
        %4678 = vmatpush1.msra.mxu0 0.0
        %4679 = vmatprep.subr.mxu0 0.0
        %4680 = vmatpush1.msra.mxu0 0.0
        %4681 = vmatprep.subr.mxu0 0.0
        %4682 = vmatpush1.msra.mxu0 0.0
        %4683 = vmatprep.subr.mxu0 0.0
        %4684 = vmatpush1.msra.mxu0 0.0
        %4685 = vmatprep.subr.mxu0 0.0
        %4686 = vmatpush1.msra.mxu0 0.0
        %4687 = vmatprep.subr.mxu0 0.0
        %4688 = vmatpush1.msra.mxu0 0.0
        %4689 = vmatprep.subr.mxu0 0.0
        %4690 = vmatpush1.msra.mxu0 0.0
        %4691 = vmatprep.subr.mxu0 0.0
        %4692 = vmatpush1.msra.mxu0 0.0
        %4693 = vmatprep.mubr.f32.mxu0 0.0
        %v4694 = vand.u32 %v4295, 4294901760
        %v4695 = vsub.f32 %v4295, %v4694
        %v4696 = vand.u32 %v4695, 4294901760
        %4697 = vmatmul.mubr.f32.gmra.mrb[0].mxu0 %v4696
        %v4698 = vpop.f32.mrb[0].mxu0
        %v4699 = vadd.f32 %v4601, %v4698
        %v4700 = vpop.f32.mrb[0].mxu0
        %4701 = vmatprep.mubr.f32.mxu0 0.0
        %v4702 = vand.u32 %v4298, 4294901760
        %v4703 = vsub.f32 %v4298, %v4702
        %v4704 = vand.u32 %v4703, 4294901760
        %4705 = vmatmul.mubr.f32.gmra.mrb[0].mxu0 %v4704
        %v4706 = vpop.f32.mrb[0].mxu0
        %v4707 = vadd.f32 %v4608, %v4706
        %v4708 = vpop.f32.mrb[0].mxu0
        %4709 = vmatprep.mubr.f32.mxu0 0.0
        %v4710 = vand.u32 %v4301, 4294901760
        %v4711 = vsub.f32 %v4301, %v4710
        %v4712 = vand.u32 %v4711, 4294901760
        %4713 = vmatmul.mubr.f32.gmra.mrb[0].mxu0 %v4712
        %v4714 = vpop.f32.mrb[0].mxu0
        %v4715 = vadd.f32 %v4615, %v4714
        %v4716 = vpop.f32.mrb[0].mxu0
        %4717 = vmatprep.mubr.f32.mxu0 0.0
        %v4718 = vand.u32 %v4304, 4294901760
        %v4719 = vsub.f32 %v4304, %v4718
        %v4720 = vand.u32 %v4719, 4294901760
        %4721 = vmatmul.mubr.f32.gmra.mrb[0].mxu0 %v4720
        %v4722 = vpop.f32.mrb[0].mxu0
        %v4723 = vadd.f32 %v4622, %v4722
        %v4724 = vpop.f32.mrb[0].mxu0
        %4725 = vdwg.mxu0
        %4726 = vmatprep.subr.mxu0 0.0
        %v4727 = vand.u32 %v4260, 4294901760
        %v4728 = vsub.f32 %v4260, %v4727
        %v4729 = vand.u32 %v4728, 4294901760
        %4730 = vmatpush1.msra.mxu0 %v4729
        %4731 = vmatprep.subr.mxu0 0.0
        %v4732 = vand.u32 %v4261, 4294901760
        %v4733 = vsub.f32 %v4261, %v4732
        %v4734 = vand.u32 %v4733, 4294901760
        %4735 = vmatpush1.msra.mxu0 %v4734
        %4736 = vmatprep.subr.mxu0 0.0
        %v4737 = vand.u32 %v4262, 4294901760
        %v4738 = vsub.f32 %v4262, %v4737
        %v4739 = vand.u32 %v4738, 4294901760
        %4740 = vmatpush1.msra.mxu0 %v4739
        %4741 = vmatprep.subr.mxu0 0.0
        %v4742 = vand.u32 %v4263, 4294901760
        %v4743 = vsub.f32 %v4263, %v4742
        %v4744 = vand.u32 %v4743, 4294901760
        %4745 = vmatpush1.msra.mxu0 %v4744
        %4746 = vmatprep.subr.mxu0 0.0
        %4747 = vmatpush1.msra.mxu0 0.0
        %4748 = vmatprep.subr.mxu0 0.0
        %4749 = vmatpush1.msra.mxu0 0.0
        %4750 = vmatprep.subr.mxu0 0.0
        %4751 = vmatpush1.msra.mxu0 0.0
        %4752 = vmatprep.subr.mxu0 0.0
        %4753 = vmatpush1.msra.mxu0 0.0
        %4754 = vmatprep.subr.mxu0 0.0
        %4755 = vmatpush1.msra.mxu0 0.0
        %4756 = vmatprep.subr.mxu0 0.0
        %4757 = vmatpush1.msra.mxu0 0.0
        %4758 = vmatprep.subr.mxu0 0.0
        %4759 = vmatpush1.msra.mxu0 0.0
        %4760 = vmatprep.subr.mxu0 0.0
        %4761 = vmatpush1.msra.mxu0 0.0
        %4762 = vmatprep.subr.mxu0 0.0
        %4763 = vmatpush1.msra.mxu0 0.0
        %4764 = vmatprep.subr.mxu0 0.0
        %4765 = vmatpush1.msra.mxu0 0.0
        %4766 = vmatprep.subr.mxu0 0.0
        %4767 = vmatpush1.msra.mxu0 0.0
        %4768 = vmatprep.subr.mxu0 0.0
        %4769 = vmatpush1.msra.mxu0 0.0
        %4770 = vmatprep.subr.mxu0 0.0
        %4771 = vmatpush1.msra.mxu0 0.0
        %4772 = vmatprep.subr.mxu0 0.0
        %4773 = vmatpush1.msra.mxu0 0.0
        %4774 = vmatprep.subr.mxu0 0.0
        %4775 = vmatpush1.msra.mxu0 0.0
        %4776 = vmatprep.subr.mxu0 0.0
        %4777 = vmatpush1.msra.mxu0 0.0
        %4778 = vmatprep.subr.mxu0 0.0
        %4779 = vmatpush1.msra.mxu0 0.0
        %4780 = vmatprep.subr.mxu0 0.0
        %4781 = vmatpush1.msra.mxu0 0.0
        %4782 = vmatprep.subr.mxu0 0.0
        %4783 = vmatpush1.msra.mxu0 0.0
        %4784 = vmatprep.subr.mxu0 0.0
        %4785 = vmatpush1.msra.mxu0 0.0
        %4786 = vmatprep.subr.mxu0 0.0
        %4787 = vmatpush1.msra.mxu0 0.0
        %4788 = vmatprep.subr.mxu0 0.0
        %4789 = vmatpush1.msra.mxu0 0.0
        %4790 = vmatprep.subr.mxu0 0.0
        %4791 = vmatpush1.msra.mxu0 0.0
        %4792 = vmatprep.subr.mxu0 0.0
        %4793 = vmatpush1.msra.mxu0 0.0
        %4794 = vmatprep.subr.mxu0 0.0
        %4795 = vmatpush1.msra.mxu0 0.0
        %4796 = vmatprep.subr.mxu0 0.0
        %4797 = vmatpush1.msra.mxu0 0.0
        %4798 = vmatprep.subr.mxu0 0.0
        %4799 = vmatpush1.msra.mxu0 0.0
        %4800 = vmatprep.subr.mxu0 0.0
        %4801 = vmatpush1.msra.mxu0 0.0
        %4802 = vmatprep.mubr.f32.mxu0 0.0
        %v4803 = vand.u32 %v4295, 4294901760
        %4804 = vmatmul.mubr.f32.gmra.mrb[0].mxu0 %v4803
        %v4805 = vpop.f32.mrb[0].mxu0
        %v4806 = vadd.f32 %v4699, %v4805
        %v4807 = vpop.f32.mrb[0].mxu0
        %4808 = vmatprep.mubr.f32.mxu0 0.0
        %v4809 = vand.u32 %v4298, 4294901760
        %4810 = vmatmul.mubr.f32.gmra.mrb[0].mxu0 %v4809
        %v4811 = vpop.f32.mrb[0].mxu0
        %v4812 = vadd.f32 %v4707, %v4811
        %v4813 = vpop.f32.mrb[0].mxu0
        %4814 = vmatprep.mubr.f32.mxu0 0.0
        %v4815 = vand.u32 %v4301, 4294901760
        %4816 = vmatmul.mubr.f32.gmra.mrb[0].mxu0 %v4815
        %v4817 = vpop.f32.mrb[0].mxu0
        %v4818 = vadd.f32 %v4715, %v4817
        %v4819 = vpop.f32.mrb[0].mxu0
        %4820 = vmatprep.mubr.f32.mxu0 0.0
        %v4821 = vand.u32 %v4304, 4294901760
        %4822 = vmatmul.mubr.f32.gmra.mrb[0].mxu0 %v4821
        %v4823 = vpop.f32.mrb[0].mxu0
        %v4824 = vadd.f32 %v4723, %v4823
        %v4825 = vpop.f32.mrb[0].mxu0
        %4826 = vdwg.mxu0
        %4827 = vmatprep.subr.mxu0 0.0
        %v4828 = vand.u32 %v4260, 4294901760
        %4829 = vmatpush1.msra.mxu0 %v4828
        %4830 = vmatprep.subr.mxu0 0.0
        %v4831 = vand.u32 %v4261, 4294901760
        %4832 = vmatpush1.msra.mxu0 %v4831
        %4833 = vmatprep.subr.mxu0 0.0
        %v4834 = vand.u32 %v4262, 4294901760
        %4835 = vmatpush1.msra.mxu0 %v4834
        %4836 = vmatprep.subr.mxu0 0.0
        %v4837 = vand.u32 %v4263, 4294901760
        %4838 = vmatpush1.msra.mxu0 %v4837
        %4839 = vmatprep.subr.mxu0 0.0
        %4840 = vmatpush1.msra.mxu0 0.0
        %4841 = vmatprep.subr.mxu0 0.0
        %4842 = vmatpush1.msra.mxu0 0.0
        %4843 = vmatprep.subr.mxu0 0.0
        %4844 = vmatpush1.msra.mxu0 0.0
        %4845 = vmatprep.subr.mxu0 0.0
        %4846 = vmatpush1.msra.mxu0 0.0
        %4847 = vmatprep.subr.mxu0 0.0
        %4848 = vmatpush1.msra.mxu0 0.0
        %4849 = vmatprep.subr.mxu0 0.0
        %4850 = vmatpush1.msra.mxu0 0.0
        %4851 = vmatprep.subr.mxu0 0.0
        %4852 = vmatpush1.msra.mxu0 0.0
        %4853 = vmatprep.subr.mxu0 0.0
        %4854 = vmatpush1.msra.mxu0 0.0
        %4855 = vmatprep.subr.mxu0 0.0
        %4856 = vmatpush1.msra.mxu0 0.0
        %4857 = vmatprep.subr.mxu0 0.0
        %4858 = vmatpush1.msra.mxu0 0.0
        %4859 = vmatprep.subr.mxu0 0.0
        %4860 = vmatpush1.msra.mxu0 0.0
        %4861 = vmatprep.subr.mxu0 0.0
        %4862 = vmatpush1.msra.mxu0 0.0
        %4863 = vmatprep.subr.mxu0 0.0
        %4864 = vmatpush1.msra.mxu0 0.0
        %4865 = vmatprep.subr.mxu0 0.0
        %4866 = vmatpush1.msra.mxu0 0.0
        %4867 = vmatprep.subr.mxu0 0.0
        %4868 = vmatpush1.msra.mxu0 0.0
        %4869 = vmatprep.subr.mxu0 0.0
        %4870 = vmatpush1.msra.mxu0 0.0
        %4871 = vmatprep.subr.mxu0 0.0
        %4872 = vmatpush1.msra.mxu0 0.0
        %4873 = vmatprep.subr.mxu0 0.0
        %4874 = vmatpush1.msra.mxu0 0.0
        %4875 = vmatprep.subr.mxu0 0.0
        %4876 = vmatpush1.msra.mxu0 0.0
        %4877 = vmatprep.subr.mxu0 0.0
        %4878 = vmatpush1.msra.mxu0 0.0
        %4879 = vmatprep.subr.mxu0 0.0
        %4880 = vmatpush1.msra.mxu0 0.0
        %4881 = vmatprep.subr.mxu0 0.0
        %4882 = vmatpush1.msra.mxu0 0.0
        %4883 = vmatprep.subr.mxu0 0.0
        %4884 = vmatpush1.msra.mxu0 0.0
        %4885 = vmatprep.subr.mxu0 0.0
        %4886 = vmatpush1.msra.mxu0 0.0
        %4887 = vmatprep.subr.mxu0 0.0
        %4888 = vmatpush1.msra.mxu0 0.0
        %4889 = vmatprep.subr.mxu0 0.0
        %4890 = vmatpush1.msra.mxu0 0.0
        %4891 = vmatprep.subr.mxu0 0.0
        %4892 = vmatpush1.msra.mxu0 0.0
        %4893 = vmatprep.subr.mxu0 0.0
        %4894 = vmatpush1.msra.mxu0 0.0
        %4895 = vmatprep.mubr.f32.mxu0 0.0
        %v4896 = vand.u32 %v4295, 4294901760
        %4897 = vmatmul.mubr.f32.gmra.mrb[0].mxu0 %v4896
        %v4898 = vpop.f32.mrb[0].mxu0
        %v4899 = vadd.f32 %v4806, %v4898
        %v4900 = vpop.f32.mrb[0].mxu0
        %4901 = vmatprep.mubr.f32.mxu0 0.0
        %v4902 = vand.u32 %v4298, 4294901760
        %4903 = vmatmul.mubr.f32.gmra.mrb[0].mxu0 %v4902
        %v4904 = vpop.f32.mrb[0].mxu0
        %v4905 = vadd.f32 %v4812, %v4904
        %v4906 = vpop.f32.mrb[0].mxu0
        %4907 = vmatprep.mubr.f32.mxu0 0.0
        %v4908 = vand.u32 %v4301, 4294901760
        %4909 = vmatmul.mubr.f32.gmra.mrb[0].mxu0 %v4908
        %v4910 = vpop.f32.mrb[0].mxu0
        %v4911 = vadd.f32 %v4818, %v4910
        %v4912 = vpop.f32.mrb[0].mxu0
        %4913 = vmatprep.mubr.f32.mxu0 0.0
        %v4914 = vand.u32 %v4304, 4294901760
        %4915 = vmatmul.mubr.f32.gmra.mrb[0].mxu0 %v4914
        %v4916 = vpop.f32.mrb[0].mxu0
        %v4917 = vadd.f32 %v4824, %v4916
        %v4918 = vpop.f32.mrb[0].mxu0
        %4919 = vdwg.mxu0
        %v4920 = vmul.f32 %v4899, 100.0
        %v4921 = vmul.f32 %v4905, 100.0
        %v4922 = vmul.f32 %v4911, 100.0
        %v4923 = vmul.f32 %v4917, 100.0
        %v4924 = vmin.f32 %v4920, 20.0
        %v4925 = vmin.f32 %v4921, 20.0
        %v4926 = vmin.f32 %v4922, 20.0
        %v4927 = vmin.f32 %v4923, 20.0
        %v4928 = vmul.f32 %v4924, 1.442695
        %v4929 = vpow.pop %v4928
        %v4930 = vmul.f32 %v4925, 1.442695
        %v4931 = vpow.pop %v4930
        %v4932 = vmul.f32 %v4926, 1.442695
        %v4933 = vpow.pop %v4932
        %v4934 = vmul.f32 %v4927, 1.442695
        %v4935 = vpow.pop %v4934
        %v4936 = vadd.f32 %v4929, 1.0
        %v4937 = vadd.f32 %v4931, 1.0
        %v4938 = vadd.f32 %v4933, 1.0
        %v4939 = vadd.f32 %v4935, 1.0
        %v4940 = vlog2.pop %v4936
        %v4941 = vmul.f32 %v4940, 0.6931472
        %v4942 = vlog2.pop %v4937
        %v4943 = vmul.f32 %v4942, 0.6931472
        %v4944 = vlog2.pop %v4938
        %v4945 = vmul.f32 %v4944, 0.6931472
        %v4946 = vlog2.pop %v4939
        %v4947 = vmul.f32 %v4946, 0.6931472
        %v4948 = vmul.f32 %v4941, 0.01
        %v4949 = vmul.f32 %v4943, 0.01
        %v4950 = vmul.f32 %v4945, 0.01
        %v4951 = vmul.f32 %v4947, 0.01
        %v4952 = vmax.f32 %v4948, %v4899
        %v4953 = vmax.f32 %v4949, %v4905
        %v4954 = vmax.f32 %v4950, %v4911
        %v4955 = vmax.f32 %v4951, %v4917
        %s4956 = scalar_lea.vmem %s2, 160
        %v4957 = vld [vmem:[%s4956] sm:$0xff]
        %v4958 = vld [vmem:[%s4956 + $0x8] sm:$0xff]
        %v4959 = vld [vmem:[%s4956 + $0x10] sm:$0xff]
        %v4960 = vld [vmem:[%s4956 + $0x18] sm:$0xff]
        %s4961 = scalar_lea.vmem %s3, 192
        %v4962 = vld [vmem:[%s4961] sm:$0xff]
        %v4963 = vld [vmem:[%s4961 + $0x8] sm:$0xff]
        %v4964 = vld [vmem:[%s4961 + $0x10] sm:$0xff]
        %v4965 = vld [vmem:[%s4961 + $0x18] sm:$0xff]
        %4967 = vset.pattern.permute.xlu0 0
        %4968 = vperm.xlu0 %4967, %v4962
        %v4969 = vpop.permute.xlu0 %4968
        %4972 = vset.pattern.permute.xlu0 0
        %4973 = vperm.xlu0 %4972, %v4963
        %v4974 = vpop.permute.xlu0 %4973
        %4977 = vset.pattern.permute.xlu0 0
        %4978 = vperm.xlu0 %4977, %v4964
        %v4979 = vpop.permute.xlu0 %4978
        %4982 = vset.pattern.permute.xlu0 0
        %4983 = vperm.xlu0 %4982, %v4965
        %v4984 = vpop.permute.xlu0 %4983
        %v4987 = vsel %vm929, %v4957, 0
        %v4990 = vsel %vm929, %v4958, 0
        %v4993 = vsel %vm929, %v4959, 0
        %v4996 = vsel %vm929, %v4960, 0
        %4998 = vmatprep.subr.mxu0 0.0
        %v4999 = vand.u32 %v4952, 4294901760
        %5000 = vmatpush1.msra.mxu0 %v4999
        %5001 = vmatprep.subr.mxu0 0.0
        %v5002 = vand.u32 %v4953, 4294901760
        %5003 = vmatpush1.msra.mxu0 %v5002
        %5004 = vmatprep.subr.mxu0 0.0
        %v5005 = vand.u32 %v4954, 4294901760
        %5006 = vmatpush1.msra.mxu0 %v5005
        %5007 = vmatprep.subr.mxu0 0.0
        %v5008 = vand.u32 %v4955, 4294901760
        %5009 = vmatpush1.msra.mxu0 %v5008
        %5010 = vmatprep.subr.mxu0 0.0
        %5011 = vmatpush1.msra.mxu0 0.0
        %5012 = vmatprep.subr.mxu0 0.0
        %5013 = vmatpush1.msra.mxu0 0.0
        %5014 = vmatprep.subr.mxu0 0.0
        %5015 = vmatpush1.msra.mxu0 0.0
        %5016 = vmatprep.subr.mxu0 0.0
        %5017 = vmatpush1.msra.mxu0 0.0
        %5018 = vmatprep.subr.mxu0 0.0
        %5019 = vmatpush1.msra.mxu0 0.0
        %5020 = vmatprep.subr.mxu0 0.0
        %5021 = vmatpush1.msra.mxu0 0.0
        %5022 = vmatprep.subr.mxu0 0.0
        %5023 = vmatpush1.msra.mxu0 0.0
        %5024 = vmatprep.subr.mxu0 0.0
        %5025 = vmatpush1.msra.mxu0 0.0
        %5026 = vmatprep.subr.mxu0 0.0
        %5027 = vmatpush1.msra.mxu0 0.0
        %5028 = vmatprep.subr.mxu0 0.0
        %5029 = vmatpush1.msra.mxu0 0.0
        %5030 = vmatprep.subr.mxu0 0.0
        %5031 = vmatpush1.msra.mxu0 0.0
        %5032 = vmatprep.subr.mxu0 0.0
        %5033 = vmatpush1.msra.mxu0 0.0
        %5034 = vmatprep.subr.mxu0 0.0
        %5035 = vmatpush1.msra.mxu0 0.0
        %5036 = vmatprep.subr.mxu0 0.0
        %5037 = vmatpush1.msra.mxu0 0.0
        %5038 = vmatprep.subr.mxu0 0.0
        %5039 = vmatpush1.msra.mxu0 0.0
        %5040 = vmatprep.subr.mxu0 0.0
        %5041 = vmatpush1.msra.mxu0 0.0
        %5042 = vmatprep.subr.mxu0 0.0
        %5043 = vmatpush1.msra.mxu0 0.0
        %5044 = vmatprep.subr.mxu0 0.0
        %5045 = vmatpush1.msra.mxu0 0.0
        %5046 = vmatprep.subr.mxu0 0.0
        %5047 = vmatpush1.msra.mxu0 0.0
        %5048 = vmatprep.subr.mxu0 0.0
        %5049 = vmatpush1.msra.mxu0 0.0
        %5050 = vmatprep.subr.mxu0 0.0
        %5051 = vmatpush1.msra.mxu0 0.0
        %5052 = vmatprep.subr.mxu0 0.0
        %5053 = vmatpush1.msra.mxu0 0.0
        %5054 = vmatprep.subr.mxu0 0.0
        %5055 = vmatpush1.msra.mxu0 0.0
        %5056 = vmatprep.subr.mxu0 0.0
        %5057 = vmatpush1.msra.mxu0 0.0
        %5058 = vmatprep.subr.mxu0 0.0
        %5059 = vmatpush1.msra.mxu0 0.0
        %5060 = vmatprep.subr.mxu0 0.0
        %5061 = vmatpush1.msra.mxu0 0.0
        %5062 = vmatprep.subr.mxu0 0.0
        %5063 = vmatpush1.msra.mxu0 0.0
        %5064 = vmatprep.subr.mxu0 0.0
        %5065 = vmatpush1.msra.mxu0 0.0
        %5066 = vmatprep.mubr.f32.mxu0 0.0
        %v5067 = vand.u32 %v4987, 4294901760
        %v5068 = vsub.f32 %v4987, %v5067
        %v5069 = vand.u32 %v5068, 4294901760
        %v5070 = vsub.f32 %v5068, %v5069
        %v5071 = vand.u32 %v5070, 4294901760
        %5072 = vmatmul.mubr.f32.gmra.mrb[0].mxu0 %v5071
        %v5073 = vpop.f32.mrb[0].mxu0
        %v5074 = vadd.f32 %v4969, %v5073
        %v5075 = vpop.f32.mrb[0].mxu0
        %5076 = vmatprep.mubr.f32.mxu0 0.0
        %v5077 = vand.u32 %v4990, 4294901760
        %v5078 = vsub.f32 %v4990, %v5077
        %v5079 = vand.u32 %v5078, 4294901760
        %v5080 = vsub.f32 %v5078, %v5079
        %v5081 = vand.u32 %v5080, 4294901760
        %5082 = vmatmul.mubr.f32.gmra.mrb[0].mxu0 %v5081
        %v5083 = vpop.f32.mrb[0].mxu0
        %v5084 = vadd.f32 %v4974, %v5083
        %v5085 = vpop.f32.mrb[0].mxu0
        %5086 = vmatprep.mubr.f32.mxu0 0.0
        %v5087 = vand.u32 %v4993, 4294901760
        %v5088 = vsub.f32 %v4993, %v5087
        %v5089 = vand.u32 %v5088, 4294901760
        %v5090 = vsub.f32 %v5088, %v5089
        %v5091 = vand.u32 %v5090, 4294901760
        %5092 = vmatmul.mubr.f32.gmra.mrb[0].mxu0 %v5091
        %v5093 = vpop.f32.mrb[0].mxu0
        %v5094 = vadd.f32 %v4979, %v5093
        %v5095 = vpop.f32.mrb[0].mxu0
        %5096 = vmatprep.mubr.f32.mxu0 0.0
        %v5097 = vand.u32 %v4996, 4294901760
        %v5098 = vsub.f32 %v4996, %v5097
        %v5099 = vand.u32 %v5098, 4294901760
        %v5100 = vsub.f32 %v5098, %v5099
        %v5101 = vand.u32 %v5100, 4294901760
        %5102 = vmatmul.mubr.f32.gmra.mrb[0].mxu0 %v5101
        %v5103 = vpop.f32.mrb[0].mxu0
        %v5104 = vadd.f32 %v4984, %v5103
        %v5105 = vpop.f32.mrb[0].mxu0
        %5106 = vdwg.mxu0
        %5107 = vmatprep.subr.mxu0 0.0
        %v5108 = vand.u32 %v4952, 4294901760
        %v5109 = vsub.f32 %v4952, %v5108
        %v5110 = vand.u32 %v5109, 4294901760
        %v5111 = vsub.f32 %v5109, %v5110
        %v5112 = vand.u32 %v5111, 4294901760
        %5113 = vmatpush1.msra.mxu0 %v5112
        %5114 = vmatprep.subr.mxu0 0.0
        %v5115 = vand.u32 %v4953, 4294901760
        %v5116 = vsub.f32 %v4953, %v5115
        %v5117 = vand.u32 %v5116, 4294901760
        %v5118 = vsub.f32 %v5116, %v5117
        %v5119 = vand.u32 %v5118, 4294901760
        %5120 = vmatpush1.msra.mxu0 %v5119
        %5121 = vmatprep.subr.mxu0 0.0
        %v5122 = vand.u32 %v4954, 4294901760
        %v5123 = vsub.f32 %v4954, %v5122
        %v5124 = vand.u32 %v5123, 4294901760
        %v5125 = vsub.f32 %v5123, %v5124
        %v5126 = vand.u32 %v5125, 4294901760
        %5127 = vmatpush1.msra.mxu0 %v5126
        %5128 = vmatprep.subr.mxu0 0.0
        %v5129 = vand.u32 %v4955, 4294901760
        %v5130 = vsub.f32 %v4955, %v5129
        %v5131 = vand.u32 %v5130, 4294901760
        %v5132 = vsub.f32 %v5130, %v5131
        %v5133 = vand.u32 %v5132, 4294901760
        %5134 = vmatpush1.msra.mxu0 %v5133
        %5135 = vmatprep.subr.mxu0 0.0
        %5136 = vmatpush1.msra.mxu0 0.0
        %5137 = vmatprep.subr.mxu0 0.0
        %5138 = vmatpush1.msra.mxu0 0.0
        %5139 = vmatprep.subr.mxu0 0.0
        %5140 = vmatpush1.msra.mxu0 0.0
        %5141 = vmatprep.subr.mxu0 0.0
        %5142 = vmatpush1.msra.mxu0 0.0
        %5143 = vmatprep.subr.mxu0 0.0
        %5144 = vmatpush1.msra.mxu0 0.0
        %5145 = vmatprep.subr.mxu0 0.0
        %5146 = vmatpush1.msra.mxu0 0.0
        %5147 = vmatprep.subr.mxu0 0.0
        %5148 = vmatpush1.msra.mxu0 0.0
        %5149 = vmatprep.subr.mxu0 0.0
        %5150 = vmatpush1.msra.mxu0 0.0
        %5151 = vmatprep.subr.mxu0 0.0
        %5152 = vmatpush1.msra.mxu0 0.0
        %5153 = vmatprep.subr.mxu0 0.0
        %5154 = vmatpush1.msra.mxu0 0.0
        %5155 = vmatprep.subr.mxu0 0.0
        %5156 = vmatpush1.msra.mxu0 0.0
        %5157 = vmatprep.subr.mxu0 0.0
        %5158 = vmatpush1.msra.mxu0 0.0
        %5159 = vmatprep.subr.mxu0 0.0
        %5160 = vmatpush1.msra.mxu0 0.0
        %5161 = vmatprep.subr.mxu0 0.0
        %5162 = vmatpush1.msra.mxu0 0.0
        %5163 = vmatprep.subr.mxu0 0.0
        %5164 = vmatpush1.msra.mxu0 0.0
        %5165 = vmatprep.subr.mxu0 0.0
        %5166 = vmatpush1.msra.mxu0 0.0
        %5167 = vmatprep.subr.mxu0 0.0
        %5168 = vmatpush1.msra.mxu0 0.0
        %5169 = vmatprep.subr.mxu0 0.0
        %5170 = vmatpush1.msra.mxu0 0.0
        %5171 = vmatprep.subr.mxu0 0.0
        %5172 = vmatpush1.msra.mxu0 0.0
        %5173 = vmatprep.subr.mxu0 0.0
        %5174 = vmatpush1.msra.mxu0 0.0
        %5175 = vmatprep.subr.mxu0 0.0
        %5176 = vmatpush1.msra.mxu0 0.0
        %5177 = vmatprep.subr.mxu0 0.0
        %5178 = vmatpush1.msra.mxu0 0.0
        %5179 = vmatprep.subr.mxu0 0.0
        %5180 = vmatpush1.msra.mxu0 0.0
        %5181 = vmatprep.subr.mxu0 0.0
        %5182 = vmatpush1.msra.mxu0 0.0
        %5183 = vmatprep.subr.mxu0 0.0
        %5184 = vmatpush1.msra.mxu0 0.0
        %5185 = vmatprep.subr.mxu0 0.0
        %5186 = vmatpush1.msra.mxu0 0.0
        %5187 = vmatprep.subr.mxu0 0.0
        %5188 = vmatpush1.msra.mxu0 0.0
        %5189 = vmatprep.subr.mxu0 0.0
        %5190 = vmatpush1.msra.mxu0 0.0
        %5191 = vmatprep.mubr.f32.mxu0 0.0
        %v5192 = vand.u32 %v4987, 4294901760
        %5193 = vmatmul.mubr.f32.gmra.mrb[0].mxu0 %v5192
        %v5194 = vpop.f32.mrb[0].mxu0
        %v5195 = vadd.f32 %v5074, %v5194
        %v5196 = vpop.f32.mrb[0].mxu0
        %5197 = vmatprep.mubr.f32.mxu0 0.0
        %v5198 = vand.u32 %v4990, 4294901760
        %5199 = vmatmul.mubr.f32.gmra.mrb[0].mxu0 %v5198
        %v5200 = vpop.f32.mrb[0].mxu0
        %v5201 = vadd.f32 %v5084, %v5200
        %v5202 = vpop.f32.mrb[0].mxu0
        %5203 = vmatprep.mubr.f32.mxu0 0.0
        %v5204 = vand.u32 %v4993, 4294901760
        %5205 = vmatmul.mubr.f32.gmra.mrb[0].mxu0 %v5204
        %v5206 = vpop.f32.mrb[0].mxu0
        %v5207 = vadd.f32 %v5094, %v5206
        %v5208 = vpop.f32.mrb[0].mxu0
        %5209 = vmatprep.mubr.f32.mxu0 0.0
        %v5210 = vand.u32 %v4996, 4294901760
        %5211 = vmatmul.mubr.f32.gmra.mrb[0].mxu0 %v5210
        %v5212 = vpop.f32.mrb[0].mxu0
        %v5213 = vadd.f32 %v5104, %v5212
        %v5214 = vpop.f32.mrb[0].mxu0
        %5215 = vdwg.mxu0
        %5216 = vmatprep.subr.mxu0 0.0
        %v5217 = vand.u32 %v4952, 4294901760
        %v5218 = vsub.f32 %v4952, %v5217
        %5219 = vmatpush1.msra.mxu0 %v5218
        %5220 = vmatprep.subr.mxu0 0.0
        %v5221 = vand.u32 %v4953, 4294901760
        %v5222 = vsub.f32 %v4953, %v5221
        %5223 = vmatpush1.msra.mxu0 %v5222
        %5224 = vmatprep.subr.mxu0 0.0
        %v5225 = vand.u32 %v4954, 4294901760
        %v5226 = vsub.f32 %v4954, %v5225
        %5227 = vmatpush1.msra.mxu0 %v5226
        %5228 = vmatprep.subr.mxu0 0.0
        %v5229 = vand.u32 %v4955, 4294901760
        %v5230 = vsub.f32 %v4955, %v5229
        %5231 = vmatpush1.msra.mxu0 %v5230
        %5232 = vmatprep.subr.mxu0 0.0
        %5233 = vmatpush1.msra.mxu0 0.0
        %5234 = vmatprep.subr.mxu0 0.0
        %5235 = vmatpush1.msra.mxu0 0.0
        %5236 = vmatprep.subr.mxu0 0.0
        %5237 = vmatpush1.msra.mxu0 0.0
        %5238 = vmatprep.subr.mxu0 0.0
        %5239 = vmatpush1.msra.mxu0 0.0
        %5240 = vmatprep.subr.mxu0 0.0
        %5241 = vmatpush1.msra.mxu0 0.0
        %5242 = vmatprep.subr.mxu0 0.0
        %5243 = vmatpush1.msra.mxu0 0.0
        %5244 = vmatprep.subr.mxu0 0.0
        %5245 = vmatpush1.msra.mxu0 0.0
        %5246 = vmatprep.subr.mxu0 0.0
        %5247 = vmatpush1.msra.mxu0 0.0
        %5248 = vmatprep.subr.mxu0 0.0
        %5249 = vmatpush1.msra.mxu0 0.0
        %5250 = vmatprep.subr.mxu0 0.0
        %5251 = vmatpush1.msra.mxu0 0.0
        %5252 = vmatprep.subr.mxu0 0.0
        %5253 = vmatpush1.msra.mxu0 0.0
        %5254 = vmatprep.subr.mxu0 0.0
        %5255 = vmatpush1.msra.mxu0 0.0
        %5256 = vmatprep.subr.mxu0 0.0
        %5257 = vmatpush1.msra.mxu0 0.0
        %5258 = vmatprep.subr.mxu0 0.0
        %5259 = vmatpush1.msra.mxu0 0.0
        %5260 = vmatprep.subr.mxu0 0.0
        %5261 = vmatpush1.msra.mxu0 0.0
        %5262 = vmatprep.subr.mxu0 0.0
        %5263 = vmatpush1.msra.mxu0 0.0
        %5264 = vmatprep.subr.mxu0 0.0
        %5265 = vmatpush1.msra.mxu0 0.0
        %5266 = vmatprep.subr.mxu0 0.0
        %5267 = vmatpush1.msra.mxu0 0.0
        %5268 = vmatprep.subr.mxu0 0.0
        %5269 = vmatpush1.msra.mxu0 0.0
        %5270 = vmatprep.subr.mxu0 0.0
        %5271 = vmatpush1.msra.mxu0 0.0
        %5272 = vmatprep.subr.mxu0 0.0
        %5273 = vmatpush1.msra.mxu0 0.0
        %5274 = vmatprep.subr.mxu0 0.0
        %5275 = vmatpush1.msra.mxu0 0.0
        %5276 = vmatprep.subr.mxu0 0.0
        %5277 = vmatpush1.msra.mxu0 0.0
        %5278 = vmatprep.subr.mxu0 0.0
        %5279 = vmatpush1.msra.mxu0 0.0
        %5280 = vmatprep.subr.mxu0 0.0
        %5281 = vmatpush1.msra.mxu0 0.0
        %5282 = vmatprep.subr.mxu0 0.0
        %5283 = vmatpush1.msra.mxu0 0.0
        %5284 = vmatprep.subr.mxu0 0.0
        %5285 = vmatpush1.msra.mxu0 0.0
        %5286 = vmatprep.subr.mxu0 0.0
        %5287 = vmatpush1.msra.mxu0 0.0
        %5288 = vmatprep.mubr.f32.mxu0 0.0
        %v5289 = vand.u32 %v4987, 4294901760
        %v5290 = vsub.f32 %v4987, %v5289
        %5291 = vmatmul.mubr.f32.gmra.mrb[0].mxu0 %v5290
        %v5292 = vpop.f32.mrb[0].mxu0
        %v5293 = vadd.f32 %v5195, %v5292
        %v5294 = vpop.f32.mrb[0].mxu0
        %5295 = vmatprep.mubr.f32.mxu0 0.0
        %v5296 = vand.u32 %v4990, 4294901760
        %v5297 = vsub.f32 %v4990, %v5296
        %5298 = vmatmul.mubr.f32.gmra.mrb[0].mxu0 %v5297
        %v5299 = vpop.f32.mrb[0].mxu0
        %v5300 = vadd.f32 %v5201, %v5299
        %v5301 = vpop.f32.mrb[0].mxu0
        %5302 = vmatprep.mubr.f32.mxu0 0.0
        %v5303 = vand.u32 %v4993, 4294901760
        %v5304 = vsub.f32 %v4993, %v5303
        %5305 = vmatmul.mubr.f32.gmra.mrb[0].mxu0 %v5304
        %v5306 = vpop.f32.mrb[0].mxu0
        %v5307 = vadd.f32 %v5207, %v5306
        %v5308 = vpop.f32.mrb[0].mxu0
        %5309 = vmatprep.mubr.f32.mxu0 0.0
        %v5310 = vand.u32 %v4996, 4294901760
        %v5311 = vsub.f32 %v4996, %v5310
        %5312 = vmatmul.mubr.f32.gmra.mrb[0].mxu0 %v5311
        %v5313 = vpop.f32.mrb[0].mxu0
        %v5314 = vadd.f32 %v5213, %v5313
        %v5315 = vpop.f32.mrb[0].mxu0
        %5316 = vdwg.mxu0
        %5317 = vmatprep.subr.mxu0 0.0
        %v5318 = vand.u32 %v4952, 4294901760
        %5319 = vmatpush1.msra.mxu0 %v5318
        %5320 = vmatprep.subr.mxu0 0.0
        %v5321 = vand.u32 %v4953, 4294901760
        %5322 = vmatpush1.msra.mxu0 %v5321
        %5323 = vmatprep.subr.mxu0 0.0
        %v5324 = vand.u32 %v4954, 4294901760
        %5325 = vmatpush1.msra.mxu0 %v5324
        %5326 = vmatprep.subr.mxu0 0.0
        %v5327 = vand.u32 %v4955, 4294901760
        %5328 = vmatpush1.msra.mxu0 %v5327
        %5329 = vmatprep.subr.mxu0 0.0
        %5330 = vmatpush1.msra.mxu0 0.0
        %5331 = vmatprep.subr.mxu0 0.0
        %5332 = vmatpush1.msra.mxu0 0.0
        %5333 = vmatprep.subr.mxu0 0.0
        %5334 = vmatpush1.msra.mxu0 0.0
        %5335 = vmatprep.subr.mxu0 0.0
        %5336 = vmatpush1.msra.mxu0 0.0
        %5337 = vmatprep.subr.mxu0 0.0
        %5338 = vmatpush1.msra.mxu0 0.0
        %5339 = vmatprep.subr.mxu0 0.0
        %5340 = vmatpush1.msra.mxu0 0.0
        %5341 = vmatprep.subr.mxu0 0.0
        %5342 = vmatpush1.msra.mxu0 0.0
        %5343 = vmatprep.subr.mxu0 0.0
        %5344 = vmatpush1.msra.mxu0 0.0
        %5345 = vmatprep.subr.mxu0 0.0
        %5346 = vmatpush1.msra.mxu0 0.0
        %5347 = vmatprep.subr.mxu0 0.0
        %5348 = vmatpush1.msra.mxu0 0.0
        %5349 = vmatprep.subr.mxu0 0.0
        %5350 = vmatpush1.msra.mxu0 0.0
        %5351 = vmatprep.subr.mxu0 0.0
        %5352 = vmatpush1.msra.mxu0 0.0
        %5353 = vmatprep.subr.mxu0 0.0
        %5354 = vmatpush1.msra.mxu0 0.0
        %5355 = vmatprep.subr.mxu0 0.0
        %5356 = vmatpush1.msra.mxu0 0.0
        %5357 = vmatprep.subr.mxu0 0.0
        %5358 = vmatpush1.msra.mxu0 0.0
        %5359 = vmatprep.subr.mxu0 0.0
        %5360 = vmatpush1.msra.mxu0 0.0
        %5361 = vmatprep.subr.mxu0 0.0
        %5362 = vmatpush1.msra.mxu0 0.0
        %5363 = vmatprep.subr.mxu0 0.0
        %5364 = vmatpush1.msra.mxu0 0.0
        %5365 = vmatprep.subr.mxu0 0.0
        %5366 = vmatpush1.msra.mxu0 0.0
        %5367 = vmatprep.subr.mxu0 0.0
        %5368 = vmatpush1.msra.mxu0 0.0
        %5369 = vmatprep.subr.mxu0 0.0
        %5370 = vmatpush1.msra.mxu0 0.0
        %5371 = vmatprep.subr.mxu0 0.0
        %5372 = vmatpush1.msra.mxu0 0.0
        %5373 = vmatprep.subr.mxu0 0.0
        %5374 = vmatpush1.msra.mxu0 0.0
        %5375 = vmatprep.subr.mxu0 0.0
        %5376 = vmatpush1.msra.mxu0 0.0
        %5377 = vmatprep.subr.mxu0 0.0
        %5378 = vmatpush1.msra.mxu0 0.0
        %5379 = vmatprep.subr.mxu0 0.0
        %5380 = vmatpush1.msra.mxu0 0.0
        %5381 = vmatprep.subr.mxu0 0.0
        %5382 = vmatpush1.msra.mxu0 0.0
        %5383 = vmatprep.subr.mxu0 0.0
        %5384 = vmatpush1.msra.mxu0 0.0
        %5385 = vmatprep.mubr.f32.mxu0 0.0
        %v5386 = vand.u32 %v4987, 4294901760
        %v5387 = vsub.f32 %v4987, %v5386
        %v5388 = vand.u32 %v5387, 4294901760
        %5389 = vmatmul.mubr.f32.gmra.mrb[0].mxu0 %v5388
        %v5390 = vpop.f32.mrb[0].mxu0
        %v5391 = vadd.f32 %v5293, %v5390
        %v5392 = vpop.f32.mrb[0].mxu0
        %5393 = vmatprep.mubr.f32.mxu0 0.0
        %v5394 = vand.u32 %v4990, 4294901760
        %v5395 = vsub.f32 %v4990, %v5394
        %v5396 = vand.u32 %v5395, 4294901760
        %5397 = vmatmul.mubr.f32.gmra.mrb[0].mxu0 %v5396
        %v5398 = vpop.f32.mrb[0].mxu0
        %v5399 = vadd.f32 %v5300, %v5398
        %v5400 = vpop.f32.mrb[0].mxu0
        %5401 = vmatprep.mubr.f32.mxu0 0.0
        %v5402 = vand.u32 %v4993, 4294901760
        %v5403 = vsub.f32 %v4993, %v5402
        %v5404 = vand.u32 %v5403, 4294901760
        %5405 = vmatmul.mubr.f32.gmra.mrb[0].mxu0 %v5404
        %v5406 = vpop.f32.mrb[0].mxu0
        %v5407 = vadd.f32 %v5307, %v5406
        %v5408 = vpop.f32.mrb[0].mxu0
        %5409 = vmatprep.mubr.f32.mxu0 0.0
        %v5410 = vand.u32 %v4996, 4294901760
        %v5411 = vsub.f32 %v4996, %v5410
        %v5412 = vand.u32 %v5411, 4294901760
        %5413 = vmatmul.mubr.f32.gmra.mrb[0].mxu0 %v5412
        %v5414 = vpop.f32.mrb[0].mxu0
        %v5415 = vadd.f32 %v5314, %v5414
        %v5416 = vpop.f32.mrb[0].mxu0
        %5417 = vdwg.mxu0
        %5418 = vmatprep.subr.mxu0 0.0
        %v5419 = vand.u32 %v4952, 4294901760
        %v5420 = vsub.f32 %v4952, %v5419
        %v5421 = vand.u32 %v5420, 4294901760
        %5422 = vmatpush1.msra.mxu0 %v5421
        %5423 = vmatprep.subr.mxu0 0.0
        %v5424 = vand.u32 %v4953, 4294901760
        %v5425 = vsub.f32 %v4953, %v5424
        %v5426 = vand.u32 %v5425, 4294901760
        %5427 = vmatpush1.msra.mxu0 %v5426
        %5428 = vmatprep.subr.mxu0 0.0
        %v5429 = vand.u32 %v4954, 4294901760
        %v5430 = vsub.f32 %v4954, %v5429
        %v5431 = vand.u32 %v5430, 4294901760
        %5432 = vmatpush1.msra.mxu0 %v5431
        %5433 = vmatprep.subr.mxu0 0.0
        %v5434 = vand.u32 %v4955, 4294901760
        %v5435 = vsub.f32 %v4955, %v5434
        %v5436 = vand.u32 %v5435, 4294901760
        %5437 = vmatpush1.msra.mxu0 %v5436
        %5438 = vmatprep.subr.mxu0 0.0
        %5439 = vmatpush1.msra.mxu0 0.0
        %5440 = vmatprep.subr.mxu0 0.0
        %5441 = vmatpush1.msra.mxu0 0.0
        %5442 = vmatprep.subr.mxu0 0.0
        %5443 = vmatpush1.msra.mxu0 0.0
        %5444 = vmatprep.subr.mxu0 0.0
        %5445 = vmatpush1.msra.mxu0 0.0
        %5446 = vmatprep.subr.mxu0 0.0
        %5447 = vmatpush1.msra.mxu0 0.0
        %5448 = vmatprep.subr.mxu0 0.0
        %5449 = vmatpush1.msra.mxu0 0.0
        %5450 = vmatprep.subr.mxu0 0.0
        %5451 = vmatpush1.msra.mxu0 0.0
        %5452 = vmatprep.subr.mxu0 0.0
        %5453 = vmatpush1.msra.mxu0 0.0
        %5454 = vmatprep.subr.mxu0 0.0
        %5455 = vmatpush1.msra.mxu0 0.0
        %5456 = vmatprep.subr.mxu0 0.0
        %5457 = vmatpush1.msra.mxu0 0.0
        %5458 = vmatprep.subr.mxu0 0.0
        %5459 = vmatpush1.msra.mxu0 0.0
        %5460 = vmatprep.subr.mxu0 0.0
        %5461 = vmatpush1.msra.mxu0 0.0
        %5462 = vmatprep.subr.mxu0 0.0
        %5463 = vmatpush1.msra.mxu0 0.0
        %5464 = vmatprep.subr.mxu0 0.0
        %5465 = vmatpush1.msra.mxu0 0.0
        %5466 = vmatprep.subr.mxu0 0.0
        %5467 = vmatpush1.msra.mxu0 0.0
        %5468 = vmatprep.subr.mxu0 0.0
        %5469 = vmatpush1.msra.mxu0 0.0
        %5470 = vmatprep.subr.mxu0 0.0
        %5471 = vmatpush1.msra.mxu0 0.0
        %5472 = vmatprep.subr.mxu0 0.0
        %5473 = vmatpush1.msra.mxu0 0.0
        %5474 = vmatprep.subr.mxu0 0.0
        %5475 = vmatpush1.msra.mxu0 0.0
        %5476 = vmatprep.subr.mxu0 0.0
        %5477 = vmatpush1.msra.mxu0 0.0
        %5478 = vmatprep.subr.mxu0 0.0
        %5479 = vmatpush1.msra.mxu0 0.0
        %5480 = vmatprep.subr.mxu0 0.0
        %5481 = vmatpush1.msra.mxu0 0.0
        %5482 = vmatprep.subr.mxu0 0.0
        %5483 = vmatpush1.msra.mxu0 0.0
        %5484 = vmatprep.subr.mxu0 0.0
        %5485 = vmatpush1.msra.mxu0 0.0
        %5486 = vmatprep.subr.mxu0 0.0
        %5487 = vmatpush1.msra.mxu0 0.0
        %5488 = vmatprep.subr.mxu0 0.0
        %5489 = vmatpush1.msra.mxu0 0.0
        %5490 = vmatprep.subr.mxu0 0.0
        %5491 = vmatpush1.msra.mxu0 0.0
        %5492 = vmatprep.subr.mxu0 0.0
        %5493 = vmatpush1.msra.mxu0 0.0
        %5494 = vmatprep.mubr.f32.mxu0 0.0
        %v5495 = vand.u32 %v4987, 4294901760
        %5496 = vmatmul.mubr.f32.gmra.mrb[0].mxu0 %v5495
        %v5497 = vpop.f32.mrb[0].mxu0
        %v5498 = vadd.f32 %v5391, %v5497
        %v5499 = vpop.f32.mrb[0].mxu0
        %5500 = vmatprep.mubr.f32.mxu0 0.0
        %v5501 = vand.u32 %v4990, 4294901760
        %5502 = vmatmul.mubr.f32.gmra.mrb[0].mxu0 %v5501
        %v5503 = vpop.f32.mrb[0].mxu0
        %v5504 = vadd.f32 %v5399, %v5503
        %v5505 = vpop.f32.mrb[0].mxu0
        %5506 = vmatprep.mubr.f32.mxu0 0.0
        %v5507 = vand.u32 %v4993, 4294901760
        %5508 = vmatmul.mubr.f32.gmra.mrb[0].mxu0 %v5507
        %v5509 = vpop.f32.mrb[0].mxu0
        %v5510 = vadd.f32 %v5407, %v5509
        %v5511 = vpop.f32.mrb[0].mxu0
        %5512 = vmatprep.mubr.f32.mxu0 0.0
        %v5513 = vand.u32 %v4996, 4294901760
        %5514 = vmatmul.mubr.f32.gmra.mrb[0].mxu0 %v5513
        %v5515 = vpop.f32.mrb[0].mxu0
        %v5516 = vadd.f32 %v5415, %v5515
        %v5517 = vpop.f32.mrb[0].mxu0
        %5518 = vdwg.mxu0
        %5519 = vmatprep.subr.mxu0 0.0
        %v5520 = vand.u32 %v4952, 4294901760
        %5521 = vmatpush1.msra.mxu0 %v5520
        %5522 = vmatprep.subr.mxu0 0.0
        %v5523 = vand.u32 %v4953, 4294901760
        %5524 = vmatpush1.msra.mxu0 %v5523
        %5525 = vmatprep.subr.mxu0 0.0
        %v5526 = vand.u32 %v4954, 4294901760
        %5527 = vmatpush1.msra.mxu0 %v5526
        %5528 = vmatprep.subr.mxu0 0.0
        %v5529 = vand.u32 %v4955, 4294901760
        %5530 = vmatpush1.msra.mxu0 %v5529
        %5531 = vmatprep.subr.mxu0 0.0
        %5532 = vmatpush1.msra.mxu0 0.0
        %5533 = vmatprep.subr.mxu0 0.0
        %5534 = vmatpush1.msra.mxu0 0.0
        %5535 = vmatprep.subr.mxu0 0.0
        %5536 = vmatpush1.msra.mxu0 0.0
        %5537 = vmatprep.subr.mxu0 0.0
        %5538 = vmatpush1.msra.mxu0 0.0
        %5539 = vmatprep.subr.mxu0 0.0
        %5540 = vmatpush1.msra.mxu0 0.0
        %5541 = vmatprep.subr.mxu0 0.0
        %5542 = vmatpush1.msra.mxu0 0.0
        %5543 = vmatprep.subr.mxu0 0.0
        %5544 = vmatpush1.msra.mxu0 0.0
        %5545 = vmatprep.subr.mxu0 0.0
        %5546 = vmatpush1.msra.mxu0 0.0
        %5547 = vmatprep.subr.mxu0 0.0
        %5548 = vmatpush1.msra.mxu0 0.0
        %5549 = vmatprep.subr.mxu0 0.0
        %5550 = vmatpush1.msra.mxu0 0.0
        %5551 = vmatprep.subr.mxu0 0.0
        %5552 = vmatpush1.msra.mxu0 0.0
        %5553 = vmatprep.subr.mxu0 0.0
        %5554 = vmatpush1.msra.mxu0 0.0
        %5555 = vmatprep.subr.mxu0 0.0
        %5556 = vmatpush1.msra.mxu0 0.0
        %5557 = vmatprep.subr.mxu0 0.0
        %5558 = vmatpush1.msra.mxu0 0.0
        %5559 = vmatprep.subr.mxu0 0.0
        %5560 = vmatpush1.msra.mxu0 0.0
        %5561 = vmatprep.subr.mxu0 0.0
        %5562 = vmatpush1.msra.mxu0 0.0
        %5563 = vmatprep.subr.mxu0 0.0
        %5564 = vmatpush1.msra.mxu0 0.0
        %5565 = vmatprep.subr.mxu0 0.0
        %5566 = vmatpush1.msra.mxu0 0.0
        %5567 = vmatprep.subr.mxu0 0.0
        %5568 = vmatpush1.msra.mxu0 0.0
        %5569 = vmatprep.subr.mxu0 0.0
        %5570 = vmatpush1.msra.mxu0 0.0
        %5571 = vmatprep.subr.mxu0 0.0
        %5572 = vmatpush1.msra.mxu0 0.0
        %5573 = vmatprep.subr.mxu0 0.0
        %5574 = vmatpush1.msra.mxu0 0.0
        %5575 = vmatprep.subr.mxu0 0.0
        %5576 = vmatpush1.msra.mxu0 0.0
        %5577 = vmatprep.subr.mxu0 0.0
        %5578 = vmatpush1.msra.mxu0 0.0
        %5579 = vmatprep.subr.mxu0 0.0
        %5580 = vmatpush1.msra.mxu0 0.0
        %5581 = vmatprep.subr.mxu0 0.0
        %5582 = vmatpush1.msra.mxu0 0.0
        %5583 = vmatprep.subr.mxu0 0.0
        %5584 = vmatpush1.msra.mxu0 0.0
        %5585 = vmatprep.subr.mxu0 0.0
        %5586 = vmatpush1.msra.mxu0 0.0
        %5587 = vmatprep.mubr.f32.mxu0 0.0
        %v5588 = vand.u32 %v4987, 4294901760
        %5589 = vmatmul.mubr.f32.gmra.mrb[0].mxu0 %v5588
        %v5590 = vpop.f32.mrb[0].mxu0
        %v5591 = vadd.f32 %v5498, %v5590
        %v5592 = vpop.f32.mrb[0].mxu0
        %5593 = vmatprep.mubr.f32.mxu0 0.0
        %v5594 = vand.u32 %v4990, 4294901760
        %5595 = vmatmul.mubr.f32.gmra.mrb[0].mxu0 %v5594
        %v5596 = vpop.f32.mrb[0].mxu0
        %v5597 = vadd.f32 %v5504, %v5596
        %v5598 = vpop.f32.mrb[0].mxu0
        %5599 = vmatprep.mubr.f32.mxu0 0.0
        %v5600 = vand.u32 %v4993, 4294901760
        %5601 = vmatmul.mubr.f32.gmra.mrb[0].mxu0 %v5600
        %v5602 = vpop.f32.mrb[0].mxu0
        %v5603 = vadd.f32 %v5510, %v5602
        %v5604 = vpop.f32.mrb[0].mxu0
        %5605 = vmatprep.mubr.f32.mxu0 0.0
        %v5606 = vand.u32 %v4996, 4294901760
        %5607 = vmatmul.mubr.f32.gmra.mrb[0].mxu0 %v5606
        %v5608 = vpop.f32.mrb[0].mxu0
        %v5609 = vadd.f32 %v5516, %v5608
        %v5610 = vpop.f32.mrb[0].mxu0
        %5611 = vdwg.mxu0
        %v5612 = vmul.f32 %v5591, 100.0
        %v5613 = vmul.f32 %v5597, 100.0
        %v5614 = vmul.f32 %v5603, 100.0
        %v5615 = vmul.f32 %v5609, 100.0
        %v5616 = vmin.f32 %v5612, 20.0
        %v5617 = vmin.f32 %v5613, 20.0
        %v5618 = vmin.f32 %v5614, 20.0
        %v5619 = vmin.f32 %v5615, 20.0
        %v5620 = vmul.f32 %v5616, 1.442695
        %v5621 = vpow.pop %v5620
        %v5622 = vmul.f32 %v5617, 1.442695
        %v5623 = vpow.pop %v5622
        %v5624 = vmul.f32 %v5618, 1.442695
        %v5625 = vpow.pop %v5624
        %v5626 = vmul.f32 %v5619, 1.442695
        %v5627 = vpow.pop %v5626
        %v5628 = vadd.f32 %v5621, 1.0
        %v5629 = vadd.f32 %v5623, 1.0
        %v5630 = vadd.f32 %v5625, 1.0
        %v5631 = vadd.f32 %v5627, 1.0
        %v5632 = vlog2.pop %v5628
        %v5633 = vmul.f32 %v5632, 0.6931472
        %v5634 = vlog2.pop %v5629
        %v5635 = vmul.f32 %v5634, 0.6931472
        %v5636 = vlog2.pop %v5630
        %v5637 = vmul.f32 %v5636, 0.6931472
        %v5638 = vlog2.pop %v5631
        %v5639 = vmul.f32 %v5638, 0.6931472
        %v5640 = vmul.f32 %v5633, 0.01
        %v5641 = vmul.f32 %v5635, 0.01
        %v5642 = vmul.f32 %v5637, 0.01
        %v5643 = vmul.f32 %v5639, 0.01
        %v5644 = vmax.f32 %v5640, %v5591
        %v5645 = vmax.f32 %v5641, %v5597
        %v5646 = vmax.f32 %v5642, %v5603
        %v5647 = vmax.f32 %v5643, %v5609
        %s5648 = scalar_lea.vmem %s2, 192
        %v5649 = vld [vmem:[%s5648] sm:$0xff]
        %v5650 = vld [vmem:[%s5648 + $0x8] sm:$0xff]
        %v5651 = vld [vmem:[%s5648 + $0x10] sm:$0xff]
        %v5652 = vld [vmem:[%s5648 + $0x18] sm:$0xff]
        %s5653 = scalar_lea.vmem %s3, 224
        %v5654 = vld [vmem:[%s5653] sm:$0xff]
        %v5655 = vld [vmem:[%s5653 + $0x8] sm:$0xff]
        %v5656 = vld [vmem:[%s5653 + $0x10] sm:$0xff]
        %v5657 = vld [vmem:[%s5653 + $0x18] sm:$0xff]
        %5659 = vset.pattern.permute.xlu0 0
        %5660 = vperm.xlu0 %5659, %v5654
        %v5661 = vpop.permute.xlu0 %5660
        %5664 = vset.pattern.permute.xlu0 0
        %5665 = vperm.xlu0 %5664, %v5655
        %v5666 = vpop.permute.xlu0 %5665
        %5669 = vset.pattern.permute.xlu0 0
        %5670 = vperm.xlu0 %5669, %v5656
        %v5671 = vpop.permute.xlu0 %5670
        %5674 = vset.pattern.permute.xlu0 0
        %5675 = vperm.xlu0 %5674, %v5657
        %v5676 = vpop.permute.xlu0 %5675
        %v5679 = vsel %vm929, %v5649, 0
        %v5682 = vsel %vm929, %v5650, 0
        %v5685 = vsel %vm929, %v5651, 0
        %v5688 = vsel %vm929, %v5652, 0
        %5690 = vmatprep.subr.mxu0 0.0
        %v5691 = vand.u32 %v5644, 4294901760
        %5692 = vmatpush1.msra.mxu0 %v5691
        %5693 = vmatprep.subr.mxu0 0.0
        %v5694 = vand.u32 %v5645, 4294901760
        %5695 = vmatpush1.msra.mxu0 %v5694
        %5696 = vmatprep.subr.mxu0 0.0
        %v5697 = vand.u32 %v5646, 4294901760
        %5698 = vmatpush1.msra.mxu0 %v5697
        %5699 = vmatprep.subr.mxu0 0.0
        %v5700 = vand.u32 %v5647, 4294901760
        %5701 = vmatpush1.msra.mxu0 %v5700
        %5702 = vmatprep.subr.mxu0 0.0
        %5703 = vmatpush1.msra.mxu0 0.0
        %5704 = vmatprep.subr.mxu0 0.0
        %5705 = vmatpush1.msra.mxu0 0.0
        %5706 = vmatprep.subr.mxu0 0.0
        %5707 = vmatpush1.msra.mxu0 0.0
        %5708 = vmatprep.subr.mxu0 0.0
        %5709 = vmatpush1.msra.mxu0 0.0
        %5710 = vmatprep.subr.mxu0 0.0
        %5711 = vmatpush1.msra.mxu0 0.0
        %5712 = vmatprep.subr.mxu0 0.0
        %5713 = vmatpush1.msra.mxu0 0.0
        %5714 = vmatprep.subr.mxu0 0.0
        %5715 = vmatpush1.msra.mxu0 0.0
        %5716 = vmatprep.subr.mxu0 0.0
        %5717 = vmatpush1.msra.mxu0 0.0
        %5718 = vmatprep.subr.mxu0 0.0
        %5719 = vmatpush1.msra.mxu0 0.0
        %5720 = vmatprep.subr.mxu0 0.0
        %5721 = vmatpush1.msra.mxu0 0.0
        %5722 = vmatprep.subr.mxu0 0.0
        %5723 = vmatpush1.msra.mxu0 0.0
        %5724 = vmatprep.subr.mxu0 0.0
        %5725 = vmatpush1.msra.mxu0 0.0
        %5726 = vmatprep.subr.mxu0 0.0
        %5727 = vmatpush1.msra.mxu0 0.0
        %5728 = vmatprep.subr.mxu0 0.0
        %5729 = vmatpush1.msra.mxu0 0.0
        %5730 = vmatprep.subr.mxu0 0.0
        %5731 = vmatpush1.msra.mxu0 0.0
        %5732 = vmatprep.subr.mxu0 0.0
        %5733 = vmatpush1.msra.mxu0 0.0
        %5734 = vmatprep.subr.mxu0 0.0
        %5735 = vmatpush1.msra.mxu0 0.0
        %5736 = vmatprep.subr.mxu0 0.0
        %5737 = vmatpush1.msra.mxu0 0.0
        %5738 = vmatprep.subr.mxu0 0.0
        %5739 = vmatpush1.msra.mxu0 0.0
        %5740 = vmatprep.subr.mxu0 0.0
        %5741 = vmatpush1.msra.mxu0 0.0
        %5742 = vmatprep.subr.mxu0 0.0
        %5743 = vmatpush1.msra.mxu0 0.0
        %5744 = vmatprep.subr.mxu0 0.0
        %5745 = vmatpush1.msra.mxu0 0.0
        %5746 = vmatprep.subr.mxu0 0.0
        %5747 = vmatpush1.msra.mxu0 0.0
        %5748 = vmatprep.subr.mxu0 0.0
        %5749 = vmatpush1.msra.mxu0 0.0
        %5750 = vmatprep.subr.mxu0 0.0
        %5751 = vmatpush1.msra.mxu0 0.0
        %5752 = vmatprep.subr.mxu0 0.0
        %5753 = vmatpush1.msra.mxu0 0.0
        %5754 = vmatprep.subr.mxu0 0.0
        %5755 = vmatpush1.msra.mxu0 0.0
        %5756 = vmatprep.subr.mxu0 0.0
        %5757 = vmatpush1.msra.mxu0 0.0
        %5758 = vmatprep.mubr.f32.mxu0 0.0
        %v5759 = vand.u32 %v5679, 4294901760
        %v5760 = vsub.f32 %v5679, %v5759
        %v5761 = vand.u32 %v5760, 4294901760
        %v5762 = vsub.f32 %v5760, %v5761
        %v5763 = vand.u32 %v5762, 4294901760
        %5764 = vmatmul.mubr.f32.gmra.mrb[0].mxu0 %v5763
        %v5765 = vpop.f32.mrb[0].mxu0
        %v5766 = vadd.f32 %v5661, %v5765
        %v5767 = vpop.f32.mrb[0].mxu0
        %5768 = vmatprep.mubr.f32.mxu0 0.0
        %v5769 = vand.u32 %v5682, 4294901760
        %v5770 = vsub.f32 %v5682, %v5769
        %v5771 = vand.u32 %v5770, 4294901760
        %v5772 = vsub.f32 %v5770, %v5771
        %v5773 = vand.u32 %v5772, 4294901760
        %5774 = vmatmul.mubr.f32.gmra.mrb[0].mxu0 %v5773
        %v5775 = vpop.f32.mrb[0].mxu0
        %v5776 = vadd.f32 %v5666, %v5775
        %v5777 = vpop.f32.mrb[0].mxu0
        %5778 = vmatprep.mubr.f32.mxu0 0.0
        %v5779 = vand.u32 %v5685, 4294901760
        %v5780 = vsub.f32 %v5685, %v5779
        %v5781 = vand.u32 %v5780, 4294901760
        %v5782 = vsub.f32 %v5780, %v5781
        %v5783 = vand.u32 %v5782, 4294901760
        %5784 = vmatmul.mubr.f32.gmra.mrb[0].mxu0 %v5783
        %v5785 = vpop.f32.mrb[0].mxu0
        %v5786 = vadd.f32 %v5671, %v5785
        %v5787 = vpop.f32.mrb[0].mxu0
        %5788 = vmatprep.mubr.f32.mxu0 0.0
        %v5789 = vand.u32 %v5688, 4294901760
        %v5790 = vsub.f32 %v5688, %v5789
        %v5791 = vand.u32 %v5790, 4294901760
        %v5792 = vsub.f32 %v5790, %v5791
        %v5793 = vand.u32 %v5792, 4294901760
        %5794 = vmatmul.mubr.f32.gmra.mrb[0].mxu0 %v5793
        %v5795 = vpop.f32.mrb[0].mxu0
        %v5796 = vadd.f32 %v5676, %v5795
        %v5797 = vpop.f32.mrb[0].mxu0
        %5798 = vdwg.mxu0
        %5799 = vmatprep.subr.mxu0 0.0
        %v5800 = vand.u32 %v5644, 4294901760
        %v5801 = vsub.f32 %v5644, %v5800
        %v5802 = vand.u32 %v5801, 4294901760
        %v5803 = vsub.f32 %v5801, %v5802
        %v5804 = vand.u32 %v5803, 4294901760
        %5805 = vmatpush1.msra.mxu0 %v5804
        %5806 = vmatprep.subr.mxu0 0.0
        %v5807 = vand.u32 %v5645, 4294901760
        %v5808 = vsub.f32 %v5645, %v5807
        %v5809 = vand.u32 %v5808, 4294901760
        %v5810 = vsub.f32 %v5808, %v5809
        %v5811 = vand.u32 %v5810, 4294901760
        %5812 = vmatpush1.msra.mxu0 %v5811
        %5813 = vmatprep.subr.mxu0 0.0
        %v5814 = vand.u32 %v5646, 4294901760
        %v5815 = vsub.f32 %v5646, %v5814
        %v5816 = vand.u32 %v5815, 4294901760
        %v5817 = vsub.f32 %v5815, %v5816
        %v5818 = vand.u32 %v5817, 4294901760
        %5819 = vmatpush1.msra.mxu0 %v5818
        %5820 = vmatprep.subr.mxu0 0.0
        %v5821 = vand.u32 %v5647, 4294901760
        %v5822 = vsub.f32 %v5647, %v5821
        %v5823 = vand.u32 %v5822, 4294901760
        %v5824 = vsub.f32 %v5822, %v5823
        %v5825 = vand.u32 %v5824, 4294901760
        %5826 = vmatpush1.msra.mxu0 %v5825
        %5827 = vmatprep.subr.mxu0 0.0
        %5828 = vmatpush1.msra.mxu0 0.0
        %5829 = vmatprep.subr.mxu0 0.0
        %5830 = vmatpush1.msra.mxu0 0.0
        %5831 = vmatprep.subr.mxu0 0.0
        %5832 = vmatpush1.msra.mxu0 0.0
        %5833 = vmatprep.subr.mxu0 0.0
        %5834 = vmatpush1.msra.mxu0 0.0
        %5835 = vmatprep.subr.mxu0 0.0
        %5836 = vmatpush1.msra.mxu0 0.0
        %5837 = vmatprep.subr.mxu0 0.0
        %5838 = vmatpush1.msra.mxu0 0.0
        %5839 = vmatprep.subr.mxu0 0.0
        %5840 = vmatpush1.msra.mxu0 0.0
        %5841 = vmatprep.subr.mxu0 0.0
        %5842 = vmatpush1.msra.mxu0 0.0
        %5843 = vmatprep.subr.mxu0 0.0
        %5844 = vmatpush1.msra.mxu0 0.0
        %5845 = vmatprep.subr.mxu0 0.0
        %5846 = vmatpush1.msra.mxu0 0.0
        %5847 = vmatprep.subr.mxu0 0.0
        %5848 = vmatpush1.msra.mxu0 0.0
        %5849 = vmatprep.subr.mxu0 0.0
        %5850 = vmatpush1.msra.mxu0 0.0
        %5851 = vmatprep.subr.mxu0 0.0
        %5852 = vmatpush1.msra.mxu0 0.0
        %5853 = vmatprep.subr.mxu0 0.0
        %5854 = vmatpush1.msra.mxu0 0.0
        %5855 = vmatprep.subr.mxu0 0.0
        %5856 = vmatpush1.msra.mxu0 0.0
        %5857 = vmatprep.subr.mxu0 0.0
        %5858 = vmatpush1.msra.mxu0 0.0
        %5859 = vmatprep.subr.mxu0 0.0
        %5860 = vmatpush1.msra.mxu0 0.0
        %5861 = vmatprep.subr.mxu0 0.0
        %5862 = vmatpush1.msra.mxu0 0.0
        %5863 = vmatprep.subr.mxu0 0.0
        %5864 = vmatpush1.msra.mxu0 0.0
        %5865 = vmatprep.subr.mxu0 0.0
        %5866 = vmatpush1.msra.mxu0 0.0
        %5867 = vmatprep.subr.mxu0 0.0
        %5868 = vmatpush1.msra.mxu0 0.0
        %5869 = vmatprep.subr.mxu0 0.0
        %5870 = vmatpush1.msra.mxu0 0.0
        %5871 = vmatprep.subr.mxu0 0.0
        %5872 = vmatpush1.msra.mxu0 0.0
        %5873 = vmatprep.subr.mxu0 0.0
        %5874 = vmatpush1.msra.mxu0 0.0
        %5875 = vmatprep.subr.mxu0 0.0
        %5876 = vmatpush1.msra.mxu0 0.0
        %5877 = vmatprep.subr.mxu0 0.0
        %5878 = vmatpush1.msra.mxu0 0.0
        %5879 = vmatprep.subr.mxu0 0.0
        %5880 = vmatpush1.msra.mxu0 0.0
        %5881 = vmatprep.subr.mxu0 0.0
        %5882 = vmatpush1.msra.mxu0 0.0
        %5883 = vmatprep.mubr.f32.mxu0 0.0
        %v5884 = vand.u32 %v5679, 4294901760
        %5885 = vmatmul.mubr.f32.gmra.mrb[0].mxu0 %v5884
        %v5886 = vpop.f32.mrb[0].mxu0
        %v5887 = vadd.f32 %v5766, %v5886
        %v5888 = vpop.f32.mrb[0].mxu0
        %5889 = vmatprep.mubr.f32.mxu0 0.0
        %v5890 = vand.u32 %v5682, 4294901760
        %5891 = vmatmul.mubr.f32.gmra.mrb[0].mxu0 %v5890
        %v5892 = vpop.f32.mrb[0].mxu0
        %v5893 = vadd.f32 %v5776, %v5892
        %v5894 = vpop.f32.mrb[0].mxu0
        %5895 = vmatprep.mubr.f32.mxu0 0.0
        %v5896 = vand.u32 %v5685, 4294901760
        %5897 = vmatmul.mubr.f32.gmra.mrb[0].mxu0 %v5896
        %v5898 = vpop.f32.mrb[0].mxu0
        %v5899 = vadd.f32 %v5786, %v5898
        %v5900 = vpop.f32.mrb[0].mxu0
        %5901 = vmatprep.mubr.f32.mxu0 0.0
        %v5902 = vand.u32 %v5688, 4294901760
        %5903 = vmatmul.mubr.f32.gmra.mrb[0].mxu0 %v5902
        %v5904 = vpop.f32.mrb[0].mxu0
        %v5905 = vadd.f32 %v5796, %v5904
        %v5906 = vpop.f32.mrb[0].mxu0
        %5907 = vdwg.mxu0
        %5908 = vmatprep.subr.mxu0 0.0
        %v5909 = vand.u32 %v5644, 4294901760
        %v5910 = vsub.f32 %v5644, %v5909
        %5911 = vmatpush1.msra.mxu0 %v5910
        %5912 = vmatprep.subr.mxu0 0.0
        %v5913 = vand.u32 %v5645, 4294901760
        %v5914 = vsub.f32 %v5645, %v5913
        %5915 = vmatpush1.msra.mxu0 %v5914
        %5916 = vmatprep.subr.mxu0 0.0
        %v5917 = vand.u32 %v5646, 4294901760
        %v5918 = vsub.f32 %v5646, %v5917
        %5919 = vmatpush1.msra.mxu0 %v5918
        %5920 = vmatprep.subr.mxu0 0.0
        %v5921 = vand.u32 %v5647, 4294901760
        %v5922 = vsub.f32 %v5647, %v5921
        %5923 = vmatpush1.msra.mxu0 %v5922
        %5924 = vmatprep.subr.mxu0 0.0
        %5925 = vmatpush1.msra.mxu0 0.0
        %5926 = vmatprep.subr.mxu0 0.0
        %5927 = vmatpush1.msra.mxu0 0.0
        %5928 = vmatprep.subr.mxu0 0.0
        %5929 = vmatpush1.msra.mxu0 0.0
        %5930 = vmatprep.subr.mxu0 0.0
        %5931 = vmatpush1.msra.mxu0 0.0
        %5932 = vmatprep.subr.mxu0 0.0
        %5933 = vmatpush1.msra.mxu0 0.0
        %5934 = vmatprep.subr.mxu0 0.0
        %5935 = vmatpush1.msra.mxu0 0.0
        %5936 = vmatprep.subr.mxu0 0.0
        %5937 = vmatpush1.msra.mxu0 0.0
        %5938 = vmatprep.subr.mxu0 0.0
        %5939 = vmatpush1.msra.mxu0 0.0
        %5940 = vmatprep.subr.mxu0 0.0
        %5941 = vmatpush1.msra.mxu0 0.0
        %5942 = vmatprep.subr.mxu0 0.0
        %5943 = vmatpush1.msra.mxu0 0.0
        %5944 = vmatprep.subr.mxu0 0.0
        %5945 = vmatpush1.msra.mxu0 0.0
        %5946 = vmatprep.subr.mxu0 0.0
        %5947 = vmatpush1.msra.mxu0 0.0
        %5948 = vmatprep.subr.mxu0 0.0
        %5949 = vmatpush1.msra.mxu0 0.0
        %5950 = vmatprep.subr.mxu0 0.0
        %5951 = vmatpush1.msra.mxu0 0.0
        %5952 = vmatprep.subr.mxu0 0.0
        %5953 = vmatpush1.msra.mxu0 0.0
        %5954 = vmatprep.subr.mxu0 0.0
        %5955 = vmatpush1.msra.mxu0 0.0
        %5956 = vmatprep.subr.mxu0 0.0
        %5957 = vmatpush1.msra.mxu0 0.0
        %5958 = vmatprep.subr.mxu0 0.0
        %5959 = vmatpush1.msra.mxu0 0.0
        %5960 = vmatprep.subr.mxu0 0.0
        %5961 = vmatpush1.msra.mxu0 0.0
        %5962 = vmatprep.subr.mxu0 0.0
        %5963 = vmatpush1.msra.mxu0 0.0
        %5964 = vmatprep.subr.mxu0 0.0
        %5965 = vmatpush1.msra.mxu0 0.0
        %5966 = vmatprep.subr.mxu0 0.0
        %5967 = vmatpush1.msra.mxu0 0.0
        %5968 = vmatprep.subr.mxu0 0.0
        %5969 = vmatpush1.msra.mxu0 0.0
        %5970 = vmatprep.subr.mxu0 0.0
        %5971 = vmatpush1.msra.mxu0 0.0
        %5972 = vmatprep.subr.mxu0 0.0
        %5973 = vmatpush1.msra.mxu0 0.0
        %5974 = vmatprep.subr.mxu0 0.0
        %5975 = vmatpush1.msra.mxu0 0.0
        %5976 = vmatprep.subr.mxu0 0.0
        %5977 = vmatpush1.msra.mxu0 0.0
        %5978 = vmatprep.subr.mxu0 0.0
        %5979 = vmatpush1.msra.mxu0 0.0
        %5980 = vmatprep.mubr.f32.mxu0 0.0
        %v5981 = vand.u32 %v5679, 4294901760
        %v5982 = vsub.f32 %v5679, %v5981
        %5983 = vmatmul.mubr.f32.gmra.mrb[0].mxu0 %v5982
        %v5984 = vpop.f32.mrb[0].mxu0
        %v5985 = vadd.f32 %v5887, %v5984
        %v5986 = vpop.f32.mrb[0].mxu0
        %5987 = vmatprep.mubr.f32.mxu0 0.0
        %v5988 = vand.u32 %v5682, 4294901760
        %v5989 = vsub.f32 %v5682, %v5988
        %5990 = vmatmul.mubr.f32.gmra.mrb[0].mxu0 %v5989
        %v5991 = vpop.f32.mrb[0].mxu0
        %v5992 = vadd.f32 %v5893, %v5991
        %v5993 = vpop.f32.mrb[0].mxu0
        %5994 = vmatprep.mubr.f32.mxu0 0.0
        %v5995 = vand.u32 %v5685, 4294901760
        %v5996 = vsub.f32 %v5685, %v5995
        %5997 = vmatmul.mubr.f32.gmra.mrb[0].mxu0 %v5996
        %v5998 = vpop.f32.mrb[0].mxu0
        %v5999 = vadd.f32 %v5899, %v5998
        %v6000 = vpop.f32.mrb[0].mxu0
        %6001 = vmatprep.mubr.f32.mxu0 0.0
        %v6002 = vand.u32 %v5688, 4294901760
        %v6003 = vsub.f32 %v5688, %v6002
        %6004 = vmatmul.mubr.f32.gmra.mrb[0].mxu0 %v6003
        %v6005 = vpop.f32.mrb[0].mxu0
        %v6006 = vadd.f32 %v5905, %v6005
        %v6007 = vpop.f32.mrb[0].mxu0
        %6008 = vdwg.mxu0
        %6009 = vmatprep.subr.mxu0 0.0
        %v6010 = vand.u32 %v5644, 4294901760
        %6011 = vmatpush1.msra.mxu0 %v6010
        %6012 = vmatprep.subr.mxu0 0.0
        %v6013 = vand.u32 %v5645, 4294901760
        %6014 = vmatpush1.msra.mxu0 %v6013
        %6015 = vmatprep.subr.mxu0 0.0
        %v6016 = vand.u32 %v5646, 4294901760
        %6017 = vmatpush1.msra.mxu0 %v6016
        %6018 = vmatprep.subr.mxu0 0.0
        %v6019 = vand.u32 %v5647, 4294901760
        %6020 = vmatpush1.msra.mxu0 %v6019
        %6021 = vmatprep.subr.mxu0 0.0
        %6022 = vmatpush1.msra.mxu0 0.0
        %6023 = vmatprep.subr.mxu0 0.0
        %6024 = vmatpush1.msra.mxu0 0.0
        %6025 = vmatprep.subr.mxu0 0.0
        %6026 = vmatpush1.msra.mxu0 0.0
        %6027 = vmatprep.subr.mxu0 0.0
        %6028 = vmatpush1.msra.mxu0 0.0
        %6029 = vmatprep.subr.mxu0 0.0
        %6030 = vmatpush1.msra.mxu0 0.0
        %6031 = vmatprep.subr.mxu0 0.0
        %6032 = vmatpush1.msra.mxu0 0.0
        %6033 = vmatprep.subr.mxu0 0.0
        %6034 = vmatpush1.msra.mxu0 0.0
        %6035 = vmatprep.subr.mxu0 0.0
        %6036 = vmatpush1.msra.mxu0 0.0
        %6037 = vmatprep.subr.mxu0 0.0
        %6038 = vmatpush1.msra.mxu0 0.0
        %6039 = vmatprep.subr.mxu0 0.0
        %6040 = vmatpush1.msra.mxu0 0.0
        %6041 = vmatprep.subr.mxu0 0.0
        %6042 = vmatpush1.msra.mxu0 0.0
        %6043 = vmatprep.subr.mxu0 0.0
        %6044 = vmatpush1.msra.mxu0 0.0
        %6045 = vmatprep.subr.mxu0 0.0
        %6046 = vmatpush1.msra.mxu0 0.0
        %6047 = vmatprep.subr.mxu0 0.0
        %6048 = vmatpush1.msra.mxu0 0.0
        %6049 = vmatprep.subr.mxu0 0.0
        %6050 = vmatpush1.msra.mxu0 0.0
        %6051 = vmatprep.subr.mxu0 0.0
        %6052 = vmatpush1.msra.mxu0 0.0
        %6053 = vmatprep.subr.mxu0 0.0
        %6054 = vmatpush1.msra.mxu0 0.0
        %6055 = vmatprep.subr.mxu0 0.0
        %6056 = vmatpush1.msra.mxu0 0.0
        %6057 = vmatprep.subr.mxu0 0.0
        %6058 = vmatpush1.msra.mxu0 0.0
        %6059 = vmatprep.subr.mxu0 0.0
        %6060 = vmatpush1.msra.mxu0 0.0
        %6061 = vmatprep.subr.mxu0 0.0
        %6062 = vmatpush1.msra.mxu0 0.0
        %6063 = vmatprep.subr.mxu0 0.0
        %6064 = vmatpush1.msra.mxu0 0.0
        %6065 = vmatprep.subr.mxu0 0.0
        %6066 = vmatpush1.msra.mxu0 0.0
        %6067 = vmatprep.subr.mxu0 0.0
        %6068 = vmatpush1.msra.mxu0 0.0
        %6069 = vmatprep.subr.mxu0 0.0
        %6070 = vmatpush1.msra.mxu0 0.0
        %6071 = vmatprep.subr.mxu0 0.0
        %6072 = vmatpush1.msra.mxu0 0.0
        %6073 = vmatprep.subr.mxu0 0.0
        %6074 = vmatpush1.msra.mxu0 0.0
        %6075 = vmatprep.subr.mxu0 0.0
        %6076 = vmatpush1.msra.mxu0 0.0
        %6077 = vmatprep.mubr.f32.mxu0 0.0
        %v6078 = vand.u32 %v5679, 4294901760
        %v6079 = vsub.f32 %v5679, %v6078
        %v6080 = vand.u32 %v6079, 4294901760
        %6081 = vmatmul.mubr.f32.gmra.mrb[0].mxu0 %v6080
        %v6082 = vpop.f32.mrb[0].mxu0
        %v6083 = vadd.f32 %v5985, %v6082
        %v6084 = vpop.f32.mrb[0].mxu0
        %6085 = vmatprep.mubr.f32.mxu0 0.0
        %v6086 = vand.u32 %v5682, 4294901760
        %v6087 = vsub.f32 %v5682, %v6086
        %v6088 = vand.u32 %v6087, 4294901760
        %6089 = vmatmul.mubr.f32.gmra.mrb[0].mxu0 %v6088
        %v6090 = vpop.f32.mrb[0].mxu0
        %v6091 = vadd.f32 %v5992, %v6090
        %v6092 = vpop.f32.mrb[0].mxu0
        %6093 = vmatprep.mubr.f32.mxu0 0.0
        %v6094 = vand.u32 %v5685, 4294901760
        %v6095 = vsub.f32 %v5685, %v6094
        %v6096 = vand.u32 %v6095, 4294901760
        %6097 = vmatmul.mubr.f32.gmra.mrb[0].mxu0 %v6096
        %v6098 = vpop.f32.mrb[0].mxu0
        %v6099 = vadd.f32 %v5999, %v6098
        %v6100 = vpop.f32.mrb[0].mxu0
        %6101 = vmatprep.mubr.f32.mxu0 0.0
        %v6102 = vand.u32 %v5688, 4294901760
        %v6103 = vsub.f32 %v5688, %v6102
        %v6104 = vand.u32 %v6103, 4294901760
        %6105 = vmatmul.mubr.f32.gmra.mrb[0].mxu0 %v6104
        %v6106 = vpop.f32.mrb[0].mxu0
        %v6107 = vadd.f32 %v6006, %v6106
        %v6108 = vpop.f32.mrb[0].mxu0
        %6109 = vdwg.mxu0
        %6110 = vmatprep.subr.mxu0 0.0
        %v6111 = vand.u32 %v5644, 4294901760
        %v6112 = vsub.f32 %v5644, %v6111
        %v6113 = vand.u32 %v6112, 4294901760
        %6114 = vmatpush1.msra.mxu0 %v6113
        %6115 = vmatprep.subr.mxu0 0.0
        %v6116 = vand.u32 %v5645, 4294901760
        %v6117 = vsub.f32 %v5645, %v6116
        %v6118 = vand.u32 %v6117, 4294901760
        %6119 = vmatpush1.msra.mxu0 %v6118
        %6120 = vmatprep.subr.mxu0 0.0
        %v6121 = vand.u32 %v5646, 4294901760
        %v6122 = vsub.f32 %v5646, %v6121
        %v6123 = vand.u32 %v6122, 4294901760
        %6124 = vmatpush1.msra.mxu0 %v6123
        %6125 = vmatprep.subr.mxu0 0.0
        %v6126 = vand.u32 %v5647, 4294901760
        %v6127 = vsub.f32 %v5647, %v6126
        %v6128 = vand.u32 %v6127, 4294901760
        %6129 = vmatpush1.msra.mxu0 %v6128
        %6130 = vmatprep.subr.mxu0 0.0
        %6131 = vmatpush1.msra.mxu0 0.0
        %6132 = vmatprep.subr.mxu0 0.0
        %6133 = vmatpush1.msra.mxu0 0.0
        %6134 = vmatprep.subr.mxu0 0.0
        %6135 = vmatpush1.msra.mxu0 0.0
        %6136 = vmatprep.subr.mxu0 0.0
        %6137 = vmatpush1.msra.mxu0 0.0
        %6138 = vmatprep.subr.mxu0 0.0
        %6139 = vmatpush1.msra.mxu0 0.0
        %6140 = vmatprep.subr.mxu0 0.0
        %6141 = vmatpush1.msra.mxu0 0.0
        %6142 = vmatprep.subr.mxu0 0.0
        %6143 = vmatpush1.msra.mxu0 0.0
        %6144 = vmatprep.subr.mxu0 0.0
        %6145 = vmatpush1.msra.mxu0 0.0
        %6146 = vmatprep.subr.mxu0 0.0
        %6147 = vmatpush1.msra.mxu0 0.0
        %6148 = vmatprep.subr.mxu0 0.0
        %6149 = vmatpush1.msra.mxu0 0.0
        %6150 = vmatprep.subr.mxu0 0.0
        %6151 = vmatpush1.msra.mxu0 0.0
        %6152 = vmatprep.subr.mxu0 0.0
        %6153 = vmatpush1.msra.mxu0 0.0
        %6154 = vmatprep.subr.mxu0 0.0
        %6155 = vmatpush1.msra.mxu0 0.0
        %6156 = vmatprep.subr.mxu0 0.0
        %6157 = vmatpush1.msra.mxu0 0.0
        %6158 = vmatprep.subr.mxu0 0.0
        %6159 = vmatpush1.msra.mxu0 0.0
        %6160 = vmatprep.subr.mxu0 0.0
        %6161 = vmatpush1.msra.mxu0 0.0
        %6162 = vmatprep.subr.mxu0 0.0
        %6163 = vmatpush1.msra.mxu0 0.0
        %6164 = vmatprep.subr.mxu0 0.0
        %6165 = vmatpush1.msra.mxu0 0.0
        %6166 = vmatprep.subr.mxu0 0.0
        %6167 = vmatpush1.msra.mxu0 0.0
        %6168 = vmatprep.subr.mxu0 0.0
        %6169 = vmatpush1.msra.mxu0 0.0
        %6170 = vmatprep.subr.mxu0 0.0
        %6171 = vmatpush1.msra.mxu0 0.0
        %6172 = vmatprep.subr.mxu0 0.0
        %6173 = vmatpush1.msra.mxu0 0.0
        %6174 = vmatprep.subr.mxu0 0.0
        %6175 = vmatpush1.msra.mxu0 0.0
        %6176 = vmatprep.subr.mxu0 0.0
        %6177 = vmatpush1.msra.mxu0 0.0
        %6178 = vmatprep.subr.mxu0 0.0
        %6179 = vmatpush1.msra.mxu0 0.0
        %6180 = vmatprep.subr.mxu0 0.0
        %6181 = vmatpush1.msra.mxu0 0.0
        %6182 = vmatprep.subr.mxu0 0.0
        %6183 = vmatpush1.msra.mxu0 0.0
        %6184 = vmatprep.subr.mxu0 0.0
        %6185 = vmatpush1.msra.mxu0 0.0
        %6186 = vmatprep.mubr.f32.mxu0 0.0
        %v6187 = vand.u32 %v5679, 4294901760
        %6188 = vmatmul.mubr.f32.gmra.mrb[0].mxu0 %v6187
        %v6189 = vpop.f32.mrb[0].mxu0
        %v6190 = vadd.f32 %v6083, %v6189
        %v6191 = vpop.f32.mrb[0].mxu0
        %6192 = vmatprep.mubr.f32.mxu0 0.0
        %v6193 = vand.u32 %v5682, 4294901760
        %6194 = vmatmul.mubr.f32.gmra.mrb[0].mxu0 %v6193
        %v6195 = vpop.f32.mrb[0].mxu0
        %v6196 = vadd.f32 %v6091, %v6195
        %v6197 = vpop.f32.mrb[0].mxu0
        %6198 = vmatprep.mubr.f32.mxu0 0.0
        %v6199 = vand.u32 %v5685, 4294901760
        %6200 = vmatmul.mubr.f32.gmra.mrb[0].mxu0 %v6199
        %v6201 = vpop.f32.mrb[0].mxu0
        %v6202 = vadd.f32 %v6099, %v6201
        %v6203 = vpop.f32.mrb[0].mxu0
        %6204 = vmatprep.mubr.f32.mxu0 0.0
        %v6205 = vand.u32 %v5688, 4294901760
        %6206 = vmatmul.mubr.f32.gmra.mrb[0].mxu0 %v6205
        %v6207 = vpop.f32.mrb[0].mxu0
        %v6208 = vadd.f32 %v6107, %v6207
        %v6209 = vpop.f32.mrb[0].mxu0
        %6210 = vdwg.mxu0
        %6211 = vmatprep.subr.mxu0 0.0
        %v6212 = vand.u32 %v5644, 4294901760
        %6213 = vmatpush1.msra.mxu0 %v6212
        %6214 = vmatprep.subr.mxu0 0.0
        %v6215 = vand.u32 %v5645, 4294901760
        %6216 = vmatpush1.msra.mxu0 %v6215
        %6217 = vmatprep.subr.mxu0 0.0
        %v6218 = vand.u32 %v5646, 4294901760
        %6219 = vmatpush1.msra.mxu0 %v6218
        %6220 = vmatprep.subr.mxu0 0.0
        %v6221 = vand.u32 %v5647, 4294901760
        %6222 = vmatpush1.msra.mxu0 %v6221
        %6223 = vmatprep.subr.mxu0 0.0
        %6224 = vmatpush1.msra.mxu0 0.0
        %6225 = vmatprep.subr.mxu0 0.0
        %6226 = vmatpush1.msra.mxu0 0.0
        %6227 = vmatprep.subr.mxu0 0.0
        %6228 = vmatpush1.msra.mxu0 0.0
        %6229 = vmatprep.subr.mxu0 0.0
        %6230 = vmatpush1.msra.mxu0 0.0
        %6231 = vmatprep.subr.mxu0 0.0
        %6232 = vmatpush1.msra.mxu0 0.0
        %6233 = vmatprep.subr.mxu0 0.0
        %6234 = vmatpush1.msra.mxu0 0.0
        %6235 = vmatprep.subr.mxu0 0.0
        %6236 = vmatpush1.msra.mxu0 0.0
        %6237 = vmatprep.subr.mxu0 0.0
        %6238 = vmatpush1.msra.mxu0 0.0
        %6239 = vmatprep.subr.mxu0 0.0
        %6240 = vmatpush1.msra.mxu0 0.0
        %6241 = vmatprep.subr.mxu0 0.0
        %6242 = vmatpush1.msra.mxu0 0.0
        %6243 = vmatprep.subr.mxu0 0.0
        %6244 = vmatpush1.msra.mxu0 0.0
        %6245 = vmatprep.subr.mxu0 0.0
        %6246 = vmatpush1.msra.mxu0 0.0
        %6247 = vmatprep.subr.mxu0 0.0
        %6248 = vmatpush1.msra.mxu0 0.0
        %6249 = vmatprep.subr.mxu0 0.0
        %6250 = vmatpush1.msra.mxu0 0.0
        %6251 = vmatprep.subr.mxu0 0.0
        %6252 = vmatpush1.msra.mxu0 0.0
        %6253 = vmatprep.subr.mxu0 0.0
        %6254 = vmatpush1.msra.mxu0 0.0
        %6255 = vmatprep.subr.mxu0 0.0
        %6256 = vmatpush1.msra.mxu0 0.0
        %6257 = vmatprep.subr.mxu0 0.0
        %6258 = vmatpush1.msra.mxu0 0.0
        %6259 = vmatprep.subr.mxu0 0.0
        %6260 = vmatpush1.msra.mxu0 0.0
        %6261 = vmatprep.subr.mxu0 0.0
        %6262 = vmatpush1.msra.mxu0 0.0
        %6263 = vmatprep.subr.mxu0 0.0
        %6264 = vmatpush1.msra.mxu0 0.0
        %6265 = vmatprep.subr.mxu0 0.0
        %6266 = vmatpush1.msra.mxu0 0.0
        %6267 = vmatprep.subr.mxu0 0.0
        %6268 = vmatpush1.msra.mxu0 0.0
        %6269 = vmatprep.subr.mxu0 0.0
        %6270 = vmatpush1.msra.mxu0 0.0
        %6271 = vmatprep.subr.mxu0 0.0
        %6272 = vmatpush1.msra.mxu0 0.0
        %6273 = vmatprep.subr.mxu0 0.0
        %6274 = vmatpush1.msra.mxu0 0.0
        %6275 = vmatprep.subr.mxu0 0.0
        %6276 = vmatpush1.msra.mxu0 0.0
        %6277 = vmatprep.subr.mxu0 0.0
        %6278 = vmatpush1.msra.mxu0 0.0
        %6279 = vmatprep.mubr.f32.mxu0 0.0
        %v6280 = vand.u32 %v5679, 4294901760
        %6281 = vmatmul.mubr.f32.gmra.mrb[0].mxu0 %v6280
        %v6282 = vpop.f32.mrb[0].mxu0
        %v6283 = vadd.f32 %v6190, %v6282
        %v6284 = vpop.f32.mrb[0].mxu0
        %6285 = vmatprep.mubr.f32.mxu0 0.0
        %v6286 = vand.u32 %v5682, 4294901760
        %6287 = vmatmul.mubr.f32.gmra.mrb[0].mxu0 %v6286
        %v6288 = vpop.f32.mrb[0].mxu0
        %v6289 = vadd.f32 %v6196, %v6288
        %v6290 = vpop.f32.mrb[0].mxu0
        %6291 = vmatprep.mubr.f32.mxu0 0.0
        %v6292 = vand.u32 %v5685, 4294901760
        %6293 = vmatmul.mubr.f32.gmra.mrb[0].mxu0 %v6292
        %v6294 = vpop.f32.mrb[0].mxu0
        %v6295 = vadd.f32 %v6202, %v6294
        %v6296 = vpop.f32.mrb[0].mxu0
        %6297 = vmatprep.mubr.f32.mxu0 0.0
        %v6298 = vand.u32 %v5688, 4294901760
        %6299 = vmatmul.mubr.f32.gmra.mrb[0].mxu0 %v6298
        %v6300 = vpop.f32.mrb[0].mxu0
        %v6301 = vadd.f32 %v6208, %v6300
        %v6302 = vpop.f32.mrb[0].mxu0
        %6303 = vdwg.mxu0
        %v6304 = vmul.f32 %v6283, 100.0
        %v6305 = vmul.f32 %v6289, 100.0
        %v6306 = vmul.f32 %v6295, 100.0
        %v6307 = vmul.f32 %v6301, 100.0
        %v6308 = vmin.f32 %v6304, 20.0
        %v6309 = vmin.f32 %v6305, 20.0
        %v6310 = vmin.f32 %v6306, 20.0
        %v6311 = vmin.f32 %v6307, 20.0
        %v6312 = vmul.f32 %v6308, 1.442695
        %v6313 = vpow.pop %v6312
        %v6314 = vmul.f32 %v6309, 1.442695
        %v6315 = vpow.pop %v6314
        %v6316 = vmul.f32 %v6310, 1.442695
        %v6317 = vpow.pop %v6316
        %v6318 = vmul.f32 %v6311, 1.442695
        %v6319 = vpow.pop %v6318
        %v6320 = vadd.f32 %v6313, 1.0
        %v6321 = vadd.f32 %v6315, 1.0
        %v6322 = vadd.f32 %v6317, 1.0
        %v6323 = vadd.f32 %v6319, 1.0
        %v6324 = vlog2.pop %v6320
        %v6325 = vmul.f32 %v6324, 0.6931472
        %v6326 = vlog2.pop %v6321
        %v6327 = vmul.f32 %v6326, 0.6931472
        %v6328 = vlog2.pop %v6322
        %v6329 = vmul.f32 %v6328, 0.6931472
        %v6330 = vlog2.pop %v6323
        %v6331 = vmul.f32 %v6330, 0.6931472
        %v6332 = vmul.f32 %v6325, 0.01
        %v6333 = vmul.f32 %v6327, 0.01
        %v6334 = vmul.f32 %v6329, 0.01
        %v6335 = vmul.f32 %v6331, 0.01
        %v6336 = vmax.f32 %v6332, %v6283
        %v6337 = vmax.f32 %v6333, %v6289
        %v6338 = vmax.f32 %v6334, %v6295
        %v6339 = vmax.f32 %v6335, %v6301
        %v6340 = vld [vmem:[%s4] sm:$0xff]
        %v6341 = vld [vmem:[%s4 + $0x8] sm:$0xff]
        %v6342 = vld [vmem:[%s4 + $0x10] sm:$0xff]
        %v6343 = vld [vmem:[%s4 + $0x18] sm:$0xff]
        %v6344 = vld [vmem:[%s4 + $0x20] sm:$0xff]
        %v6345 = vld [vmem:[%s5] sm:$0xff]
        %v6346 = vld [vmem:[%s5 + $0x8] sm:$0xff]
        %v6347 = vld [vmem:[%s5 + $0x10] sm:$0xff]
        %v6348 = vld [vmem:[%s5 + $0x18] sm:$0xff]
        %v6349 = vld [vmem:[%s5 + $0x20] sm:$0xff]
        %6351 = vset.pattern.permute.xlu0 0
        %6352 = vperm.xlu0 %6351, %v6345
        %v6353 = vpop.permute.xlu0 %6352
        %6356 = vset.pattern.permute.xlu0 0
        %6357 = vperm.xlu0 %6356, %v6346
        %v6358 = vpop.permute.xlu0 %6357
        %6361 = vset.pattern.permute.xlu0 0
        %6362 = vperm.xlu0 %6361, %v6347
        %v6363 = vpop.permute.xlu0 %6362
        %6366 = vset.pattern.permute.xlu0 0
        %6367 = vperm.xlu0 %6366, %v6348
        %v6368 = vpop.permute.xlu0 %6367
        %6371 = vset.pattern.permute.xlu0 0
        %6372 = vperm.xlu0 %6371, %v6349
        %v6373 = vpop.permute.xlu0 %6372
        %v6376 = vsel %vm929, %v6340, 0
        %v6379 = vsel %vm929, %v6341, 0
        %v6382 = vsel %vm929, %v6342, 0
        %v6385 = vsel %vm929, %v6343, 0
        %v6388 = vsel %vm929, %v6344, 0
        %6390 = vmatprep.subr.mxu0 0.0
        %v6391 = vand.u32 %v6336, 4294901760
        %6392 = vmatpush1.msra.mxu0 %v6391
        %6393 = vmatprep.subr.mxu0 0.0
        %v6394 = vand.u32 %v6337, 4294901760
        %6395 = vmatpush1.msra.mxu0 %v6394
        %6396 = vmatprep.subr.mxu0 0.0
        %v6397 = vand.u32 %v6338, 4294901760
        %6398 = vmatpush1.msra.mxu0 %v6397
        %6399 = vmatprep.subr.mxu0 0.0
        %v6400 = vand.u32 %v6339, 4294901760
        %6401 = vmatpush1.msra.mxu0 %v6400
        %6402 = vmatprep.subr.mxu0 0.0
        %6403 = vmatpush1.msra.mxu0 0.0
        %6404 = vmatprep.subr.mxu0 0.0
        %6405 = vmatpush1.msra.mxu0 0.0
        %6406 = vmatprep.subr.mxu0 0.0
        %6407 = vmatpush1.msra.mxu0 0.0
        %6408 = vmatprep.subr.mxu0 0.0
        %6409 = vmatpush1.msra.mxu0 0.0
        %6410 = vmatprep.subr.mxu0 0.0
        %6411 = vmatpush1.msra.mxu0 0.0
        %6412 = vmatprep.subr.mxu0 0.0
        %6413 = vmatpush1.msra.mxu0 0.0
        %6414 = vmatprep.subr.mxu0 0.0
        %6415 = vmatpush1.msra.mxu0 0.0
        %6416 = vmatprep.subr.mxu0 0.0
        %6417 = vmatpush1.msra.mxu0 0.0
        %6418 = vmatprep.subr.mxu0 0.0
        %6419 = vmatpush1.msra.mxu0 0.0
        %6420 = vmatprep.subr.mxu0 0.0
        %6421 = vmatpush1.msra.mxu0 0.0
        %6422 = vmatprep.subr.mxu0 0.0
        %6423 = vmatpush1.msra.mxu0 0.0
        %6424 = vmatprep.subr.mxu0 0.0
        %6425 = vmatpush1.msra.mxu0 0.0
        %6426 = vmatprep.subr.mxu0 0.0
        %6427 = vmatpush1.msra.mxu0 0.0
        %6428 = vmatprep.subr.mxu0 0.0
        %6429 = vmatpush1.msra.mxu0 0.0
        %6430 = vmatprep.subr.mxu0 0.0
        %6431 = vmatpush1.msra.mxu0 0.0
        %6432 = vmatprep.subr.mxu0 0.0
        %6433 = vmatpush1.msra.mxu0 0.0
        %6434 = vmatprep.subr.mxu0 0.0
        %6435 = vmatpush1.msra.mxu0 0.0
        %6436 = vmatprep.subr.mxu0 0.0
        %6437 = vmatpush1.msra.mxu0 0.0
        %6438 = vmatprep.subr.mxu0 0.0
        %6439 = vmatpush1.msra.mxu0 0.0
        %6440 = vmatprep.subr.mxu0 0.0
        %6441 = vmatpush1.msra.mxu0 0.0
        %6442 = vmatprep.subr.mxu0 0.0
        %6443 = vmatpush1.msra.mxu0 0.0
        %6444 = vmatprep.subr.mxu0 0.0
        %6445 = vmatpush1.msra.mxu0 0.0
        %6446 = vmatprep.subr.mxu0 0.0
        %6447 = vmatpush1.msra.mxu0 0.0
        %6448 = vmatprep.subr.mxu0 0.0
        %6449 = vmatpush1.msra.mxu0 0.0
        %6450 = vmatprep.subr.mxu0 0.0
        %6451 = vmatpush1.msra.mxu0 0.0
        %6452 = vmatprep.subr.mxu0 0.0
        %6453 = vmatpush1.msra.mxu0 0.0
        %6454 = vmatprep.subr.mxu0 0.0
        %6455 = vmatpush1.msra.mxu0 0.0
        %6456 = vmatprep.subr.mxu0 0.0
        %6457 = vmatpush1.msra.mxu0 0.0
        %6458 = vmatprep.mubr.f32.mxu0 0.0
        %v6459 = vand.u32 %v6376, 4294901760
        %v6460 = vsub.f32 %v6376, %v6459
        %v6461 = vand.u32 %v6460, 4294901760
        %v6462 = vsub.f32 %v6460, %v6461
        %v6463 = vand.u32 %v6462, 4294901760
        %6464 = vmatmul.mubr.f32.gmra.mrb[0].mxu0 %v6463
        %v6465 = vpop.f32.mrb[0].mxu0
        %v6466 = vadd.f32 %v6353, %v6465
        %v6467 = vpop.f32.mrb[0].mxu0
        %6468 = vmatprep.mubr.f32.mxu0 0.0
        %v6469 = vand.u32 %v6379, 4294901760
        %v6470 = vsub.f32 %v6379, %v6469
        %v6471 = vand.u32 %v6470, 4294901760
        %v6472 = vsub.f32 %v6470, %v6471
        %v6473 = vand.u32 %v6472, 4294901760
        %6474 = vmatmul.mubr.f32.gmra.mrb[0].mxu0 %v6473
        %v6475 = vpop.f32.mrb[0].mxu0
        %v6476 = vadd.f32 %v6358, %v6475
        %v6477 = vpop.f32.mrb[0].mxu0
        %6478 = vmatprep.mubr.f32.mxu0 0.0
        %v6479 = vand.u32 %v6382, 4294901760
        %v6480 = vsub.f32 %v6382, %v6479
        %v6481 = vand.u32 %v6480, 4294901760
        %v6482 = vsub.f32 %v6480, %v6481
        %v6483 = vand.u32 %v6482, 4294901760
        %6484 = vmatmul.mubr.f32.gmra.mrb[0].mxu0 %v6483
        %v6485 = vpop.f32.mrb[0].mxu0
        %v6486 = vadd.f32 %v6363, %v6485
        %v6487 = vpop.f32.mrb[0].mxu0
        %6488 = vmatprep.mubr.f32.mxu0 0.0
        %v6489 = vand.u32 %v6385, 4294901760
        %v6490 = vsub.f32 %v6385, %v6489
        %v6491 = vand.u32 %v6490, 4294901760
        %v6492 = vsub.f32 %v6490, %v6491
        %v6493 = vand.u32 %v6492, 4294901760
        %6494 = vmatmul.mubr.f32.gmra.mrb[0].mxu0 %v6493
        %v6495 = vpop.f32.mrb[0].mxu0
        %v6496 = vadd.f32 %v6368, %v6495
        %v6497 = vpop.f32.mrb[0].mxu0
        %6498 = vmatprep.mubr.f32.mxu0 0.0
        %v6499 = vand.u32 %v6388, 4294901760
        %v6500 = vsub.f32 %v6388, %v6499
        %v6501 = vand.u32 %v6500, 4294901760
        %v6502 = vsub.f32 %v6500, %v6501
        %v6503 = vand.u32 %v6502, 4294901760
        %6504 = vmatmul.mubr.f32.gmra.mrb[0].mxu0 %v6503
        %v6505 = vpop.f32.mrb[0].mxu0
        %v6506 = vadd.f32 %v6373, %v6505
        %v6507 = vpop.f32.mrb[0].mxu0
        %6508 = vdwg.mxu0
        %6509 = vmatprep.subr.mxu0 0.0
        %v6510 = vand.u32 %v6336, 4294901760
        %v6511 = vsub.f32 %v6336, %v6510
        %v6512 = vand.u32 %v6511, 4294901760
        %v6513 = vsub.f32 %v6511, %v6512
        %v6514 = vand.u32 %v6513, 4294901760
        %6515 = vmatpush1.msra.mxu0 %v6514
        %6516 = vmatprep.subr.mxu0 0.0
        %v6517 = vand.u32 %v6337, 4294901760
        %v6518 = vsub.f32 %v6337, %v6517
        %v6519 = vand.u32 %v6518, 4294901760
        %v6520 = vsub.f32 %v6518, %v6519
        %v6521 = vand.u32 %v6520, 4294901760
        %6522 = vmatpush1.msra.mxu0 %v6521
        %6523 = vmatprep.subr.mxu0 0.0
        %v6524 = vand.u32 %v6338, 4294901760
        %v6525 = vsub.f32 %v6338, %v6524
        %v6526 = vand.u32 %v6525, 4294901760
        %v6527 = vsub.f32 %v6525, %v6526
        %v6528 = vand.u32 %v6527, 4294901760
        %6529 = vmatpush1.msra.mxu0 %v6528
        %6530 = vmatprep.subr.mxu0 0.0
        %v6531 = vand.u32 %v6339, 4294901760
        %v6532 = vsub.f32 %v6339, %v6531
        %v6533 = vand.u32 %v6532, 4294901760
        %v6534 = vsub.f32 %v6532, %v6533
        %v6535 = vand.u32 %v6534, 4294901760
        %6536 = vmatpush1.msra.mxu0 %v6535
        %6537 = vmatprep.subr.mxu0 0.0
        %6538 = vmatpush1.msra.mxu0 0.0
        %6539 = vmatprep.subr.mxu0 0.0
        %6540 = vmatpush1.msra.mxu0 0.0
        %6541 = vmatprep.subr.mxu0 0.0
        %6542 = vmatpush1.msra.mxu0 0.0
        %6543 = vmatprep.subr.mxu0 0.0
        %6544 = vmatpush1.msra.mxu0 0.0
        %6545 = vmatprep.subr.mxu0 0.0
        %6546 = vmatpush1.msra.mxu0 0.0
        %6547 = vmatprep.subr.mxu0 0.0
        %6548 = vmatpush1.msra.mxu0 0.0
        %6549 = vmatprep.subr.mxu0 0.0
        %6550 = vmatpush1.msra.mxu0 0.0
        %6551 = vmatprep.subr.mxu0 0.0
        %6552 = vmatpush1.msra.mxu0 0.0
        %6553 = vmatprep.subr.mxu0 0.0
        %6554 = vmatpush1.msra.mxu0 0.0
        %6555 = vmatprep.subr.mxu0 0.0
        %6556 = vmatpush1.msra.mxu0 0.0
        %6557 = vmatprep.subr.mxu0 0.0
        %6558 = vmatpush1.msra.mxu0 0.0
        %6559 = vmatprep.subr.mxu0 0.0
        %6560 = vmatpush1.msra.mxu0 0.0
        %6561 = vmatprep.subr.mxu0 0.0
        %6562 = vmatpush1.msra.mxu0 0.0
        %6563 = vmatprep.subr.mxu0 0.0
        %6564 = vmatpush1.msra.mxu0 0.0
        %6565 = vmatprep.subr.mxu0 0.0
        %6566 = vmatpush1.msra.mxu0 0.0
        %6567 = vmatprep.subr.mxu0 0.0
        %6568 = vmatpush1.msra.mxu0 0.0
        %6569 = vmatprep.subr.mxu0 0.0
        %6570 = vmatpush1.msra.mxu0 0.0
        %6571 = vmatprep.subr.mxu0 0.0
        %6572 = vmatpush1.msra.mxu0 0.0
        %6573 = vmatprep.subr.mxu0 0.0
        %6574 = vmatpush1.msra.mxu0 0.0
        %6575 = vmatprep.subr.mxu0 0.0
        %6576 = vmatpush1.msra.mxu0 0.0
        %6577 = vmatprep.subr.mxu0 0.0
        %6578 = vmatpush1.msra.mxu0 0.0
        %6579 = vmatprep.subr.mxu0 0.0
        %6580 = vmatpush1.msra.mxu0 0.0
        %6581 = vmatprep.subr.mxu0 0.0
        %6582 = vmatpush1.msra.mxu0 0.0
        %6583 = vmatprep.subr.mxu0 0.0
        %6584 = vmatpush1.msra.mxu0 0.0
        %6585 = vmatprep.subr.mxu0 0.0
        %6586 = vmatpush1.msra.mxu0 0.0
        %6587 = vmatprep.subr.mxu0 0.0
        %6588 = vmatpush1.msra.mxu0 0.0
        %6589 = vmatprep.subr.mxu0 0.0
        %6590 = vmatpush1.msra.mxu0 0.0
        %6591 = vmatprep.subr.mxu0 0.0
        %6592 = vmatpush1.msra.mxu0 0.0
        %6593 = vmatprep.mubr.f32.mxu0 0.0
        %v6594 = vand.u32 %v6376, 4294901760
        %6595 = vmatmul.mubr.f32.gmra.mrb[0].mxu0 %v6594
        %v6596 = vpop.f32.mrb[0].mxu0
        %v6597 = vadd.f32 %v6466, %v6596
        %v6598 = vpop.f32.mrb[0].mxu0
        %6599 = vmatprep.mubr.f32.mxu0 0.0
        %v6600 = vand.u32 %v6379, 4294901760
        %6601 = vmatmul.mubr.f32.gmra.mrb[0].mxu0 %v6600
        %v6602 = vpop.f32.mrb[0].mxu0
        %v6603 = vadd.f32 %v6476, %v6602
        %v6604 = vpop.f32.mrb[0].mxu0
        %6605 = vmatprep.mubr.f32.mxu0 0.0
        %v6606 = vand.u32 %v6382, 4294901760
        %6607 = vmatmul.mubr.f32.gmra.mrb[0].mxu0 %v6606
        %v6608 = vpop.f32.mrb[0].mxu0
        %v6609 = vadd.f32 %v6486, %v6608
        %v6610 = vpop.f32.mrb[0].mxu0
        %6611 = vmatprep.mubr.f32.mxu0 0.0
        %v6612 = vand.u32 %v6385, 4294901760
        %6613 = vmatmul.mubr.f32.gmra.mrb[0].mxu0 %v6612
        %v6614 = vpop.f32.mrb[0].mxu0
        %v6615 = vadd.f32 %v6496, %v6614
        %v6616 = vpop.f32.mrb[0].mxu0
        %6617 = vmatprep.mubr.f32.mxu0 0.0
        %v6618 = vand.u32 %v6388, 4294901760
        %6619 = vmatmul.mubr.f32.gmra.mrb[0].mxu0 %v6618
        %v6620 = vpop.f32.mrb[0].mxu0
        %v6621 = vadd.f32 %v6506, %v6620
        %v6622 = vpop.f32.mrb[0].mxu0
        %6623 = vdwg.mxu0
        %6624 = vmatprep.subr.mxu0 0.0
        %v6625 = vand.u32 %v6336, 4294901760
        %v6626 = vsub.f32 %v6336, %v6625
        %6627 = vmatpush1.msra.mxu0 %v6626
        %6628 = vmatprep.subr.mxu0 0.0
        %v6629 = vand.u32 %v6337, 4294901760
        %v6630 = vsub.f32 %v6337, %v6629
        %6631 = vmatpush1.msra.mxu0 %v6630
        %6632 = vmatprep.subr.mxu0 0.0
        %v6633 = vand.u32 %v6338, 4294901760
        %v6634 = vsub.f32 %v6338, %v6633
        %6635 = vmatpush1.msra.mxu0 %v6634
        %6636 = vmatprep.subr.mxu0 0.0
        %v6637 = vand.u32 %v6339, 4294901760
        %v6638 = vsub.f32 %v6339, %v6637
        %6639 = vmatpush1.msra.mxu0 %v6638
        %6640 = vmatprep.subr.mxu0 0.0
        %6641 = vmatpush1.msra.mxu0 0.0
        %6642 = vmatprep.subr.mxu0 0.0
        %6643 = vmatpush1.msra.mxu0 0.0
        %6644 = vmatprep.subr.mxu0 0.0
        %6645 = vmatpush1.msra.mxu0 0.0
        %6646 = vmatprep.subr.mxu0 0.0
        %6647 = vmatpush1.msra.mxu0 0.0
        %6648 = vmatprep.subr.mxu0 0.0
        %6649 = vmatpush1.msra.mxu0 0.0
        %6650 = vmatprep.subr.mxu0 0.0
        %6651 = vmatpush1.msra.mxu0 0.0
        %6652 = vmatprep.subr.mxu0 0.0
        %6653 = vmatpush1.msra.mxu0 0.0
        %6654 = vmatprep.subr.mxu0 0.0
        %6655 = vmatpush1.msra.mxu0 0.0
        %6656 = vmatprep.subr.mxu0 0.0
        %6657 = vmatpush1.msra.mxu0 0.0
        %6658 = vmatprep.subr.mxu0 0.0
        %6659 = vmatpush1.msra.mxu0 0.0
        %6660 = vmatprep.subr.mxu0 0.0
        %6661 = vmatpush1.msra.mxu0 0.0
        %6662 = vmatprep.subr.mxu0 0.0
        %6663 = vmatpush1.msra.mxu0 0.0
        %6664 = vmatprep.subr.mxu0 0.0
        %6665 = vmatpush1.msra.mxu0 0.0
        %6666 = vmatprep.subr.mxu0 0.0
        %6667 = vmatpush1.msra.mxu0 0.0
        %6668 = vmatprep.subr.mxu0 0.0
        %6669 = vmatpush1.msra.mxu0 0.0
        %6670 = vmatprep.subr.mxu0 0.0
        %6671 = vmatpush1.msra.mxu0 0.0
        %6672 = vmatprep.subr.mxu0 0.0
        %6673 = vmatpush1.msra.mxu0 0.0
        %6674 = vmatprep.subr.mxu0 0.0
        %6675 = vmatpush1.msra.mxu0 0.0
        %6676 = vmatprep.subr.mxu0 0.0
        %6677 = vmatpush1.msra.mxu0 0.0
        %6678 = vmatprep.subr.mxu0 0.0
        %6679 = vmatpush1.msra.mxu0 0.0
        %6680 = vmatprep.subr.mxu0 0.0
        %6681 = vmatpush1.msra.mxu0 0.0
        %6682 = vmatprep.subr.mxu0 0.0
        %6683 = vmatpush1.msra.mxu0 0.0
        %6684 = vmatprep.subr.mxu0 0.0
        %6685 = vmatpush1.msra.mxu0 0.0
        %6686 = vmatprep.subr.mxu0 0.0
        %6687 = vmatpush1.msra.mxu0 0.0
        %6688 = vmatprep.subr.mxu0 0.0
        %6689 = vmatpush1.msra.mxu0 0.0
        %6690 = vmatprep.subr.mxu0 0.0
        %6691 = vmatpush1.msra.mxu0 0.0
        %6692 = vmatprep.subr.mxu0 0.0
        %6693 = vmatpush1.msra.mxu0 0.0
        %6694 = vmatprep.subr.mxu0 0.0
        %6695 = vmatpush1.msra.mxu0 0.0
        %6696 = vmatprep.mubr.f32.mxu0 0.0
        %v6697 = vand.u32 %v6376, 4294901760
        %v6698 = vsub.f32 %v6376, %v6697
        %6699 = vmatmul.mubr.f32.gmra.mrb[0].mxu0 %v6698
        %v6700 = vpop.f32.mrb[0].mxu0
        %v6701 = vadd.f32 %v6597, %v6700
        %v6702 = vpop.f32.mrb[0].mxu0
        %6703 = vmatprep.mubr.f32.mxu0 0.0
        %v6704 = vand.u32 %v6379, 4294901760
        %v6705 = vsub.f32 %v6379, %v6704
        %6706 = vmatmul.mubr.f32.gmra.mrb[0].mxu0 %v6705
        %v6707 = vpop.f32.mrb[0].mxu0
        %v6708 = vadd.f32 %v6603, %v6707
        %v6709 = vpop.f32.mrb[0].mxu0
        %6710 = vmatprep.mubr.f32.mxu0 0.0
        %v6711 = vand.u32 %v6382, 4294901760
        %v6712 = vsub.f32 %v6382, %v6711
        %6713 = vmatmul.mubr.f32.gmra.mrb[0].mxu0 %v6712
        %v6714 = vpop.f32.mrb[0].mxu0
        %v6715 = vadd.f32 %v6609, %v6714
        %v6716 = vpop.f32.mrb[0].mxu0
        %6717 = vmatprep.mubr.f32.mxu0 0.0
        %v6718 = vand.u32 %v6385, 4294901760
        %v6719 = vsub.f32 %v6385, %v6718
        %6720 = vmatmul.mubr.f32.gmra.mrb[0].mxu0 %v6719
        %v6721 = vpop.f32.mrb[0].mxu0
        %v6722 = vadd.f32 %v6615, %v6721
        %v6723 = vpop.f32.mrb[0].mxu0
        %6724 = vmatprep.mubr.f32.mxu0 0.0
        %v6725 = vand.u32 %v6388, 4294901760
        %v6726 = vsub.f32 %v6388, %v6725
        %6727 = vmatmul.mubr.f32.gmra.mrb[0].mxu0 %v6726
        %v6728 = vpop.f32.mrb[0].mxu0
        %v6729 = vadd.f32 %v6621, %v6728
        %v6730 = vpop.f32.mrb[0].mxu0
        %6731 = vdwg.mxu0
        %6732 = vmatprep.subr.mxu0 0.0
        %v6733 = vand.u32 %v6336, 4294901760
        %6734 = vmatpush1.msra.mxu0 %v6733
        %6735 = vmatprep.subr.mxu0 0.0
        %v6736 = vand.u32 %v6337, 4294901760
        %6737 = vmatpush1.msra.mxu0 %v6736
        %6738 = vmatprep.subr.mxu0 0.0
        %v6739 = vand.u32 %v6338, 4294901760
        %6740 = vmatpush1.msra.mxu0 %v6739
        %6741 = vmatprep.subr.mxu0 0.0
        %v6742 = vand.u32 %v6339, 4294901760
        %6743 = vmatpush1.msra.mxu0 %v6742
        %6744 = vmatprep.subr.mxu0 0.0
        %6745 = vmatpush1.msra.mxu0 0.0
        %6746 = vmatprep.subr.mxu0 0.0
        %6747 = vmatpush1.msra.mxu0 0.0
        %6748 = vmatprep.subr.mxu0 0.0
        %6749 = vmatpush1.msra.mxu0 0.0
        %6750 = vmatprep.subr.mxu0 0.0
        %6751 = vmatpush1.msra.mxu0 0.0
        %6752 = vmatprep.subr.mxu0 0.0
        %6753 = vmatpush1.msra.mxu0 0.0
        %6754 = vmatprep.subr.mxu0 0.0
        %6755 = vmatpush1.msra.mxu0 0.0
        %6756 = vmatprep.subr.mxu0 0.0
        %6757 = vmatpush1.msra.mxu0 0.0
        %6758 = vmatprep.subr.mxu0 0.0
        %6759 = vmatpush1.msra.mxu0 0.0
        %6760 = vmatprep.subr.mxu0 0.0
        %6761 = vmatpush1.msra.mxu0 0.0
        %6762 = vmatprep.subr.mxu0 0.0
        %6763 = vmatpush1.msra.mxu0 0.0
        %6764 = vmatprep.subr.mxu0 0.0
        %6765 = vmatpush1.msra.mxu0 0.0
        %6766 = vmatprep.subr.mxu0 0.0
        %6767 = vmatpush1.msra.mxu0 0.0
        %6768 = vmatprep.subr.mxu0 0.0
        %6769 = vmatpush1.msra.mxu0 0.0
        %6770 = vmatprep.subr.mxu0 0.0
        %6771 = vmatpush1.msra.mxu0 0.0
        %6772 = vmatprep.subr.mxu0 0.0
        %6773 = vmatpush1.msra.mxu0 0.0
        %6774 = vmatprep.subr.mxu0 0.0
        %6775 = vmatpush1.msra.mxu0 0.0
        %6776 = vmatprep.subr.mxu0 0.0
        %6777 = vmatpush1.msra.mxu0 0.0
        %6778 = vmatprep.subr.mxu0 0.0
        %6779 = vmatpush1.msra.mxu0 0.0
        %6780 = vmatprep.subr.mxu0 0.0
        %6781 = vmatpush1.msra.mxu0 0.0
        %6782 = vmatprep.subr.mxu0 0.0
        %6783 = vmatpush1.msra.mxu0 0.0
        %6784 = vmatprep.subr.mxu0 0.0
        %6785 = vmatpush1.msra.mxu0 0.0
        %6786 = vmatprep.subr.mxu0 0.0
        %6787 = vmatpush1.msra.mxu0 0.0
        %6788 = vmatprep.subr.mxu0 0.0
        %6789 = vmatpush1.msra.mxu0 0.0
        %6790 = vmatprep.subr.mxu0 0.0
        %6791 = vmatpush1.msra.mxu0 0.0
        %6792 = vmatprep.subr.mxu0 0.0
        %6793 = vmatpush1.msra.mxu0 0.0
        %6794 = vmatprep.subr.mxu0 0.0
        %6795 = vmatpush1.msra.mxu0 0.0
        %6796 = vmatprep.subr.mxu0 0.0
        %6797 = vmatpush1.msra.mxu0 0.0
        %6798 = vmatprep.subr.mxu0 0.0
        %6799 = vmatpush1.msra.mxu0 0.0
        %6800 = vmatprep.mubr.f32.mxu0 0.0
        %v6801 = vand.u32 %v6376, 4294901760
        %v6802 = vsub.f32 %v6376, %v6801
        %v6803 = vand.u32 %v6802, 4294901760
        %6804 = vmatmul.mubr.f32.gmra.mrb[0].mxu0 %v6803
        %v6805 = vpop.f32.mrb[0].mxu0
        %v6806 = vadd.f32 %v6701, %v6805
        %v6807 = vpop.f32.mrb[0].mxu0
        %6808 = vmatprep.mubr.f32.mxu0 0.0
        %v6809 = vand.u32 %v6379, 4294901760
        %v6810 = vsub.f32 %v6379, %v6809
        %v6811 = vand.u32 %v6810, 4294901760
        %6812 = vmatmul.mubr.f32.gmra.mrb[0].mxu0 %v6811
        %v6813 = vpop.f32.mrb[0].mxu0
        %v6814 = vadd.f32 %v6708, %v6813
        %v6815 = vpop.f32.mrb[0].mxu0
        %6816 = vmatprep.mubr.f32.mxu0 0.0
        %v6817 = vand.u32 %v6382, 4294901760
        %v6818 = vsub.f32 %v6382, %v6817
        %v6819 = vand.u32 %v6818, 4294901760
        %6820 = vmatmul.mubr.f32.gmra.mrb[0].mxu0 %v6819
        %v6821 = vpop.f32.mrb[0].mxu0
        %v6822 = vadd.f32 %v6715, %v6821
        %v6823 = vpop.f32.mrb[0].mxu0
        %6824 = vmatprep.mubr.f32.mxu0 0.0
        %v6825 = vand.u32 %v6385, 4294901760
        %v6826 = vsub.f32 %v6385, %v6825
        %v6827 = vand.u32 %v6826, 4294901760
        %6828 = vmatmul.mubr.f32.gmra.mrb[0].mxu0 %v6827
        %v6829 = vpop.f32.mrb[0].mxu0
        %v6830 = vadd.f32 %v6722, %v6829
        %v6831 = vpop.f32.mrb[0].mxu0
        %6832 = vmatprep.mubr.f32.mxu0 0.0
        %v6833 = vand.u32 %v6388, 4294901760
        %v6834 = vsub.f32 %v6388, %v6833
        %v6835 = vand.u32 %v6834, 4294901760
        %6836 = vmatmul.mubr.f32.gmra.mrb[0].mxu0 %v6835
        %v6837 = vpop.f32.mrb[0].mxu0
        %v6838 = vadd.f32 %v6729, %v6837
        %v6839 = vpop.f32.mrb[0].mxu0
        %6840 = vdwg.mxu0
        %6841 = vmatprep.subr.mxu0 0.0
        %v6842 = vand.u32 %v6336, 4294901760
        %v6843 = vsub.f32 %v6336, %v6842
        %v6844 = vand.u32 %v6843, 4294901760
        %6845 = vmatpush1.msra.mxu0 %v6844
        %6846 = vmatprep.subr.mxu0 0.0
        %v6847 = vand.u32 %v6337, 4294901760
        %v6848 = vsub.f32 %v6337, %v6847
        %v6849 = vand.u32 %v6848, 4294901760
        %6850 = vmatpush1.msra.mxu0 %v6849
        %6851 = vmatprep.subr.mxu0 0.0
        %v6852 = vand.u32 %v6338, 4294901760
        %v6853 = vsub.f32 %v6338, %v6852
        %v6854 = vand.u32 %v6853, 4294901760
        %6855 = vmatpush1.msra.mxu0 %v6854
        %6856 = vmatprep.subr.mxu0 0.0
        %v6857 = vand.u32 %v6339, 4294901760
        %v6858 = vsub.f32 %v6339, %v6857
        %v6859 = vand.u32 %v6858, 4294901760
        %6860 = vmatpush1.msra.mxu0 %v6859
        %6861 = vmatprep.subr.mxu0 0.0
        %6862 = vmatpush1.msra.mxu0 0.0
        %6863 = vmatprep.subr.mxu0 0.0
        %6864 = vmatpush1.msra.mxu0 0.0
        %6865 = vmatprep.subr.mxu0 0.0
        %6866 = vmatpush1.msra.mxu0 0.0
        %6867 = vmatprep.subr.mxu0 0.0
        %6868 = vmatpush1.msra.mxu0 0.0
        %6869 = vmatprep.subr.mxu0 0.0
        %6870 = vmatpush1.msra.mxu0 0.0
        %6871 = vmatprep.subr.mxu0 0.0
        %6872 = vmatpush1.msra.mxu0 0.0
        %6873 = vmatprep.subr.mxu0 0.0
        %6874 = vmatpush1.msra.mxu0 0.0
        %6875 = vmatprep.subr.mxu0 0.0
        %6876 = vmatpush1.msra.mxu0 0.0
        %6877 = vmatprep.subr.mxu0 0.0
        %6878 = vmatpush1.msra.mxu0 0.0
        %6879 = vmatprep.subr.mxu0 0.0
        %6880 = vmatpush1.msra.mxu0 0.0
        %6881 = vmatprep.subr.mxu0 0.0
        %6882 = vmatpush1.msra.mxu0 0.0
        %6883 = vmatprep.subr.mxu0 0.0
        %6884 = vmatpush1.msra.mxu0 0.0
        %6885 = vmatprep.subr.mxu0 0.0
        %6886 = vmatpush1.msra.mxu0 0.0
        %6887 = vmatprep.subr.mxu0 0.0
        %6888 = vmatpush1.msra.mxu0 0.0
        %6889 = vmatprep.subr.mxu0 0.0
        %6890 = vmatpush1.msra.mxu0 0.0
        %6891 = vmatprep.subr.mxu0 0.0
        %6892 = vmatpush1.msra.mxu0 0.0
        %6893 = vmatprep.subr.mxu0 0.0
        %6894 = vmatpush1.msra.mxu0 0.0
        %6895 = vmatprep.subr.mxu0 0.0
        %6896 = vmatpush1.msra.mxu0 0.0
        %6897 = vmatprep.subr.mxu0 0.0
        %6898 = vmatpush1.msra.mxu0 0.0
        %6899 = vmatprep.subr.mxu0 0.0
        %6900 = vmatpush1.msra.mxu0 0.0
        %6901 = vmatprep.subr.mxu0 0.0
        %6902 = vmatpush1.msra.mxu0 0.0
        %6903 = vmatprep.subr.mxu0 0.0
        %6904 = vmatpush1.msra.mxu0 0.0
        %6905 = vmatprep.subr.mxu0 0.0
        %6906 = vmatpush1.msra.mxu0 0.0
        %6907 = vmatprep.subr.mxu0 0.0
        %6908 = vmatpush1.msra.mxu0 0.0
        %6909 = vmatprep.subr.mxu0 0.0
        %6910 = vmatpush1.msra.mxu0 0.0
        %6911 = vmatprep.subr.mxu0 0.0
        %6912 = vmatpush1.msra.mxu0 0.0
        %6913 = vmatprep.subr.mxu0 0.0
        %6914 = vmatpush1.msra.mxu0 0.0
        %6915 = vmatprep.subr.mxu0 0.0
        %6916 = vmatpush1.msra.mxu0 0.0
        %6917 = vmatprep.mubr.f32.mxu0 0.0
        %v6918 = vand.u32 %v6376, 4294901760
        %6919 = vmatmul.mubr.f32.gmra.mrb[0].mxu0 %v6918
        %v6920 = vpop.f32.mrb[0].mxu0
        %v6921 = vadd.f32 %v6806, %v6920
        %v6922 = vpop.f32.mrb[0].mxu0
        %6923 = vmatprep.mubr.f32.mxu0 0.0
        %v6924 = vand.u32 %v6379, 4294901760
        %6925 = vmatmul.mubr.f32.gmra.mrb[0].mxu0 %v6924
        %v6926 = vpop.f32.mrb[0].mxu0
        %v6927 = vadd.f32 %v6814, %v6926
        %v6928 = vpop.f32.mrb[0].mxu0
        %6929 = vmatprep.mubr.f32.mxu0 0.0
        %v6930 = vand.u32 %v6382, 4294901760
        %6931 = vmatmul.mubr.f32.gmra.mrb[0].mxu0 %v6930
        %v6932 = vpop.f32.mrb[0].mxu0
        %v6933 = vadd.f32 %v6822, %v6932
        %v6934 = vpop.f32.mrb[0].mxu0
        %6935 = vmatprep.mubr.f32.mxu0 0.0
        %v6936 = vand.u32 %v6385, 4294901760
        %6937 = vmatmul.mubr.f32.gmra.mrb[0].mxu0 %v6936
        %v6938 = vpop.f32.mrb[0].mxu0
        %v6939 = vadd.f32 %v6830, %v6938
        %v6940 = vpop.f32.mrb[0].mxu0
        %6941 = vmatprep.mubr.f32.mxu0 0.0
        %v6942 = vand.u32 %v6388, 4294901760
        %6943 = vmatmul.mubr.f32.gmra.mrb[0].mxu0 %v6942
        %v6944 = vpop.f32.mrb[0].mxu0
        %v6945 = vadd.f32 %v6838, %v6944
        %v6946 = vpop.f32.mrb[0].mxu0
        %6947 = vdwg.mxu0
        %6948 = vmatprep.subr.mxu0 0.0
        %v6949 = vand.u32 %v6336, 4294901760
        %6950 = vmatpush1.msra.mxu0 %v6949
        %6951 = vmatprep.subr.mxu0 0.0
        %v6952 = vand.u32 %v6337, 4294901760
        %6953 = vmatpush1.msra.mxu0 %v6952
        %6954 = vmatprep.subr.mxu0 0.0
        %v6955 = vand.u32 %v6338, 4294901760
        %6956 = vmatpush1.msra.mxu0 %v6955
        %6957 = vmatprep.subr.mxu0 0.0
        %v6958 = vand.u32 %v6339, 4294901760
        %6959 = vmatpush1.msra.mxu0 %v6958
        %6960 = vmatprep.subr.mxu0 0.0
        %6961 = vmatpush1.msra.mxu0 0.0
        %6962 = vmatprep.subr.mxu0 0.0
        %6963 = vmatpush1.msra.mxu0 0.0
        %6964 = vmatprep.subr.mxu0 0.0
        %6965 = vmatpush1.msra.mxu0 0.0
        %6966 = vmatprep.subr.mxu0 0.0
        %6967 = vmatpush1.msra.mxu0 0.0
        %6968 = vmatprep.subr.mxu0 0.0
        %6969 = vmatpush1.msra.mxu0 0.0
        %6970 = vmatprep.subr.mxu0 0.0
        %6971 = vmatpush1.msra.mxu0 0.0
        %6972 = vmatprep.subr.mxu0 0.0
        %6973 = vmatpush1.msra.mxu0 0.0
        %6974 = vmatprep.subr.mxu0 0.0
        %6975 = vmatpush1.msra.mxu0 0.0
        %6976 = vmatprep.subr.mxu0 0.0
        %6977 = vmatpush1.msra.mxu0 0.0
        %6978 = vmatprep.subr.mxu0 0.0
        %6979 = vmatpush1.msra.mxu0 0.0
        %6980 = vmatprep.subr.mxu0 0.0
        %6981 = vmatpush1.msra.mxu0 0.0
        %6982 = vmatprep.subr.mxu0 0.0
        %6983 = vmatpush1.msra.mxu0 0.0
        %6984 = vmatprep.subr.mxu0 0.0
        %6985 = vmatpush1.msra.mxu0 0.0
        %6986 = vmatprep.subr.mxu0 0.0
        %6987 = vmatpush1.msra.mxu0 0.0
        %6988 = vmatprep.subr.mxu0 0.0
        %6989 = vmatpush1.msra.mxu0 0.0
        %6990 = vmatprep.subr.mxu0 0.0
        %6991 = vmatpush1.msra.mxu0 0.0
        %6992 = vmatprep.subr.mxu0 0.0
        %6993 = vmatpush1.msra.mxu0 0.0
        %6994 = vmatprep.subr.mxu0 0.0
        %6995 = vmatpush1.msra.mxu0 0.0
        %6996 = vmatprep.subr.mxu0 0.0
        %6997 = vmatpush1.msra.mxu0 0.0
        %6998 = vmatprep.subr.mxu0 0.0
        %6999 = vmatpush1.msra.mxu0 0.0
        %7000 = vmatprep.subr.mxu0 0.0
        %7001 = vmatpush1.msra.mxu0 0.0
        %7002 = vmatprep.subr.mxu0 0.0
        %7003 = vmatpush1.msra.mxu0 0.0
        %7004 = vmatprep.subr.mxu0 0.0
        %7005 = vmatpush1.msra.mxu0 0.0
        %7006 = vmatprep.subr.mxu0 0.0
        %7007 = vmatpush1.msra.mxu0 0.0
        %7008 = vmatprep.subr.mxu0 0.0
        %7009 = vmatpush1.msra.mxu0 0.0
        %7010 = vmatprep.subr.mxu0 0.0
        %7011 = vmatpush1.msra.mxu0 0.0
        %7012 = vmatprep.subr.mxu0 0.0
        %7013 = vmatpush1.msra.mxu0 0.0
        %7014 = vmatprep.subr.mxu0 0.0
        %7015 = vmatpush1.msra.mxu0 0.0
        %7016 = vmatprep.mubr.f32.mxu0 0.0
        %v7017 = vand.u32 %v6376, 4294901760
        %7018 = vmatmul.mubr.f32.gmra.mrb[0].mxu0 %v7017
        %v7019 = vpop.f32.mrb[0].mxu0
        %v7020 = vadd.f32 %v6921, %v7019
        %v7021 = vpop.f32.mrb[0].mxu0
        %7022 = vmatprep.mubr.f32.mxu0 0.0
        %v7023 = vand.u32 %v6379, 4294901760
        %7024 = vmatmul.mubr.f32.gmra.mrb[0].mxu0 %v7023
        %v7025 = vpop.f32.mrb[0].mxu0
        %v7026 = vadd.f32 %v6927, %v7025
        %v7027 = vpop.f32.mrb[0].mxu0
        %7028 = vmatprep.mubr.f32.mxu0 0.0
        %v7029 = vand.u32 %v6382, 4294901760
        %7030 = vmatmul.mubr.f32.gmra.mrb[0].mxu0 %v7029
        %v7031 = vpop.f32.mrb[0].mxu0
        %v7032 = vadd.f32 %v6933, %v7031
        %v7033 = vpop.f32.mrb[0].mxu0
        %7034 = vmatprep.mubr.f32.mxu0 0.0
        %v7035 = vand.u32 %v6385, 4294901760
        %7036 = vmatmul.mubr.f32.gmra.mrb[0].mxu0 %v7035
        %v7037 = vpop.f32.mrb[0].mxu0
        %v7038 = vadd.f32 %v6939, %v7037
        %v7039 = vpop.f32.mrb[0].mxu0
        %7040 = vmatprep.mubr.f32.mxu0 0.0
        %v7041 = vand.u32 %v6388, 4294901760
        %7042 = vmatmul.mubr.f32.gmra.mrb[0].mxu0 %v7041
        %v7043 = vpop.f32.mrb[0].mxu0
        %v7044 = vadd.f32 %v6945, %v7043
        %v7045 = vpop.f32.mrb[0].mxu0
        %7046 = vdwg.mxu0
        %7047 = vst [vmem:[%s242] sm:$0xff] %v7020
        %7048 = vst [vmem:[%s242 + $0x8] sm:$0xff] %v7026
        %7049 = vst [vmem:[%s242 + $0x10] sm:$0xff] %v7032
        %7050 = vst [vmem:[%s242 + $0x18] sm:$0xff] %v7038
        %7051 = vst [vmem:[%s242 + $0x20] sm:$0xff] %v7044
        %s7052 = sand.u32 %s159, 1
        %s7053 = scalar_lea.sflag [#allocation3], %s7052
        %s7054 = sand.u32 %s159, 1
        %s7055 = smul.addr %s7054, 40
        %s7056 = scalar_lea.vmem [#allocation2], %s7055
        // Predicated region
        $region45: #{tpu_custom_call.1} parent=43 // pred_check
          %p7057 = pneg %p169
        $region46: #{tpu_custom_call.1} parent=43 // pred_check_branch
          %7059 = sbr.rel (%p7057) target = $region48
        $region47: #{tpu_custom_call.1} parent=43 // pred_region
          %s7061 = ssub.s32 640, 640
          %7062 = vsyncadd %s7053, %s7061
          %s7063 = smul.addr %s20, 128
          %s7064 = scalar_lea.hbm %s6, %s7063
          %s7065 = sshll.u32 %s7056, 4
          %s7066 = int_to_ptr.vmem [resolvable:$true] %s7065
          %7071 = dma.vmem_to_hbm [thread:$0]  %s7066, 640, %s7064, %s7053, 128, 256, 8
        $region48: #{tpu_custom_call.1} parent=43 // pred_fallthru
          _
      $region44: #{tpu_custom_call.1} parent=5 // pred_fallthru
        _
      %p7072 = scmp.le.s32.totalorder 2, %s15
      // Predicated region
      $region49: #{tpu_custom_call.1} parent=5 // pred_check
        %p7073 = pneg %p7072
      $region50: #{tpu_custom_call.1} parent=5 // pred_check_branch
        %7075 = sbr.rel (%p7073) target = $region52
      $region51: #{tpu_custom_call.1} parent=5 // pred_region
        %s7076 = ssub.s32 %s15, 2
        // Predicated region
        $region53: #{tpu_custom_call.1} parent=51 // pred_check
          %p7077 = pneg %p175
        $region54: #{tpu_custom_call.1} parent=51 // pred_check_branch
          %7079 = sbr.rel (%p7077) target = $region56
        $region55: #{tpu_custom_call.1} parent=51 // pred_region
          %s7080 = sand.u32 %s160, 1
          %s7081 = scalar_lea.sflag [#allocation3], %s7080
          %s7082 = sand.u32 %s160, 1
          %s7083 = smul.addr %s7082, 40
          %s7084 = scalar_lea.vmem [#allocation2], %s7083
          %7085 = dma.done %s7081, 640
        $region56: #{tpu_custom_call.1} parent=51 // pred_fallthru
          _
      $region52: #{tpu_custom_call.1} parent=5 // pred_fallthru
        _
    $region6: #{tpu_custom_call.1} parent=1 // loop_footer
      %s19 = sadd.s32 1, %s15
    $region7: #{tpu_custom_call.1} parent=1 // loop_footer_branch
      %14 = sbr.rel target = $region3
    $region8: #{tpu_custom_call.1} parent=1 // loop_exit
      _
    %7086 = vsyncpa [#allocation3], 1
    %s7087 = scalar_lea.sflag [#allocation3], 1
    %7088 = vsyncpa %s7087, 1

</llo_original>
